<compile_context>
chip_gen: v5e
topology: v5e:2x2
jax: 0.10.0
libtpu: 0.0.40
codegen_flags: <defaults>
</compile_context>

<pallas_src>
import jax
import jax.numpy as jnp
import numpy as np
from jax.experimental import pallas as pl
from jax.experimental.pallas import tpu as pltpu


# ---- model geometry implied by fc1 = Linear(64*617, 128) ---------------------
INPUT_SIZE = 2463
L1 = INPUT_SIZE + 2 * 2 - 3 + 1        # 2465  conv1 output length
P1 = L1 // 2                           # 1232  after pool2
L2 = P1 + 2 * 2 - 3 + 1                # 1234  conv2 output length
P2 = L2 // 2                           # 617   after pool2
R = P1 // 2                            # 616   valid stage-1 rows per batch
C1, C2 = 32, 64
P2_PAD = 624                           # 617 rounded up to a multiple of 8
HALF = P2_PAD // 2                     # 312   lane-dense output rows
KFLAT = HALF * 128                     # 39936 padded fc1 contraction dim
assert R + 1 == P2 and P1 == 2 * R and KFLAT == P2_PAD * C2


def _pick_bt(batch, cap=4):
    """Largest divisor of `batch` that is <= cap (batch elements per grid step)."""
    bt = 1
    for d in range(1, min(batch, cap) + 1):
        if batch % d == 0:
            bt = d
    return bt


def _num_h_shards():
    # fc1-column split across the two v7x TensorCores; on single-TC v5e/v6e the
    # extra grid steps are pure overhead, so gate on the device kind.
    try:
        kind = jax.devices()[0].device_kind.lower()
    except Exception:
        kind = ""
    return 2 if "v7" in kind else 1


# ==============================================================================
# Fused conv1+pool -> conv2+pool kernel (bt batch elements per grid step).
# ==============================================================================
def _conv_stack_kernel(x16_ref, w1_ref, w2_ref, b2_ref, o_ref):
    # x16_ref : (bt, 624, 16)  lanes 0..9 = xpad2[4r..4r+9], 10/11 = validity of
    #                          the A/B pooled pair, 12/13 = their complements
    # w1_ref  : (16, 256)      polyphase conv1 weights; +bias rows on lanes 10/11,
    #                          -1e9 "mask" rows on lanes 12/13
    # w2_ref  : (128, 128)     polyphase conv2 weights (cols = [z even | z odd])
    # b2_ref  : (1, 64)
    # o_ref   : (bt, 312, 128) bf16, flat order n = l*128 + j
    f32 = jnp.float32
    bt = x16_ref.shape[0]
    n = bt * P2_PAD

    # ---- stage 1: conv1 + bias + relu + maxpool2 as ONE MXU pass + one max ----
    y1 = jnp.dot(x16_ref[...].reshape(n, 16), w1_ref[...],
                 preferred_element_type=f32)                        # (n, 256)
    # cols 0:128 hold even conv1 positions, 128:256 the odd ones of each pooled
    # pair; invalid pairs carry -1e9 so relu pins them to exactly 0.
    lhs2 = jnp.maximum(jnp.maximum(y1[:, 0:128], y1[:, 128:256]), 0.0)   # (n, 128)
    # lhs2[p] = [pool1[2p-2] | pool1[2p-1] | pool1[2p] | pool1[2p+1]] (32 ch each)

    # ---- stage 2: conv2 + relu + maxpool2 on the VMEM-resident intermediate ---
    y2 = jnp.dot(lhs2, w2_ref[...], preferred_element_type=f32)     # (n, 128)
    pooled = jnp.maximum(
        jnp.maximum(y2[:, 0:64], y2[:, 64:128]) + b2_ref[...], 0.0)  # (n, 64)

    # Lane-dense store: out[b, l, 0:64] = pooled[l], out[b, l, 64:128] = pooled[l+312].
    # Rows 617..623 per batch are harmless garbage (matching fc1 rows are zero).
    p3 = pooled.reshape(bt, P2_PAD, C2)
    out = jnp.concatenate([p3[:, :HALF, :], p3[:, HALF:, :]], axis=2)    # (bt,312,128)
    o_ref[...] = out.astype(o_ref.dtype)


def _build_x16(x):
    """x: (B, 2463) -> (B, 624, 16) polyphase slab with bias/mask indicator lanes."""
    B, L = x.shape
    nq = P2_PAD + 3                                        # 627 groups of 4
    xpad2 = jnp.pad(x, ((0, 0), (6, 4 * nq - L - 6)))      # (B, 2508), left pad 6
    q = xpad2.reshape(B, nq, 4)
    r = jnp.arange(P2_PAD)
    ind_a = ((r >= 1) & (r <= R)).astype(x.dtype)          # pooled pair [2r-2, 2r-1] valid
    ind_b = (r < R).astype(x.dtype)                        # pooled pair [2r,   2r+1] valid
    one = (B, P2_PAD, 1)
    return jnp.concatenate([
        q[:, 0:P2_PAD, :],                                 # lanes 0..3
        q[:, 1:P2_PAD + 1, :],                             # lanes 4..7
        q[:, 2:P2_PAD + 2, 0:2],                           # lanes 8..9
        jnp.broadcast_to(ind_a[None, :, None], one),       # lane 10 -> +b1 (A)
        jnp.broadcast_to(ind_b[None, :, None], one),       # lane 11 -> +b1 (B)
        jnp.broadcast_to((1.0 - ind_a)[None, :, None], one),   # lane 12 -> -1e9 (A)
        jnp.broadcast_to((1.0 - ind_b)[None, :, None], one),   # lane 13 -> -1e9 (B)
        jnp.zeros((B, P2_PAD, 2), x.dtype),                # lanes 14..15
    ], axis=-1)


def conv_stack(x, w1big, w2full, b2t):
    """x: (B, 2463) f32 -> (B, 312, 128) bf16 (flat order n = l*128 + j)."""
    B, L = x.shape
    assert L == INPUT_SIZE
    x16 = _build_x16(x)
    bt = _pick_bt(B)
    # TODO(synk): the 16-lane x16 input is still lane-sparse in VMEM (16->128 lane
    # padding); small absolute cost, left as-is per priority ordering.
    return pl.pallas_call(
        _conv_stack_kernel,
        out_shape=jax.ShapeDtypeStruct((B, HALF, 2 * C2), jnp.bfloat16),
        grid_spec=pltpu.PrefetchScalarGridSpec(
            num_scalar_prefetch=0,
            grid=(B // bt,),
            in_specs=[
                pl.BlockSpec((bt, P2_PAD, 16), lambda b: (b, 0, 0)),
                pl.BlockSpec((16, 256), lambda b: (0, 0)),
                pl.BlockSpec((2 * C2, 2 * C2), lambda b: (0, 0)),
                pl.BlockSpec((1, C2), lambda b: (0, 0)),
            ],
            out_specs=pl.BlockSpec((bt, HALF, 2 * C2), lambda b: (b, 0, 0)),
        ),
        compiler_params=pltpu.CompilerParams(dimension_semantics=("parallel",)),
    )(x16, w1big, w2full, b2t)


# ==============================================================================
# Fused MLP head: relu((flat @ W1q) * s + b1) @ W2  (+ b2 added outside),
# K-tiled with a VMEM accumulator; W1 streamed as int8 (f32 accumulation).
# ==============================================================================
def _mlp_kernel(x_ref, w1_ref, s_ref, b1_ref, w2_ref, o_ref, acc_ref):
    k = pl.program_id(1)

    @pl.when(k == 0)
    def _():
        acc_ref[...] = jnp.zeros_like(acc_ref)

    # int8 -> bf16 "dequant" cast is exact (|q| <= 127); per-output-column scales
    # are applied once in the epilogue, so the VPU only pays for the cast, which
    # hides under the DMA of this HBM-bound kernel.  bf16 x bf16 MXU, f32 accum.
    w = w1_ref[0].astype(jnp.float32).astype(jnp.bfloat16)          # (tk, Hs)
    acc_ref[...] += jnp.dot(x_ref[...], w, preferred_element_type=jnp.float32)

    @pl.when(k == pl.num_programs(1) - 1)
    def _():
        h = jnp.maximum(acc_ref[...] * s_ref[0] + b1_ref[0], 0.0)   # relu(fc1)
        o_ref[0] = jnp.dot(h, w2_ref[0], preferred_element_type=jnp.float32)


def mlp(flat, w1q, scales, b1, w2s, b2, *, nk=4):
    """flat: (B, Kp) bf16; w1q: (nh, Kp, Hs) int8; scales/b1: (nh, 1, Hs) f32;
    w2s: (nh, Hs, NC) f32; b2: (1, NC) f32."""
    B, Kp = flat.shape
    nh, kq, Hs = w1q.shape
    NC = w2s.shape[2]
    assert kq == Kp and Kp % (nk * 128) == 0
    tk = Kp // nk                       # int8 tile ~1.25 MB -> double-buffer fits v5e
    Htot = nh * Hs
    partial = pl.pallas_call(
        _mlp_kernel,
        out_shape=jax.ShapeDtypeStruct((nh, B, NC), jnp.float32),
        grid_spec=pltpu.PrefetchScalarGridSpec(
            num_scalar_prefetch=0,
            grid=(nh, nk),
            in_specs=[
                pl.BlockSpec((B, tk), lambda c, k: (0, k)),           # activations
                pl.BlockSpec((1, tk, Hs), lambda c, k: (c, k, 0)),    # int8 W1 shard
                pl.BlockSpec((1, 1, Hs), lambda c, k: (c, 0, 0)),     # quant scales
                pl.BlockSpec((1, 1, Hs), lambda c, k: (c, 0, 0)),     # fc1 bias
                pl.BlockSpec((1, Hs, NC), lambda c, k: (c, 0, 0)),    # fc2 rows
            ],
            out_specs=pl.BlockSpec((1, B, NC), lambda c, k: (c, 0, 0)),
            scratch_shapes=[pltpu.VMEM((B, Hs), jnp.float32)],
        ),
        compiler_params=pltpu.CompilerParams(
            dimension_semantics=("parallel", "arbitrary"),
            vmem_limit_bytes=32 * 1024 * 1024),
        cost_estimate=pl.CostEstimate(
            flops=2 * B * Kp * Htot + 2 * B * Htot * NC,
            transcendentals=0,
            bytes_accessed=Kp * Htot + 2 * B * Kp
            + 4 * (Htot * NC + nh * B * NC + 2 * Htot)),
    )(flat, w1q, scales, b1, w2s)
    return partial.sum(axis=0) + b2     # nh partial fc2 results + bias


# ==============================================================================
# One-time parameter preparation.
# ==============================================================================
def _make_w1big(wc1, bc1):
    """(16, 256) polyphase conv1 weight with bias/mask rows folded in."""
    f32 = jnp.float32
    t = [wc1[:, 0, k].astype(f32) for k in range(3)]     # per-tap (32,) vectors
    z = jnp.zeros((C1,), f32)
    bias = bc1.astype(f32)
    neg = jnp.full((C1,), -1e9, f32)

    def offset_block(j):                 # coefficients of y[4r + j - 4] (32 cols)
        rows = []
        for tt in range(10):             # data taps: lane tt = xpad2[4r + tt]
            kk = tt - j
            rows.append(t[kk] if 0 <= kk <= 2 else z)
        a_half = j < 4                   # offsets 0..3 feed pooled pair [2r-2, 2r-1]
        rows.append(bias if a_half else z)   # lane 10: +b1 where A pair valid
        rows.append(z if a_half else bias)   # lane 11: +b1 where B pair valid
        rows.append(neg if a_half else z)    # lane 12: -1e9 where A pair invalid
        rows.append(z if a_half else neg)    # lane 13: -1e9 where B pair invalid
        rows.append(z)                       # lane 14
        rows.append(z)                       # lane 15
        return jnp.stack(rows, axis=0)       # (16, 32)

    first = jnp.concatenate([offset_block(0), offset_block(2),
                             offset_block(4), offset_block(6)], axis=1)   # even offsets
    second = jnp.concatenate([offset_block(1), offset_block(3),
                              offset_block(5), offset_block(7)], axis=1)  # odd offsets
    return jnp.concatenate([first, second], axis=1)       # (16, 256)


def prepare_params(params, nh=1):
    wc1, bc1, wc2, bc2, wf1, bf1, wf2, bf2 = params
    f32 = jnp.float32
    H = wf1.shape[1]
    NC = wf2.shape[1]
    assert H % nh == 0

    w1big = _make_w1big(wc1, bc1)                                        # (16, 256)

    # conv2 taps as (Cin, Cout); row blocks of w2full multiply the four 32-ch
    # groups [pool1[2p-2] | pool1[2p-1] | pool1[2p] | pool1[2p+1]] of lhs2,
    # cols 0:64 produce conv2[2p], cols 64:128 produce conv2[2p+1].
    v = [jnp.transpose(wc2[:, :, k], (1, 0)).astype(f32) for k in range(3)]
    zc = jnp.zeros((C1, C2), f32)
    w2full = jnp.concatenate([
        jnp.concatenate([v[0], zc], axis=1),
        jnp.concatenate([v[1], v[0]], axis=1),
        jnp.concatenate([v[2], v[1]], axis=1),
        jnp.concatenate([zc, v[2]], axis=1),
    ], axis=0)                                                           # (128, 128)
    b2t = bc2.astype(f32).reshape(1, C2)

    # fc1: permute rows from PyTorch's (c*617 + l) flatten order to the kernel's
    # (l*128 + j) order (j<64 -> (c=j, pos=l), j>=64 -> (c=j-64, pos=l+312)),
    # zero-pad positions 617..623, then weight-only int8 quantize with
    # per-output-column scales (applied in the kernel epilogue, f32 accum).
    w_lc = wf1.astype(f32).reshape(C2, P2, H).transpose(1, 0, 2)         # (617, 64, H)
    w_lc = jnp.pad(w_lc, ((0, P2_PAD - P2), (0, 0), (0, 0)))             # (624, 64, H)
    w1p = jnp.concatenate([w_lc[:HALF], w_lc[HALF:]], axis=1).reshape(KFLAT, H)
    col_amax = jnp.max(jnp.abs(w1p), axis=0, keepdims=True)              # (1, H)
    scales = jnp.maximum(col_amax, 1e-30) / 127.0
    w1q = jnp.clip(jnp.round(w1p / scales), -127.0, 127.0).astype(jnp.int8)

    # Split fc1 columns / fc2 rows into nh shards (nh=2 only on v7x megacore).
    Hs = H // nh
    w1q = w1q.reshape(KFLAT, nh, Hs).transpose(1, 0, 2)                  # (nh, KFLAT, Hs)
    scales = scales.reshape(nh, 1, Hs)
    b1 = bf1.astype(f32).reshape(nh, 1, Hs)
    w2 = wf2.astype(f32).reshape(nh, Hs, NC)
    b2 = bf2.astype(f32).reshape(1, NC)
    return (w1big, w2full, b2t, w1q, scales, b1, w2, b2)


# ==============================================================================
# Full forward pass (mirrors Simple1DCNN.forward, eval mode).
# ==============================================================================
@jax.jit
def simple1dcnn_forward(x, prepped):
    (w1big, w2full, b2t, w1q, scales, b1, w2, b2) = prepped
    h = conv_stack(x, w1big, w2full, b2t)          # (B, 312, 128) bf16, lane-dense
    flat = h.reshape(h.shape[0], KFLAT)            # (B, 39936): flat index l*128 + j
    # TODO(synk): nn.Dropout(p=0.05) is identity in eval mode; stochastic
    # training-mode dropout is not reproduced here.
    return mlp(flat, w1q, scales, b1, w2, b2)      # (B, NC)


# ==============================================================================
# Pure-JAX (XLA) reference for correctness checking.
# ==============================================================================
def reference_forward(x, params):
    wc1, bc1, wc2, bc2, wf1, bf1, wf2, bf2 = params
    hp = jax.lax.Precision.HIGHEST

    def conv1d(h, w, b):
        y = jax.lax.conv_general_dilated(
            h, w, window_strides=(1,), padding=((2, 2),),
            dimension_numbers=("NCH", "OIH", "NCH"), precision=hp)
        return y + b[None, :, None]

    def maxpool2(h):
        return jax.lax.reduce_window(h, -jnp.inf, jax.lax.max,
                                     (1, 1, 2), (1, 1, 2), "VALID")

    h = x[:, None, :]
    h = maxpool2(jax.nn.relu(conv1d(h, wc1, bc1)))
    h = maxpool2(jax.nn.relu(conv1d(h, wc2, bc2)))
    flat = h.reshape(h.shape[0], -1)
    h = jax.nn.relu(jnp.dot(flat, wf1, precision=hp) + bf1)
    return jnp.dot(h, wf2, precision=hp) + bf2


if __name__ == "__main__":
    NUM_CLASSES = 10
    BATCH = 2

    key = jax.random.PRNGKey(0)
    ks = jax.random.split(key, 9)
    params = (
        jax.random.normal(ks[0], (32, 1, 3), jnp.float32) * 0.20,         # conv1.weight (Cout,Cin,K)
        jax.random.normal(ks[1], (32,), jnp.float32) * 0.10,              # conv1.bias
        jax.random.normal(ks[2], (64, 32, 3), jnp.float32) * 0.05,        # conv2.weight
        jax.random.normal(ks[3], (64,), jnp.float32) * 0.10,              # conv2.bias
        jax.random.normal(ks[4], (64 * 617, 128), jnp.float32) * 0.01,    # fc1.weight (stored transposed)
        jax.random.normal(ks[5], (128,), jnp.float32) * 0.10,             # fc1.bias
        jax.random.normal(ks[6], (128, NUM_CLASSES), jnp.float32) * 0.20, # fc2.weight (stored transposed)
        jax.random.normal(ks[7], (NUM_CLASSES,), jnp.float32) * 0.10,     # fc2.bias
    )
    x = jax.random.normal(ks[8], (BATCH, INPUT_SIZE), jnp.float32)

    prepped = prepare_params(params, nh=_num_h_shards())

    out = jax.block_until_ready(simple1dcnn_forward(x, prepped))
    assert out.shape == (BATCH, NUM_CLASSES), out.shape

    ref = jax.block_until_ready(reference_forward(x, params))
    # Tolerance covers int8 weight-only fc1 quantization (per-column scales,
    # f32 accumulation) plus bf16 activation streaming.
    np.testing.assert_allclose(np.asarray(out), np.asarray(ref),
                               rtol=3e-2, atol=3e-2)

    print("KERNEL_OK")
</pallas_src>

<mosaic_0001>
module attributes {stable_mosaic.version = 11 : i64} {
  func.func @_conv_stack_kernel(%arg0: i32, %arg1: memref<2x624x16xf32, #tpu.memory_space<vmem>>, %arg2: memref<16x256xf32, #tpu.memory_space<vmem>>, %arg3: memref<128x128xf32, #tpu.memory_space<vmem>>, %arg4: memref<1x64xf32, #tpu.memory_space<vmem>>, %arg5: memref<2x312x128xbf16, #tpu.memory_space<vmem>>) attributes {dimension_semantics = [#tpu.dimension_semantics<parallel>], iteration_bounds = array<i64: 1>, scalar_prefetch = 0 : i64, scratch_operands = 0 : i64, tpu.core_type = #tpu.core_type<tc>, window_params = [{transform_indices = @transform_0, window_bounds = array<i64: 2, 624, 16>}, {pipeline_mode = #tpu.pipeline_mode<synchronous>, transform_indices = @transform_1, window_bounds = array<i64: 16, 256>}, {pipeline_mode = #tpu.pipeline_mode<synchronous>, transform_indices = @transform_2, window_bounds = array<i64: 128, 128>}, {pipeline_mode = #tpu.pipeline_mode<synchronous>, transform_indices = @transform_3, window_bounds = array<i64: 1, 64>}, {transform_indices = @transform_4, window_bounds = array<i64: 2, 312, 128>}]} {
    %c0 = arith.constant 0 : index
    %c0_0 = arith.constant 0 : index
    %c0_1 = arith.constant 0 : index
    %0 = vector.load %arg1[%c0, %c0_0, %c0_1] : memref<2x624x16xf32, #tpu.memory_space<vmem>>, vector<2x624x16xf32>
    %1 = vector.shape_cast %0 : vector<2x624x16xf32> to vector<1248x16xf32>
    %c0_2 = arith.constant 0 : index
    %c0_3 = arith.constant 0 : index
    %2 = vector.load %arg2[%c0_2, %c0_3] : memref<16x256xf32, #tpu.memory_space<vmem>>, vector<16x256xf32>
    %cst = arith.constant dense<0.000000e+00> : vector<1248x256xf32>
    %3 = tpu.matmul %1, %2, %cst {dimension_numbers = #tpu.dot_dimension_numbers<[1], [0], [0], [1], [0, 0, 1, 1], [], []>} : vector<1248x16xf32>, vector<16x256xf32>, vector<1248x256xf32> -> vector<1248x256xf32>
    %4 = vector.extract_strided_slice %3 {offsets = [0, 0], sizes = [1248, 128], strides = [1, 1]} : vector<1248x256xf32> to vector<1248x128xf32>
    %5 = vector.extract_strided_slice %3 {offsets = [0, 128], sizes = [1248, 128], strides = [1, 1]} : vector<1248x256xf32> to vector<1248x128xf32>
    %6 = arith.maximumf %4, %5 : vector<1248x128xf32>
    %cst_4 = arith.constant 0.000000e+00 : f32
    %7 = vector.broadcast %cst_4 : f32 to vector<1248x128xf32>
    %8 = arith.maximumf %6, %7 : vector<1248x128xf32>
    %c0_5 = arith.constant 0 : index
    %c0_6 = arith.constant 0 : index
    %9 = vector.load %arg3[%c0_5, %c0_6] : memref<128x128xf32, #tpu.memory_space<vmem>>, vector<128x128xf32>
    %cst_7 = arith.constant dense<0.000000e+00> : vector<1248x128xf32>
    %10 = tpu.matmul %8, %9, %cst_7 {dimension_numbers = #tpu.dot_dimension_numbers<[1], [0], [0], [1], [0, 0, 1, 1], [], []>} : vector<1248x128xf32>, vector<128x128xf32>, vector<1248x128xf32> -> vector<1248x128xf32>
    %11 = vector.extract_strided_slice %10 {offsets = [0, 0], sizes = [1248, 64], strides = [1, 1]} : vector<1248x128xf32> to vector<1248x64xf32>
    %12 = vector.extract_strided_slice %10 {offsets = [0, 64], sizes = [1248, 64], strides = [1, 1]} : vector<1248x128xf32> to vector<1248x64xf32>
    %13 = arith.maximumf %11, %12 : vector<1248x64xf32>
    %c0_8 = arith.constant 0 : index
    %c0_9 = arith.constant 0 : index
    %14 = vector.load %arg4[%c0_8, %c0_9] : memref<1x64xf32, #tpu.memory_space<vmem>>, vector<1x64xf32>
    %15 = vector.broadcast %14 : vector<1x64xf32> to vector<1248x64xf32>
    %16 = arith.addf %13, %15 : vector<1248x64xf32>
    %cst_10 = arith.constant 0.000000e+00 : f32
    %17 = vector.broadcast %cst_10 : f32 to vector<1248x64xf32>
    %18 = arith.maximumf %16, %17 : vector<1248x64xf32>
    %19 = vector.shape_cast %18 : vector<1248x64xf32> to vector<2x624x64xf32>
    %20 = vector.extract_strided_slice %19 {offsets = [0, 0, 0], sizes = [2, 312, 64], strides = [1, 1, 1]} : vector<2x624x64xf32> to vector<2x312x64xf32>
    %21 = vector.extract_strided_slice %19 {offsets = [0, 312, 0], sizes = [2, 312, 64], strides = [1, 1, 1]} : vector<2x624x64xf32> to vector<2x312x64xf32>
    %22 = tpu.concatenate %20, %21 in 2 : vector<2x312x64xf32>, vector<2x312x64xf32> -> vector<2x312x128xf32>
    %23 = arith.truncf %22 : vector<2x312x128xf32> to vector<2x312x128xbf16>
    %c0_11 = arith.constant 0 : index
    %c0_12 = arith.constant 0 : index
    %c0_13 = arith.constant 0 : index
    %24 = vector.load %arg5[%c0_11, %c0_12, %c0_13] : memref<2x312x128xbf16, #tpu.memory_space<vmem>>, vector<2x312x128xbf16>
    tpu.vector_store %arg5[%c0_11, %c0_12, %c0_13], %23 {strides = array<i32>} : memref<2x312x128xbf16, #tpu.memory_space<vmem>>, vector<2x312x128xbf16>,
    return
  }
  func.func @transform_0(%arg0: i32) -> (i32, i32, i32) {
    %c0_i32 = arith.constant 0 : i32
    %c0_i32_0 = arith.constant 0 : i32
    %c0_i32_1 = arith.constant 0 : i32
    return %arg0, %c0_i32, %c0_i32_0 : i32, i32, i32
  }
  func.func @transform_1(%arg0: i32) -> (i32, i32) {
    %c0_i32 = arith.constant 0 : i32
    %c0_i32_0 = arith.constant 0 : i32
    %c0_i32_1 = arith.constant 0 : i32
    return %c0_i32, %c0_i32_0 : i32, i32
  }
  func.func @transform_2(%arg0: i32) -> (i32, i32) {
    %c0_i32 = arith.constant 0 : i32
    %c0_i32_0 = arith.constant 0 : i32
    %c0_i32_1 = arith.constant 0 : i32
    return %c0_i32, %c0_i32_0 : i32, i32
  }
  func.func @transform_3(%arg0: i32) -> (i32, i32) {
    %c0_i32 = arith.constant 0 : i32
    %c0_i32_0 = arith.constant 0 : i32
    %c0_i32_1 = arith.constant 0 : i32
    return %c0_i32, %c0_i32_0 : i32, i32
  }
  func.func @transform_4(%arg0: i32) -> (i32, i32, i32) {
    %c0_i32 = arith.constant 0 : i32
    %c0_i32_0 = arith.constant 0 : i32
    %c0_i32_1 = arith.constant 0 : i32
    return %arg0, %c0_i32, %c0_i32_0 : i32, i32, i32
  }
}

module attributes {stable_mosaic.version = 11 : i64} {
  func.func @_mlp_kernel(%arg0: i32, %arg1: i32, %arg2: memref<2x9984xbf16, #tpu.memory_space<vmem>>, %arg3: memref<1x9984x128xi8, #tpu.memory_space<vmem>>, %arg4: memref<1x1x128xf32, #tpu.memory_space<vmem>>, %arg5: memref<1x1x128xf32, #tpu.memory_space<vmem>>, %arg6: memref<1x128x10xf32, #tpu.memory_space<vmem>>, %arg7: memref<1x2x10xf32, #tpu.memory_space<vmem>>, %arg8: memref<2x128xf32, #tpu.memory_space<vmem>>) attributes {dimension_semantics = [#tpu.dimension_semantics<parallel>, #tpu.dimension_semantics<arbitrary>], iteration_bounds = array<i64: 1, 4>, scalar_prefetch = 0 : i64, scratch_operands = 1 : i64, tpu.core_type = #tpu.core_type<tc>, window_params = [{transform_indices = @transform_0, window_bounds = array<i64: 2, 9984>}, {transform_indices = @transform_1, window_bounds = array<i64: 1, 9984, 128>}, {transform_indices = @transform_2, window_bounds = array<i64: 1, 1, 128>}, {transform_indices = @transform_3, window_bounds = array<i64: 1, 1, 128>}, {transform_indices = @transform_4, window_bounds = array<i64: 1, 128, 10>}, {transform_indices = @transform_5, window_bounds = array<i64: 1, 2, 10>}]} {
    %c0_i32 = arith.constant 0 : i32
    %0 = arith.cmpi eq, %arg1, %c0_i32 : i32
    %1 = arith.extui %0 : i1 to i32
    %c0_i32_0 = arith.constant 0 : i32
    %2 = arith.cmpi ne, %1, %c0_i32_0 : i32
    scf.if %2 {
      %cst_10 = arith.constant 0.000000e+00 : f32
      %15 = vector.broadcast %cst_10 : f32 to vector<2x128xf32>
      %c0_11 = arith.constant 0 : index
      %c0_12 = arith.constant 0 : index
      %16 = vector.load %arg8[%c0_11, %c0_12] : memref<2x128xf32, #tpu.memory_space<vmem>>, vector<2x128xf32>
      tpu.vector_store %arg8[%c0_11, %c0_12], %15 {strides = array<i32>} : memref<2x128xf32, #tpu.memory_space<vmem>>, vector<2x128xf32>,
    } else {
    }
    %c0 = arith.constant 0 : index
    %c0_1 = arith.constant 0 : index
    %c0_2 = arith.constant 0 : index
    %3 = vector.load %arg3[%c0, %c0_1, %c0_2] : memref<1x9984x128xi8, #tpu.memory_space<vmem>>, vector<1x9984x128xi8>
    %4 = vector.shape_cast %3 : vector<1x9984x128xi8> to vector<9984x128xi8>
    %5 = arith.sitofp %4 : vector<9984x128xi8> to vector<9984x128xf32>
    %6 = arith.truncf %5 : vector<9984x128xf32> to vector<9984x128xbf16>
    %c0_3 = arith.constant 0 : index
    %c0_4 = arith.constant 0 : index
    %7 = vector.load %arg8[%c0_3, %c0_4] : memref<2x128xf32, #tpu.memory_space<vmem>>, vector<2x128xf32>
    %c0_5 = arith.constant 0 : index
    %c0_6 = arith.constant 0 : index
    %8 = vector.load %arg2[%c0_5, %c0_6] : memref<2x9984xbf16, #tpu.memory_space<vmem>>, vector<2x9984xbf16>
    %cst = arith.constant dense<0.000000e+00> : vector<2x128xf32>
    %9 = tpu.matmul %8, %6, %cst {dimension_numbers = #tpu.dot_dimension_numbers<[1], [0], [0], [1], [0, 0, 1, 1], [], []>} : vector<2x9984xbf16>, vector<9984x128xbf16>, vector<2x128xf32> -> vector<2x128xf32>
    %10 = arith.addf %7, %9 : vector<2x128xf32>
    %c0_7 = arith.constant 0 : index
    %c0_8 = arith.constant 0 : index
    %11 = vector.load %arg8[%c0_7, %c0_8] : memref<2x128xf32, #tpu.memory_space<vmem>>, vector<2x128xf32>
    tpu.vector_store %arg8[%c0_7, %c0_8], %10 {strides = array<i32>} : memref<2x128xf32, #tpu.memory_space<vmem>>, vector<2x128xf32>,
    %c3_i32 = arith.constant 3 : i32
    %12 = arith.cmpi eq, %arg1, %c3_i32 : i32
    %13 = arith.extui %12 : i1 to i32
    %c0_i32_9 = arith.constant 0 : i32
    %14 = arith.cmpi ne, %13, %c0_i32_9 : i32
    scf.if %14 {
      %c0_10 = arith.constant 0 : index
      %c0_11 = arith.constant 0 : index
      %15 = vector.load %arg8[%c0_10, %c0_11] : memref<2x128xf32, #tpu.memory_space<vmem>>, vector<2x128xf32>
      %c0_12 = arith.constant 0 : index
      %c0_13 = arith.constant 0 : index
      %c0_14 = arith.constant 0 : index
      %16 = vector.load %arg4[%c0_12, %c0_13, %c0_14] : memref<1x1x128xf32, #tpu.memory_space<vmem>>, vector<1x1x128xf32>
      %17 = vector.shape_cast %16 : vector<1x1x128xf32> to vector<1x128xf32>
      %18 = vector.broadcast %17 : vector<1x128xf32> to vector<2x128xf32>
      %19 = arith.mulf %15, %18 : vector<2x128xf32>
      %c0_15 = arith.constant 0 : index
      %c0_16 = arith.constant 0 : index
      %c0_17 = arith.constant 0 : index
      %20 = vector.load %arg5[%c0_15, %c0_16, %c0_17] : memref<1x1x128xf32, #tpu.memory_space<vmem>>, vector<1x1x128xf32>
      %21 = vector.shape_cast %20 : vector<1x1x128xf32> to vector<1x128xf32>
      %22 = vector.broadcast %21 : vector<1x128xf32> to vector<2x128xf32>
      %23 = arith.addf %19, %22 : vector<2x128xf32>
      %cst_18 = arith.constant 0.000000e+00 : f32
      %24 = vector.broadcast %cst_18 : f32 to vector<2x128xf32>
      %25 = arith.maximumf %23, %24 : vector<2x128xf32>
      %c0_19 = arith.constant 0 : index
      %c0_20 = arith.constant 0 : index
      %c0_21 = arith.constant 0 : index
      %26 = vector.load %arg6[%c0_19, %c0_20, %c0_21] : memref<1x128x10xf32, #tpu.memory_space<vmem>>, vector<1x128x10xf32>
      %27 = vector.shape_cast %26 : vector<1x128x10xf32> to vector<128x10xf32>
      %cst_22 = arith.constant dense<0.000000e+00> : vector<2x10xf32>
      %28 = tpu.matmul %25, %27, %cst_22 {dimension_numbers = #tpu.dot_dimension_numbers<[1], [0], [0], [1], [0, 0, 1, 1], [], []>} : vector<2x128xf32>, vector<128x10xf32>, vector<2x10xf32> -> vector<2x10xf32>
      %c0_23 = arith.constant 0 : index
      %c0_24 = arith.constant 0 : index
      %c0_25 = arith.constant 0 : index
      %29 = vector.load %arg7[%c0_23, %c0_24, %c0_25] : memref<1x2x10xf32, #tpu.memory_space<vmem>>, vector<1x2x10xf32>
      %30 = vector.shape_cast %29 : vector<1x2x10xf32> to vector<2x10xf32>
      %31 = vector.shape_cast %28 : vector<2x10xf32> to vector<1x2x10xf32>
      tpu.vector_store %arg7[%c0_23, %c0_24, %c0_25], %31 {strides = array<i32>} : memref<1x2x10xf32, #tpu.memory_space<vmem>>, vector<1x2x10xf32>,
    } else {
    }
    return
  }
  func.func @transform_0(%arg0: i32, %arg1: i32) -> (i32, i32) {
    %c0_i32 = arith.constant 0 : i32
    %c0_i32_0 = arith.constant 0 : i32
    return %c0_i32, %arg1 : i32, i32
  }
  func.func @transform_1(%arg0: i32, %arg1: i32) -> (i32, i32, i32) {
    %c0_i32 = arith.constant 0 : i32
    %c0_i32_0 = arith.constant 0 : i32
    return %arg0, %arg1, %c0_i32 : i32, i32, i32
  }
  func.func @transform_2(%arg0: i32, %arg1: i32) -> (i32, i32, i32) {
    %c0_i32 = arith.constant 0 : i32
    %c0_i32_0 = arith.constant 0 : i32
    %c0_i32_1 = arith.constant 0 : i32
    return %arg0, %c0_i32, %c0_i32_0 : i32, i32, i32
  }
  func.func @transform_3(%arg0: i32, %arg1: i32) -> (i32, i32, i32) {
    %c0_i32 = arith.constant 0 : i32
    %c0_i32_0 = arith.constant 0 : i32
    %c0_i32_1 = arith.constant 0 : i32
    return %arg0, %c0_i32, %c0_i32_0 : i32, i32, i32
  }
  func.func @transform_4(%arg0: i32, %arg1: i32) -> (i32, i32, i32) {
    %c0_i32 = arith.constant 0 : i32
    %c0_i32_0 = arith.constant 0 : i32
    %c0_i32_1 = arith.constant 0 : i32
    return %arg0, %c0_i32, %c0_i32_0 : i32, i32, i32
  }
  func.func @transform_5(%arg0: i32, %arg1: i32) -> (i32, i32, i32) {
    %c0_i32 = arith.constant 0 : i32
    %c0_i32_0 = arith.constant 0 : i32
    %c0_i32_1 = arith.constant 0 : i32
    return %arg0, %c0_i32, %c0_i32_0 : i32, i32, i32
  }
}

</mosaic_0001>

<llo_original>
// kernel: simple1dcnn_forward.2
$region0: #{simple1dcnn_forward.2}
  #allocation0 [shape = 'u32[]', space=smem, size = 0x4, offset = 0x4, fixed_abs, tag = 'smem constant byte address 0x4 - core index']
  #allocation1 [shape = 'u32[72,128]{1,0:T(1,128)}', space=vmem, size = 0x9000, scoped, tag = 'internal scratch']
  %s0 = inlined_call_operand.vmem [shape: f32[2,624,16], index: 0, kind: input, shape index: {}]
  %s1 = inlined_call_operand.vmem [shape: f32[16,256], index: 1, kind: input, shape index: {}]
  %s2 = inlined_call_operand.vmem [shape: f32[128,128], index: 2, kind: input, shape index: {}]
  %s3 = inlined_call_operand.vmem [shape: f32[1,64], index: 3, kind: input, shape index: {}]
  %s4 = inlined_call_operand.vmem [shape: bf16[2,312,128], index: 4, kind: output, shape index: {}]
  %s5 = sld [smem:[#allocation0]]
  $region26: #{simple1dcnn_forward.2} parent=0
    _
  %s7 = ssub.s32 1, %s5
  %s8 = scalar_select 0, %s7, %s5
  // Predicated region
  $region2: #{simple1dcnn_forward.2} parent=0 // pred_check
    _
  $region3: #{simple1dcnn_forward.2} parent=0 // pred_check_branch
    %10 = sbr.rel (0) target = $region5
  $region4: #{simple1dcnn_forward.2} parent=0 // pred_region
    _
  $region5: #{simple1dcnn_forward.2} parent=0 // pred_fallthru
    _
  // Predicated region
  $region6: #{simple1dcnn_forward.2} parent=0 // pred_check
    _
  $region7: #{simple1dcnn_forward.2} parent=0 // pred_check_branch
    %12 = sbr.rel (0) target = $region9
  $region8: #{simple1dcnn_forward.2} parent=0 // pred_region
    _
  $region9: #{simple1dcnn_forward.2} parent=0 // pred_fallthru
    _
  // Predicated region
  $region10: #{simple1dcnn_forward.2} parent=0 // pred_check
    _
  $region11: #{simple1dcnn_forward.2} parent=0 // pred_check_branch
    %14 = sbr.rel (0) target = $region13
  $region12: #{simple1dcnn_forward.2} parent=0 // pred_region
    _
  $region13: #{simple1dcnn_forward.2} parent=0 // pred_fallthru
    _
  // Predicated region
  $region14: #{simple1dcnn_forward.2} parent=0 // pred_check
    _
  $region15: #{simple1dcnn_forward.2} parent=0 // pred_check_branch
    %16 = sbr.rel (0) target = $region17
  $region16: #{simple1dcnn_forward.2} parent=0 // pred_region
    _
  $region17: #{simple1dcnn_forward.2} parent=0 // pred_fallthru
    _
  %v17 = vld [vmem:[%s0] sm:$0xff]
  %v18 = vld [vmem:[%s0 + $0x8] sm:$0xff]
  %v19 = vld [vmem:[%s0 + $0x10] sm:$0xff]
  %v20 = vld [vmem:[%s0 + $0x18] sm:$0xff]
  %v21 = vld [vmem:[%s0 + $0x20] sm:$0xff]
  %v22 = vld [vmem:[%s0 + $0x28] sm:$0xff]
  %v23 = vld [vmem:[%s0 + $0x30] sm:$0xff]
  %v24 = vld [vmem:[%s0 + $0x38] sm:$0xff]
  %v25 = vld [vmem:[%s0 + $0x40] sm:$0xff]
  %v26 = vld [vmem:[%s0 + $0x48] sm:$0xff]
  %v27 = vld [vmem:[%s0 + $0x50] sm:$0xff]
  %v28 = vld [vmem:[%s0 + $0x58] sm:$0xff]
  %v29 = vld [vmem:[%s0 + $0x60] sm:$0xff]
  %v30 = vld [vmem:[%s0 + $0x68] sm:$0xff]
  %v31 = vld [vmem:[%s0 + $0x70] sm:$0xff]
  %v32 = vld [vmem:[%s0 + $0x78] sm:$0xff]
  %v33 = vld [vmem:[%s0 + $0x80] sm:$0xff]
  %v34 = vld [vmem:[%s0 + $0x88] sm:$0xff]
  %v35 = vld [vmem:[%s0 + $0x90] sm:$0xff]
  %v36 = vld [vmem:[%s0 + $0x98] sm:$0xff]
  %v37 = vld [vmem:[%s0 + $0xa0] sm:$0xff]
  %v38 = vld [vmem:[%s0 + $0xa8] sm:$0xff]
  %v39 = vld [vmem:[%s0 + $0xb0] sm:$0xff]
  %v40 = vld [vmem:[%s0 + $0xb8] sm:$0xff]
  %v41 = vld [vmem:[%s0 + $0xc0] sm:$0xff]
  %v42 = vld [vmem:[%s0 + $0xc8] sm:$0xff]
  %v43 = vld [vmem:[%s0 + $0xd0] sm:$0xff]
  %v44 = vld [vmem:[%s0 + $0xd8] sm:$0xff]
  %v45 = vld [vmem:[%s0 + $0xe0] sm:$0xff]
  %v46 = vld [vmem:[%s0 + $0xe8] sm:$0xff]
  %v47 = vld [vmem:[%s0 + $0xf0] sm:$0xff]
  %v48 = vld [vmem:[%s0 + $0xf8] sm:$0xff]
  %v49 = vld [vmem:[%s0 + $0x100] sm:$0xff]
  %v50 = vld [vmem:[%s0 + $0x108] sm:$0xff]
  %v51 = vld [vmem:[%s0 + $0x110] sm:$0xff]
  %v52 = vld [vmem:[%s0 + $0x118] sm:$0xff]
  %v53 = vld [vmem:[%s0 + $0x120] sm:$0xff]
  %v54 = vld [vmem:[%s0 + $0x128] sm:$0xff]
  %v55 = vld [vmem:[%s0 + $0x130] sm:$0xff]
  %v56 = vld [vmem:[%s0 + $0x138] sm:$0xff]
  %v57 = vld [vmem:[%s0 + $0x140] sm:$0xff]
  %v58 = vld [vmem:[%s0 + $0x148] sm:$0xff]
  %v59 = vld [vmem:[%s0 + $0x150] sm:$0xff]
  %v60 = vld [vmem:[%s0 + $0x158] sm:$0xff]
  %v61 = vld [vmem:[%s0 + $0x160] sm:$0xff]
  %v62 = vld [vmem:[%s0 + $0x168] sm:$0xff]
  %v63 = vld [vmem:[%s0 + $0x170] sm:$0xff]
  %v64 = vld [vmem:[%s0 + $0x178] sm:$0xff]
  %v65 = vld [vmem:[%s0 + $0x180] sm:$0xff]
  %v66 = vld [vmem:[%s0 + $0x188] sm:$0xff]
  %v67 = vld [vmem:[%s0 + $0x190] sm:$0xff]
  %v68 = vld [vmem:[%s0 + $0x198] sm:$0xff]
  %v69 = vld [vmem:[%s0 + $0x1a0] sm:$0xff]
  %v70 = vld [vmem:[%s0 + $0x1a8] sm:$0xff]
  %v71 = vld [vmem:[%s0 + $0x1b0] sm:$0xff]
  %v72 = vld [vmem:[%s0 + $0x1b8] sm:$0xff]
  %v73 = vld [vmem:[%s0 + $0x1c0] sm:$0xff]
  %v74 = vld [vmem:[%s0 + $0x1c8] sm:$0xff]
  %v75 = vld [vmem:[%s0 + $0x1d0] sm:$0xff]
  %v76 = vld [vmem:[%s0 + $0x1d8] sm:$0xff]
  %v77 = vld [vmem:[%s0 + $0x1e0] sm:$0xff]
  %v78 = vld [vmem:[%s0 + $0x1e8] sm:$0xff]
  %v79 = vld [vmem:[%s0 + $0x1f0] sm:$0xff]
  %v80 = vld [vmem:[%s0 + $0x1f8] sm:$0xff]
  %v81 = vld [vmem:[%s0 + $0x200] sm:$0xff]
  %v82 = vld [vmem:[%s0 + $0x208] sm:$0xff]
  %v83 = vld [vmem:[%s0 + $0x210] sm:$0xff]
  %v84 = vld [vmem:[%s0 + $0x218] sm:$0xff]
  %v85 = vld [vmem:[%s0 + $0x220] sm:$0xff]
  %v86 = vld [vmem:[%s0 + $0x228] sm:$0xff]
  %v87 = vld [vmem:[%s0 + $0x230] sm:$0xff]
  %v88 = vld [vmem:[%s0 + $0x238] sm:$0xff]
  %v89 = vld [vmem:[%s0 + $0x240] sm:$0xff]
  %v90 = vld [vmem:[%s0 + $0x248] sm:$0xff]
  %v91 = vld [vmem:[%s0 + $0x250] sm:$0xff]
  %v92 = vld [vmem:[%s0 + $0x258] sm:$0xff]
  %v93 = vld [vmem:[%s0 + $0x260] sm:$0xff]
  %v94 = vld [vmem:[%s0 + $0x268] sm:$0xff]
  %v95 = vld [vmem:[%s0 + $0x270] sm:$0xff]
  %v96 = vld [vmem:[%s0 + $0x278] sm:$0xff]
  %v97 = vld [vmem:[%s0 + $0x280] sm:$0xff]
  %v98 = vld [vmem:[%s0 + $0x288] sm:$0xff]
  %v99 = vld [vmem:[%s0 + $0x290] sm:$0xff]
  %v100 = vld [vmem:[%s0 + $0x298] sm:$0xff]
  %v101 = vld [vmem:[%s0 + $0x2a0] sm:$0xff]
  %v102 = vld [vmem:[%s0 + $0x2a8] sm:$0xff]
  %v103 = vld [vmem:[%s0 + $0x2b0] sm:$0xff]
  %v104 = vld [vmem:[%s0 + $0x2b8] sm:$0xff]
  %v105 = vld [vmem:[%s0 + $0x2c0] sm:$0xff]
  %v106 = vld [vmem:[%s0 + $0x2c8] sm:$0xff]
  %v107 = vld [vmem:[%s0 + $0x2d0] sm:$0xff]
  %v108 = vld [vmem:[%s0 + $0x2d8] sm:$0xff]
  %v109 = vld [vmem:[%s0 + $0x2e0] sm:$0xff]
  %v110 = vld [vmem:[%s0 + $0x2e8] sm:$0xff]
  %v111 = vld [vmem:[%s0 + $0x2f0] sm:$0xff]
  %v112 = vld [vmem:[%s0 + $0x2f8] sm:$0xff]
  %v113 = vld [vmem:[%s0 + $0x300] sm:$0xff]
  %v114 = vld [vmem:[%s0 + $0x308] sm:$0xff]
  %v115 = vld [vmem:[%s0 + $0x310] sm:$0xff]
  %v116 = vld [vmem:[%s0 + $0x318] sm:$0xff]
  %v117 = vld [vmem:[%s0 + $0x320] sm:$0xff]
  %v118 = vld [vmem:[%s0 + $0x328] sm:$0xff]
  %v119 = vld [vmem:[%s0 + $0x330] sm:$0xff]
  %v120 = vld [vmem:[%s0 + $0x338] sm:$0xff]
  %v121 = vld [vmem:[%s0 + $0x340] sm:$0xff]
  %v122 = vld [vmem:[%s0 + $0x348] sm:$0xff]
  %v123 = vld [vmem:[%s0 + $0x350] sm:$0xff]
  %v124 = vld [vmem:[%s0 + $0x358] sm:$0xff]
  %v125 = vld [vmem:[%s0 + $0x360] sm:$0xff]
  %v126 = vld [vmem:[%s0 + $0x368] sm:$0xff]
  %v127 = vld [vmem:[%s0 + $0x370] sm:$0xff]
  %v128 = vld [vmem:[%s0 + $0x378] sm:$0xff]
  %v129 = vld [vmem:[%s0 + $0x380] sm:$0xff]
  %v130 = vld [vmem:[%s0 + $0x388] sm:$0xff]
  %v131 = vld [vmem:[%s0 + $0x390] sm:$0xff]
  %v132 = vld [vmem:[%s0 + $0x398] sm:$0xff]
  %v133 = vld [vmem:[%s0 + $0x3a0] sm:$0xff]
  %v134 = vld [vmem:[%s0 + $0x3a8] sm:$0xff]
  %v135 = vld [vmem:[%s0 + $0x3b0] sm:$0xff]
  %v136 = vld [vmem:[%s0 + $0x3b8] sm:$0xff]
  %v137 = vld [vmem:[%s0 + $0x3c0] sm:$0xff]
  %v138 = vld [vmem:[%s0 + $0x3c8] sm:$0xff]
  %v139 = vld [vmem:[%s0 + $0x3d0] sm:$0xff]
  %v140 = vld [vmem:[%s0 + $0x3d8] sm:$0xff]
  %v141 = vld [vmem:[%s0 + $0x3e0] sm:$0xff]
  %v142 = vld [vmem:[%s0 + $0x3e8] sm:$0xff]
  %v143 = vld [vmem:[%s0 + $0x3f0] sm:$0xff]
  %v144 = vld [vmem:[%s0 + $0x3f8] sm:$0xff]
  %v145 = vld [vmem:[%s0 + $0x400] sm:$0xff]
  %v146 = vld [vmem:[%s0 + $0x408] sm:$0xff]
  %v147 = vld [vmem:[%s0 + $0x410] sm:$0xff]
  %v148 = vld [vmem:[%s0 + $0x418] sm:$0xff]
  %v149 = vld [vmem:[%s0 + $0x420] sm:$0xff]
  %v150 = vld [vmem:[%s0 + $0x428] sm:$0xff]
  %v151 = vld [vmem:[%s0 + $0x430] sm:$0xff]
  %v152 = vld [vmem:[%s0 + $0x438] sm:$0xff]
  %v153 = vld [vmem:[%s0 + $0x440] sm:$0xff]
  %v154 = vld [vmem:[%s0 + $0x448] sm:$0xff]
  %v155 = vld [vmem:[%s0 + $0x450] sm:$0xff]
  %v156 = vld [vmem:[%s0 + $0x458] sm:$0xff]
  %v157 = vld [vmem:[%s0 + $0x460] sm:$0xff]
  %v158 = vld [vmem:[%s0 + $0x468] sm:$0xff]
  %v159 = vld [vmem:[%s0 + $0x470] sm:$0xff]
  %v160 = vld [vmem:[%s0 + $0x478] sm:$0xff]
  %v161 = vld [vmem:[%s0 + $0x480] sm:$0xff]
  %v162 = vld [vmem:[%s0 + $0x488] sm:$0xff]
  %v163 = vld [vmem:[%s0 + $0x490] sm:$0xff]
  %v164 = vld [vmem:[%s0 + $0x498] sm:$0xff]
  %v165 = vld [vmem:[%s0 + $0x4a0] sm:$0xff]
  %v166 = vld [vmem:[%s0 + $0x4a8] sm:$0xff]
  %v167 = vld [vmem:[%s0 + $0x4b0] sm:$0xff]
  %v168 = vld [vmem:[%s0 + $0x4b8] sm:$0xff]
  %v169 = vld [vmem:[%s0 + $0x4c0] sm:$0xff]
  %v170 = vld [vmem:[%s0 + $0x4c8] sm:$0xff]
  %v171 = vld [vmem:[%s0 + $0x4d0] sm:$0xff]
  %v172 = vld [vmem:[%s0 + $0x4d8] sm:$0xff]
  %v173 = vld [vmem:[%s1] sm:$0xff]
  %v174 = vld [vmem:[%s1 + $0x8] sm:$0xff]
  %v175 = vld [vmem:[%s1 + $0x10] sm:$0xff]
  %v176 = vld [vmem:[%s1 + $0x18] sm:$0xff]
  %vm177 = vcmask 130048
  %v179 = vsel %vm177, %v17, 0
  %v182 = vsel %vm177, %v18, 0
  %v185 = vsel %vm177, %v19, 0
  %v188 = vsel %vm177, %v20, 0
  %v191 = vsel %vm177, %v21, 0
  %v194 = vsel %vm177, %v22, 0
  %v197 = vsel %vm177, %v23, 0
  %v200 = vsel %vm177, %v24, 0
  %v203 = vsel %vm177, %v25, 0
  %v206 = vsel %vm177, %v26, 0
  %v209 = vsel %vm177, %v27, 0
  %v212 = vsel %vm177, %v28, 0
  %v215 = vsel %vm177, %v29, 0
  %v218 = vsel %vm177, %v30, 0
  %v221 = vsel %vm177, %v31, 0
  %v224 = vsel %vm177, %v32, 0
  %v227 = vsel %vm177, %v33, 0
  %v230 = vsel %vm177, %v34, 0
  %v233 = vsel %vm177, %v35, 0
  %v236 = vsel %vm177, %v36, 0
  %v239 = vsel %vm177, %v37, 0
  %v242 = vsel %vm177, %v38, 0
  %v245 = vsel %vm177, %v39, 0
  %v248 = vsel %vm177, %v40, 0
  %v251 = vsel %vm177, %v41, 0
  %v254 = vsel %vm177, %v42, 0
  %v257 = vsel %vm177, %v43, 0
  %v260 = vsel %vm177, %v44, 0
  %v263 = vsel %vm177, %v45, 0
  %v266 = vsel %vm177, %v46, 0
  %v269 = vsel %vm177, %v47, 0
  %v272 = vsel %vm177, %v48, 0
  %v275 = vsel %vm177, %v49, 0
  %v278 = vsel %vm177, %v50, 0
  %v281 = vsel %vm177, %v51, 0
  %v284 = vsel %vm177, %v52, 0
  %v287 = vsel %vm177, %v53, 0
  %v290 = vsel %vm177, %v54, 0
  %v293 = vsel %vm177, %v55, 0
  %v296 = vsel %vm177, %v56, 0
  %v299 = vsel %vm177, %v57, 0
  %v302 = vsel %vm177, %v58, 0
  %v305 = vsel %vm177, %v59, 0
  %v308 = vsel %vm177, %v60, 0
  %v311 = vsel %vm177, %v61, 0
  %v314 = vsel %vm177, %v62, 0
  %v317 = vsel %vm177, %v63, 0
  %v320 = vsel %vm177, %v64, 0
  %v323 = vsel %vm177, %v65, 0
  %v326 = vsel %vm177, %v66, 0
  %v329 = vsel %vm177, %v67, 0
  %v332 = vsel %vm177, %v68, 0
  %v335 = vsel %vm177, %v69, 0
  %v338 = vsel %vm177, %v70, 0
  %v341 = vsel %vm177, %v71, 0
  %v344 = vsel %vm177, %v72, 0
  %v347 = vsel %vm177, %v73, 0
  %v350 = vsel %vm177, %v74, 0
  %v353 = vsel %vm177, %v75, 0
  %v356 = vsel %vm177, %v76, 0
  %v359 = vsel %vm177, %v77, 0
  %v362 = vsel %vm177, %v78, 0
  %v365 = vsel %vm177, %v79, 0
  %v368 = vsel %vm177, %v80, 0
  %v371 = vsel %vm177, %v81, 0
  %v374 = vsel %vm177, %v82, 0
  %v377 = vsel %vm177, %v83, 0
  %v380 = vsel %vm177, %v84, 0
  %v383 = vsel %vm177, %v85, 0
  %v386 = vsel %vm177, %v86, 0
  %v389 = vsel %vm177, %v87, 0
  %v392 = vsel %vm177, %v88, 0
  %v395 = vsel %vm177, %v89, 0
  %v398 = vsel %vm177, %v90, 0
  %v401 = vsel %vm177, %v91, 0
  %v404 = vsel %vm177, %v92, 0
  %v407 = vsel %vm177, %v93, 0
  %v410 = vsel %vm177, %v94, 0
  %v413 = vsel %vm177, %v95, 0
  %v416 = vsel %vm177, %v96, 0
  %v419 = vsel %vm177, %v97, 0
  %v422 = vsel %vm177, %v98, 0
  %v425 = vsel %vm177, %v99, 0
  %v428 = vsel %vm177, %v100, 0
  %v431 = vsel %vm177, %v101, 0
  %v434 = vsel %vm177, %v102, 0
  %v437 = vsel %vm177, %v103, 0
  %v440 = vsel %vm177, %v104, 0
  %v443 = vsel %vm177, %v105, 0
  %v446 = vsel %vm177, %v106, 0
  %v449 = vsel %vm177, %v107, 0
  %v452 = vsel %vm177, %v108, 0
  %v455 = vsel %vm177, %v109, 0
  %v458 = vsel %vm177, %v110, 0
  %v461 = vsel %vm177, %v111, 0
  %v464 = vsel %vm177, %v112, 0
  %v467 = vsel %vm177, %v113, 0
  %v470 = vsel %vm177, %v114, 0
  %v473 = vsel %vm177, %v115, 0
  %v476 = vsel %vm177, %v116, 0
  %v479 = vsel %vm177, %v117, 0
  %v482 = vsel %vm177, %v118, 0
  %v485 = vsel %vm177, %v119, 0
  %v488 = vsel %vm177, %v120, 0
  %v491 = vsel %vm177, %v121, 0
  %v494 = vsel %vm177, %v122, 0
  %v497 = vsel %vm177, %v123, 0
  %v500 = vsel %vm177, %v124, 0
  %v503 = vsel %vm177, %v125, 0
  %v506 = vsel %vm177, %v126, 0
  %v509 = vsel %vm177, %v127, 0
  %v512 = vsel %vm177, %v128, 0
  %v515 = vsel %vm177, %v129, 0
  %v518 = vsel %vm177, %v130, 0
  %v521 = vsel %vm177, %v131, 0
  %v524 = vsel %vm177, %v132, 0
  %v527 = vsel %vm177, %v133, 0
  %v530 = vsel %vm177, %v134, 0
  %v533 = vsel %vm177, %v135, 0
  %v536 = vsel %vm177, %v136, 0
  %v539 = vsel %vm177, %v137, 0
  %v542 = vsel %vm177, %v138, 0
  %v545 = vsel %vm177, %v139, 0
  %v548 = vsel %vm177, %v140, 0
  %v551 = vsel %vm177, %v141, 0
  %v554 = vsel %vm177, %v142, 0
  %v557 = vsel %vm177, %v143, 0
  %v560 = vsel %vm177, %v144, 0
  %v563 = vsel %vm177, %v145, 0
  %v566 = vsel %vm177, %v146, 0
  %v569 = vsel %vm177, %v147, 0
  %v572 = vsel %vm177, %v148, 0
  %v575 = vsel %vm177, %v149, 0
  %v578 = vsel %vm177, %v150, 0
  %v581 = vsel %vm177, %v151, 0
  %v584 = vsel %vm177, %v152, 0
  %v587 = vsel %vm177, %v153, 0
  %v590 = vsel %vm177, %v154, 0
  %v593 = vsel %vm177, %v155, 0
  %v596 = vsel %vm177, %v156, 0
  %v599 = vsel %vm177, %v157, 0
  %v602 = vsel %vm177, %v158, 0
  %v605 = vsel %vm177, %v159, 0
  %v608 = vsel %vm177, %v160, 0
  %v611 = vsel %vm177, %v161, 0
  %v614 = vsel %vm177, %v162, 0
  %v617 = vsel %vm177, %v163, 0
  %v620 = vsel %vm177, %v164, 0
  %v623 = vsel %vm177, %v165, 0
  %v626 = vsel %vm177, %v166, 0
  %v629 = vsel %vm177, %v167, 0
  %v632 = vsel %vm177, %v168, 0
  %v635 = vsel %vm177, %v169, 0
  %v638 = vsel %vm177, %v170, 0
  %v641 = vsel %vm177, %v171, 0
  %v644 = vsel %vm177, %v172, 0
  %646 = vmatpush.msra.mxu0 0.0
  %647 = vmatpush.msra.mxu0 0.0
  %648 = vmatpush.msra.mxu0 0.0
  %649 = vmatpush.msra.mxu0 0.0
  %650 = vmatpush.msra.mxu0 0.0
  %651 = vmatpush.msra.mxu0 0.0
  %652 = vmatpush.msra.mxu0 0.0
  %653 = vmatpush.msra.mxu0 0.0
  %654 = vmatpush.msra.mxu0 0.0
  %655 = vmatpush.msra.mxu0 0.0
  %656 = vmatpush.msra.mxu0 0.0
  %657 = vmatpush.msra.mxu0 0.0
  %658 = vmatpush.msra.mxu0 0.0
  %659 = vmatpush.msra.mxu0 0.0
  %660 = vmatpush.msra.mxu0 %v175
  %661 = vmatpush.msra.mxu0 %v173
  %662 = vmatmul.f32.gmra.mxu0 %v179
  %v663 = vpop.f32.mrf.mxu0
  %v664 = vadd.f32 0.0, %v663
  %665 = vmatmul.f32.gmra.mxu0 %v182
  %v666 = vpop.f32.mrf.mxu0
  %v667 = vadd.f32 0.0, %v666
  %668 = vmatmul.f32.gmra.mxu0 %v185
  %v669 = vpop.f32.mrf.mxu0
  %v670 = vadd.f32 0.0, %v669
  %671 = vmatmul.f32.gmra.mxu0 %v188
  %v672 = vpop.f32.mrf.mxu0
  %v673 = vadd.f32 0.0, %v672
  %674 = vmatmul.f32.gmra.mxu0 %v191
  %v675 = vpop.f32.mrf.mxu0
  %v676 = vadd.f32 0.0, %v675
  %677 = vmatmul.f32.gmra.mxu0 %v194
  %v678 = vpop.f32.mrf.mxu0
  %v679 = vadd.f32 0.0, %v678
  %680 = vmatmul.f32.gmra.mxu0 %v197
  %v681 = vpop.f32.mrf.mxu0
  %v682 = vadd.f32 0.0, %v681
  %683 = vmatmul.f32.gmra.mxu0 %v200
  %v684 = vpop.f32.mrf.mxu0
  %v685 = vadd.f32 0.0, %v684
  %686 = vmatmul.f32.gmra.mxu0 %v203
  %v687 = vpop.f32.mrf.mxu0
  %v688 = vadd.f32 0.0, %v687
  %689 = vmatmul.f32.gmra.mxu0 %v206
  %v690 = vpop.f32.mrf.mxu0
  %v691 = vadd.f32 0.0, %v690
  %692 = vmatmul.f32.gmra.mxu0 %v209
  %v693 = vpop.f32.mrf.mxu0
  %v694 = vadd.f32 0.0, %v693
  %695 = vmatmul.f32.gmra.mxu0 %v212
  %v696 = vpop.f32.mrf.mxu0
  %v697 = vadd.f32 0.0, %v696
  %698 = vmatmul.f32.gmra.mxu0 %v215
  %v699 = vpop.f32.mrf.mxu0
  %v700 = vadd.f32 0.0, %v699
  %701 = vmatmul.f32.gmra.mxu0 %v218
  %v702 = vpop.f32.mrf.mxu0
  %v703 = vadd.f32 0.0, %v702
  %704 = vmatmul.f32.gmra.mxu0 %v221
  %v705 = vpop.f32.mrf.mxu0
  %v706 = vadd.f32 0.0, %v705
  %707 = vmatmul.f32.gmra.mxu0 %v224
  %v708 = vpop.f32.mrf.mxu0
  %v709 = vadd.f32 0.0, %v708
  %710 = vmatmul.f32.gmra.mxu0 %v227
  %v711 = vpop.f32.mrf.mxu0
  %v712 = vadd.f32 0.0, %v711
  %713 = vmatmul.f32.gmra.mxu0 %v230
  %v714 = vpop.f32.mrf.mxu0
  %v715 = vadd.f32 0.0, %v714
  %716 = vmatmul.f32.gmra.mxu0 %v233
  %v717 = vpop.f32.mrf.mxu0
  %v718 = vadd.f32 0.0, %v717
  %719 = vmatmul.f32.gmra.mxu0 %v236
  %v720 = vpop.f32.mrf.mxu0
  %v721 = vadd.f32 0.0, %v720
  %722 = vmatmul.f32.gmra.mxu0 %v239
  %v723 = vpop.f32.mrf.mxu0
  %v724 = vadd.f32 0.0, %v723
  %725 = vmatmul.f32.gmra.mxu0 %v242
  %v726 = vpop.f32.mrf.mxu0
  %v727 = vadd.f32 0.0, %v726
  %728 = vmatmul.f32.gmra.mxu0 %v245
  %v729 = vpop.f32.mrf.mxu0
  %v730 = vadd.f32 0.0, %v729
  %731 = vmatmul.f32.gmra.mxu0 %v248
  %v732 = vpop.f32.mrf.mxu0
  %v733 = vadd.f32 0.0, %v732
  %734 = vmatmul.f32.gmra.mxu0 %v251
  %v735 = vpop.f32.mrf.mxu0
  %v736 = vadd.f32 0.0, %v735
  %737 = vmatmul.f32.gmra.mxu0 %v254
  %v738 = vpop.f32.mrf.mxu0
  %v739 = vadd.f32 0.0, %v738
  %740 = vmatmul.f32.gmra.mxu0 %v257
  %v741 = vpop.f32.mrf.mxu0
  %v742 = vadd.f32 0.0, %v741
  %743 = vmatmul.f32.gmra.mxu0 %v260
  %v744 = vpop.f32.mrf.mxu0
  %v745 = vadd.f32 0.0, %v744
  %746 = vmatmul.f32.gmra.mxu0 %v263
  %v747 = vpop.f32.mrf.mxu0
  %v748 = vadd.f32 0.0, %v747
  %749 = vmatmul.f32.gmra.mxu0 %v266
  %v750 = vpop.f32.mrf.mxu0
  %v751 = vadd.f32 0.0, %v750
  %752 = vmatmul.f32.gmra.mxu0 %v269
  %v753 = vpop.f32.mrf.mxu0
  %v754 = vadd.f32 0.0, %v753
  %755 = vmatmul.f32.gmra.mxu0 %v272
  %v756 = vpop.f32.mrf.mxu0
  %v757 = vadd.f32 0.0, %v756
  %758 = vmatmul.f32.gmra.mxu0 %v275
  %v759 = vpop.f32.mrf.mxu0
  %v760 = vadd.f32 0.0, %v759
  %761 = vmatmul.f32.gmra.mxu0 %v278
  %v762 = vpop.f32.mrf.mxu0
  %v763 = vadd.f32 0.0, %v762
  %764 = vmatmul.f32.gmra.mxu0 %v281
  %v765 = vpop.f32.mrf.mxu0
  %v766 = vadd.f32 0.0, %v765
  %767 = vmatmul.f32.gmra.mxu0 %v284
  %v768 = vpop.f32.mrf.mxu0
  %v769 = vadd.f32 0.0, %v768
  %770 = vmatmul.f32.gmra.mxu0 %v287
  %v771 = vpop.f32.mrf.mxu0
  %v772 = vadd.f32 0.0, %v771
  %773 = vmatmul.f32.gmra.mxu0 %v290
  %v774 = vpop.f32.mrf.mxu0
  %v775 = vadd.f32 0.0, %v774
  %776 = vmatmul.f32.gmra.mxu0 %v293
  %v777 = vpop.f32.mrf.mxu0
  %v778 = vadd.f32 0.0, %v777
  %779 = vmatmul.f32.gmra.mxu0 %v296
  %v780 = vpop.f32.mrf.mxu0
  %v781 = vadd.f32 0.0, %v780
  %782 = vmatmul.f32.gmra.mxu0 %v299
  %v783 = vpop.f32.mrf.mxu0
  %v784 = vadd.f32 0.0, %v783
  %785 = vmatmul.f32.gmra.mxu0 %v302
  %v786 = vpop.f32.mrf.mxu0
  %v787 = vadd.f32 0.0, %v786
  %788 = vmatmul.f32.gmra.mxu0 %v305
  %v789 = vpop.f32.mrf.mxu0
  %v790 = vadd.f32 0.0, %v789
  %791 = vmatmul.f32.gmra.mxu0 %v308
  %v792 = vpop.f32.mrf.mxu0
  %v793 = vadd.f32 0.0, %v792
  %794 = vmatmul.f32.gmra.mxu0 %v311
  %v795 = vpop.f32.mrf.mxu0
  %v796 = vadd.f32 0.0, %v795
  %797 = vmatmul.f32.gmra.mxu0 %v314
  %v798 = vpop.f32.mrf.mxu0
  %v799 = vadd.f32 0.0, %v798
  %800 = vmatmul.f32.gmra.mxu0 %v317
  %v801 = vpop.f32.mrf.mxu0
  %v802 = vadd.f32 0.0, %v801
  %803 = vmatmul.f32.gmra.mxu0 %v320
  %v804 = vpop.f32.mrf.mxu0
  %v805 = vadd.f32 0.0, %v804
  %806 = vmatmul.f32.gmra.mxu0 %v323
  %v807 = vpop.f32.mrf.mxu0
  %v808 = vadd.f32 0.0, %v807
  %809 = vmatmul.f32.gmra.mxu0 %v326
  %v810 = vpop.f32.mrf.mxu0
  %v811 = vadd.f32 0.0, %v810
  %812 = vmatmul.f32.gmra.mxu0 %v329
  %v813 = vpop.f32.mrf.mxu0
  %v814 = vadd.f32 0.0, %v813
  %815 = vmatmul.f32.gmra.mxu0 %v332
  %v816 = vpop.f32.mrf.mxu0
  %v817 = vadd.f32 0.0, %v816
  %818 = vmatmul.f32.gmra.mxu0 %v335
  %v819 = vpop.f32.mrf.mxu0
  %v820 = vadd.f32 0.0, %v819
  %821 = vmatmul.f32.gmra.mxu0 %v338
  %v822 = vpop.f32.mrf.mxu0
  %v823 = vadd.f32 0.0, %v822
  %824 = vmatmul.f32.gmra.mxu0 %v341
  %v825 = vpop.f32.mrf.mxu0
  %v826 = vadd.f32 0.0, %v825
  %827 = vmatmul.f32.gmra.mxu0 %v344
  %v828 = vpop.f32.mrf.mxu0
  %v829 = vadd.f32 0.0, %v828
  %830 = vmatmul.f32.gmra.mxu0 %v347
  %v831 = vpop.f32.mrf.mxu0
  %v832 = vadd.f32 0.0, %v831
  %833 = vmatmul.f32.gmra.mxu0 %v350
  %v834 = vpop.f32.mrf.mxu0
  %v835 = vadd.f32 0.0, %v834
  %836 = vmatmul.f32.gmra.mxu0 %v353
  %v837 = vpop.f32.mrf.mxu0
  %v838 = vadd.f32 0.0, %v837
  %839 = vmatmul.f32.gmra.mxu0 %v356
  %v840 = vpop.f32.mrf.mxu0
  %v841 = vadd.f32 0.0, %v840
  %842 = vmatmul.f32.gmra.mxu0 %v359
  %v843 = vpop.f32.mrf.mxu0
  %v844 = vadd.f32 0.0, %v843
  %845 = vmatmul.f32.gmra.mxu0 %v362
  %v846 = vpop.f32.mrf.mxu0
  %v847 = vadd.f32 0.0, %v846
  %848 = vmatmul.f32.gmra.mxu0 %v365
  %v849 = vpop.f32.mrf.mxu0
  %v850 = vadd.f32 0.0, %v849
  %851 = vmatmul.f32.gmra.mxu0 %v368
  %v852 = vpop.f32.mrf.mxu0
  %v853 = vadd.f32 0.0, %v852
  %854 = vmatmul.f32.gmra.mxu0 %v371
  %v855 = vpop.f32.mrf.mxu0
  %v856 = vadd.f32 0.0, %v855
  %857 = vmatmul.f32.gmra.mxu0 %v374
  %v858 = vpop.f32.mrf.mxu0
  %v859 = vadd.f32 0.0, %v858
  %860 = vmatmul.f32.gmra.mxu0 %v377
  %v861 = vpop.f32.mrf.mxu0
  %v862 = vadd.f32 0.0, %v861
  %863 = vmatmul.f32.gmra.mxu0 %v380
  %v864 = vpop.f32.mrf.mxu0
  %v865 = vadd.f32 0.0, %v864
  %866 = vmatmul.f32.gmra.mxu0 %v383
  %v867 = vpop.f32.mrf.mxu0
  %v868 = vadd.f32 0.0, %v867
  %869 = vmatmul.f32.gmra.mxu0 %v386
  %v870 = vpop.f32.mrf.mxu0
  %v871 = vadd.f32 0.0, %v870
  %872 = vmatmul.f32.gmra.mxu0 %v389
  %v873 = vpop.f32.mrf.mxu0
  %v874 = vadd.f32 0.0, %v873
  %875 = vmatmul.f32.gmra.mxu0 %v392
  %v876 = vpop.f32.mrf.mxu0
  %v877 = vadd.f32 0.0, %v876
  %878 = vmatmul.f32.gmra.mxu0 %v395
  %v879 = vpop.f32.mrf.mxu0
  %v880 = vadd.f32 0.0, %v879
  %881 = vmatmul.f32.gmra.mxu0 %v398
  %v882 = vpop.f32.mrf.mxu0
  %v883 = vadd.f32 0.0, %v882
  %884 = vmatmul.f32.gmra.mxu0 %v401
  %v885 = vpop.f32.mrf.mxu0
  %v886 = vadd.f32 0.0, %v885
  %887 = vmatmul.f32.gmra.mxu0 %v404
  %v888 = vpop.f32.mrf.mxu0
  %v889 = vadd.f32 0.0, %v888
  %890 = vmatmul.f32.gmra.mxu0 %v407
  %v891 = vpop.f32.mrf.mxu0
  %v892 = vadd.f32 0.0, %v891
  %893 = vmatmul.f32.gmra.mxu0 %v410
  %v894 = vpop.f32.mrf.mxu0
  %v895 = vadd.f32 0.0, %v894
  %896 = vmatmul.f32.gmra.mxu0 %v413
  %v897 = vpop.f32.mrf.mxu0
  %v898 = vadd.f32 0.0, %v897
  %899 = vmatmul.f32.gmra.mxu0 %v416
  %v900 = vpop.f32.mrf.mxu0
  %v901 = vadd.f32 0.0, %v900
  %902 = vmatmul.f32.gmra.mxu0 %v419
  %v903 = vpop.f32.mrf.mxu0
  %v904 = vadd.f32 0.0, %v903
  %905 = vmatmul.f32.gmra.mxu0 %v422
  %v906 = vpop.f32.mrf.mxu0
  %v907 = vadd.f32 0.0, %v906
  %908 = vmatmul.f32.gmra.mxu0 %v425
  %v909 = vpop.f32.mrf.mxu0
  %v910 = vadd.f32 0.0, %v909
  %911 = vmatmul.f32.gmra.mxu0 %v428
  %v912 = vpop.f32.mrf.mxu0
  %v913 = vadd.f32 0.0, %v912
  %914 = vmatmul.f32.gmra.mxu0 %v431
  %v915 = vpop.f32.mrf.mxu0
  %v916 = vadd.f32 0.0, %v915
  %917 = vmatmul.f32.gmra.mxu0 %v434
  %v918 = vpop.f32.mrf.mxu0
  %v919 = vadd.f32 0.0, %v918
  %920 = vmatmul.f32.gmra.mxu0 %v437
  %v921 = vpop.f32.mrf.mxu0
  %v922 = vadd.f32 0.0, %v921
  %923 = vmatmul.f32.gmra.mxu0 %v440
  %v924 = vpop.f32.mrf.mxu0
  %v925 = vadd.f32 0.0, %v924
  %926 = vmatmul.f32.gmra.mxu0 %v443
  %v927 = vpop.f32.mrf.mxu0
  %v928 = vadd.f32 0.0, %v927
  %929 = vmatmul.f32.gmra.mxu0 %v446
  %v930 = vpop.f32.mrf.mxu0
  %v931 = vadd.f32 0.0, %v930
  %932 = vmatmul.f32.gmra.mxu0 %v449
  %v933 = vpop.f32.mrf.mxu0
  %v934 = vadd.f32 0.0, %v933
  %935 = vmatmul.f32.gmra.mxu0 %v452
  %v936 = vpop.f32.mrf.mxu0
  %v937 = vadd.f32 0.0, %v936
  %938 = vmatmul.f32.gmra.mxu0 %v455
  %v939 = vpop.f32.mrf.mxu0
  %v940 = vadd.f32 0.0, %v939
  %941 = vmatmul.f32.gmra.mxu0 %v458
  %v942 = vpop.f32.mrf.mxu0
  %v943 = vadd.f32 0.0, %v942
  %944 = vmatmul.f32.gmra.mxu0 %v461
  %v945 = vpop.f32.mrf.mxu0
  %v946 = vadd.f32 0.0, %v945
  %947 = vmatmul.f32.gmra.mxu0 %v464
  %v948 = vpop.f32.mrf.mxu0
  %v949 = vadd.f32 0.0, %v948
  %950 = vmatmul.f32.gmra.mxu0 %v467
  %v951 = vpop.f32.mrf.mxu0
  %v952 = vadd.f32 0.0, %v951
  %953 = vmatmul.f32.gmra.mxu0 %v470
  %v954 = vpop.f32.mrf.mxu0
  %v955 = vadd.f32 0.0, %v954
  %956 = vmatmul.f32.gmra.mxu0 %v473
  %v957 = vpop.f32.mrf.mxu0
  %v958 = vadd.f32 0.0, %v957
  %959 = vmatmul.f32.gmra.mxu0 %v476
  %v960 = vpop.f32.mrf.mxu0
  %v961 = vadd.f32 0.0, %v960
  %962 = vmatmul.f32.gmra.mxu0 %v479
  %v963 = vpop.f32.mrf.mxu0
  %v964 = vadd.f32 0.0, %v963
  %965 = vmatmul.f32.gmra.mxu0 %v482
  %v966 = vpop.f32.mrf.mxu0
  %v967 = vadd.f32 0.0, %v966
  %968 = vmatmul.f32.gmra.mxu0 %v485
  %v969 = vpop.f32.mrf.mxu0
  %v970 = vadd.f32 0.0, %v969
  %971 = vmatmul.f32.gmra.mxu0 %v488
  %v972 = vpop.f32.mrf.mxu0
  %v973 = vadd.f32 0.0, %v972
  %974 = vmatmul.f32.gmra.mxu0 %v491
  %v975 = vpop.f32.mrf.mxu0
  %v976 = vadd.f32 0.0, %v975
  %977 = vmatmul.f32.gmra.mxu0 %v494
  %v978 = vpop.f32.mrf.mxu0
  %v979 = vadd.f32 0.0, %v978
  %980 = vmatmul.f32.gmra.mxu0 %v497
  %v981 = vpop.f32.mrf.mxu0
  %v982 = vadd.f32 0.0, %v981
  %983 = vmatmul.f32.gmra.mxu0 %v500
  %v984 = vpop.f32.mrf.mxu0
  %v985 = vadd.f32 0.0, %v984
  %986 = vmatmul.f32.gmra.mxu0 %v503
  %v987 = vpop.f32.mrf.mxu0
  %v988 = vadd.f32 0.0, %v987
  %989 = vmatmul.f32.gmra.mxu0 %v506
  %v990 = vpop.f32.mrf.mxu0
  %v991 = vadd.f32 0.0, %v990
  %992 = vmatmul.f32.gmra.mxu0 %v509
  %v993 = vpop.f32.mrf.mxu0
  %v994 = vadd.f32 0.0, %v993
  %995 = vmatmul.f32.gmra.mxu0 %v512
  %v996 = vpop.f32.mrf.mxu0
  %v997 = vadd.f32 0.0, %v996
  %998 = vmatmul.f32.gmra.mxu0 %v515
  %v999 = vpop.f32.mrf.mxu0
  %v1000 = vadd.f32 0.0, %v999
  %1001 = vmatmul.f32.gmra.mxu0 %v518
  %v1002 = vpop.f32.mrf.mxu0
  %v1003 = vadd.f32 0.0, %v1002
  %1004 = vmatmul.f32.gmra.mxu0 %v521
  %v1005 = vpop.f32.mrf.mxu0
  %v1006 = vadd.f32 0.0, %v1005
  %1007 = vmatmul.f32.gmra.mxu0 %v524
  %v1008 = vpop.f32.mrf.mxu0
  %v1009 = vadd.f32 0.0, %v1008
  %1010 = vmatmul.f32.gmra.mxu0 %v527
  %v1011 = vpop.f32.mrf.mxu0
  %v1012 = vadd.f32 0.0, %v1011
  %1013 = vmatmul.f32.gmra.mxu0 %v530
  %v1014 = vpop.f32.mrf.mxu0
  %v1015 = vadd.f32 0.0, %v1014
  %1016 = vmatmul.f32.gmra.mxu0 %v533
  %v1017 = vpop.f32.mrf.mxu0
  %v1018 = vadd.f32 0.0, %v1017
  %1019 = vmatmul.f32.gmra.mxu0 %v536
  %v1020 = vpop.f32.mrf.mxu0
  %v1021 = vadd.f32 0.0, %v1020
  %1022 = vmatmul.f32.gmra.mxu0 %v539
  %v1023 = vpop.f32.mrf.mxu0
  %v1024 = vadd.f32 0.0, %v1023
  %1025 = vmatmul.f32.gmra.mxu0 %v542
  %v1026 = vpop.f32.mrf.mxu0
  %v1027 = vadd.f32 0.0, %v1026
  %1028 = vmatmul.f32.gmra.mxu0 %v545
  %v1029 = vpop.f32.mrf.mxu0
  %v1030 = vadd.f32 0.0, %v1029
  %1031 = vmatmul.f32.gmra.mxu0 %v548
  %v1032 = vpop.f32.mrf.mxu0
  %v1033 = vadd.f32 0.0, %v1032
  %1034 = vmatmul.f32.gmra.mxu0 %v551
  %v1035 = vpop.f32.mrf.mxu0
  %v1036 = vadd.f32 0.0, %v1035
  %1037 = vmatmul.f32.gmra.mxu0 %v554
  %v1038 = vpop.f32.mrf.mxu0
  %v1039 = vadd.f32 0.0, %v1038
  %1040 = vmatmul.f32.gmra.mxu0 %v557
  %v1041 = vpop.f32.mrf.mxu0
  %v1042 = vadd.f32 0.0, %v1041
  %1043 = vmatmul.f32.gmra.mxu0 %v560
  %v1044 = vpop.f32.mrf.mxu0
  %v1045 = vadd.f32 0.0, %v1044
  %1046 = vmatmul.f32.gmra.mxu0 %v563
  %v1047 = vpop.f32.mrf.mxu0
  %v1048 = vadd.f32 0.0, %v1047
  %1049 = vmatmul.f32.gmra.mxu0 %v566
  %v1050 = vpop.f32.mrf.mxu0
  %v1051 = vadd.f32 0.0, %v1050
  %1052 = vmatmul.f32.gmra.mxu0 %v569
  %v1053 = vpop.f32.mrf.mxu0
  %v1054 = vadd.f32 0.0, %v1053
  %1055 = vmatmul.f32.gmra.mxu0 %v572
  %v1056 = vpop.f32.mrf.mxu0
  %v1057 = vadd.f32 0.0, %v1056
  %1058 = vmatmul.f32.gmra.mxu0 %v575
  %v1059 = vpop.f32.mrf.mxu0
  %v1060 = vadd.f32 0.0, %v1059
  %1061 = vmatmul.f32.gmra.mxu0 %v578
  %v1062 = vpop.f32.mrf.mxu0
  %v1063 = vadd.f32 0.0, %v1062
  %1064 = vmatmul.f32.gmra.mxu0 %v581
  %v1065 = vpop.f32.mrf.mxu0
  %v1066 = vadd.f32 0.0, %v1065
  %1067 = vmatmul.f32.gmra.mxu0 %v584
  %v1068 = vpop.f32.mrf.mxu0
  %v1069 = vadd.f32 0.0, %v1068
  %1070 = vmatmul.f32.gmra.mxu0 %v587
  %v1071 = vpop.f32.mrf.mxu0
  %v1072 = vadd.f32 0.0, %v1071
  %1073 = vmatmul.f32.gmra.mxu0 %v590
  %v1074 = vpop.f32.mrf.mxu0
  %v1075 = vadd.f32 0.0, %v1074
  %1076 = vmatmul.f32.gmra.mxu0 %v593
  %v1077 = vpop.f32.mrf.mxu0
  %v1078 = vadd.f32 0.0, %v1077
  %1079 = vmatmul.f32.gmra.mxu0 %v596
  %v1080 = vpop.f32.mrf.mxu0
  %v1081 = vadd.f32 0.0, %v1080
  %1082 = vmatmul.f32.gmra.mxu0 %v599
  %v1083 = vpop.f32.mrf.mxu0
  %v1084 = vadd.f32 0.0, %v1083
  %1085 = vmatmul.f32.gmra.mxu0 %v602
  %v1086 = vpop.f32.mrf.mxu0
  %v1087 = vadd.f32 0.0, %v1086
  %1088 = vmatmul.f32.gmra.mxu0 %v605
  %v1089 = vpop.f32.mrf.mxu0
  %v1090 = vadd.f32 0.0, %v1089
  %1091 = vmatmul.f32.gmra.mxu0 %v608
  %v1092 = vpop.f32.mrf.mxu0
  %v1093 = vadd.f32 0.0, %v1092
  %1094 = vmatmul.f32.gmra.mxu0 %v611
  %v1095 = vpop.f32.mrf.mxu0
  %v1096 = vadd.f32 0.0, %v1095
  %1097 = vmatmul.f32.gmra.mxu0 %v614
  %v1098 = vpop.f32.mrf.mxu0
  %v1099 = vadd.f32 0.0, %v1098
  %1100 = vmatmul.f32.gmra.mxu0 %v617
  %v1101 = vpop.f32.mrf.mxu0
  %v1102 = vadd.f32 0.0, %v1101
  %1103 = vmatmul.f32.gmra.mxu0 %v620
  %v1104 = vpop.f32.mrf.mxu0
  %v1105 = vadd.f32 0.0, %v1104
  %1106 = vmatmul.f32.gmra.mxu0 %v623
  %v1107 = vpop.f32.mrf.mxu0
  %v1108 = vadd.f32 0.0, %v1107
  %1109 = vmatmul.f32.gmra.mxu0 %v626
  %v1110 = vpop.f32.mrf.mxu0
  %v1111 = vadd.f32 0.0, %v1110
  %1112 = vmatmul.f32.gmra.mxu0 %v629
  %v1113 = vpop.f32.mrf.mxu0
  %v1114 = vadd.f32 0.0, %v1113
  %1115 = vmatmul.f32.gmra.mxu0 %v632
  %v1116 = vpop.f32.mrf.mxu0
  %v1117 = vadd.f32 0.0, %v1116
  %1118 = vmatmul.f32.gmra.mxu0 %v635
  %v1119 = vpop.f32.mrf.mxu0
  %v1120 = vadd.f32 0.0, %v1119
  %1121 = vmatmul.f32.gmra.mxu0 %v638
  %v1122 = vpop.f32.mrf.mxu0
  %v1123 = vadd.f32 0.0, %v1122
  %1124 = vmatmul.f32.gmra.mxu0 %v641
  %v1125 = vpop.f32.mrf.mxu0
  %v1126 = vadd.f32 0.0, %v1125
  %1127 = vmatmul.f32.gmra.mxu0 %v644
  %v1128 = vpop.f32.mrf.mxu0
  %v1129 = vadd.f32 0.0, %v1128
  %1130 = vdwg.mxu0
  %1131 = vmatpush.msra.mxu0 0.0
  %1132 = vmatpush.msra.mxu0 0.0
  %1133 = vmatpush.msra.mxu0 0.0
  %1134 = vmatpush.msra.mxu0 0.0
  %1135 = vmatpush.msra.mxu0 0.0
  %1136 = vmatpush.msra.mxu0 0.0
  %1137 = vmatpush.msra.mxu0 0.0
  %1138 = vmatpush.msra.mxu0 0.0
  %1139 = vmatpush.msra.mxu0 0.0
  %1140 = vmatpush.msra.mxu0 0.0
  %1141 = vmatpush.msra.mxu0 0.0
  %1142 = vmatpush.msra.mxu0 0.0
  %1143 = vmatpush.msra.mxu0 0.0
  %1144 = vmatpush.msra.mxu0 0.0
  %1145 = vmatpush.msra.mxu0 %v176
  %1146 = vmatpush.msra.mxu0 %v174
  %1147 = vmatmul.f32.gmra.mxu0 %v179
  %v1148 = vpop.f32.mrf.mxu0
  %v1149 = vadd.f32 0.0, %v1148
  %1150 = vmatmul.f32.gmra.mxu0 %v182
  %v1151 = vpop.f32.mrf.mxu0
  %v1152 = vadd.f32 0.0, %v1151
  %1153 = vmatmul.f32.gmra.mxu0 %v185
  %v1154 = vpop.f32.mrf.mxu0
  %v1155 = vadd.f32 0.0, %v1154
  %1156 = vmatmul.f32.gmra.mxu0 %v188
  %v1157 = vpop.f32.mrf.mxu0
  %v1158 = vadd.f32 0.0, %v1157
  %1159 = vmatmul.f32.gmra.mxu0 %v191
  %v1160 = vpop.f32.mrf.mxu0
  %v1161 = vadd.f32 0.0, %v1160
  %1162 = vmatmul.f32.gmra.mxu0 %v194
  %v1163 = vpop.f32.mrf.mxu0
  %v1164 = vadd.f32 0.0, %v1163
  %1165 = vmatmul.f32.gmra.mxu0 %v197
  %v1166 = vpop.f32.mrf.mxu0
  %v1167 = vadd.f32 0.0, %v1166
  %1168 = vmatmul.f32.gmra.mxu0 %v200
  %v1169 = vpop.f32.mrf.mxu0
  %v1170 = vadd.f32 0.0, %v1169
  %1171 = vmatmul.f32.gmra.mxu0 %v203
  %v1172 = vpop.f32.mrf.mxu0
  %v1173 = vadd.f32 0.0, %v1172
  %1174 = vmatmul.f32.gmra.mxu0 %v206
  %v1175 = vpop.f32.mrf.mxu0
  %v1176 = vadd.f32 0.0, %v1175
  %1177 = vmatmul.f32.gmra.mxu0 %v209
  %v1178 = vpop.f32.mrf.mxu0
  %v1179 = vadd.f32 0.0, %v1178
  %1180 = vmatmul.f32.gmra.mxu0 %v212
  %v1181 = vpop.f32.mrf.mxu0
  %v1182 = vadd.f32 0.0, %v1181
  %1183 = vmatmul.f32.gmra.mxu0 %v215
  %v1184 = vpop.f32.mrf.mxu0
  %v1185 = vadd.f32 0.0, %v1184
  %1186 = vmatmul.f32.gmra.mxu0 %v218
  %v1187 = vpop.f32.mrf.mxu0
  %v1188 = vadd.f32 0.0, %v1187
  %1189 = vmatmul.f32.gmra.mxu0 %v221
  %v1190 = vpop.f32.mrf.mxu0
  %v1191 = vadd.f32 0.0, %v1190
  %1192 = vmatmul.f32.gmra.mxu0 %v224
  %v1193 = vpop.f32.mrf.mxu0
  %v1194 = vadd.f32 0.0, %v1193
  %1195 = vmatmul.f32.gmra.mxu0 %v227
  %v1196 = vpop.f32.mrf.mxu0
  %v1197 = vadd.f32 0.0, %v1196
  %1198 = vmatmul.f32.gmra.mxu0 %v230
  %v1199 = vpop.f32.mrf.mxu0
  %v1200 = vadd.f32 0.0, %v1199
  %1201 = vmatmul.f32.gmra.mxu0 %v233
  %v1202 = vpop.f32.mrf.mxu0
  %v1203 = vadd.f32 0.0, %v1202
  %1204 = vmatmul.f32.gmra.mxu0 %v236
  %v1205 = vpop.f32.mrf.mxu0
  %v1206 = vadd.f32 0.0, %v1205
  %1207 = vmatmul.f32.gmra.mxu0 %v239
  %v1208 = vpop.f32.mrf.mxu0
  %v1209 = vadd.f32 0.0, %v1208
  %1210 = vmatmul.f32.gmra.mxu0 %v242
  %v1211 = vpop.f32.mrf.mxu0
  %v1212 = vadd.f32 0.0, %v1211
  %1213 = vmatmul.f32.gmra.mxu0 %v245
  %v1214 = vpop.f32.mrf.mxu0
  %v1215 = vadd.f32 0.0, %v1214
  %1216 = vmatmul.f32.gmra.mxu0 %v248
  %v1217 = vpop.f32.mrf.mxu0
  %v1218 = vadd.f32 0.0, %v1217
  %1219 = vmatmul.f32.gmra.mxu0 %v251
  %v1220 = vpop.f32.mrf.mxu0
  %v1221 = vadd.f32 0.0, %v1220
  %1222 = vmatmul.f32.gmra.mxu0 %v254
  %v1223 = vpop.f32.mrf.mxu0
  %v1224 = vadd.f32 0.0, %v1223
  %1225 = vmatmul.f32.gmra.mxu0 %v257
  %v1226 = vpop.f32.mrf.mxu0
  %v1227 = vadd.f32 0.0, %v1226
  %1228 = vmatmul.f32.gmra.mxu0 %v260
  %v1229 = vpop.f32.mrf.mxu0
  %v1230 = vadd.f32 0.0, %v1229
  %1231 = vmatmul.f32.gmra.mxu0 %v263
  %v1232 = vpop.f32.mrf.mxu0
  %v1233 = vadd.f32 0.0, %v1232
  %1234 = vmatmul.f32.gmra.mxu0 %v266
  %v1235 = vpop.f32.mrf.mxu0
  %v1236 = vadd.f32 0.0, %v1235
  %1237 = vmatmul.f32.gmra.mxu0 %v269
  %v1238 = vpop.f32.mrf.mxu0
  %v1239 = vadd.f32 0.0, %v1238
  %1240 = vmatmul.f32.gmra.mxu0 %v272
  %v1241 = vpop.f32.mrf.mxu0
  %v1242 = vadd.f32 0.0, %v1241
  %1243 = vmatmul.f32.gmra.mxu0 %v275
  %v1244 = vpop.f32.mrf.mxu0
  %v1245 = vadd.f32 0.0, %v1244
  %1246 = vmatmul.f32.gmra.mxu0 %v278
  %v1247 = vpop.f32.mrf.mxu0
  %v1248 = vadd.f32 0.0, %v1247
  %1249 = vmatmul.f32.gmra.mxu0 %v281
  %v1250 = vpop.f32.mrf.mxu0
  %v1251 = vadd.f32 0.0, %v1250
  %1252 = vmatmul.f32.gmra.mxu0 %v284
  %v1253 = vpop.f32.mrf.mxu0
  %v1254 = vadd.f32 0.0, %v1253
  %1255 = vmatmul.f32.gmra.mxu0 %v287
  %v1256 = vpop.f32.mrf.mxu0
  %v1257 = vadd.f32 0.0, %v1256
  %1258 = vmatmul.f32.gmra.mxu0 %v290
  %v1259 = vpop.f32.mrf.mxu0
  %v1260 = vadd.f32 0.0, %v1259
  %1261 = vmatmul.f32.gmra.mxu0 %v293
  %v1262 = vpop.f32.mrf.mxu0
  %v1263 = vadd.f32 0.0, %v1262
  %1264 = vmatmul.f32.gmra.mxu0 %v296
  %v1265 = vpop.f32.mrf.mxu0
  %v1266 = vadd.f32 0.0, %v1265
  %1267 = vmatmul.f32.gmra.mxu0 %v299
  %v1268 = vpop.f32.mrf.mxu0
  %v1269 = vadd.f32 0.0, %v1268
  %1270 = vmatmul.f32.gmra.mxu0 %v302
  %v1271 = vpop.f32.mrf.mxu0
  %v1272 = vadd.f32 0.0, %v1271
  %1273 = vmatmul.f32.gmra.mxu0 %v305
  %v1274 = vpop.f32.mrf.mxu0
  %v1275 = vadd.f32 0.0, %v1274
  %1276 = vmatmul.f32.gmra.mxu0 %v308
  %v1277 = vpop.f32.mrf.mxu0
  %v1278 = vadd.f32 0.0, %v1277
  %1279 = vmatmul.f32.gmra.mxu0 %v311
  %v1280 = vpop.f32.mrf.mxu0
  %v1281 = vadd.f32 0.0, %v1280
  %1282 = vmatmul.f32.gmra.mxu0 %v314
  %v1283 = vpop.f32.mrf.mxu0
  %v1284 = vadd.f32 0.0, %v1283
  %1285 = vmatmul.f32.gmra.mxu0 %v317
  %v1286 = vpop.f32.mrf.mxu0
  %v1287 = vadd.f32 0.0, %v1286
  %1288 = vmatmul.f32.gmra.mxu0 %v320
  %v1289 = vpop.f32.mrf.mxu0
  %v1290 = vadd.f32 0.0, %v1289
  %1291 = vmatmul.f32.gmra.mxu0 %v323
  %v1292 = vpop.f32.mrf.mxu0
  %v1293 = vadd.f32 0.0, %v1292
  %1294 = vmatmul.f32.gmra.mxu0 %v326
  %v1295 = vpop.f32.mrf.mxu0
  %v1296 = vadd.f32 0.0, %v1295
  %1297 = vmatmul.f32.gmra.mxu0 %v329
  %v1298 = vpop.f32.mrf.mxu0
  %v1299 = vadd.f32 0.0, %v1298
  %1300 = vmatmul.f32.gmra.mxu0 %v332
  %v1301 = vpop.f32.mrf.mxu0
  %v1302 = vadd.f32 0.0, %v1301
  %1303 = vmatmul.f32.gmra.mxu0 %v335
  %v1304 = vpop.f32.mrf.mxu0
  %v1305 = vadd.f32 0.0, %v1304
  %1306 = vmatmul.f32.gmra.mxu0 %v338
  %v1307 = vpop.f32.mrf.mxu0
  %v1308 = vadd.f32 0.0, %v1307
  %1309 = vmatmul.f32.gmra.mxu0 %v341
  %v1310 = vpop.f32.mrf.mxu0
  %v1311 = vadd.f32 0.0, %v1310
  %1312 = vmatmul.f32.gmra.mxu0 %v344
  %v1313 = vpop.f32.mrf.mxu0
  %v1314 = vadd.f32 0.0, %v1313
  %1315 = vmatmul.f32.gmra.mxu0 %v347
  %v1316 = vpop.f32.mrf.mxu0
  %v1317 = vadd.f32 0.0, %v1316
  %1318 = vmatmul.f32.gmra.mxu0 %v350
  %v1319 = vpop.f32.mrf.mxu0
  %v1320 = vadd.f32 0.0, %v1319
  %1321 = vmatmul.f32.gmra.mxu0 %v353
  %v1322 = vpop.f32.mrf.mxu0
  %v1323 = vadd.f32 0.0, %v1322
  %1324 = vmatmul.f32.gmra.mxu0 %v356
  %v1325 = vpop.f32.mrf.mxu0
  %v1326 = vadd.f32 0.0, %v1325
  %1327 = vmatmul.f32.gmra.mxu0 %v359
  %v1328 = vpop.f32.mrf.mxu0
  %v1329 = vadd.f32 0.0, %v1328
  %1330 = vmatmul.f32.gmra.mxu0 %v362
  %v1331 = vpop.f32.mrf.mxu0
  %v1332 = vadd.f32 0.0, %v1331
  %1333 = vmatmul.f32.gmra.mxu0 %v365
  %v1334 = vpop.f32.mrf.mxu0
  %v1335 = vadd.f32 0.0, %v1334
  %1336 = vmatmul.f32.gmra.mxu0 %v368
  %v1337 = vpop.f32.mrf.mxu0
  %v1338 = vadd.f32 0.0, %v1337
  %1339 = vmatmul.f32.gmra.mxu0 %v371
  %v1340 = vpop.f32.mrf.mxu0
  %v1341 = vadd.f32 0.0, %v1340
  %1342 = vmatmul.f32.gmra.mxu0 %v374
  %v1343 = vpop.f32.mrf.mxu0
  %v1344 = vadd.f32 0.0, %v1343
  %1345 = vmatmul.f32.gmra.mxu0 %v377
  %v1346 = vpop.f32.mrf.mxu0
  %v1347 = vadd.f32 0.0, %v1346
  %1348 = vmatmul.f32.gmra.mxu0 %v380
  %v1349 = vpop.f32.mrf.mxu0
  %v1350 = vadd.f32 0.0, %v1349
  %1351 = vmatmul.f32.gmra.mxu0 %v383
  %v1352 = vpop.f32.mrf.mxu0
  %v1353 = vadd.f32 0.0, %v1352
  %1354 = vmatmul.f32.gmra.mxu0 %v386
  %v1355 = vpop.f32.mrf.mxu0
  %v1356 = vadd.f32 0.0, %v1355
  %1357 = vmatmul.f32.gmra.mxu0 %v389
  %v1358 = vpop.f32.mrf.mxu0
  %v1359 = vadd.f32 0.0, %v1358
  %1360 = vmatmul.f32.gmra.mxu0 %v392
  %v1361 = vpop.f32.mrf.mxu0
  %v1362 = vadd.f32 0.0, %v1361
  %1363 = vmatmul.f32.gmra.mxu0 %v395
  %v1364 = vpop.f32.mrf.mxu0
  %v1365 = vadd.f32 0.0, %v1364
  %1366 = vmatmul.f32.gmra.mxu0 %v398
  %v1367 = vpop.f32.mrf.mxu0
  %v1368 = vadd.f32 0.0, %v1367
  %1369 = vmatmul.f32.gmra.mxu0 %v401
  %v1370 = vpop.f32.mrf.mxu0
  %v1371 = vadd.f32 0.0, %v1370
  %1372 = vmatmul.f32.gmra.mxu0 %v404
  %v1373 = vpop.f32.mrf.mxu0
  %v1374 = vadd.f32 0.0, %v1373
  %1375 = vmatmul.f32.gmra.mxu0 %v407
  %v1376 = vpop.f32.mrf.mxu0
  %v1377 = vadd.f32 0.0, %v1376
  %1378 = vmatmul.f32.gmra.mxu0 %v410
  %v1379 = vpop.f32.mrf.mxu0
  %v1380 = vadd.f32 0.0, %v1379
  %1381 = vmatmul.f32.gmra.mxu0 %v413
  %v1382 = vpop.f32.mrf.mxu0
  %v1383 = vadd.f32 0.0, %v1382
  %1384 = vmatmul.f32.gmra.mxu0 %v416
  %v1385 = vpop.f32.mrf.mxu0
  %v1386 = vadd.f32 0.0, %v1385
  %1387 = vmatmul.f32.gmra.mxu0 %v419
  %v1388 = vpop.f32.mrf.mxu0
  %v1389 = vadd.f32 0.0, %v1388
  %1390 = vmatmul.f32.gmra.mxu0 %v422
  %v1391 = vpop.f32.mrf.mxu0
  %v1392 = vadd.f32 0.0, %v1391
  %1393 = vmatmul.f32.gmra.mxu0 %v425
  %v1394 = vpop.f32.mrf.mxu0
  %v1395 = vadd.f32 0.0, %v1394
  %1396 = vmatmul.f32.gmra.mxu0 %v428
  %v1397 = vpop.f32.mrf.mxu0
  %v1398 = vadd.f32 0.0, %v1397
  %1399 = vmatmul.f32.gmra.mxu0 %v431
  %v1400 = vpop.f32.mrf.mxu0
  %v1401 = vadd.f32 0.0, %v1400
  %1402 = vmatmul.f32.gmra.mxu0 %v434
  %v1403 = vpop.f32.mrf.mxu0
  %v1404 = vadd.f32 0.0, %v1403
  %1405 = vmatmul.f32.gmra.mxu0 %v437
  %v1406 = vpop.f32.mrf.mxu0
  %v1407 = vadd.f32 0.0, %v1406
  %1408 = vmatmul.f32.gmra.mxu0 %v440
  %v1409 = vpop.f32.mrf.mxu0
  %v1410 = vadd.f32 0.0, %v1409
  %1411 = vmatmul.f32.gmra.mxu0 %v443
  %v1412 = vpop.f32.mrf.mxu0
  %v1413 = vadd.f32 0.0, %v1412
  %1414 = vmatmul.f32.gmra.mxu0 %v446
  %v1415 = vpop.f32.mrf.mxu0
  %v1416 = vadd.f32 0.0, %v1415
  %1417 = vmatmul.f32.gmra.mxu0 %v449
  %v1418 = vpop.f32.mrf.mxu0
  %v1419 = vadd.f32 0.0, %v1418
  %1420 = vmatmul.f32.gmra.mxu0 %v452
  %v1421 = vpop.f32.mrf.mxu0
  %v1422 = vadd.f32 0.0, %v1421
  %1423 = vmatmul.f32.gmra.mxu0 %v455
  %v1424 = vpop.f32.mrf.mxu0
  %v1425 = vadd.f32 0.0, %v1424
  %1426 = vmatmul.f32.gmra.mxu0 %v458
  %v1427 = vpop.f32.mrf.mxu0
  %v1428 = vadd.f32 0.0, %v1427
  %1429 = vmatmul.f32.gmra.mxu0 %v461
  %v1430 = vpop.f32.mrf.mxu0
  %v1431 = vadd.f32 0.0, %v1430
  %1432 = vmatmul.f32.gmra.mxu0 %v464
  %v1433 = vpop.f32.mrf.mxu0
  %v1434 = vadd.f32 0.0, %v1433
  %1435 = vmatmul.f32.gmra.mxu0 %v467
  %v1436 = vpop.f32.mrf.mxu0
  %v1437 = vadd.f32 0.0, %v1436
  %1438 = vmatmul.f32.gmra.mxu0 %v470
  %v1439 = vpop.f32.mrf.mxu0
  %v1440 = vadd.f32 0.0, %v1439
  %1441 = vmatmul.f32.gmra.mxu0 %v473
  %v1442 = vpop.f32.mrf.mxu0
  %v1443 = vadd.f32 0.0, %v1442
  %1444 = vmatmul.f32.gmra.mxu0 %v476
  %v1445 = vpop.f32.mrf.mxu0
  %v1446 = vadd.f32 0.0, %v1445
  %1447 = vmatmul.f32.gmra.mxu0 %v479
  %v1448 = vpop.f32.mrf.mxu0
  %v1449 = vadd.f32 0.0, %v1448
  %1450 = vmatmul.f32.gmra.mxu0 %v482
  %v1451 = vpop.f32.mrf.mxu0
  %v1452 = vadd.f32 0.0, %v1451
  %1453 = vmatmul.f32.gmra.mxu0 %v485
  %v1454 = vpop.f32.mrf.mxu0
  %v1455 = vadd.f32 0.0, %v1454
  %1456 = vmatmul.f32.gmra.mxu0 %v488
  %v1457 = vpop.f32.mrf.mxu0
  %v1458 = vadd.f32 0.0, %v1457
  %1459 = vmatmul.f32.gmra.mxu0 %v491
  %v1460 = vpop.f32.mrf.mxu0
  %v1461 = vadd.f32 0.0, %v1460
  %1462 = vmatmul.f32.gmra.mxu0 %v494
  %v1463 = vpop.f32.mrf.mxu0
  %v1464 = vadd.f32 0.0, %v1463
  %1465 = vmatmul.f32.gmra.mxu0 %v497
  %v1466 = vpop.f32.mrf.mxu0
  %v1467 = vadd.f32 0.0, %v1466
  %1468 = vmatmul.f32.gmra.mxu0 %v500
  %v1469 = vpop.f32.mrf.mxu0
  %v1470 = vadd.f32 0.0, %v1469
  %1471 = vmatmul.f32.gmra.mxu0 %v503
  %v1472 = vpop.f32.mrf.mxu0
  %v1473 = vadd.f32 0.0, %v1472
  %1474 = vmatmul.f32.gmra.mxu0 %v506
  %v1475 = vpop.f32.mrf.mxu0
  %v1476 = vadd.f32 0.0, %v1475
  %1477 = vmatmul.f32.gmra.mxu0 %v509
  %v1478 = vpop.f32.mrf.mxu0
  %v1479 = vadd.f32 0.0, %v1478
  %1480 = vmatmul.f32.gmra.mxu0 %v512
  %v1481 = vpop.f32.mrf.mxu0
  %v1482 = vadd.f32 0.0, %v1481
  %1483 = vmatmul.f32.gmra.mxu0 %v515
  %v1484 = vpop.f32.mrf.mxu0
  %v1485 = vadd.f32 0.0, %v1484
  %1486 = vmatmul.f32.gmra.mxu0 %v518
  %v1487 = vpop.f32.mrf.mxu0
  %v1488 = vadd.f32 0.0, %v1487
  %1489 = vmatmul.f32.gmra.mxu0 %v521
  %v1490 = vpop.f32.mrf.mxu0
  %v1491 = vadd.f32 0.0, %v1490
  %1492 = vmatmul.f32.gmra.mxu0 %v524
  %v1493 = vpop.f32.mrf.mxu0
  %v1494 = vadd.f32 0.0, %v1493
  %1495 = vmatmul.f32.gmra.mxu0 %v527
  %v1496 = vpop.f32.mrf.mxu0
  %v1497 = vadd.f32 0.0, %v1496
  %1498 = vmatmul.f32.gmra.mxu0 %v530
  %v1499 = vpop.f32.mrf.mxu0
  %v1500 = vadd.f32 0.0, %v1499
  %1501 = vmatmul.f32.gmra.mxu0 %v533
  %v1502 = vpop.f32.mrf.mxu0
  %v1503 = vadd.f32 0.0, %v1502
  %1504 = vmatmul.f32.gmra.mxu0 %v536
  %v1505 = vpop.f32.mrf.mxu0
  %v1506 = vadd.f32 0.0, %v1505
  %1507 = vmatmul.f32.gmra.mxu0 %v539
  %v1508 = vpop.f32.mrf.mxu0
  %v1509 = vadd.f32 0.0, %v1508
  %1510 = vmatmul.f32.gmra.mxu0 %v542
  %v1511 = vpop.f32.mrf.mxu0
  %v1512 = vadd.f32 0.0, %v1511
  %1513 = vmatmul.f32.gmra.mxu0 %v545
  %v1514 = vpop.f32.mrf.mxu0
  %v1515 = vadd.f32 0.0, %v1514
  %1516 = vmatmul.f32.gmra.mxu0 %v548
  %v1517 = vpop.f32.mrf.mxu0
  %v1518 = vadd.f32 0.0, %v1517
  %1519 = vmatmul.f32.gmra.mxu0 %v551
  %v1520 = vpop.f32.mrf.mxu0
  %v1521 = vadd.f32 0.0, %v1520
  %1522 = vmatmul.f32.gmra.mxu0 %v554
  %v1523 = vpop.f32.mrf.mxu0
  %v1524 = vadd.f32 0.0, %v1523
  %1525 = vmatmul.f32.gmra.mxu0 %v557
  %v1526 = vpop.f32.mrf.mxu0
  %v1527 = vadd.f32 0.0, %v1526
  %1528 = vmatmul.f32.gmra.mxu0 %v560
  %v1529 = vpop.f32.mrf.mxu0
  %v1530 = vadd.f32 0.0, %v1529
  %1531 = vmatmul.f32.gmra.mxu0 %v563
  %v1532 = vpop.f32.mrf.mxu0
  %v1533 = vadd.f32 0.0, %v1532
  %1534 = vmatmul.f32.gmra.mxu0 %v566
  %v1535 = vpop.f32.mrf.mxu0
  %v1536 = vadd.f32 0.0, %v1535
  %1537 = vmatmul.f32.gmra.mxu0 %v569
  %v1538 = vpop.f32.mrf.mxu0
  %v1539 = vadd.f32 0.0, %v1538
  %1540 = vmatmul.f32.gmra.mxu0 %v572
  %v1541 = vpop.f32.mrf.mxu0
  %v1542 = vadd.f32 0.0, %v1541
  %1543 = vmatmul.f32.gmra.mxu0 %v575
  %v1544 = vpop.f32.mrf.mxu0
  %v1545 = vadd.f32 0.0, %v1544
  %1546 = vmatmul.f32.gmra.mxu0 %v578
  %v1547 = vpop.f32.mrf.mxu0
  %v1548 = vadd.f32 0.0, %v1547
  %1549 = vmatmul.f32.gmra.mxu0 %v581
  %v1550 = vpop.f32.mrf.mxu0
  %v1551 = vadd.f32 0.0, %v1550
  %1552 = vmatmul.f32.gmra.mxu0 %v584
  %v1553 = vpop.f32.mrf.mxu0
  %v1554 = vadd.f32 0.0, %v1553
  %1555 = vmatmul.f32.gmra.mxu0 %v587
  %v1556 = vpop.f32.mrf.mxu0
  %v1557 = vadd.f32 0.0, %v1556
  %1558 = vmatmul.f32.gmra.mxu0 %v590
  %v1559 = vpop.f32.mrf.mxu0
  %v1560 = vadd.f32 0.0, %v1559
  %1561 = vmatmul.f32.gmra.mxu0 %v593
  %v1562 = vpop.f32.mrf.mxu0
  %v1563 = vadd.f32 0.0, %v1562
  %1564 = vmatmul.f32.gmra.mxu0 %v596
  %v1565 = vpop.f32.mrf.mxu0
  %v1566 = vadd.f32 0.0, %v1565
  %1567 = vmatmul.f32.gmra.mxu0 %v599
  %v1568 = vpop.f32.mrf.mxu0
  %v1569 = vadd.f32 0.0, %v1568
  %1570 = vmatmul.f32.gmra.mxu0 %v602
  %v1571 = vpop.f32.mrf.mxu0
  %v1572 = vadd.f32 0.0, %v1571
  %1573 = vmatmul.f32.gmra.mxu0 %v605
  %v1574 = vpop.f32.mrf.mxu0
  %v1575 = vadd.f32 0.0, %v1574
  %1576 = vmatmul.f32.gmra.mxu0 %v608
  %v1577 = vpop.f32.mrf.mxu0
  %v1578 = vadd.f32 0.0, %v1577
  %1579 = vmatmul.f32.gmra.mxu0 %v611
  %v1580 = vpop.f32.mrf.mxu0
  %v1581 = vadd.f32 0.0, %v1580
  %1582 = vmatmul.f32.gmra.mxu0 %v614
  %v1583 = vpop.f32.mrf.mxu0
  %v1584 = vadd.f32 0.0, %v1583
  %1585 = vmatmul.f32.gmra.mxu0 %v617
  %v1586 = vpop.f32.mrf.mxu0
  %v1587 = vadd.f32 0.0, %v1586
  %1588 = vmatmul.f32.gmra.mxu0 %v620
  %v1589 = vpop.f32.mrf.mxu0
  %v1590 = vadd.f32 0.0, %v1589
  %1591 = vmatmul.f32.gmra.mxu0 %v623
  %v1592 = vpop.f32.mrf.mxu0
  %v1593 = vadd.f32 0.0, %v1592
  %1594 = vmatmul.f32.gmra.mxu0 %v626
  %v1595 = vpop.f32.mrf.mxu0
  %v1596 = vadd.f32 0.0, %v1595
  %1597 = vmatmul.f32.gmra.mxu0 %v629
  %v1598 = vpop.f32.mrf.mxu0
  %v1599 = vadd.f32 0.0, %v1598
  %1600 = vmatmul.f32.gmra.mxu0 %v632
  %v1601 = vpop.f32.mrf.mxu0
  %v1602 = vadd.f32 0.0, %v1601
  %1603 = vmatmul.f32.gmra.mxu0 %v635
  %v1604 = vpop.f32.mrf.mxu0
  %v1605 = vadd.f32 0.0, %v1604
  %1606 = vmatmul.f32.gmra.mxu0 %v638
  %v1607 = vpop.f32.mrf.mxu0
  %v1608 = vadd.f32 0.0, %v1607
  %1609 = vmatmul.f32.gmra.mxu0 %v641
  %v1610 = vpop.f32.mrf.mxu0
  %v1611 = vadd.f32 0.0, %v1610
  %1612 = vmatmul.f32.gmra.mxu0 %v644
  %v1613 = vpop.f32.mrf.mxu0
  %v1614 = vadd.f32 0.0, %v1613
  %1615 = vdwg.mxu0
  %v1616 = vmax.f32 %v664, %v1149
  %v1617 = vmax.f32 %v667, %v1152
  %v1618 = vmax.f32 %v670, %v1155
  %v1619 = vmax.f32 %v673, %v1158
  %v1620 = vmax.f32 %v676, %v1161
  %v1621 = vmax.f32 %v679, %v1164
  %v1622 = vmax.f32 %v682, %v1167
  %v1623 = vmax.f32 %v685, %v1170
  %v1624 = vmax.f32 %v688, %v1173
  %v1625 = vmax.f32 %v691, %v1176
  %v1626 = vmax.f32 %v694, %v1179
  %v1627 = vmax.f32 %v697, %v1182
  %v1628 = vmax.f32 %v700, %v1185
  %v1629 = vmax.f32 %v703, %v1188
  %v1630 = vmax.f32 %v706, %v1191
  %v1631 = vmax.f32 %v709, %v1194
  %v1632 = vmax.f32 %v712, %v1197
  %v1633 = vmax.f32 %v715, %v1200
  %v1634 = vmax.f32 %v718, %v1203
  %v1635 = vmax.f32 %v721, %v1206
  %v1636 = vmax.f32 %v724, %v1209
  %v1637 = vmax.f32 %v727, %v1212
  %v1638 = vmax.f32 %v730, %v1215
  %v1639 = vmax.f32 %v733, %v1218
  %v1640 = vmax.f32 %v736, %v1221
  %v1641 = vmax.f32 %v739, %v1224
  %v1642 = vmax.f32 %v742, %v1227
  %v1643 = vmax.f32 %v745, %v1230
  %v1644 = vmax.f32 %v748, %v1233
  %v1645 = vmax.f32 %v751, %v1236
  %v1646 = vmax.f32 %v754, %v1239
  %v1647 = vmax.f32 %v757, %v1242
  %v1648 = vmax.f32 %v760, %v1245
  %v1649 = vmax.f32 %v763, %v1248
  %v1650 = vmax.f32 %v766, %v1251
  %v1651 = vmax.f32 %v769, %v1254
  %v1652 = vmax.f32 %v772, %v1257
  %v1653 = vmax.f32 %v775, %v1260
  %v1654 = vmax.f32 %v778, %v1263
  %v1655 = vmax.f32 %v781, %v1266
  %v1656 = vmax.f32 %v784, %v1269
  %v1657 = vmax.f32 %v787, %v1272
  %v1658 = vmax.f32 %v790, %v1275
  %v1659 = vmax.f32 %v793, %v1278
  %v1660 = vmax.f32 %v796, %v1281
  %v1661 = vmax.f32 %v799, %v1284
  %v1662 = vmax.f32 %v802, %v1287
  %v1663 = vmax.f32 %v805, %v1290
  %v1664 = vmax.f32 %v808, %v1293
  %v1665 = vmax.f32 %v811, %v1296
  %v1666 = vmax.f32 %v814, %v1299
  %v1667 = vmax.f32 %v817, %v1302
  %v1668 = vmax.f32 %v820, %v1305
  %v1669 = vmax.f32 %v823, %v1308
  %v1670 = vmax.f32 %v826, %v1311
  %v1671 = vmax.f32 %v829, %v1314
  %v1672 = vmax.f32 %v832, %v1317
  %v1673 = vmax.f32 %v835, %v1320
  %v1674 = vmax.f32 %v838, %v1323
  %v1675 = vmax.f32 %v841, %v1326
  %v1676 = vmax.f32 %v844, %v1329
  %v1677 = vmax.f32 %v847, %v1332
  %v1678 = vmax.f32 %v850, %v1335
  %v1679 = vmax.f32 %v853, %v1338
  %v1680 = vmax.f32 %v856, %v1341
  %v1681 = vmax.f32 %v859, %v1344
  %v1682 = vmax.f32 %v862, %v1347
  %v1683 = vmax.f32 %v865, %v1350
  %v1684 = vmax.f32 %v868, %v1353
  %v1685 = vmax.f32 %v871, %v1356
  %v1686 = vmax.f32 %v874, %v1359
  %v1687 = vmax.f32 %v877, %v1362
  %v1688 = vmax.f32 %v880, %v1365
  %v1689 = vmax.f32 %v883, %v1368
  %v1690 = vmax.f32 %v886, %v1371
  %v1691 = vmax.f32 %v889, %v1374
  %v1692 = vmax.f32 %v892, %v1377
  %v1693 = vmax.f32 %v895, %v1380
  %v1694 = vmax.f32 %v898, %v1383
  %v1695 = vmax.f32 %v901, %v1386
  %v1696 = vmax.f32 %v904, %v1389
  %v1697 = vmax.f32 %v907, %v1392
  %v1698 = vmax.f32 %v910, %v1395
  %v1699 = vmax.f32 %v913, %v1398
  %v1700 = vmax.f32 %v916, %v1401
  %v1701 = vmax.f32 %v919, %v1404
  %v1702 = vmax.f32 %v922, %v1407
  %v1703 = vmax.f32 %v925, %v1410
  %v1704 = vmax.f32 %v928, %v1413
  %v1705 = vmax.f32 %v931, %v1416
  %v1706 = vmax.f32 %v934, %v1419
  %v1707 = vmax.f32 %v937, %v1422
  %v1708 = vmax.f32 %v940, %v1425
  %v1709 = vmax.f32 %v943, %v1428
  %v1710 = vmax.f32 %v946, %v1431
  %v1711 = vmax.f32 %v949, %v1434
  %v1712 = vmax.f32 %v952, %v1437
  %v1713 = vmax.f32 %v955, %v1440
  %v1714 = vmax.f32 %v958, %v1443
  %v1715 = vmax.f32 %v961, %v1446
  %v1716 = vmax.f32 %v964, %v1449
  %v1717 = vmax.f32 %v967, %v1452
  %v1718 = vmax.f32 %v970, %v1455
  %v1719 = vmax.f32 %v973, %v1458
  %v1720 = vmax.f32 %v976, %v1461
  %v1721 = vmax.f32 %v979, %v1464
  %v1722 = vmax.f32 %v982, %v1467
  %v1723 = vmax.f32 %v985, %v1470
  %v1724 = vmax.f32 %v988, %v1473
  %v1725 = vmax.f32 %v991, %v1476
  %v1726 = vmax.f32 %v994, %v1479
  %v1727 = vmax.f32 %v997, %v1482
  %v1728 = vmax.f32 %v1000, %v1485
  %v1729 = vmax.f32 %v1003, %v1488
  %v1730 = vmax.f32 %v1006, %v1491
  %v1731 = vmax.f32 %v1009, %v1494
  %v1732 = vmax.f32 %v1012, %v1497
  %v1733 = vmax.f32 %v1015, %v1500
  %v1734 = vmax.f32 %v1018, %v1503
  %v1735 = vmax.f32 %v1021, %v1506
  %v1736 = vmax.f32 %v1024, %v1509
  %v1737 = vmax.f32 %v1027, %v1512
  %v1738 = vmax.f32 %v1030, %v1515
  %v1739 = vmax.f32 %v1033, %v1518
  %v1740 = vmax.f32 %v1036, %v1521
  %v1741 = vmax.f32 %v1039, %v1524
  %v1742 = vmax.f32 %v1042, %v1527
  %v1743 = vmax.f32 %v1045, %v1530
  %v1744 = vmax.f32 %v1048, %v1533
  %v1745 = vmax.f32 %v1051, %v1536
  %v1746 = vmax.f32 %v1054, %v1539
  %v1747 = vmax.f32 %v1057, %v1542
  %v1748 = vmax.f32 %v1060, %v1545
  %v1749 = vmax.f32 %v1063, %v1548
  %v1750 = vmax.f32 %v1066, %v1551
  %v1751 = vmax.f32 %v1069, %v1554
  %v1752 = vmax.f32 %v1072, %v1557
  %v1753 = vmax.f32 %v1075, %v1560
  %v1754 = vmax.f32 %v1078, %v1563
  %v1755 = vmax.f32 %v1081, %v1566
  %v1756 = vmax.f32 %v1084, %v1569
  %v1757 = vmax.f32 %v1087, %v1572
  %v1758 = vmax.f32 %v1090, %v1575
  %v1759 = vmax.f32 %v1093, %v1578
  %v1760 = vmax.f32 %v1096, %v1581
  %v1761 = vmax.f32 %v1099, %v1584
  %v1762 = vmax.f32 %v1102, %v1587
  %v1763 = vmax.f32 %v1105, %v1590
  %v1764 = vmax.f32 %v1108, %v1593
  %v1765 = vmax.f32 %v1111, %v1596
  %v1766 = vmax.f32 %v1114, %v1599
  %v1767 = vmax.f32 %v1117, %v1602
  %v1768 = vmax.f32 %v1120, %v1605
  %v1769 = vmax.f32 %v1123, %v1608
  %v1770 = vmax.f32 %v1126, %v1611
  %v1771 = vmax.f32 %v1129, %v1614
  %v1772 = vmax.f32 %v1616, 0.0
  %v1773 = vmax.f32 %v1617, 0.0
  %v1774 = vmax.f32 %v1618, 0.0
  %v1775 = vmax.f32 %v1619, 0.0
  %v1776 = vmax.f32 %v1620, 0.0
  %v1777 = vmax.f32 %v1621, 0.0
  %v1778 = vmax.f32 %v1622, 0.0
  %v1779 = vmax.f32 %v1623, 0.0
  %v1780 = vmax.f32 %v1624, 0.0
  %v1781 = vmax.f32 %v1625, 0.0
  %v1782 = vmax.f32 %v1626, 0.0
  %v1783 = vmax.f32 %v1627, 0.0
  %v1784 = vmax.f32 %v1628, 0.0
  %v1785 = vmax.f32 %v1629, 0.0
  %v1786 = vmax.f32 %v1630, 0.0
  %v1787 = vmax.f32 %v1631, 0.0
  %v1788 = vmax.f32 %v1632, 0.0
  %v1789 = vmax.f32 %v1633, 0.0
  %v1790 = vmax.f32 %v1634, 0.0
  %v1791 = vmax.f32 %v1635, 0.0
  %v1792 = vmax.f32 %v1636, 0.0
  %v1793 = vmax.f32 %v1637, 0.0
  %v1794 = vmax.f32 %v1638, 0.0
  %v1795 = vmax.f32 %v1639, 0.0
  %v1796 = vmax.f32 %v1640, 0.0
  %v1797 = vmax.f32 %v1641, 0.0
  %v1798 = vmax.f32 %v1642, 0.0
  %v1799 = vmax.f32 %v1643, 0.0
  %v1800 = vmax.f32 %v1644, 0.0
  %v1801 = vmax.f32 %v1645, 0.0
  %v1802 = vmax.f32 %v1646, 0.0
  %v1803 = vmax.f32 %v1647, 0.0
  %v1804 = vmax.f32 %v1648, 0.0
  %v1805 = vmax.f32 %v1649, 0.0
  %v1806 = vmax.f32 %v1650, 0.0
  %v1807 = vmax.f32 %v1651, 0.0
  %v1808 = vmax.f32 %v1652, 0.0
  %v1809 = vmax.f32 %v1653, 0.0
  %v1810 = vmax.f32 %v1654, 0.0
  %v1811 = vmax.f32 %v1655, 0.0
  %v1812 = vmax.f32 %v1656, 0.0
  %v1813 = vmax.f32 %v1657, 0.0
  %v1814 = vmax.f32 %v1658, 0.0
  %v1815 = vmax.f32 %v1659, 0.0
  %v1816 = vmax.f32 %v1660, 0.0
  %v1817 = vmax.f32 %v1661, 0.0
  %v1818 = vmax.f32 %v1662, 0.0
  %v1819 = vmax.f32 %v1663, 0.0
  %v1820 = vmax.f32 %v1664, 0.0
  %v1821 = vmax.f32 %v1665, 0.0
  %v1822 = vmax.f32 %v1666, 0.0
  %v1823 = vmax.f32 %v1667, 0.0
  %v1824 = vmax.f32 %v1668, 0.0
  %v1825 = vmax.f32 %v1669, 0.0
  %v1826 = vmax.f32 %v1670, 0.0
  %v1827 = vmax.f32 %v1671, 0.0
  %v1828 = vmax.f32 %v1672, 0.0
  %v1829 = vmax.f32 %v1673, 0.0
  %v1830 = vmax.f32 %v1674, 0.0
  %v1831 = vmax.f32 %v1675, 0.0
  %v1832 = vmax.f32 %v1676, 0.0
  %v1833 = vmax.f32 %v1677, 0.0
  %v1834 = vmax.f32 %v1678, 0.0
  %v1835 = vmax.f32 %v1679, 0.0
  %v1836 = vmax.f32 %v1680, 0.0
  %v1837 = vmax.f32 %v1681, 0.0
  %v1838 = vmax.f32 %v1682, 0.0
  %v1839 = vmax.f32 %v1683, 0.0
  %v1840 = vmax.f32 %v1684, 0.0
  %v1841 = vmax.f32 %v1685, 0.0
  %v1842 = vmax.f32 %v1686, 0.0
  %v1843 = vmax.f32 %v1687, 0.0
  %v1844 = vmax.f32 %v1688, 0.0
  %v1845 = vmax.f32 %v1689, 0.0
  %v1846 = vmax.f32 %v1690, 0.0
  %v1847 = vmax.f32 %v1691, 0.0
  %v1848 = vmax.f32 %v1692, 0.0
  %v1849 = vmax.f32 %v1693, 0.0
  %v1850 = vmax.f32 %v1694, 0.0
  %v1851 = vmax.f32 %v1695, 0.0
  %v1852 = vmax.f32 %v1696, 0.0
  %v1853 = vmax.f32 %v1697, 0.0
  %v1854 = vmax.f32 %v1698, 0.0
  %v1855 = vmax.f32 %v1699, 0.0
  %v1856 = vmax.f32 %v1700, 0.0
  %v1857 = vmax.f32 %v1701, 0.0
  %v1858 = vmax.f32 %v1702, 0.0
  %v1859 = vmax.f32 %v1703, 0.0
  %v1860 = vmax.f32 %v1704, 0.0
  %v1861 = vmax.f32 %v1705, 0.0
  %v1862 = vmax.f32 %v1706, 0.0
  %v1863 = vmax.f32 %v1707, 0.0
  %v1864 = vmax.f32 %v1708, 0.0
  %v1865 = vmax.f32 %v1709, 0.0
  %v1866 = vmax.f32 %v1710, 0.0
  %v1867 = vmax.f32 %v1711, 0.0
  %v1868 = vmax.f32 %v1712, 0.0
  %v1869 = vmax.f32 %v1713, 0.0
  %v1870 = vmax.f32 %v1714, 0.0
  %v1871 = vmax.f32 %v1715, 0.0
  %v1872 = vmax.f32 %v1716, 0.0
  %v1873 = vmax.f32 %v1717, 0.0
  %v1874 = vmax.f32 %v1718, 0.0
  %v1875 = vmax.f32 %v1719, 0.0
  %v1876 = vmax.f32 %v1720, 0.0
  %v1877 = vmax.f32 %v1721, 0.0
  %v1878 = vmax.f32 %v1722, 0.0
  %v1879 = vmax.f32 %v1723, 0.0
  %v1880 = vmax.f32 %v1724, 0.0
  %v1881 = vmax.f32 %v1725, 0.0
  %v1882 = vmax.f32 %v1726, 0.0
  %v1883 = vmax.f32 %v1727, 0.0
  %v1884 = vmax.f32 %v1728, 0.0
  %v1885 = vmax.f32 %v1729, 0.0
  %v1886 = vmax.f32 %v1730, 0.0
  %v1887 = vmax.f32 %v1731, 0.0
  %v1888 = vmax.f32 %v1732, 0.0
  %v1889 = vmax.f32 %v1733, 0.0
  %v1890 = vmax.f32 %v1734, 0.0
  %v1891 = vmax.f32 %v1735, 0.0
  %v1892 = vmax.f32 %v1736, 0.0
  %v1893 = vmax.f32 %v1737, 0.0
  %v1894 = vmax.f32 %v1738, 0.0
  %v1895 = vmax.f32 %v1739, 0.0
  %v1896 = vmax.f32 %v1740, 0.0
  %v1897 = vmax.f32 %v1741, 0.0
  %v1898 = vmax.f32 %v1742, 0.0
  %v1899 = vmax.f32 %v1743, 0.0
  %v1900 = vmax.f32 %v1744, 0.0
  %v1901 = vmax.f32 %v1745, 0.0
  %v1902 = vmax.f32 %v1746, 0.0
  %v1903 = vmax.f32 %v1747, 0.0
  %v1904 = vmax.f32 %v1748, 0.0
  %v1905 = vmax.f32 %v1749, 0.0
  %v1906 = vmax.f32 %v1750, 0.0
  %v1907 = vmax.f32 %v1751, 0.0
  %v1908 = vmax.f32 %v1752, 0.0
  %v1909 = vmax.f32 %v1753, 0.0
  %v1910 = vmax.f32 %v1754, 0.0
  %v1911 = vmax.f32 %v1755, 0.0
  %v1912 = vmax.f32 %v1756, 0.0
  %v1913 = vmax.f32 %v1757, 0.0
  %v1914 = vmax.f32 %v1758, 0.0
  %v1915 = vmax.f32 %v1759, 0.0
  %v1916 = vmax.f32 %v1760, 0.0
  %v1917 = vmax.f32 %v1761, 0.0
  %v1918 = vmax.f32 %v1762, 0.0
  %v1919 = vmax.f32 %v1763, 0.0
  %v1920 = vmax.f32 %v1764, 0.0
  %v1921 = vmax.f32 %v1765, 0.0
  %v1922 = vmax.f32 %v1766, 0.0
  %v1923 = vmax.f32 %v1767, 0.0
  %v1924 = vmax.f32 %v1768, 0.0
  %v1925 = vmax.f32 %v1769, 0.0
  %v1926 = vmax.f32 %v1770, 0.0
  %v1927 = vmax.f32 %v1771, 0.0
  %v1928 = vld [vmem:[%s2] sm:$0xff]
  %v1929 = vld [vmem:[%s2 + $0x8] sm:$0xff]
  %v1930 = vld [vmem:[%s2 + $0x10] sm:$0xff]
  %v1931 = vld [vmem:[%s2 + $0x18] sm:$0xff]
  %v1932 = vld [vmem:[%s2 + $0x20] sm:$0xff]
  %v1933 = vld [vmem:[%s2 + $0x28] sm:$0xff]
  %v1934 = vld [vmem:[%s2 + $0x30] sm:$0xff]
  %v1935 = vld [vmem:[%s2 + $0x38] sm:$0xff]
  %v1936 = vld [vmem:[%s2 + $0x40] sm:$0xff]
  %v1937 = vld [vmem:[%s2 + $0x48] sm:$0xff]
  %v1938 = vld [vmem:[%s2 + $0x50] sm:$0xff]
  %v1939 = vld [vmem:[%s2 + $0x58] sm:$0xff]
  %v1940 = vld [vmem:[%s2 + $0x60] sm:$0xff]
  %v1941 = vld [vmem:[%s2 + $0x68] sm:$0xff]
  %v1942 = vld [vmem:[%s2 + $0x70] sm:$0xff]
  %v1943 = vld [vmem:[%s2 + $0x78] sm:$0xff]
  %1944 = vmatpush.msra.mxu0 %v1943
  %1945 = vmatpush.msra.mxu0 %v1942
  %1946 = vmatpush.msra.mxu0 %v1941
  %1947 = vmatpush.msra.mxu0 %v1940
  %1948 = vmatpush.msra.mxu0 %v1939
  %1949 = vmatpush.msra.mxu0 %v1938
  %1950 = vmatpush.msra.mxu0 %v1937
  %1951 = vmatpush.msra.mxu0 %v1936
  %1952 = vmatpush.msra.mxu0 %v1935
  %1953 = vmatpush.msra.mxu0 %v1934
  %1954 = vmatpush.msra.mxu0 %v1933
  %1955 = vmatpush.msra.mxu0 %v1932
  %1956 = vmatpush.msra.mxu0 %v1931
  %1957 = vmatpush.msra.mxu0 %v1930
  %1958 = vmatpush.msra.mxu0 %v1929
  %1959 = vmatpush.msra.mxu0 %v1928
  %1960 = vmatmul.f32.gmra.mxu0 %v1772
  %v1961 = vpop.f32.mrf.mxu0
  %v1962 = vadd.f32 0.0, %v1961
  %1963 = vmatmul.f32.gmra.mxu0 %v1773
  %v1964 = vpop.f32.mrf.mxu0
  %v1965 = vadd.f32 0.0, %v1964
  %1966 = vmatmul.f32.gmra.mxu0 %v1774
  %v1967 = vpop.f32.mrf.mxu0
  %v1968 = vadd.f32 0.0, %v1967
  %1969 = vmatmul.f32.gmra.mxu0 %v1775
  %v1970 = vpop.f32.mrf.mxu0
  %v1971 = vadd.f32 0.0, %v1970
  %1972 = vmatmul.f32.gmra.mxu0 %v1776
  %v1973 = vpop.f32.mrf.mxu0
  %v1974 = vadd.f32 0.0, %v1973
  %1975 = vmatmul.f32.gmra.mxu0 %v1777
  %v1976 = vpop.f32.mrf.mxu0
  %v1977 = vadd.f32 0.0, %v1976
  %1978 = vmatmul.f32.gmra.mxu0 %v1778
  %v1979 = vpop.f32.mrf.mxu0
  %v1980 = vadd.f32 0.0, %v1979
  %1981 = vmatmul.f32.gmra.mxu0 %v1779
  %v1982 = vpop.f32.mrf.mxu0
  %v1983 = vadd.f32 0.0, %v1982
  %1984 = vmatmul.f32.gmra.mxu0 %v1780
  %v1985 = vpop.f32.mrf.mxu0
  %v1986 = vadd.f32 0.0, %v1985
  %1987 = vmatmul.f32.gmra.mxu0 %v1781
  %v1988 = vpop.f32.mrf.mxu0
  %v1989 = vadd.f32 0.0, %v1988
  %1990 = vmatmul.f32.gmra.mxu0 %v1782
  %v1991 = vpop.f32.mrf.mxu0
  %v1992 = vadd.f32 0.0, %v1991
  %1993 = vmatmul.f32.gmra.mxu0 %v1783
  %v1994 = vpop.f32.mrf.mxu0
  %v1995 = vadd.f32 0.0, %v1994
  %1996 = vmatmul.f32.gmra.mxu0 %v1784
  %v1997 = vpop.f32.mrf.mxu0
  %v1998 = vadd.f32 0.0, %v1997
  %1999 = vmatmul.f32.gmra.mxu0 %v1785
  %v2000 = vpop.f32.mrf.mxu0
  %v2001 = vadd.f32 0.0, %v2000
  %2002 = vmatmul.f32.gmra.mxu0 %v1786
  %v2003 = vpop.f32.mrf.mxu0
  %v2004 = vadd.f32 0.0, %v2003
  %2005 = vmatmul.f32.gmra.mxu0 %v1787
  %v2006 = vpop.f32.mrf.mxu0
  %v2007 = vadd.f32 0.0, %v2006
  %2008 = vmatmul.f32.gmra.mxu0 %v1788
  %v2009 = vpop.f32.mrf.mxu0
  %v2010 = vadd.f32 0.0, %v2009
  %2011 = vmatmul.f32.gmra.mxu0 %v1789
  %v2012 = vpop.f32.mrf.mxu0
  %v2013 = vadd.f32 0.0, %v2012
  %2014 = vmatmul.f32.gmra.mxu0 %v1790
  %v2015 = vpop.f32.mrf.mxu0
  %v2016 = vadd.f32 0.0, %v2015
  %2017 = vmatmul.f32.gmra.mxu0 %v1791
  %v2018 = vpop.f32.mrf.mxu0
  %v2019 = vadd.f32 0.0, %v2018
  %2020 = vmatmul.f32.gmra.mxu0 %v1792
  %v2021 = vpop.f32.mrf.mxu0
  %v2022 = vadd.f32 0.0, %v2021
  %2023 = vmatmul.f32.gmra.mxu0 %v1793
  %v2024 = vpop.f32.mrf.mxu0
  %v2025 = vadd.f32 0.0, %v2024
  %2026 = vmatmul.f32.gmra.mxu0 %v1794
  %v2027 = vpop.f32.mrf.mxu0
  %v2028 = vadd.f32 0.0, %v2027
  %2029 = vmatmul.f32.gmra.mxu0 %v1795
  %v2030 = vpop.f32.mrf.mxu0
  %v2031 = vadd.f32 0.0, %v2030
  %2032 = vmatmul.f32.gmra.mxu0 %v1796
  %v2033 = vpop.f32.mrf.mxu0
  %v2034 = vadd.f32 0.0, %v2033
  %2035 = vmatmul.f32.gmra.mxu0 %v1797
  %v2036 = vpop.f32.mrf.mxu0
  %v2037 = vadd.f32 0.0, %v2036
  %2038 = vmatmul.f32.gmra.mxu0 %v1798
  %v2039 = vpop.f32.mrf.mxu0
  %v2040 = vadd.f32 0.0, %v2039
  %2041 = vmatmul.f32.gmra.mxu0 %v1799
  %v2042 = vpop.f32.mrf.mxu0
  %v2043 = vadd.f32 0.0, %v2042
  %2044 = vmatmul.f32.gmra.mxu0 %v1800
  %v2045 = vpop.f32.mrf.mxu0
  %v2046 = vadd.f32 0.0, %v2045
  %2047 = vmatmul.f32.gmra.mxu0 %v1801
  %v2048 = vpop.f32.mrf.mxu0
  %v2049 = vadd.f32 0.0, %v2048
  %2050 = vmatmul.f32.gmra.mxu0 %v1802
  %v2051 = vpop.f32.mrf.mxu0
  %v2052 = vadd.f32 0.0, %v2051
  %2053 = vmatmul.f32.gmra.mxu0 %v1803
  %v2054 = vpop.f32.mrf.mxu0
  %v2055 = vadd.f32 0.0, %v2054
  %2056 = vmatmul.f32.gmra.mxu0 %v1804
  %v2057 = vpop.f32.mrf.mxu0
  %v2058 = vadd.f32 0.0, %v2057
  %2059 = vmatmul.f32.gmra.mxu0 %v1805
  %v2060 = vpop.f32.mrf.mxu0
  %v2061 = vadd.f32 0.0, %v2060
  %2062 = vmatmul.f32.gmra.mxu0 %v1806
  %v2063 = vpop.f32.mrf.mxu0
  %v2064 = vadd.f32 0.0, %v2063
  %2065 = vmatmul.f32.gmra.mxu0 %v1807
  %v2066 = vpop.f32.mrf.mxu0
  %v2067 = vadd.f32 0.0, %v2066
  %2068 = vmatmul.f32.gmra.mxu0 %v1808
  %v2069 = vpop.f32.mrf.mxu0
  %v2070 = vadd.f32 0.0, %v2069
  %2071 = vmatmul.f32.gmra.mxu0 %v1809
  %v2072 = vpop.f32.mrf.mxu0
  %v2073 = vadd.f32 0.0, %v2072
  %2074 = vmatmul.f32.gmra.mxu0 %v1810
  %v2075 = vpop.f32.mrf.mxu0
  %v2076 = vadd.f32 0.0, %v2075
  %2077 = vmatmul.f32.gmra.mxu0 %v1811
  %v2078 = vpop.f32.mrf.mxu0
  %v2079 = vadd.f32 0.0, %v2078
  %2080 = vmatmul.f32.gmra.mxu0 %v1812
  %v2081 = vpop.f32.mrf.mxu0
  %v2082 = vadd.f32 0.0, %v2081
  %2083 = vmatmul.f32.gmra.mxu0 %v1813
  %v2084 = vpop.f32.mrf.mxu0
  %v2085 = vadd.f32 0.0, %v2084
  %2086 = vmatmul.f32.gmra.mxu0 %v1814
  %v2087 = vpop.f32.mrf.mxu0
  %v2088 = vadd.f32 0.0, %v2087
  %2089 = vmatmul.f32.gmra.mxu0 %v1815
  %v2090 = vpop.f32.mrf.mxu0
  %v2091 = vadd.f32 0.0, %v2090
  %2092 = vmatmul.f32.gmra.mxu0 %v1816
  %v2093 = vpop.f32.mrf.mxu0
  %v2094 = vadd.f32 0.0, %v2093
  %2095 = vmatmul.f32.gmra.mxu0 %v1817
  %v2096 = vpop.f32.mrf.mxu0
  %v2097 = vadd.f32 0.0, %v2096
  %2098 = vmatmul.f32.gmra.mxu0 %v1818
  %v2099 = vpop.f32.mrf.mxu0
  %v2100 = vadd.f32 0.0, %v2099
  %2101 = vmatmul.f32.gmra.mxu0 %v1819
  %v2102 = vpop.f32.mrf.mxu0
  %v2103 = vadd.f32 0.0, %v2102
  %2104 = vmatmul.f32.gmra.mxu0 %v1820
  %v2105 = vpop.f32.mrf.mxu0
  %v2106 = vadd.f32 0.0, %v2105
  %2107 = vmatmul.f32.gmra.mxu0 %v1821
  %v2108 = vpop.f32.mrf.mxu0
  %v2109 = vadd.f32 0.0, %v2108
  %2110 = vmatmul.f32.gmra.mxu0 %v1822
  %v2111 = vpop.f32.mrf.mxu0
  %v2112 = vadd.f32 0.0, %v2111
  %2113 = vmatmul.f32.gmra.mxu0 %v1823
  %v2114 = vpop.f32.mrf.mxu0
  %v2115 = vadd.f32 0.0, %v2114
  %2116 = vmatmul.f32.gmra.mxu0 %v1824
  %v2117 = vpop.f32.mrf.mxu0
  %v2118 = vadd.f32 0.0, %v2117
  %2119 = vmatmul.f32.gmra.mxu0 %v1825
  %v2120 = vpop.f32.mrf.mxu0
  %v2121 = vadd.f32 0.0, %v2120
  %2122 = vmatmul.f32.gmra.mxu0 %v1826
  %v2123 = vpop.f32.mrf.mxu0
  %v2124 = vadd.f32 0.0, %v2123
  %2125 = vmatmul.f32.gmra.mxu0 %v1827
  %v2126 = vpop.f32.mrf.mxu0
  %v2127 = vadd.f32 0.0, %v2126
  %2128 = vmatmul.f32.gmra.mxu0 %v1828
  %v2129 = vpop.f32.mrf.mxu0
  %v2130 = vadd.f32 0.0, %v2129
  %2131 = vmatmul.f32.gmra.mxu0 %v1829
  %v2132 = vpop.f32.mrf.mxu0
  %v2133 = vadd.f32 0.0, %v2132
  %2134 = vmatmul.f32.gmra.mxu0 %v1830
  %v2135 = vpop.f32.mrf.mxu0
  %v2136 = vadd.f32 0.0, %v2135
  %2137 = vmatmul.f32.gmra.mxu0 %v1831
  %v2138 = vpop.f32.mrf.mxu0
  %v2139 = vadd.f32 0.0, %v2138
  %2140 = vmatmul.f32.gmra.mxu0 %v1832
  %v2141 = vpop.f32.mrf.mxu0
  %v2142 = vadd.f32 0.0, %v2141
  %2143 = vmatmul.f32.gmra.mxu0 %v1833
  %v2144 = vpop.f32.mrf.mxu0
  %v2145 = vadd.f32 0.0, %v2144
  %2146 = vmatmul.f32.gmra.mxu0 %v1834
  %v2147 = vpop.f32.mrf.mxu0
  %v2148 = vadd.f32 0.0, %v2147
  %2149 = vmatmul.f32.gmra.mxu0 %v1835
  %v2150 = vpop.f32.mrf.mxu0
  %v2151 = vadd.f32 0.0, %v2150
  %2152 = vmatmul.f32.gmra.mxu0 %v1836
  %v2153 = vpop.f32.mrf.mxu0
  %v2154 = vadd.f32 0.0, %v2153
  %2155 = vmatmul.f32.gmra.mxu0 %v1837
  %v2156 = vpop.f32.mrf.mxu0
  %v2157 = vadd.f32 0.0, %v2156
  %2158 = vmatmul.f32.gmra.mxu0 %v1838
  %v2159 = vpop.f32.mrf.mxu0
  %v2160 = vadd.f32 0.0, %v2159
  %2161 = vmatmul.f32.gmra.mxu0 %v1839
  %v2162 = vpop.f32.mrf.mxu0
  %v2163 = vadd.f32 0.0, %v2162
  %2164 = vmatmul.f32.gmra.mxu0 %v1840
  %v2165 = vpop.f32.mrf.mxu0
  %v2166 = vadd.f32 0.0, %v2165
  %2167 = vmatmul.f32.gmra.mxu0 %v1841
  %v2168 = vpop.f32.mrf.mxu0
  %v2169 = vadd.f32 0.0, %v2168
  %2170 = vmatmul.f32.gmra.mxu0 %v1842
  %v2171 = vpop.f32.mrf.mxu0
  %v2172 = vadd.f32 0.0, %v2171
  %2173 = vmatmul.f32.gmra.mxu0 %v1843
  %v2174 = vpop.f32.mrf.mxu0
  %v2175 = vadd.f32 0.0, %v2174
  %2176 = vmatmul.f32.gmra.mxu0 %v1844
  %v2177 = vpop.f32.mrf.mxu0
  %v2178 = vadd.f32 0.0, %v2177
  %2179 = vmatmul.f32.gmra.mxu0 %v1845
  %v2180 = vpop.f32.mrf.mxu0
  %v2181 = vadd.f32 0.0, %v2180
  %2182 = vmatmul.f32.gmra.mxu0 %v1846
  %v2183 = vpop.f32.mrf.mxu0
  %v2184 = vadd.f32 0.0, %v2183
  %2185 = vmatmul.f32.gmra.mxu0 %v1847
  %v2186 = vpop.f32.mrf.mxu0
  %v2187 = vadd.f32 0.0, %v2186
  %2188 = vmatmul.f32.gmra.mxu0 %v1848
  %v2189 = vpop.f32.mrf.mxu0
  %v2190 = vadd.f32 0.0, %v2189
  %2191 = vmatmul.f32.gmra.mxu0 %v1849
  %v2192 = vpop.f32.mrf.mxu0
  %v2193 = vadd.f32 0.0, %v2192
  %2194 = vmatmul.f32.gmra.mxu0 %v1850
  %v2195 = vpop.f32.mrf.mxu0
  %v2196 = vadd.f32 0.0, %v2195
  %2197 = vmatmul.f32.gmra.mxu0 %v1851
  %v2198 = vpop.f32.mrf.mxu0
  %v2199 = vadd.f32 0.0, %v2198
  %2200 = vmatmul.f32.gmra.mxu0 %v1852
  %v2201 = vpop.f32.mrf.mxu0
  %v2202 = vadd.f32 0.0, %v2201
  %2203 = vmatmul.f32.gmra.mxu0 %v1853
  %v2204 = vpop.f32.mrf.mxu0
  %v2205 = vadd.f32 0.0, %v2204
  %2206 = vmatmul.f32.gmra.mxu0 %v1854
  %v2207 = vpop.f32.mrf.mxu0
  %v2208 = vadd.f32 0.0, %v2207
  %2209 = vmatmul.f32.gmra.mxu0 %v1855
  %v2210 = vpop.f32.mrf.mxu0
  %v2211 = vadd.f32 0.0, %v2210
  %2212 = vmatmul.f32.gmra.mxu0 %v1856
  %v2213 = vpop.f32.mrf.mxu0
  %v2214 = vadd.f32 0.0, %v2213
  %2215 = vmatmul.f32.gmra.mxu0 %v1857
  %v2216 = vpop.f32.mrf.mxu0
  %v2217 = vadd.f32 0.0, %v2216
  %2218 = vmatmul.f32.gmra.mxu0 %v1858
  %v2219 = vpop.f32.mrf.mxu0
  %v2220 = vadd.f32 0.0, %v2219
  %2221 = vmatmul.f32.gmra.mxu0 %v1859
  %v2222 = vpop.f32.mrf.mxu0
  %v2223 = vadd.f32 0.0, %v2222
  %2224 = vmatmul.f32.gmra.mxu0 %v1860
  %v2225 = vpop.f32.mrf.mxu0
  %v2226 = vadd.f32 0.0, %v2225
  %2227 = vmatmul.f32.gmra.mxu0 %v1861
  %v2228 = vpop.f32.mrf.mxu0
  %v2229 = vadd.f32 0.0, %v2228
  %2230 = vmatmul.f32.gmra.mxu0 %v1862
  %v2231 = vpop.f32.mrf.mxu0
  %v2232 = vadd.f32 0.0, %v2231
  %2233 = vmatmul.f32.gmra.mxu0 %v1863
  %v2234 = vpop.f32.mrf.mxu0
  %v2235 = vadd.f32 0.0, %v2234
  %2236 = vmatmul.f32.gmra.mxu0 %v1864
  %v2237 = vpop.f32.mrf.mxu0
  %v2238 = vadd.f32 0.0, %v2237
  %2239 = vmatmul.f32.gmra.mxu0 %v1865
  %v2240 = vpop.f32.mrf.mxu0
  %v2241 = vadd.f32 0.0, %v2240
  %2242 = vmatmul.f32.gmra.mxu0 %v1866
  %v2243 = vpop.f32.mrf.mxu0
  %v2244 = vadd.f32 0.0, %v2243
  %2245 = vmatmul.f32.gmra.mxu0 %v1867
  %v2246 = vpop.f32.mrf.mxu0
  %v2247 = vadd.f32 0.0, %v2246
  %2248 = vmatmul.f32.gmra.mxu0 %v1868
  %v2249 = vpop.f32.mrf.mxu0
  %v2250 = vadd.f32 0.0, %v2249
  %2251 = vmatmul.f32.gmra.mxu0 %v1869
  %v2252 = vpop.f32.mrf.mxu0
  %v2253 = vadd.f32 0.0, %v2252
  %2254 = vmatmul.f32.gmra.mxu0 %v1870
  %v2255 = vpop.f32.mrf.mxu0
  %v2256 = vadd.f32 0.0, %v2255
  %2257 = vmatmul.f32.gmra.mxu0 %v1871
  %v2258 = vpop.f32.mrf.mxu0
  %v2259 = vadd.f32 0.0, %v2258
  %2260 = vmatmul.f32.gmra.mxu0 %v1872
  %v2261 = vpop.f32.mrf.mxu0
  %v2262 = vadd.f32 0.0, %v2261
  %2263 = vmatmul.f32.gmra.mxu0 %v1873
  %v2264 = vpop.f32.mrf.mxu0
  %v2265 = vadd.f32 0.0, %v2264
  %2266 = vmatmul.f32.gmra.mxu0 %v1874
  %v2267 = vpop.f32.mrf.mxu0
  %v2268 = vadd.f32 0.0, %v2267
  %2269 = vmatmul.f32.gmra.mxu0 %v1875
  %v2270 = vpop.f32.mrf.mxu0
  %v2271 = vadd.f32 0.0, %v2270
  %2272 = vmatmul.f32.gmra.mxu0 %v1876
  %v2273 = vpop.f32.mrf.mxu0
  %v2274 = vadd.f32 0.0, %v2273
  %2275 = vmatmul.f32.gmra.mxu0 %v1877
  %v2276 = vpop.f32.mrf.mxu0
  %v2277 = vadd.f32 0.0, %v2276
  %2278 = vmatmul.f32.gmra.mxu0 %v1878
  %v2279 = vpop.f32.mrf.mxu0
  %v2280 = vadd.f32 0.0, %v2279
  %2281 = vmatmul.f32.gmra.mxu0 %v1879
  %v2282 = vpop.f32.mrf.mxu0
  %v2283 = vadd.f32 0.0, %v2282
  %2284 = vmatmul.f32.gmra.mxu0 %v1880
  %v2285 = vpop.f32.mrf.mxu0
  %v2286 = vadd.f32 0.0, %v2285
  %2287 = vmatmul.f32.gmra.mxu0 %v1881
  %v2288 = vpop.f32.mrf.mxu0
  %v2289 = vadd.f32 0.0, %v2288
  %2290 = vmatmul.f32.gmra.mxu0 %v1882
  %v2291 = vpop.f32.mrf.mxu0
  %v2292 = vadd.f32 0.0, %v2291
  %2293 = vmatmul.f32.gmra.mxu0 %v1883
  %v2294 = vpop.f32.mrf.mxu0
  %v2295 = vadd.f32 0.0, %v2294
  %2296 = vmatmul.f32.gmra.mxu0 %v1884
  %v2297 = vpop.f32.mrf.mxu0
  %v2298 = vadd.f32 0.0, %v2297
  %2299 = vmatmul.f32.gmra.mxu0 %v1885
  %v2300 = vpop.f32.mrf.mxu0
  %v2301 = vadd.f32 0.0, %v2300
  %2302 = vmatmul.f32.gmra.mxu0 %v1886
  %v2303 = vpop.f32.mrf.mxu0
  %v2304 = vadd.f32 0.0, %v2303
  %2305 = vmatmul.f32.gmra.mxu0 %v1887
  %v2306 = vpop.f32.mrf.mxu0
  %v2307 = vadd.f32 0.0, %v2306
  %2308 = vmatmul.f32.gmra.mxu0 %v1888
  %v2309 = vpop.f32.mrf.mxu0
  %v2310 = vadd.f32 0.0, %v2309
  %2311 = vmatmul.f32.gmra.mxu0 %v1889
  %v2312 = vpop.f32.mrf.mxu0
  %v2313 = vadd.f32 0.0, %v2312
  %2314 = vmatmul.f32.gmra.mxu0 %v1890
  %v2315 = vpop.f32.mrf.mxu0
  %v2316 = vadd.f32 0.0, %v2315
  %2317 = vmatmul.f32.gmra.mxu0 %v1891
  %v2318 = vpop.f32.mrf.mxu0
  %v2319 = vadd.f32 0.0, %v2318
  %2320 = vmatmul.f32.gmra.mxu0 %v1892
  %v2321 = vpop.f32.mrf.mxu0
  %v2322 = vadd.f32 0.0, %v2321
  %2323 = vmatmul.f32.gmra.mxu0 %v1893
  %v2324 = vpop.f32.mrf.mxu0
  %v2325 = vadd.f32 0.0, %v2324
  %2326 = vmatmul.f32.gmra.mxu0 %v1894
  %v2327 = vpop.f32.mrf.mxu0
  %v2328 = vadd.f32 0.0, %v2327
  %2329 = vmatmul.f32.gmra.mxu0 %v1895
  %v2330 = vpop.f32.mrf.mxu0
  %v2331 = vadd.f32 0.0, %v2330
  %2332 = vmatmul.f32.gmra.mxu0 %v1896
  %v2333 = vpop.f32.mrf.mxu0
  %v2334 = vadd.f32 0.0, %v2333
  %2335 = vmatmul.f32.gmra.mxu0 %v1897
  %v2336 = vpop.f32.mrf.mxu0
  %v2337 = vadd.f32 0.0, %v2336
  %2338 = vmatmul.f32.gmra.mxu0 %v1898
  %v2339 = vpop.f32.mrf.mxu0
  %v2340 = vadd.f32 0.0, %v2339
  %2341 = vmatmul.f32.gmra.mxu0 %v1899
  %v2342 = vpop.f32.mrf.mxu0
  %v2343 = vadd.f32 0.0, %v2342
  %2344 = vmatmul.f32.gmra.mxu0 %v1900
  %v2345 = vpop.f32.mrf.mxu0
  %v2346 = vadd.f32 0.0, %v2345
  %2347 = vmatmul.f32.gmra.mxu0 %v1901
  %v2348 = vpop.f32.mrf.mxu0
  %v2349 = vadd.f32 0.0, %v2348
  %2350 = vmatmul.f32.gmra.mxu0 %v1902
  %v2351 = vpop.f32.mrf.mxu0
  %v2352 = vadd.f32 0.0, %v2351
  %2353 = vmatmul.f32.gmra.mxu0 %v1903
  %v2354 = vpop.f32.mrf.mxu0
  %v2355 = vadd.f32 0.0, %v2354
  %2356 = vmatmul.f32.gmra.mxu0 %v1904
  %v2357 = vpop.f32.mrf.mxu0
  %v2358 = vadd.f32 0.0, %v2357
  %2359 = vmatmul.f32.gmra.mxu0 %v1905
  %v2360 = vpop.f32.mrf.mxu0
  %v2361 = vadd.f32 0.0, %v2360
  %2362 = vmatmul.f32.gmra.mxu0 %v1906
  %v2363 = vpop.f32.mrf.mxu0
  %v2364 = vadd.f32 0.0, %v2363
  %2365 = vmatmul.f32.gmra.mxu0 %v1907
  %v2366 = vpop.f32.mrf.mxu0
  %v2367 = vadd.f32 0.0, %v2366
  %2368 = vmatmul.f32.gmra.mxu0 %v1908
  %v2369 = vpop.f32.mrf.mxu0
  %v2370 = vadd.f32 0.0, %v2369
  %2371 = vmatmul.f32.gmra.mxu0 %v1909
  %v2372 = vpop.f32.mrf.mxu0
  %v2373 = vadd.f32 0.0, %v2372
  %2374 = vmatmul.f32.gmra.mxu0 %v1910
  %v2375 = vpop.f32.mrf.mxu0
  %v2376 = vadd.f32 0.0, %v2375
  %2377 = vmatmul.f32.gmra.mxu0 %v1911
  %v2378 = vpop.f32.mrf.mxu0
  %v2379 = vadd.f32 0.0, %v2378
  %2380 = vmatmul.f32.gmra.mxu0 %v1912
  %v2381 = vpop.f32.mrf.mxu0
  %v2382 = vadd.f32 0.0, %v2381
  %2383 = vmatmul.f32.gmra.mxu0 %v1913
  %v2384 = vpop.f32.mrf.mxu0
  %v2385 = vadd.f32 0.0, %v2384
  %2386 = vmatmul.f32.gmra.mxu0 %v1914
  %v2387 = vpop.f32.mrf.mxu0
  %v2388 = vadd.f32 0.0, %v2387
  %2389 = vmatmul.f32.gmra.mxu0 %v1915
  %v2390 = vpop.f32.mrf.mxu0
  %v2391 = vadd.f32 0.0, %v2390
  %2392 = vmatmul.f32.gmra.mxu0 %v1916
  %v2393 = vpop.f32.mrf.mxu0
  %v2394 = vadd.f32 0.0, %v2393
  %2395 = vmatmul.f32.gmra.mxu0 %v1917
  %v2396 = vpop.f32.mrf.mxu0
  %v2397 = vadd.f32 0.0, %v2396
  %2398 = vmatmul.f32.gmra.mxu0 %v1918
  %v2399 = vpop.f32.mrf.mxu0
  %v2400 = vadd.f32 0.0, %v2399
  %2401 = vmatmul.f32.gmra.mxu0 %v1919
  %v2402 = vpop.f32.mrf.mxu0
  %v2403 = vadd.f32 0.0, %v2402
  %2404 = vmatmul.f32.gmra.mxu0 %v1920
  %v2405 = vpop.f32.mrf.mxu0
  %v2406 = vadd.f32 0.0, %v2405
  %2407 = vmatmul.f32.gmra.mxu0 %v1921
  %v2408 = vpop.f32.mrf.mxu0
  %v2409 = vadd.f32 0.0, %v2408
  %2410 = vmatmul.f32.gmra.mxu0 %v1922
  %v2411 = vpop.f32.mrf.mxu0
  %v2412 = vadd.f32 0.0, %v2411
  %2413 = vmatmul.f32.gmra.mxu0 %v1923
  %v2414 = vpop.f32.mrf.mxu0
  %v2415 = vadd.f32 0.0, %v2414
  %2416 = vmatmul.f32.gmra.mxu0 %v1924
  %v2417 = vpop.f32.mrf.mxu0
  %v2418 = vadd.f32 0.0, %v2417
  %2419 = vmatmul.f32.gmra.mxu0 %v1925
  %v2420 = vpop.f32.mrf.mxu0
  %v2421 = vadd.f32 0.0, %v2420
  %2422 = vmatmul.f32.gmra.mxu0 %v1926
  %v2423 = vpop.f32.mrf.mxu0
  %v2424 = vadd.f32 0.0, %v2423
  %2425 = vmatmul.f32.gmra.mxu0 %v1927
  %v2426 = vpop.f32.mrf.mxu0
  %v2427 = vadd.f32 0.0, %v2426
  %2428 = vdwg.mxu0
  %2585 = vrot.lane.b32.xlu0 %v1962, 64
  %v2586 = vpop.permute.xlu0 %2585
  %2587 = vrot.lane.b32.xlu0 %v1965, 64
  %v2588 = vpop.permute.xlu0 %2587
  %2589 = vrot.lane.b32.xlu0 %v1968, 64
  %v2590 = vpop.permute.xlu0 %2589
  %2591 = vrot.lane.b32.xlu0 %v1971, 64
  %v2592 = vpop.permute.xlu0 %2591
  %2593 = vrot.lane.b32.xlu0 %v1974, 64
  %v2594 = vpop.permute.xlu0 %2593
  %2595 = vrot.lane.b32.xlu0 %v1977, 64
  %v2596 = vpop.permute.xlu0 %2595
  %2597 = vrot.lane.b32.xlu0 %v1980, 64
  %v2598 = vpop.permute.xlu0 %2597
  %2599 = vrot.lane.b32.xlu0 %v1983, 64
  %v2600 = vpop.permute.xlu0 %2599
  %2601 = vrot.lane.b32.xlu0 %v1986, 64
  %v2602 = vpop.permute.xlu0 %2601
  %2603 = vrot.lane.b32.xlu0 %v1989, 64
  %v2604 = vpop.permute.xlu0 %2603
  %2605 = vrot.lane.b32.xlu0 %v1992, 64
  %v2606 = vpop.permute.xlu0 %2605
  %2607 = vrot.lane.b32.xlu0 %v1995, 64
  %v2608 = vpop.permute.xlu0 %2607
  %2609 = vrot.lane.b32.xlu0 %v1998, 64
  %v2610 = vpop.permute.xlu0 %2609
  %2611 = vrot.lane.b32.xlu0 %v2001, 64
  %v2612 = vpop.permute.xlu0 %2611
  %2613 = vrot.lane.b32.xlu0 %v2004, 64
  %v2614 = vpop.permute.xlu0 %2613
  %2615 = vrot.lane.b32.xlu0 %v2007, 64
  %v2616 = vpop.permute.xlu0 %2615
  %2617 = vrot.lane.b32.xlu0 %v2010, 64
  %v2618 = vpop.permute.xlu0 %2617
  %2619 = vrot.lane.b32.xlu0 %v2013, 64
  %v2620 = vpop.permute.xlu0 %2619
  %2621 = vrot.lane.b32.xlu0 %v2016, 64
  %v2622 = vpop.permute.xlu0 %2621
  %2623 = vrot.lane.b32.xlu0 %v2019, 64
  %v2624 = vpop.permute.xlu0 %2623
  %2625 = vrot.lane.b32.xlu0 %v2022, 64
  %v2626 = vpop.permute.xlu0 %2625
  %2627 = vrot.lane.b32.xlu0 %v2025, 64
  %v2628 = vpop.permute.xlu0 %2627
  %2629 = vrot.lane.b32.xlu0 %v2028, 64
  %v2630 = vpop.permute.xlu0 %2629
  %2631 = vrot.lane.b32.xlu0 %v2031, 64
  %v2632 = vpop.permute.xlu0 %2631
  %2633 = vrot.lane.b32.xlu0 %v2034, 64
  %v2634 = vpop.permute.xlu0 %2633
  %2635 = vrot.lane.b32.xlu0 %v2037, 64
  %v2636 = vpop.permute.xlu0 %2635
  %2637 = vrot.lane.b32.xlu0 %v2040, 64
  %v2638 = vpop.permute.xlu0 %2637
  %2639 = vrot.lane.b32.xlu0 %v2043, 64
  %v2640 = vpop.permute.xlu0 %2639
  %2641 = vrot.lane.b32.xlu0 %v2046, 64
  %v2642 = vpop.permute.xlu0 %2641
  %2643 = vrot.lane.b32.xlu0 %v2049, 64
  %v2644 = vpop.permute.xlu0 %2643
  %2645 = vrot.lane.b32.xlu0 %v2052, 64
  %v2646 = vpop.permute.xlu0 %2645
  %2647 = vrot.lane.b32.xlu0 %v2055, 64
  %v2648 = vpop.permute.xlu0 %2647
  %2649 = vrot.lane.b32.xlu0 %v2058, 64
  %v2650 = vpop.permute.xlu0 %2649
  %2651 = vrot.lane.b32.xlu0 %v2061, 64
  %v2652 = vpop.permute.xlu0 %2651
  %2653 = vrot.lane.b32.xlu0 %v2064, 64
  %v2654 = vpop.permute.xlu0 %2653
  %2655 = vrot.lane.b32.xlu0 %v2067, 64
  %v2656 = vpop.permute.xlu0 %2655
  %2657 = vrot.lane.b32.xlu0 %v2070, 64
  %v2658 = vpop.permute.xlu0 %2657
  %2659 = vrot.lane.b32.xlu0 %v2073, 64
  %v2660 = vpop.permute.xlu0 %2659
  %2661 = vrot.lane.b32.xlu0 %v2076, 64
  %v2662 = vpop.permute.xlu0 %2661
  %2663 = vrot.lane.b32.xlu0 %v2079, 64
  %v2664 = vpop.permute.xlu0 %2663
  %2665 = vrot.lane.b32.xlu0 %v2082, 64
  %v2666 = vpop.permute.xlu0 %2665
  %2667 = vrot.lane.b32.xlu0 %v2085, 64
  %v2668 = vpop.permute.xlu0 %2667
  %2669 = vrot.lane.b32.xlu0 %v2088, 64
  %v2670 = vpop.permute.xlu0 %2669
  %2671 = vrot.lane.b32.xlu0 %v2091, 64
  %v2672 = vpop.permute.xlu0 %2671
  %2673 = vrot.lane.b32.xlu0 %v2094, 64
  %v2674 = vpop.permute.xlu0 %2673
  %2675 = vrot.lane.b32.xlu0 %v2097, 64
  %v2676 = vpop.permute.xlu0 %2675
  %2677 = vrot.lane.b32.xlu0 %v2100, 64
  %v2678 = vpop.permute.xlu0 %2677
  %2679 = vrot.lane.b32.xlu0 %v2103, 64
  %v2680 = vpop.permute.xlu0 %2679
  %2681 = vrot.lane.b32.xlu0 %v2106, 64
  %v2682 = vpop.permute.xlu0 %2681
  %2683 = vrot.lane.b32.xlu0 %v2109, 64
  %v2684 = vpop.permute.xlu0 %2683
  %2685 = vrot.lane.b32.xlu0 %v2112, 64
  %v2686 = vpop.permute.xlu0 %2685
  %2687 = vrot.lane.b32.xlu0 %v2115, 64
  %v2688 = vpop.permute.xlu0 %2687
  %2689 = vrot.lane.b32.xlu0 %v2118, 64
  %v2690 = vpop.permute.xlu0 %2689
  %2691 = vrot.lane.b32.xlu0 %v2121, 64
  %v2692 = vpop.permute.xlu0 %2691
  %2693 = vrot.lane.b32.xlu0 %v2124, 64
  %v2694 = vpop.permute.xlu0 %2693
  %2695 = vrot.lane.b32.xlu0 %v2127, 64
  %v2696 = vpop.permute.xlu0 %2695
  %2697 = vrot.lane.b32.xlu0 %v2130, 64
  %v2698 = vpop.permute.xlu0 %2697
  %2699 = vrot.lane.b32.xlu0 %v2133, 64
  %v2700 = vpop.permute.xlu0 %2699
  %2701 = vrot.lane.b32.xlu0 %v2136, 64
  %v2702 = vpop.permute.xlu0 %2701
  %2703 = vrot.lane.b32.xlu0 %v2139, 64
  %v2704 = vpop.permute.xlu0 %2703
  %2705 = vrot.lane.b32.xlu0 %v2142, 64
  %v2706 = vpop.permute.xlu0 %2705
  %2707 = vrot.lane.b32.xlu0 %v2145, 64
  %v2708 = vpop.permute.xlu0 %2707
  %2709 = vrot.lane.b32.xlu0 %v2148, 64
  %v2710 = vpop.permute.xlu0 %2709
  %2711 = vrot.lane.b32.xlu0 %v2151, 64
  %v2712 = vpop.permute.xlu0 %2711
  %2713 = vrot.lane.b32.xlu0 %v2154, 64
  %v2714 = vpop.permute.xlu0 %2713
  %2715 = vrot.lane.b32.xlu0 %v2157, 64
  %v2716 = vpop.permute.xlu0 %2715
  %2717 = vrot.lane.b32.xlu0 %v2160, 64
  %v2718 = vpop.permute.xlu0 %2717
  %2719 = vrot.lane.b32.xlu0 %v2163, 64
  %v2720 = vpop.permute.xlu0 %2719
  %2721 = vrot.lane.b32.xlu0 %v2166, 64
  %v2722 = vpop.permute.xlu0 %2721
  %2723 = vrot.lane.b32.xlu0 %v2169, 64
  %v2724 = vpop.permute.xlu0 %2723
  %2725 = vrot.lane.b32.xlu0 %v2172, 64
  %v2726 = vpop.permute.xlu0 %2725
  %2727 = vrot.lane.b32.xlu0 %v2175, 64
  %v2728 = vpop.permute.xlu0 %2727
  %2729 = vrot.lane.b32.xlu0 %v2178, 64
  %v2730 = vpop.permute.xlu0 %2729
  %2731 = vrot.lane.b32.xlu0 %v2181, 64
  %v2732 = vpop.permute.xlu0 %2731
  %2733 = vrot.lane.b32.xlu0 %v2184, 64
  %v2734 = vpop.permute.xlu0 %2733
  %2735 = vrot.lane.b32.xlu0 %v2187, 64
  %v2736 = vpop.permute.xlu0 %2735
  %2737 = vrot.lane.b32.xlu0 %v2190, 64
  %v2738 = vpop.permute.xlu0 %2737
  %2739 = vrot.lane.b32.xlu0 %v2193, 64
  %v2740 = vpop.permute.xlu0 %2739
  %2741 = vrot.lane.b32.xlu0 %v2196, 64
  %v2742 = vpop.permute.xlu0 %2741
  %2743 = vrot.lane.b32.xlu0 %v2199, 64
  %v2744 = vpop.permute.xlu0 %2743
  %2745 = vrot.lane.b32.xlu0 %v2202, 64
  %v2746 = vpop.permute.xlu0 %2745
  %2747 = vrot.lane.b32.xlu0 %v2205, 64
  %v2748 = vpop.permute.xlu0 %2747
  %2749 = vrot.lane.b32.xlu0 %v2208, 64
  %v2750 = vpop.permute.xlu0 %2749
  %2751 = vrot.lane.b32.xlu0 %v2211, 64
  %v2752 = vpop.permute.xlu0 %2751
  %2753 = vrot.lane.b32.xlu0 %v2214, 64
  %v2754 = vpop.permute.xlu0 %2753
  %2755 = vrot.lane.b32.xlu0 %v2217, 64
  %v2756 = vpop.permute.xlu0 %2755
  %2757 = vrot.lane.b32.xlu0 %v2220, 64
  %v2758 = vpop.permute.xlu0 %2757
  %2759 = vrot.lane.b32.xlu0 %v2223, 64
  %v2760 = vpop.permute.xlu0 %2759
  %2761 = vrot.lane.b32.xlu0 %v2226, 64
  %v2762 = vpop.permute.xlu0 %2761
  %2763 = vrot.lane.b32.xlu0 %v2229, 64
  %v2764 = vpop.permute.xlu0 %2763
  %2765 = vrot.lane.b32.xlu0 %v2232, 64
  %v2766 = vpop.permute.xlu0 %2765
  %2767 = vrot.lane.b32.xlu0 %v2235, 64
  %v2768 = vpop.permute.xlu0 %2767
  %2769 = vrot.lane.b32.xlu0 %v2238, 64
  %v2770 = vpop.permute.xlu0 %2769
  %2771 = vrot.lane.b32.xlu0 %v2241, 64
  %v2772 = vpop.permute.xlu0 %2771
  %2773 = vrot.lane.b32.xlu0 %v2244, 64
  %v2774 = vpop.permute.xlu0 %2773
  %2775 = vrot.lane.b32.xlu0 %v2247, 64
  %v2776 = vpop.permute.xlu0 %2775
  %2777 = vrot.lane.b32.xlu0 %v2250, 64
  %v2778 = vpop.permute.xlu0 %2777
  %2779 = vrot.lane.b32.xlu0 %v2253, 64
  %v2780 = vpop.permute.xlu0 %2779
  %2781 = vrot.lane.b32.xlu0 %v2256, 64
  %v2782 = vpop.permute.xlu0 %2781
  %2783 = vrot.lane.b32.xlu0 %v2259, 64
  %v2784 = vpop.permute.xlu0 %2783
  %2785 = vrot.lane.b32.xlu0 %v2262, 64
  %v2786 = vpop.permute.xlu0 %2785
  %2787 = vrot.lane.b32.xlu0 %v2265, 64
  %v2788 = vpop.permute.xlu0 %2787
  %2789 = vrot.lane.b32.xlu0 %v2268, 64
  %v2790 = vpop.permute.xlu0 %2789
  %2791 = vrot.lane.b32.xlu0 %v2271, 64
  %v2792 = vpop.permute.xlu0 %2791
  %2793 = vrot.lane.b32.xlu0 %v2274, 64
  %v2794 = vpop.permute.xlu0 %2793
  %2795 = vrot.lane.b32.xlu0 %v2277, 64
  %v2796 = vpop.permute.xlu0 %2795
  %2797 = vrot.lane.b32.xlu0 %v2280, 64
  %v2798 = vpop.permute.xlu0 %2797
  %2799 = vrot.lane.b32.xlu0 %v2283, 64
  %v2800 = vpop.permute.xlu0 %2799
  %2801 = vrot.lane.b32.xlu0 %v2286, 64
  %v2802 = vpop.permute.xlu0 %2801
  %2803 = vrot.lane.b32.xlu0 %v2289, 64
  %v2804 = vpop.permute.xlu0 %2803
  %2805 = vrot.lane.b32.xlu0 %v2292, 64
  %v2806 = vpop.permute.xlu0 %2805
  %2807 = vrot.lane.b32.xlu0 %v2295, 64
  %v2808 = vpop.permute.xlu0 %2807
  %2809 = vrot.lane.b32.xlu0 %v2298, 64
  %v2810 = vpop.permute.xlu0 %2809
  %2811 = vrot.lane.b32.xlu0 %v2301, 64
  %v2812 = vpop.permute.xlu0 %2811
  %2813 = vrot.lane.b32.xlu0 %v2304, 64
  %v2814 = vpop.permute.xlu0 %2813
  %2815 = vrot.lane.b32.xlu0 %v2307, 64
  %v2816 = vpop.permute.xlu0 %2815
  %2817 = vrot.lane.b32.xlu0 %v2310, 64
  %v2818 = vpop.permute.xlu0 %2817
  %2819 = vrot.lane.b32.xlu0 %v2313, 64
  %v2820 = vpop.permute.xlu0 %2819
  %2821 = vrot.lane.b32.xlu0 %v2316, 64
  %v2822 = vpop.permute.xlu0 %2821
  %2823 = vrot.lane.b32.xlu0 %v2319, 64
  %v2824 = vpop.permute.xlu0 %2823
  %2825 = vrot.lane.b32.xlu0 %v2322, 64
  %v2826 = vpop.permute.xlu0 %2825
  %2827 = vrot.lane.b32.xlu0 %v2325, 64
  %v2828 = vpop.permute.xlu0 %2827
  %2829 = vrot.lane.b32.xlu0 %v2328, 64
  %v2830 = vpop.permute.xlu0 %2829
  %2831 = vrot.lane.b32.xlu0 %v2331, 64
  %v2832 = vpop.permute.xlu0 %2831
  %2833 = vrot.lane.b32.xlu0 %v2334, 64
  %v2834 = vpop.permute.xlu0 %2833
  %2835 = vrot.lane.b32.xlu0 %v2337, 64
  %v2836 = vpop.permute.xlu0 %2835
  %2837 = vrot.lane.b32.xlu0 %v2340, 64
  %v2838 = vpop.permute.xlu0 %2837
  %2839 = vrot.lane.b32.xlu0 %v2343, 64
  %v2840 = vpop.permute.xlu0 %2839
  %2841 = vrot.lane.b32.xlu0 %v2346, 64
  %v2842 = vpop.permute.xlu0 %2841
  %2843 = vrot.lane.b32.xlu0 %v2349, 64
  %v2844 = vpop.permute.xlu0 %2843
  %2845 = vrot.lane.b32.xlu0 %v2352, 64
  %v2846 = vpop.permute.xlu0 %2845
  %2847 = vrot.lane.b32.xlu0 %v2355, 64
  %v2848 = vpop.permute.xlu0 %2847
  %2849 = vrot.lane.b32.xlu0 %v2358, 64
  %v2850 = vpop.permute.xlu0 %2849
  %2851 = vrot.lane.b32.xlu0 %v2361, 64
  %v2852 = vpop.permute.xlu0 %2851
  %2853 = vrot.lane.b32.xlu0 %v2364, 64
  %v2854 = vpop.permute.xlu0 %2853
  %2855 = vrot.lane.b32.xlu0 %v2367, 64
  %v2856 = vpop.permute.xlu0 %2855
  %2857 = vrot.lane.b32.xlu0 %v2370, 64
  %v2858 = vpop.permute.xlu0 %2857
  %2859 = vrot.lane.b32.xlu0 %v2373, 64
  %v2860 = vpop.permute.xlu0 %2859
  %2861 = vrot.lane.b32.xlu0 %v2376, 64
  %v2862 = vpop.permute.xlu0 %2861
  %2863 = vrot.lane.b32.xlu0 %v2379, 64
  %v2864 = vpop.permute.xlu0 %2863
  %2865 = vrot.lane.b32.xlu0 %v2382, 64
  %v2866 = vpop.permute.xlu0 %2865
  %2867 = vrot.lane.b32.xlu0 %v2385, 64
  %v2868 = vpop.permute.xlu0 %2867
  %2869 = vrot.lane.b32.xlu0 %v2388, 64
  %v2870 = vpop.permute.xlu0 %2869
  %2871 = vrot.lane.b32.xlu0 %v2391, 64
  %v2872 = vpop.permute.xlu0 %2871
  %2873 = vrot.lane.b32.xlu0 %v2394, 64
  %v2874 = vpop.permute.xlu0 %2873
  %2875 = vrot.lane.b32.xlu0 %v2397, 64
  %v2876 = vpop.permute.xlu0 %2875
  %2877 = vrot.lane.b32.xlu0 %v2400, 64
  %v2878 = vpop.permute.xlu0 %2877
  %2879 = vrot.lane.b32.xlu0 %v2403, 64
  %v2880 = vpop.permute.xlu0 %2879
  %2881 = vrot.lane.b32.xlu0 %v2406, 64
  %v2882 = vpop.permute.xlu0 %2881
  %2883 = vrot.lane.b32.xlu0 %v2409, 64
  %v2884 = vpop.permute.xlu0 %2883
  %2885 = vrot.lane.b32.xlu0 %v2412, 64
  %v2886 = vpop.permute.xlu0 %2885
  %2887 = vrot.lane.b32.xlu0 %v2415, 64
  %v2888 = vpop.permute.xlu0 %2887
  %2889 = vrot.lane.b32.xlu0 %v2418, 64
  %v2890 = vpop.permute.xlu0 %2889
  %2891 = vrot.lane.b32.xlu0 %v2421, 64
  %v2892 = vpop.permute.xlu0 %2891
  %2893 = vrot.lane.b32.xlu0 %v2424, 64
  %v2894 = vpop.permute.xlu0 %2893
  %2895 = vrot.lane.b32.xlu0 %v2427, 64
  %v2896 = vpop.permute.xlu0 %2895
  %v3053 = vmax.f32 %v1962, %v2586
  %v3054 = vmax.f32 %v1965, %v2588
  %v3055 = vmax.f32 %v1968, %v2590
  %v3056 = vmax.f32 %v1971, %v2592
  %v3057 = vmax.f32 %v1974, %v2594
  %v3058 = vmax.f32 %v1977, %v2596
  %v3059 = vmax.f32 %v1980, %v2598
  %v3060 = vmax.f32 %v1983, %v2600
  %v3061 = vmax.f32 %v1986, %v2602
  %v3062 = vmax.f32 %v1989, %v2604
  %v3063 = vmax.f32 %v1992, %v2606
  %v3064 = vmax.f32 %v1995, %v2608
  %v3065 = vmax.f32 %v1998, %v2610
  %v3066 = vmax.f32 %v2001, %v2612
  %v3067 = vmax.f32 %v2004, %v2614
  %v3068 = vmax.f32 %v2007, %v2616
  %v3069 = vmax.f32 %v2010, %v2618
  %v3070 = vmax.f32 %v2013, %v2620
  %v3071 = vmax.f32 %v2016, %v2622
  %v3072 = vmax.f32 %v2019, %v2624
  %v3073 = vmax.f32 %v2022, %v2626
  %v3074 = vmax.f32 %v2025, %v2628
  %v3075 = vmax.f32 %v2028, %v2630
  %v3076 = vmax.f32 %v2031, %v2632
  %v3077 = vmax.f32 %v2034, %v2634
  %v3078 = vmax.f32 %v2037, %v2636
  %v3079 = vmax.f32 %v2040, %v2638
  %v3080 = vmax.f32 %v2043, %v2640
  %v3081 = vmax.f32 %v2046, %v2642
  %v3082 = vmax.f32 %v2049, %v2644
  %v3083 = vmax.f32 %v2052, %v2646
  %v3084 = vmax.f32 %v2055, %v2648
  %v3085 = vmax.f32 %v2058, %v2650
  %v3086 = vmax.f32 %v2061, %v2652
  %v3087 = vmax.f32 %v2064, %v2654
  %v3088 = vmax.f32 %v2067, %v2656
  %v3089 = vmax.f32 %v2070, %v2658
  %v3090 = vmax.f32 %v2073, %v2660
  %v3091 = vmax.f32 %v2076, %v2662
  %v3092 = vmax.f32 %v2079, %v2664
  %v3093 = vmax.f32 %v2082, %v2666
  %v3094 = vmax.f32 %v2085, %v2668
  %v3095 = vmax.f32 %v2088, %v2670
  %v3096 = vmax.f32 %v2091, %v2672
  %v3097 = vmax.f32 %v2094, %v2674
  %v3098 = vmax.f32 %v2097, %v2676
  %v3099 = vmax.f32 %v2100, %v2678
  %v3100 = vmax.f32 %v2103, %v2680
  %v3101 = vmax.f32 %v2106, %v2682
  %v3102 = vmax.f32 %v2109, %v2684
  %v3103 = vmax.f32 %v2112, %v2686
  %v3104 = vmax.f32 %v2115, %v2688
  %v3105 = vmax.f32 %v2118, %v2690
  %v3106 = vmax.f32 %v2121, %v2692
  %v3107 = vmax.f32 %v2124, %v2694
  %v3108 = vmax.f32 %v2127, %v2696
  %v3109 = vmax.f32 %v2130, %v2698
  %v3110 = vmax.f32 %v2133, %v2700
  %v3111 = vmax.f32 %v2136, %v2702
  %v3112 = vmax.f32 %v2139, %v2704
  %v3113 = vmax.f32 %v2142, %v2706
  %v3114 = vmax.f32 %v2145, %v2708
  %v3115 = vmax.f32 %v2148, %v2710
  %v3116 = vmax.f32 %v2151, %v2712
  %v3117 = vmax.f32 %v2154, %v2714
  %v3118 = vmax.f32 %v2157, %v2716
  %v3119 = vmax.f32 %v2160, %v2718
  %v3120 = vmax.f32 %v2163, %v2720
  %v3121 = vmax.f32 %v2166, %v2722
  %v3122 = vmax.f32 %v2169, %v2724
  %v3123 = vmax.f32 %v2172, %v2726
  %v3124 = vmax.f32 %v2175, %v2728
  %v3125 = vmax.f32 %v2178, %v2730
  %v3126 = vmax.f32 %v2181, %v2732
  %v3127 = vmax.f32 %v2184, %v2734
  %v3128 = vmax.f32 %v2187, %v2736
  %v3129 = vmax.f32 %v2190, %v2738
  %v3130 = vmax.f32 %v2193, %v2740
  %v3131 = vmax.f32 %v2196, %v2742
  %v3132 = vmax.f32 %v2199, %v2744
  %v3133 = vmax.f32 %v2202, %v2746
  %v3134 = vmax.f32 %v2205, %v2748
  %v3135 = vmax.f32 %v2208, %v2750
  %v3136 = vmax.f32 %v2211, %v2752
  %v3137 = vmax.f32 %v2214, %v2754
  %v3138 = vmax.f32 %v2217, %v2756
  %v3139 = vmax.f32 %v2220, %v2758
  %v3140 = vmax.f32 %v2223, %v2760
  %v3141 = vmax.f32 %v2226, %v2762
  %v3142 = vmax.f32 %v2229, %v2764
  %v3143 = vmax.f32 %v2232, %v2766
  %v3144 = vmax.f32 %v2235, %v2768
  %v3145 = vmax.f32 %v2238, %v2770
  %v3146 = vmax.f32 %v2241, %v2772
  %v3147 = vmax.f32 %v2244, %v2774
  %v3148 = vmax.f32 %v2247, %v2776
  %v3149 = vmax.f32 %v2250, %v2778
  %v3150 = vmax.f32 %v2253, %v2780
  %v3151 = vmax.f32 %v2256, %v2782
  %v3152 = vmax.f32 %v2259, %v2784
  %v3153 = vmax.f32 %v2262, %v2786
  %v3154 = vmax.f32 %v2265, %v2788
  %v3155 = vmax.f32 %v2268, %v2790
  %v3156 = vmax.f32 %v2271, %v2792
  %v3157 = vmax.f32 %v2274, %v2794
  %v3158 = vmax.f32 %v2277, %v2796
  %v3159 = vmax.f32 %v2280, %v2798
  %v3160 = vmax.f32 %v2283, %v2800
  %v3161 = vmax.f32 %v2286, %v2802
  %v3162 = vmax.f32 %v2289, %v2804
  %v3163 = vmax.f32 %v2292, %v2806
  %v3164 = vmax.f32 %v2295, %v2808
  %v3165 = vmax.f32 %v2298, %v2810
  %v3166 = vmax.f32 %v2301, %v2812
  %v3167 = vmax.f32 %v2304, %v2814
  %v3168 = vmax.f32 %v2307, %v2816
  %v3169 = vmax.f32 %v2310, %v2818
  %v3170 = vmax.f32 %v2313, %v2820
  %v3171 = vmax.f32 %v2316, %v2822
  %v3172 = vmax.f32 %v2319, %v2824
  %v3173 = vmax.f32 %v2322, %v2826
  %v3174 = vmax.f32 %v2325, %v2828
  %v3175 = vmax.f32 %v2328, %v2830
  %v3176 = vmax.f32 %v2331, %v2832
  %v3177 = vmax.f32 %v2334, %v2834
  %v3178 = vmax.f32 %v2337, %v2836
  %v3179 = vmax.f32 %v2340, %v2838
  %v3180 = vmax.f32 %v2343, %v2840
  %v3181 = vmax.f32 %v2346, %v2842
  %v3182 = vmax.f32 %v2349, %v2844
  %v3183 = vmax.f32 %v2352, %v2846
  %v3184 = vmax.f32 %v2355, %v2848
  %v3185 = vmax.f32 %v2358, %v2850
  %v3186 = vmax.f32 %v2361, %v2852
  %v3187 = vmax.f32 %v2364, %v2854
  %v3188 = vmax.f32 %v2367, %v2856
  %v3189 = vmax.f32 %v2370, %v2858
  %v3190 = vmax.f32 %v2373, %v2860
  %v3191 = vmax.f32 %v2376, %v2862
  %v3192 = vmax.f32 %v2379, %v2864
  %v3193 = vmax.f32 %v2382, %v2866
  %v3194 = vmax.f32 %v2385, %v2868
  %v3195 = vmax.f32 %v2388, %v2870
  %v3196 = vmax.f32 %v2391, %v2872
  %v3197 = vmax.f32 %v2394, %v2874
  %v3198 = vmax.f32 %v2397, %v2876
  %v3199 = vmax.f32 %v2400, %v2878
  %v3200 = vmax.f32 %v2403, %v2880
  %v3201 = vmax.f32 %v2406, %v2882
  %v3202 = vmax.f32 %v2409, %v2884
  %v3203 = vmax.f32 %v2412, %v2886
  %v3204 = vmax.f32 %v2415, %v2888
  %v3205 = vmax.f32 %v2418, %v2890
  %v3206 = vmax.f32 %v2421, %v2892
  %v3207 = vmax.f32 %v2424, %v2894
  %v3208 = vmax.f32 %v2427, %v2896
  %v3209 = vld [vmem:[%s3] sm:$0x1]
  %v3211 = vperm.slane %v3209, 0
  %v3213 = vadd.f32 %v3053, %v3211
  %v3214 = vadd.f32 %v3054, %v3211
  %v3215 = vadd.f32 %v3055, %v3211
  %v3216 = vadd.f32 %v3056, %v3211
  %v3217 = vadd.f32 %v3057, %v3211
  %v3218 = vadd.f32 %v3058, %v3211
  %v3219 = vadd.f32 %v3059, %v3211
  %v3220 = vadd.f32 %v3060, %v3211
  %v3221 = vadd.f32 %v3061, %v3211
  %v3222 = vadd.f32 %v3062, %v3211
  %v3223 = vadd.f32 %v3063, %v3211
  %v3224 = vadd.f32 %v3064, %v3211
  %v3225 = vadd.f32 %v3065, %v3211
  %v3226 = vadd.f32 %v3066, %v3211
  %v3227 = vadd.f32 %v3067, %v3211
  %v3228 = vadd.f32 %v3068, %v3211
  %v3229 = vadd.f32 %v3069, %v3211
  %v3230 = vadd.f32 %v3070, %v3211
  %v3231 = vadd.f32 %v3071, %v3211
  %v3232 = vadd.f32 %v3072, %v3211
  %v3233 = vadd.f32 %v3073, %v3211
  %v3234 = vadd.f32 %v3074, %v3211
  %v3235 = vadd.f32 %v3075, %v3211
  %v3236 = vadd.f32 %v3076, %v3211
  %v3237 = vadd.f32 %v3077, %v3211
  %v3238 = vadd.f32 %v3078, %v3211
  %v3239 = vadd.f32 %v3079, %v3211
  %v3240 = vadd.f32 %v3080, %v3211
  %v3241 = vadd.f32 %v3081, %v3211
  %v3242 = vadd.f32 %v3082, %v3211
  %v3243 = vadd.f32 %v3083, %v3211
  %v3244 = vadd.f32 %v3084, %v3211
  %v3245 = vadd.f32 %v3085, %v3211
  %v3246 = vadd.f32 %v3086, %v3211
  %v3247 = vadd.f32 %v3087, %v3211
  %v3248 = vadd.f32 %v3088, %v3211
  %v3249 = vadd.f32 %v3089, %v3211
  %v3250 = vadd.f32 %v3090, %v3211
  %v3251 = vadd.f32 %v3091, %v3211
  %v3252 = vadd.f32 %v3092, %v3211
  %v3253 = vadd.f32 %v3093, %v3211
  %v3254 = vadd.f32 %v3094, %v3211
  %v3255 = vadd.f32 %v3095, %v3211
  %v3256 = vadd.f32 %v3096, %v3211
  %v3257 = vadd.f32 %v3097, %v3211
  %v3258 = vadd.f32 %v3098, %v3211
  %v3259 = vadd.f32 %v3099, %v3211
  %v3260 = vadd.f32 %v3100, %v3211
  %v3261 = vadd.f32 %v3101, %v3211
  %v3262 = vadd.f32 %v3102, %v3211
  %v3263 = vadd.f32 %v3103, %v3211
  %v3264 = vadd.f32 %v3104, %v3211
  %v3265 = vadd.f32 %v3105, %v3211
  %v3266 = vadd.f32 %v3106, %v3211
  %v3267 = vadd.f32 %v3107, %v3211
  %v3268 = vadd.f32 %v3108, %v3211
  %v3269 = vadd.f32 %v3109, %v3211
  %v3270 = vadd.f32 %v3110, %v3211
  %v3271 = vadd.f32 %v3111, %v3211
  %v3272 = vadd.f32 %v3112, %v3211
  %v3273 = vadd.f32 %v3113, %v3211
  %v3274 = vadd.f32 %v3114, %v3211
  %v3275 = vadd.f32 %v3115, %v3211
  %v3276 = vadd.f32 %v3116, %v3211
  %v3277 = vadd.f32 %v3117, %v3211
  %v3278 = vadd.f32 %v3118, %v3211
  %v3279 = vadd.f32 %v3119, %v3211
  %v3280 = vadd.f32 %v3120, %v3211
  %v3281 = vadd.f32 %v3121, %v3211
  %v3282 = vadd.f32 %v3122, %v3211
  %v3283 = vadd.f32 %v3123, %v3211
  %v3284 = vadd.f32 %v3124, %v3211
  %v3285 = vadd.f32 %v3125, %v3211
  %v3286 = vadd.f32 %v3126, %v3211
  %v3287 = vadd.f32 %v3127, %v3211
  %v3288 = vadd.f32 %v3128, %v3211
  %v3289 = vadd.f32 %v3129, %v3211
  %v3290 = vadd.f32 %v3130, %v3211
  %v3291 = vadd.f32 %v3131, %v3211
  %v3292 = vadd.f32 %v3132, %v3211
  %v3293 = vadd.f32 %v3133, %v3211
  %v3294 = vadd.f32 %v3134, %v3211
  %v3295 = vadd.f32 %v3135, %v3211
  %v3296 = vadd.f32 %v3136, %v3211
  %v3297 = vadd.f32 %v3137, %v3211
  %v3298 = vadd.f32 %v3138, %v3211
  %v3299 = vadd.f32 %v3139, %v3211
  %v3300 = vadd.f32 %v3140, %v3211
  %v3301 = vadd.f32 %v3141, %v3211
  %v3302 = vadd.f32 %v3142, %v3211
  %v3303 = vadd.f32 %v3143, %v3211
  %v3304 = vadd.f32 %v3144, %v3211
  %v3305 = vadd.f32 %v3145, %v3211
  %v3306 = vadd.f32 %v3146, %v3211
  %v3307 = vadd.f32 %v3147, %v3211
  %v3308 = vadd.f32 %v3148, %v3211
  %v3309 = vadd.f32 %v3149, %v3211
  %v3310 = vadd.f32 %v3150, %v3211
  %v3311 = vadd.f32 %v3151, %v3211
  %v3312 = vadd.f32 %v3152, %v3211
  %v3313 = vadd.f32 %v3153, %v3211
  %v3314 = vadd.f32 %v3154, %v3211
  %v3315 = vadd.f32 %v3155, %v3211
  %v3316 = vadd.f32 %v3156, %v3211
  %v3317 = vadd.f32 %v3157, %v3211
  %v3318 = vadd.f32 %v3158, %v3211
  %v3319 = vadd.f32 %v3159, %v3211
  %v3320 = vadd.f32 %v3160, %v3211
  %v3321 = vadd.f32 %v3161, %v3211
  %v3322 = vadd.f32 %v3162, %v3211
  %v3323 = vadd.f32 %v3163, %v3211
  %v3324 = vadd.f32 %v3164, %v3211
  %v3325 = vadd.f32 %v3165, %v3211
  %v3326 = vadd.f32 %v3166, %v3211
  %v3327 = vadd.f32 %v3167, %v3211
  %v3328 = vadd.f32 %v3168, %v3211
  %v3329 = vadd.f32 %v3169, %v3211
  %v3330 = vadd.f32 %v3170, %v3211
  %v3331 = vadd.f32 %v3171, %v3211
  %v3332 = vadd.f32 %v3172, %v3211
  %v3333 = vadd.f32 %v3173, %v3211
  %v3334 = vadd.f32 %v3174, %v3211
  %v3335 = vadd.f32 %v3175, %v3211
  %v3336 = vadd.f32 %v3176, %v3211
  %v3337 = vadd.f32 %v3177, %v3211
  %v3338 = vadd.f32 %v3178, %v3211
  %v3339 = vadd.f32 %v3179, %v3211
  %v3340 = vadd.f32 %v3180, %v3211
  %v3341 = vadd.f32 %v3181, %v3211
  %v3342 = vadd.f32 %v3182, %v3211
  %v3343 = vadd.f32 %v3183, %v3211
  %v3344 = vadd.f32 %v3184, %v3211
  %v3345 = vadd.f32 %v3185, %v3211
  %v3346 = vadd.f32 %v3186, %v3211
  %v3347 = vadd.f32 %v3187, %v3211
  %v3348 = vadd.f32 %v3188, %v3211
  %v3349 = vadd.f32 %v3189, %v3211
  %v3350 = vadd.f32 %v3190, %v3211
  %v3351 = vadd.f32 %v3191, %v3211
  %v3352 = vadd.f32 %v3192, %v3211
  %v3353 = vadd.f32 %v3193, %v3211
  %v3354 = vadd.f32 %v3194, %v3211
  %v3355 = vadd.f32 %v3195, %v3211
  %v3356 = vadd.f32 %v3196, %v3211
  %v3357 = vadd.f32 %v3197, %v3211
  %v3358 = vadd.f32 %v3198, %v3211
  %v3359 = vadd.f32 %v3199, %v3211
  %v3360 = vadd.f32 %v3200, %v3211
  %v3361 = vadd.f32 %v3201, %v3211
  %v3362 = vadd.f32 %v3202, %v3211
  %v3363 = vadd.f32 %v3203, %v3211
  %v3364 = vadd.f32 %v3204, %v3211
  %v3365 = vadd.f32 %v3205, %v3211
  %v3366 = vadd.f32 %v3206, %v3211
  %v3367 = vadd.f32 %v3207, %v3211
  %v3368 = vadd.f32 %v3208, %v3211
  %v3369 = vmax.f32 %v3213, 0.0
  %v3370 = vmax.f32 %v3214, 0.0
  %v3371 = vmax.f32 %v3215, 0.0
  %v3372 = vmax.f32 %v3216, 0.0
  %v3373 = vmax.f32 %v3217, 0.0
  %v3374 = vmax.f32 %v3218, 0.0
  %v3375 = vmax.f32 %v3219, 0.0
  %v3376 = vmax.f32 %v3220, 0.0
  %v3377 = vmax.f32 %v3221, 0.0
  %v3378 = vmax.f32 %v3222, 0.0
  %v3379 = vmax.f32 %v3223, 0.0
  %v3380 = vmax.f32 %v3224, 0.0
  %v3381 = vmax.f32 %v3225, 0.0
  %v3382 = vmax.f32 %v3226, 0.0
  %v3383 = vmax.f32 %v3227, 0.0
  %v3384 = vmax.f32 %v3228, 0.0
  %v3385 = vmax.f32 %v3229, 0.0
  %v3386 = vmax.f32 %v3230, 0.0
  %v3387 = vmax.f32 %v3231, 0.0
  %v3388 = vmax.f32 %v3232, 0.0
  %v3389 = vmax.f32 %v3233, 0.0
  %v3390 = vmax.f32 %v3234, 0.0
  %v3391 = vmax.f32 %v3235, 0.0
  %v3392 = vmax.f32 %v3236, 0.0
  %v3393 = vmax.f32 %v3237, 0.0
  %v3394 = vmax.f32 %v3238, 0.0
  %v3395 = vmax.f32 %v3239, 0.0
  %v3396 = vmax.f32 %v3240, 0.0
  %v3397 = vmax.f32 %v3241, 0.0
  %v3398 = vmax.f32 %v3242, 0.0
  %v3399 = vmax.f32 %v3243, 0.0
  %v3400 = vmax.f32 %v3244, 0.0
  %v3401 = vmax.f32 %v3245, 0.0
  %v3402 = vmax.f32 %v3246, 0.0
  %v3403 = vmax.f32 %v3247, 0.0
  %v3404 = vmax.f32 %v3248, 0.0
  %v3405 = vmax.f32 %v3249, 0.0
  %v3406 = vmax.f32 %v3250, 0.0
  %v3407 = vmax.f32 %v3251, 0.0
  %v3408 = vmax.f32 %v3252, 0.0
  %v3409 = vmax.f32 %v3253, 0.0
  %v3410 = vmax.f32 %v3254, 0.0
  %v3411 = vmax.f32 %v3255, 0.0
  %v3412 = vmax.f32 %v3256, 0.0
  %v3413 = vmax.f32 %v3257, 0.0
  %v3414 = vmax.f32 %v3258, 0.0
  %v3415 = vmax.f32 %v3259, 0.0
  %v3416 = vmax.f32 %v3260, 0.0
  %v3417 = vmax.f32 %v3261, 0.0
  %v3418 = vmax.f32 %v3262, 0.0
  %v3419 = vmax.f32 %v3263, 0.0
  %v3420 = vmax.f32 %v3264, 0.0
  %v3421 = vmax.f32 %v3265, 0.0
  %v3422 = vmax.f32 %v3266, 0.0
  %v3423 = vmax.f32 %v3267, 0.0
  %v3424 = vmax.f32 %v3268, 0.0
  %v3425 = vmax.f32 %v3269, 0.0
  %v3426 = vmax.f32 %v3270, 0.0
  %v3427 = vmax.f32 %v3271, 0.0
  %v3428 = vmax.f32 %v3272, 0.0
  %v3429 = vmax.f32 %v3273, 0.0
  %v3430 = vmax.f32 %v3274, 0.0
  %v3431 = vmax.f32 %v3275, 0.0
  %v3432 = vmax.f32 %v3276, 0.0
  %v3433 = vmax.f32 %v3277, 0.0
  %v3434 = vmax.f32 %v3278, 0.0
  %v3435 = vmax.f32 %v3279, 0.0
  %v3436 = vmax.f32 %v3280, 0.0
  %v3437 = vmax.f32 %v3281, 0.0
  %v3438 = vmax.f32 %v3282, 0.0
  %v3439 = vmax.f32 %v3283, 0.0
  %v3440 = vmax.f32 %v3284, 0.0
  %v3441 = vmax.f32 %v3285, 0.0
  %v3442 = vmax.f32 %v3286, 0.0
  %v3443 = vmax.f32 %v3287, 0.0
  %v3444 = vmax.f32 %v3288, 0.0
  %v3445 = vmax.f32 %v3289, 0.0
  %v3446 = vmax.f32 %v3290, 0.0
  %v3447 = vmax.f32 %v3291, 0.0
  %v3448 = vmax.f32 %v3292, 0.0
  %v3449 = vmax.f32 %v3293, 0.0
  %v3450 = vmax.f32 %v3294, 0.0
  %v3451 = vmax.f32 %v3295, 0.0
  %v3452 = vmax.f32 %v3296, 0.0
  %v3453 = vmax.f32 %v3297, 0.0
  %v3454 = vmax.f32 %v3298, 0.0
  %v3455 = vmax.f32 %v3299, 0.0
  %v3456 = vmax.f32 %v3300, 0.0
  %v3457 = vmax.f32 %v3301, 0.0
  %v3458 = vmax.f32 %v3302, 0.0
  %v3459 = vmax.f32 %v3303, 0.0
  %v3460 = vmax.f32 %v3304, 0.0
  %v3461 = vmax.f32 %v3305, 0.0
  %v3462 = vmax.f32 %v3306, 0.0
  %v3463 = vmax.f32 %v3307, 0.0
  %v3464 = vmax.f32 %v3308, 0.0
  %v3465 = vmax.f32 %v3309, 0.0
  %v3466 = vmax.f32 %v3310, 0.0
  %v3467 = vmax.f32 %v3311, 0.0
  %v3468 = vmax.f32 %v3312, 0.0
  %v3469 = vmax.f32 %v3313, 0.0
  %v3470 = vmax.f32 %v3314, 0.0
  %v3471 = vmax.f32 %v3315, 0.0
  %v3472 = vmax.f32 %v3316, 0.0
  %v3473 = vmax.f32 %v3317, 0.0
  %v3474 = vmax.f32 %v3318, 0.0
  %v3475 = vmax.f32 %v3319, 0.0
  %v3476 = vmax.f32 %v3320, 0.0
  %v3477 = vmax.f32 %v3321, 0.0
  %v3478 = vmax.f32 %v3322, 0.0
  %v3479 = vmax.f32 %v3323, 0.0
  %v3480 = vmax.f32 %v3324, 0.0
  %v3481 = vmax.f32 %v3325, 0.0
  %v3482 = vmax.f32 %v3326, 0.0
  %v3483 = vmax.f32 %v3327, 0.0
  %v3484 = vmax.f32 %v3328, 0.0
  %v3485 = vmax.f32 %v3329, 0.0
  %v3486 = vmax.f32 %v3330, 0.0
  %v3487 = vmax.f32 %v3331, 0.0
  %v3488 = vmax.f32 %v3332, 0.0
  %v3489 = vmax.f32 %v3333, 0.0
  %v3490 = vmax.f32 %v3334, 0.0
  %v3491 = vmax.f32 %v3335, 0.0
  %v3492 = vmax.f32 %v3336, 0.0
  %v3493 = vmax.f32 %v3337, 0.0
  %v3494 = vmax.f32 %v3338, 0.0
  %v3495 = vmax.f32 %v3339, 0.0
  %v3496 = vmax.f32 %v3340, 0.0
  %v3497 = vmax.f32 %v3341, 0.0
  %v3498 = vmax.f32 %v3342, 0.0
  %v3499 = vmax.f32 %v3343, 0.0
  %v3500 = vmax.f32 %v3344, 0.0
  %v3501 = vmax.f32 %v3345, 0.0
  %v3502 = vmax.f32 %v3346, 0.0
  %v3503 = vmax.f32 %v3347, 0.0
  %v3504 = vmax.f32 %v3348, 0.0
  %v3505 = vmax.f32 %v3349, 0.0
  %v3506 = vmax.f32 %v3350, 0.0
  %v3507 = vmax.f32 %v3351, 0.0
  %v3508 = vmax.f32 %v3352, 0.0
  %v3509 = vmax.f32 %v3353, 0.0
  %v3510 = vmax.f32 %v3354, 0.0
  %v3511 = vmax.f32 %v3355, 0.0
  %v3512 = vmax.f32 %v3356, 0.0
  %v3513 = vmax.f32 %v3357, 0.0
  %v3514 = vmax.f32 %v3358, 0.0
  %v3515 = vmax.f32 %v3359, 0.0
  %v3516 = vmax.f32 %v3360, 0.0
  %v3517 = vmax.f32 %v3361, 0.0
  %v3518 = vmax.f32 %v3362, 0.0
  %v3519 = vmax.f32 %v3363, 0.0
  %v3520 = vmax.f32 %v3364, 0.0
  %v3521 = vmax.f32 %v3365, 0.0
  %v3522 = vmax.f32 %v3366, 0.0
  %v3523 = vmax.f32 %v3367, 0.0
  %v3524 = vmax.f32 %v3368, 0.0
  %3603 = vrot.lane.b32.xlu0 %v3408, 64
  %v3604 = vpop.permute.xlu0 %3603
  %3605 = vrot.lane.b32.xlu0 %v3409, 64
  %v3606 = vpop.permute.xlu0 %3605
  %3607 = vrot.lane.b32.xlu0 %v3410, 64
  %v3608 = vpop.permute.xlu0 %3607
  %3609 = vrot.lane.b32.xlu0 %v3411, 64
  %v3610 = vpop.permute.xlu0 %3609
  %3611 = vrot.lane.b32.xlu0 %v3412, 64
  %v3612 = vpop.permute.xlu0 %3611
  %3613 = vrot.lane.b32.xlu0 %v3413, 64
  %v3614 = vpop.permute.xlu0 %3613
  %3615 = vrot.lane.b32.xlu0 %v3414, 64
  %v3616 = vpop.permute.xlu0 %3615
  %3617 = vrot.lane.b32.xlu0 %v3415, 64
  %v3618 = vpop.permute.xlu0 %3617
  %3619 = vrot.lane.b32.xlu0 %v3416, 64
  %v3620 = vpop.permute.xlu0 %3619
  %3621 = vrot.lane.b32.xlu0 %v3417, 64
  %v3622 = vpop.permute.xlu0 %3621
  %3623 = vrot.lane.b32.xlu0 %v3418, 64
  %v3624 = vpop.permute.xlu0 %3623
  %3625 = vrot.lane.b32.xlu0 %v3419, 64
  %v3626 = vpop.permute.xlu0 %3625
  %3627 = vrot.lane.b32.xlu0 %v3420, 64
  %v3628 = vpop.permute.xlu0 %3627
  %3629 = vrot.lane.b32.xlu0 %v3421, 64
  %v3630 = vpop.permute.xlu0 %3629
  %3631 = vrot.lane.b32.xlu0 %v3422, 64
  %v3632 = vpop.permute.xlu0 %3631
  %3633 = vrot.lane.b32.xlu0 %v3423, 64
  %v3634 = vpop.permute.xlu0 %3633
  %3635 = vrot.lane.b32.xlu0 %v3424, 64
  %v3636 = vpop.permute.xlu0 %3635
  %3637 = vrot.lane.b32.xlu0 %v3425, 64
  %v3638 = vpop.permute.xlu0 %3637
  %3639 = vrot.lane.b32.xlu0 %v3426, 64
  %v3640 = vpop.permute.xlu0 %3639
  %3641 = vrot.lane.b32.xlu0 %v3427, 64
  %v3642 = vpop.permute.xlu0 %3641
  %3643 = vrot.lane.b32.xlu0 %v3428, 64
  %v3644 = vpop.permute.xlu0 %3643
  %3645 = vrot.lane.b32.xlu0 %v3429, 64
  %v3646 = vpop.permute.xlu0 %3645
  %3647 = vrot.lane.b32.xlu0 %v3430, 64
  %v3648 = vpop.permute.xlu0 %3647
  %3649 = vrot.lane.b32.xlu0 %v3431, 64
  %v3650 = vpop.permute.xlu0 %3649
  %3651 = vrot.lane.b32.xlu0 %v3432, 64
  %v3652 = vpop.permute.xlu0 %3651
  %3653 = vrot.lane.b32.xlu0 %v3433, 64
  %v3654 = vpop.permute.xlu0 %3653
  %3655 = vrot.lane.b32.xlu0 %v3434, 64
  %v3656 = vpop.permute.xlu0 %3655
  %3657 = vrot.lane.b32.xlu0 %v3435, 64
  %v3658 = vpop.permute.xlu0 %3657
  %3659 = vrot.lane.b32.xlu0 %v3436, 64
  %v3660 = vpop.permute.xlu0 %3659
  %3661 = vrot.lane.b32.xlu0 %v3437, 64
  %v3662 = vpop.permute.xlu0 %3661
  %3663 = vrot.lane.b32.xlu0 %v3438, 64
  %v3664 = vpop.permute.xlu0 %3663
  %3665 = vrot.lane.b32.xlu0 %v3439, 64
  %v3666 = vpop.permute.xlu0 %3665
  %3667 = vrot.lane.b32.xlu0 %v3440, 64
  %v3668 = vpop.permute.xlu0 %3667
  %3669 = vrot.lane.b32.xlu0 %v3441, 64
  %v3670 = vpop.permute.xlu0 %3669
  %3671 = vrot.lane.b32.xlu0 %v3442, 64
  %v3672 = vpop.permute.xlu0 %3671
  %3673 = vrot.lane.b32.xlu0 %v3443, 64
  %v3674 = vpop.permute.xlu0 %3673
  %3675 = vrot.lane.b32.xlu0 %v3444, 64
  %v3676 = vpop.permute.xlu0 %3675
  %3677 = vrot.lane.b32.xlu0 %v3445, 64
  %v3678 = vpop.permute.xlu0 %3677
  %3679 = vrot.lane.b32.xlu0 %v3446, 64
  %v3680 = vpop.permute.xlu0 %3679
  %3681 = vrot.lane.b32.xlu0 %v3486, 64
  %v3682 = vpop.permute.xlu0 %3681
  %3683 = vrot.lane.b32.xlu0 %v3487, 64
  %v3684 = vpop.permute.xlu0 %3683
  %3685 = vrot.lane.b32.xlu0 %v3488, 64
  %v3686 = vpop.permute.xlu0 %3685
  %3687 = vrot.lane.b32.xlu0 %v3489, 64
  %v3688 = vpop.permute.xlu0 %3687
  %3689 = vrot.lane.b32.xlu0 %v3490, 64
  %v3690 = vpop.permute.xlu0 %3689
  %3691 = vrot.lane.b32.xlu0 %v3491, 64
  %v3692 = vpop.permute.xlu0 %3691
  %3693 = vrot.lane.b32.xlu0 %v3492, 64
  %v3694 = vpop.permute.xlu0 %3693
  %3695 = vrot.lane.b32.xlu0 %v3493, 64
  %v3696 = vpop.permute.xlu0 %3695
  %3697 = vrot.lane.b32.xlu0 %v3494, 64
  %v3698 = vpop.permute.xlu0 %3697
  %3699 = vrot.lane.b32.xlu0 %v3495, 64
  %v3700 = vpop.permute.xlu0 %3699
  %3701 = vrot.lane.b32.xlu0 %v3496, 64
  %v3702 = vpop.permute.xlu0 %3701
  %3703 = vrot.lane.b32.xlu0 %v3497, 64
  %v3704 = vpop.permute.xlu0 %3703
  %3705 = vrot.lane.b32.xlu0 %v3498, 64
  %v3706 = vpop.permute.xlu0 %3705
  %3707 = vrot.lane.b32.xlu0 %v3499, 64
  %v3708 = vpop.permute.xlu0 %3707
  %3709 = vrot.lane.b32.xlu0 %v3500, 64
  %v3710 = vpop.permute.xlu0 %3709
  %3711 = vrot.lane.b32.xlu0 %v3501, 64
  %v3712 = vpop.permute.xlu0 %3711
  %3713 = vrot.lane.b32.xlu0 %v3502, 64
  %v3714 = vpop.permute.xlu0 %3713
  %3715 = vrot.lane.b32.xlu0 %v3503, 64
  %v3716 = vpop.permute.xlu0 %3715
  %3717 = vrot.lane.b32.xlu0 %v3504, 64
  %v3718 = vpop.permute.xlu0 %3717
  %3719 = vrot.lane.b32.xlu0 %v3505, 64
  %v3720 = vpop.permute.xlu0 %3719
  %3721 = vrot.lane.b32.xlu0 %v3506, 64
  %v3722 = vpop.permute.xlu0 %3721
  %3723 = vrot.lane.b32.xlu0 %v3507, 64
  %v3724 = vpop.permute.xlu0 %3723
  %3725 = vrot.lane.b32.xlu0 %v3508, 64
  %v3726 = vpop.permute.xlu0 %3725
  %3727 = vrot.lane.b32.xlu0 %v3509, 64
  %v3728 = vpop.permute.xlu0 %3727
  %3729 = vrot.lane.b32.xlu0 %v3510, 64
  %v3730 = vpop.permute.xlu0 %3729
  %3731 = vrot.lane.b32.xlu0 %v3511, 64
  %v3732 = vpop.permute.xlu0 %3731
  %3733 = vrot.lane.b32.xlu0 %v3512, 64
  %v3734 = vpop.permute.xlu0 %3733
  %3735 = vrot.lane.b32.xlu0 %v3513, 64
  %v3736 = vpop.permute.xlu0 %3735
  %3737 = vrot.lane.b32.xlu0 %v3514, 64
  %v3738 = vpop.permute.xlu0 %3737
  %3739 = vrot.lane.b32.xlu0 %v3515, 64
  %v3740 = vpop.permute.xlu0 %3739
  %3741 = vrot.lane.b32.xlu0 %v3516, 64
  %v3742 = vpop.permute.xlu0 %3741
  %3743 = vrot.lane.b32.xlu0 %v3517, 64
  %v3744 = vpop.permute.xlu0 %3743
  %3745 = vrot.lane.b32.xlu0 %v3518, 64
  %v3746 = vpop.permute.xlu0 %3745
  %3747 = vrot.lane.b32.xlu0 %v3519, 64
  %v3748 = vpop.permute.xlu0 %3747
  %3749 = vrot.lane.b32.xlu0 %v3520, 64
  %v3750 = vpop.permute.xlu0 %3749
  %3751 = vrot.lane.b32.xlu0 %v3521, 64
  %v3752 = vpop.permute.xlu0 %3751
  %3753 = vrot.lane.b32.xlu0 %v3522, 64
  %v3754 = vpop.permute.xlu0 %3753
  %3755 = vrot.lane.b32.xlu0 %v3523, 64
  %v3756 = vpop.permute.xlu0 %3755
  %3757 = vrot.lane.b32.xlu0 %v3524, 64
  %v3758 = vpop.permute.xlu0 %3757
  %vm3837 = vcmask 523264
  %v3838 = vsel %vm3837, %v3369, %v3604
  %v3839 = vsel %vm3837, %v3370, %v3606
  %v3840 = vsel %vm3837, %v3371, %v3608
  %v3841 = vsel %vm3837, %v3372, %v3610
  %v3842 = vsel %vm3837, %v3373, %v3612
  %v3843 = vsel %vm3837, %v3374, %v3614
  %v3844 = vsel %vm3837, %v3375, %v3616
  %v3845 = vsel %vm3837, %v3376, %v3618
  %v3846 = vsel %vm3837, %v3377, %v3620
  %v3847 = vsel %vm3837, %v3378, %v3622
  %v3848 = vsel %vm3837, %v3379, %v3624
  %v3849 = vsel %vm3837, %v3380, %v3626
  %v3850 = vsel %vm3837, %v3381, %v3628
  %v3851 = vsel %vm3837, %v3382, %v3630
  %v3852 = vsel %vm3837, %v3383, %v3632
  %v3853 = vsel %vm3837, %v3384, %v3634
  %v3854 = vsel %vm3837, %v3385, %v3636
  %v3855 = vsel %vm3837, %v3386, %v3638
  %v3856 = vsel %vm3837, %v3387, %v3640
  %v3857 = vsel %vm3837, %v3388, %v3642
  %v3858 = vsel %vm3837, %v3389, %v3644
  %v3859 = vsel %vm3837, %v3390, %v3646
  %v3860 = vsel %vm3837, %v3391, %v3648
  %v3861 = vsel %vm3837, %v3392, %v3650
  %v3862 = vsel %vm3837, %v3393, %v3652
  %v3863 = vsel %vm3837, %v3394, %v3654
  %v3864 = vsel %vm3837, %v3395, %v3656
  %v3865 = vsel %vm3837, %v3396, %v3658
  %v3866 = vsel %vm3837, %v3397, %v3660
  %v3867 = vsel %vm3837, %v3398, %v3662
  %v3868 = vsel %vm3837, %v3399, %v3664
  %v3869 = vsel %vm3837, %v3400, %v3666
  %v3870 = vsel %vm3837, %v3401, %v3668
  %v3871 = vsel %vm3837, %v3402, %v3670
  %v3872 = vsel %vm3837, %v3403, %v3672
  %v3873 = vsel %vm3837, %v3404, %v3674
  %v3874 = vsel %vm3837, %v3405, %v3676
  %v3875 = vsel %vm3837, %v3406, %v3678
  %v3876 = vsel %vm3837, %v3407, %v3680
  %v3877 = vsel %vm3837, %v3447, %v3682
  %v3878 = vsel %vm3837, %v3448, %v3684
  %v3879 = vsel %vm3837, %v3449, %v3686
  %v3880 = vsel %vm3837, %v3450, %v3688
  %v3881 = vsel %vm3837, %v3451, %v3690
  %v3882 = vsel %vm3837, %v3452, %v3692
  %v3883 = vsel %vm3837, %v3453, %v3694
  %v3884 = vsel %vm3837, %v3454, %v3696
  %v3885 = vsel %vm3837, %v3455, %v3698
  %v3886 = vsel %vm3837, %v3456, %v3700
  %v3887 = vsel %vm3837, %v3457, %v3702
  %v3888 = vsel %vm3837, %v3458, %v3704
  %v3889 = vsel %vm3837, %v3459, %v3706
  %v3890 = vsel %vm3837, %v3460, %v3708
  %v3891 = vsel %vm3837, %v3461, %v3710
  %v3892 = vsel %vm3837, %v3462, %v3712
  %v3893 = vsel %vm3837, %v3463, %v3714
  %v3894 = vsel %vm3837, %v3464, %v3716
  %v3895 = vsel %vm3837, %v3465, %v3718
  %v3896 = vsel %vm3837, %v3466, %v3720
  %v3897 = vsel %vm3837, %v3467, %v3722
  %v3898 = vsel %vm3837, %v3468, %v3724
  %v3899 = vsel %vm3837, %v3469, %v3726
  %v3900 = vsel %vm3837, %v3470, %v3728
  %v3901 = vsel %vm3837, %v3471, %v3730
  %v3902 = vsel %vm3837, %v3472, %v3732
  %v3903 = vsel %vm3837, %v3473, %v3734
  %v3904 = vsel %vm3837, %v3474, %v3736
  %v3905 = vsel %vm3837, %v3475, %v3738
  %v3906 = vsel %vm3837, %v3476, %v3740
  %v3907 = vsel %vm3837, %v3477, %v3742
  %v3908 = vsel %vm3837, %v3478, %v3744
  %v3909 = vsel %vm3837, %v3479, %v3746
  %v3910 = vsel %vm3837, %v3480, %v3748
  %v3911 = vsel %vm3837, %v3481, %v3750
  %v3912 = vsel %vm3837, %v3482, %v3752
  %v3913 = vsel %vm3837, %v3483, %v3754
  %v3914 = vsel %vm3837, %v3484, %v3756
  %v3915 = vsel %vm3837, %v3485, %v3758
  %v3916 = vpack.c.bf16 %v3838, %v3838
  %v3917 = vpack.c.bf16 %v3839, %v3839
  %v3918 = vpack.c.bf16 %v3840, %v3840
  %v3919 = vpack.c.bf16 %v3841, %v3841
  %v3920 = vpack.c.bf16 %v3842, %v3842
  %v3921 = vpack.c.bf16 %v3843, %v3843
  %v3922 = vpack.c.bf16 %v3844, %v3844
  %v3923 = vpack.c.bf16 %v3845, %v3845
  %v3924 = vpack.c.bf16 %v3846, %v3846
  %v3925 = vpack.c.bf16 %v3847, %v3847
  %v3926 = vpack.c.bf16 %v3848, %v3848
  %v3927 = vpack.c.bf16 %v3849, %v3849
  %v3928 = vpack.c.bf16 %v3850, %v3850
  %v3929 = vpack.c.bf16 %v3851, %v3851
  %v3930 = vpack.c.bf16 %v3852, %v3852
  %v3931 = vpack.c.bf16 %v3853, %v3853
  %v3932 = vpack.c.bf16 %v3854, %v3854
  %v3933 = vpack.c.bf16 %v3855, %v3855
  %v3934 = vpack.c.bf16 %v3856, %v3856
  %v3935 = vpack.c.bf16 %v3857, %v3857
  %v3936 = vpack.c.bf16 %v3858, %v3858
  %v3937 = vpack.c.bf16 %v3859, %v3859
  %v3938 = vpack.c.bf16 %v3860, %v3860
  %v3939 = vpack.c.bf16 %v3861, %v3861
  %v3940 = vpack.c.bf16 %v3862, %v3862
  %v3941 = vpack.c.bf16 %v3863, %v3863
  %v3942 = vpack.c.bf16 %v3864, %v3864
  %v3943 = vpack.c.bf16 %v3865, %v3865
  %v3944 = vpack.c.bf16 %v3866, %v3866
  %v3945 = vpack.c.bf16 %v3867, %v3867
  %v3946 = vpack.c.bf16 %v3868, %v3868
  %v3947 = vpack.c.bf16 %v3869, %v3869
  %v3948 = vpack.c.bf16 %v3870, %v3870
  %v3949 = vpack.c.bf16 %v3871, %v3871
  %v3950 = vpack.c.bf16 %v3872, %v3872
  %v3951 = vpack.c.bf16 %v3873, %v3873
  %v3952 = vpack.c.bf16 %v3874, %v3874
  %v3953 = vpack.c.bf16 %v3875, %v3875
  %v3954 = vpack.c.bf16 %v3876, %v3876
  %v3955 = vpack.c.bf16 %v3877, %v3877
  %v3956 = vpack.c.bf16 %v3878, %v3878
  %v3957 = vpack.c.bf16 %v3879, %v3879
  %v3958 = vpack.c.bf16 %v3880, %v3880
  %v3959 = vpack.c.bf16 %v3881, %v3881
  %v3960 = vpack.c.bf16 %v3882, %v3882
  %v3961 = vpack.c.bf16 %v3883, %v3883
  %v3962 = vpack.c.bf16 %v3884, %v3884
  %v3963 = vpack.c.bf16 %v3885, %v3885
  %v3964 = vpack.c.bf16 %v3886, %v3886
  %v3965 = vpack.c.bf16 %v3887, %v3887
  %v3966 = vpack.c.bf16 %v3888, %v3888
  %v3967 = vpack.c.bf16 %v3889, %v3889
  %v3968 = vpack.c.bf16 %v3890, %v3890
  %v3969 = vpack.c.bf16 %v3891, %v3891
  %v3970 = vpack.c.bf16 %v3892, %v3892
  %v3971 = vpack.c.bf16 %v3893, %v3893
  %v3972 = vpack.c.bf16 %v3894, %v3894
  %v3973 = vpack.c.bf16 %v3895, %v3895
  %v3974 = vpack.c.bf16 %v3896, %v3896
  %v3975 = vpack.c.bf16 %v3897, %v3897
  %v3976 = vpack.c.bf16 %v3898, %v3898
  %v3977 = vpack.c.bf16 %v3899, %v3899
  %v3978 = vpack.c.bf16 %v3900, %v3900
  %v3979 = vpack.c.bf16 %v3901, %v3901
  %v3980 = vpack.c.bf16 %v3902, %v3902
  %v3981 = vpack.c.bf16 %v3903, %v3903
  %v3982 = vpack.c.bf16 %v3904, %v3904
  %v3983 = vpack.c.bf16 %v3905, %v3905
  %v3984 = vpack.c.bf16 %v3906, %v3906
  %v3985 = vpack.c.bf16 %v3907, %v3907
  %v3986 = vpack.c.bf16 %v3908, %v3908
  %v3987 = vpack.c.bf16 %v3909, %v3909
  %v3988 = vpack.c.bf16 %v3910, %v3910
  %v3989 = vpack.c.bf16 %v3911, %v3911
  %v3990 = vpack.c.bf16 %v3912, %v3912
  %v3991 = vpack.c.bf16 %v3913, %v3913
  %v3992 = vpack.c.bf16 %v3914, %v3914
  %v3993 = vpack.c.bf16 %v3915, %v3915
  %3994 = vst [vmem:[%s4] sm:$0xf] %v3916
  %3995 = vst [vmem:[%s4 + $0x4] sm:$0xf] %v3917
  %3996 = vst [vmem:[%s4 + $0x8] sm:$0xf] %v3918
  %3997 = vst [vmem:[%s4 + $0xc] sm:$0xf] %v3919
  %3998 = vst [vmem:[%s4 + $0x10] sm:$0xf] %v3920
  %3999 = vst [vmem:[%s4 + $0x14] sm:$0xf] %v3921
  %4000 = vst [vmem:[%s4 + $0x18] sm:$0xf] %v3922
  %4001 = vst [vmem:[%s4 + $0x1c] sm:$0xf] %v3923
  %4002 = vst [vmem:[%s4 + $0x20] sm:$0xf] %v3924
  %4003 = vst [vmem:[%s4 + $0x24] sm:$0xf] %v3925
  %4004 = vst [vmem:[%s4 + $0x28] sm:$0xf] %v3926
  %4005 = vst [vmem:[%s4 + $0x2c] sm:$0xf] %v3927
  %4006 = vst [vmem:[%s4 + $0x30] sm:$0xf] %v3928
  %4007 = vst [vmem:[%s4 + $0x34] sm:$0xf] %v3929
  %4008 = vst [vmem:[%s4 + $0x38] sm:$0xf] %v3930
  %4009 = vst [vmem:[%s4 + $0x3c] sm:$0xf] %v3931
  %4010 = vst [vmem:[%s4 + $0x40] sm:$0xf] %v3932
  %4011 = vst [vmem:[%s4 + $0x44] sm:$0xf] %v3933
  %4012 = vst [vmem:[%s4 + $0x48] sm:$0xf] %v3934
  %4013 = vst [vmem:[%s4 + $0x4c] sm:$0xf] %v3935
  %4014 = vst [vmem:[%s4 + $0x50] sm:$0xf] %v3936
  %4015 = vst [vmem:[%s4 + $0x54] sm:$0xf] %v3937
  %4016 = vst [vmem:[%s4 + $0x58] sm:$0xf] %v3938
  %4017 = vst [vmem:[%s4 + $0x5c] sm:$0xf] %v3939
  %4018 = vst [vmem:[%s4 + $0x60] sm:$0xf] %v3940
  %4019 = vst [vmem:[%s4 + $0x64] sm:$0xf] %v3941
  %4020 = vst [vmem:[%s4 + $0x68] sm:$0xf] %v3942
  %4021 = vst [vmem:[%s4 + $0x6c] sm:$0xf] %v3943
  %4022 = vst [vmem:[%s4 + $0x70] sm:$0xf] %v3944
  %4023 = vst [vmem:[%s4 + $0x74] sm:$0xf] %v3945
  %4024 = vst [vmem:[%s4 + $0x78] sm:$0xf] %v3946
  %4025 = vst [vmem:[%s4 + $0x7c] sm:$0xf] %v3947
  %4026 = vst [vmem:[%s4 + $0x80] sm:$0xf] %v3948
  %4027 = vst [vmem:[%s4 + $0x84] sm:$0xf] %v3949
  %4028 = vst [vmem:[%s4 + $0x88] sm:$0xf] %v3950
  %4029 = vst [vmem:[%s4 + $0x8c] sm:$0xf] %v3951
  %4030 = vst [vmem:[%s4 + $0x90] sm:$0xf] %v3952
  %4031 = vst [vmem:[%s4 + $0x94] sm:$0xf] %v3953
  %4032 = vst [vmem:[%s4 + $0x98] sm:$0xf] %v3954
  %4033 = vst [vmem:[%s4 + $0x9c] sm:$0xf] %v3955
  %4034 = vst [vmem:[%s4 + $0xa0] sm:$0xf] %v3956
  %4035 = vst [vmem:[%s4 + $0xa4] sm:$0xf] %v3957
  %4036 = vst [vmem:[%s4 + $0xa8] sm:$0xf] %v3958
  %4037 = vst [vmem:[%s4 + $0xac] sm:$0xf] %v3959
  %4038 = vst [vmem:[%s4 + $0xb0] sm:$0xf] %v3960
  %4039 = vst [vmem:[%s4 + $0xb4] sm:$0xf] %v3961
  %4040 = vst [vmem:[%s4 + $0xb8] sm:$0xf] %v3962
  %4041 = vst [vmem:[%s4 + $0xbc] sm:$0xf] %v3963
  %4042 = vst [vmem:[%s4 + $0xc0] sm:$0xf] %v3964
  %4043 = vst [vmem:[%s4 + $0xc4] sm:$0xf] %v3965
  %4044 = vst [vmem:[%s4 + $0xc8] sm:$0xf] %v3966
  %4045 = vst [vmem:[%s4 + $0xcc] sm:$0xf] %v3967
  %4046 = vst [vmem:[%s4 + $0xd0] sm:$0xf] %v3968
  %4047 = vst [vmem:[%s4 + $0xd4] sm:$0xf] %v3969
  %4048 = vst [vmem:[%s4 + $0xd8] sm:$0xf] %v3970
  %4049 = vst [vmem:[%s4 + $0xdc] sm:$0xf] %v3971
  %4050 = vst [vmem:[%s4 + $0xe0] sm:$0xf] %v3972
  %4051 = vst [vmem:[%s4 + $0xe4] sm:$0xf] %v3973
  %4052 = vst [vmem:[%s4 + $0xe8] sm:$0xf] %v3974
  %4053 = vst [vmem:[%s4 + $0xec] sm:$0xf] %v3975
  %4054 = vst [vmem:[%s4 + $0xf0] sm:$0xf] %v3976
  %4055 = vst [vmem:[%s4 + $0xf4] sm:$0xf] %v3977
  %4056 = vst [vmem:[%s4 + $0xf8] sm:$0xf] %v3978
  %4057 = vst [vmem:[%s4 + $0xfc] sm:$0xf] %v3979
  %4058 = vst [vmem:[%s4 + $0x100] sm:$0xf] %v3980
  %4059 = vst [vmem:[%s4 + $0x104] sm:$0xf] %v3981
  %4060 = vst [vmem:[%s4 + $0x108] sm:$0xf] %v3982
  %4061 = vst [vmem:[%s4 + $0x10c] sm:$0xf] %v3983
  %4062 = vst [vmem:[%s4 + $0x110] sm:$0xf] %v3984
  %4063 = vst [vmem:[%s4 + $0x114] sm:$0xf] %v3985
  %4064 = vst [vmem:[%s4 + $0x118] sm:$0xf] %v3986
  %4065 = vst [vmem:[%s4 + $0x11c] sm:$0xf] %v3987
  %4066 = vst [vmem:[%s4 + $0x120] sm:$0xf] %v3988
  %4067 = vst [vmem:[%s4 + $0x124] sm:$0xf] %v3989
  %4068 = vst [vmem:[%s4 + $0x128] sm:$0xf] %v3990
  %4069 = vst [vmem:[%s4 + $0x12c] sm:$0xf] %v3991
  %4070 = vst [vmem:[%s4 + $0x130] sm:$0xf] %v3992
  %4071 = vst [vmem:[%s4 + $0x134] sm:$0xf] %v3993
  // Predicated region
  $region18: #{simple1dcnn_forward.2} parent=0 // pred_check
    _
  $region19: #{simple1dcnn_forward.2} parent=0 // pred_check_branch
    %4073 = sbr.rel (0) target = $region21
  $region20: #{simple1dcnn_forward.2} parent=0 // pred_region
    _
  $region21: #{simple1dcnn_forward.2} parent=0 // pred_fallthru
    _
  // Predicated region
  $region22: #{simple1dcnn_forward.2} parent=0 // pred_check
    _
  $region23: #{simple1dcnn_forward.2} parent=0 // pred_check_branch
    %4075 = sbr.rel (0) target = $region25
  $region24: #{simple1dcnn_forward.2} parent=0 // pred_region
    _
  $region25: #{simple1dcnn_forward.2} parent=0 // pred_fallthru
    _

// kernel: simple1dcnn_forward.3
$region0: #{simple1dcnn_forward.3}
  #allocation0 [shape = 'u32[]', space=smem, size = 0x4, offset = 0x4, fixed_abs, tag = 'smem constant byte address 0x4 - core index']
  #allocation1 [shape = 'u32[72,128]{1,0:T(1,128)}', space=vmem, size = 0x9000, scoped, tag = 'internal scratch']
  #allocation2 [shape = 'f32[2,128]{1,0:T(2,128)}', space=vmem, size = 0x400, scoped, tag = 'scratch operand']
  %s0 = inlined_call_operand.vmem [shape: bf16[2,39936], index: 0, kind: input, shape index: {}]
  %s1 = inlined_call_operand.vmem [shape: s8[1,39936,128], index: 1, kind: input, shape index: {}]
  %s2 = inlined_call_operand.vmem [shape: f32[1,1,128], index: 2, kind: input, shape index: {}]
  %s3 = inlined_call_operand.vmem [shape: f32[1,1,128], index: 3, kind: input, shape index: {}]
  %s4 = inlined_call_operand.vmem [shape: f32[1,128,10], index: 4, kind: input, shape index: {}]
  %s5 = inlined_call_operand.vmem [shape: f32[1,2,10], index: 5, kind: output, shape index: {}]
  %s6 = sld [smem:[#allocation0]]
  $region61: #{simple1dcnn_forward.3} parent=0
    _
  %s8 = ssub.s32 1, %s6
  %s9 = scalar_select 0, %s8, %s6
  loop: start=0, step=1, limit=6
  $region2: #{simple1dcnn_forward.3} parent=0 // loop_pre_header
    _
  $region3: #{simple1dcnn_forward.3} parent=0 // loop_header
    %s11 = sphi 0, %s15
    %p12 = scmp.ge.s32.totalorder %s11, 6
    %s18 = sphi 0, %s30
    %s19 = sphi 0, %s26
    %s20 = sphi 0, %s18
    %s21 = sphi 0, %s19
    %s22 = sphi 0, %s20
    %s23 = sphi 0, %s21
    %s33 = sphi 0, %s35
    %s36 = sphi 0, %s33
    %s37 = sphi 0, %s36
    %s53 = sphi 0, %s37
    %s61 = sphi 0, %s63
    %s64 = sphi 0, %s61
    %s65 = sphi 0, %s64
    %s81 = sphi 0, %s65
    %s87 = sphi 0, %s89
    %s90 = sphi 0, %s87
    %s91 = sphi 0, %s90
    %s107 = sphi 0, %s91
    %s113 = sphi 0, %s115
    %s116 = sphi 0, %s113
    %s117 = sphi 0, %s116
    %s133 = sphi 0, %s117
    %s139 = sphi 0, %s141
    %s142 = sphi 0, %s139
    %s143 = sphi 0, %s142
    %s159 = sphi 0, %s143
    %s165 = sphi 0, %s167
    %s168 = sphi 0, %s165
    %s169 = sphi 0, %s168
    %s185 = sphi 0, %s169
  $region4: #{simple1dcnn_forward.3} parent=0 // loop_header_branch
    %14 = sbr.rel (%p12) target = $region8
  $region5: #{simple1dcnn_forward.3} parent=0 // loop_body
    %s16 = ssub.s32 %s11, 1
    %s17 = ssub.s32 %s11, 2
    %s24 = sadd.s32 1, %s19
    %p25 = scmp.ge.s32.totalorder %s24, 4
    %s26 = scalar_select %p25, 0, %s24
    %s27 = sadd.s32 1, %s18
    %s28 = scalar_select %p25, %s27, %s18
    %p29 = scmp.ge.s32.totalorder %s28, 1
    %s30 = scalar_select %p29, 0, %s28
    %s31 = ssub.s32 %s19, %s26
    %p32 = scmp.eq.s32.totalorder %s31, 0
    %s34 = sadd.s32 %s33, 1
    %s35 = scalar_select %p32, %s33, %s34
    %p38 = pneg %p32
    %p39 = scmp.eq.s32.totalorder %s11, 3
    %p40 = por %p38, %p39
    %p41 = scmp.ne.s32.totalorder %s33, %s36
    %p42 = scmp.eq.s32.totalorder %s11, 0
    %p43 = por %p41, %p42
    %p44 = scmp.ne.s32.totalorder %s33, %s36
    %p45 = scmp.eq.s32.totalorder %s16, 3
    %p46 = por %p44, %p45
    %p47 = scmp.ne.s32.totalorder %s36, %s37
    %p48 = scmp.eq.s32.totalorder %s16, 0
    %p49 = por %p47, %p48
    %p50 = scmp.ne.s32.totalorder %s36, %s37
    %p51 = scmp.eq.s32.totalorder %s17, 3
    %p52 = por %p50, %p51
    %p54 = scmp.ne.s32.totalorder %s37, %s53
    %p55 = scmp.eq.s32.totalorder %s17, 0
    %p56 = por %p54, %p55
    %s57 = ssub.s32 %s18, %s30
    %s58 = ssub.s32 %s19, %s26
    %s59 = sor.u32 %s57, %s58
    %p60 = scmp.eq.s32.totalorder %s59, 0
    %s62 = sadd.s32 %s61, 1
    %s63 = scalar_select %p60, %s61, %s62
    %p66 = pneg %p60
    %p67 = scmp.eq.s32.totalorder %s11, 3
    %p68 = por %p66, %p67
    %p69 = scmp.ne.s32.totalorder %s61, %s64
    %p70 = scmp.eq.s32.totalorder %s11, 0
    %p71 = por %p69, %p70
    %p72 = scmp.ne.s32.totalorder %s61, %s64
    %p73 = scmp.eq.s32.totalorder %s16, 3
    %p74 = por %p72, %p73
    %p75 = scmp.ne.s32.totalorder %s64, %s65
    %p76 = scmp.eq.s32.totalorder %s16, 0
    %p77 = por %p75, %p76
    %p78 = scmp.ne.s32.totalorder %s64, %s65
    %p79 = scmp.eq.s32.totalorder %s17, 3
    %p80 = por %p78, %p79
    %p82 = scmp.ne.s32.totalorder %s65, %s81
    %p83 = scmp.eq.s32.totalorder %s17, 0
    %p84 = por %p82, %p83
    %s85 = ssub.s32 %s18, %s30
    %p86 = scmp.eq.s32.totalorder %s85, 0
    %s88 = sadd.s32 %s87, 1
    %s89 = scalar_select %p86, %s87, %s88
    %p92 = pneg %p86
    %p93 = scmp.eq.s32.totalorder %s11, 3
    %p94 = por %p92, %p93
    %p95 = scmp.ne.s32.totalorder %s87, %s90
    %p96 = scmp.eq.s32.totalorder %s11, 0
    %p97 = por %p95, %p96
    %p98 = scmp.ne.s32.totalorder %s87, %s90
    %p99 = scmp.eq.s32.totalorder %s16, 3
    %p100 = por %p98, %p99
    %p101 = scmp.ne.s32.totalorder %s90, %s91
    %p102 = scmp.eq.s32.totalorder %s16, 0
    %p103 = por %p101, %p102
    %p104 = scmp.ne.s32.totalorder %s90, %s91
    %p105 = scmp.eq.s32.totalorder %s17, 3
    %p106 = por %p104, %p105
    %p108 = scmp.ne.s32.totalorder %s91, %s107
    %p109 = scmp.eq.s32.totalorder %s17, 0
    %p110 = por %p108, %p109
    %s111 = ssub.s32 %s18, %s30
    %p112 = scmp.eq.s32.totalorder %s111, 0
    %s114 = sadd.s32 %s113, 1
    %s115 = scalar_select %p112, %s113, %s114
    %p118 = pneg %p112
    %p119 = scmp.eq.s32.totalorder %s11, 3
    %p120 = por %p118, %p119
    %p121 = scmp.ne.s32.totalorder %s113, %s116
    %p122 = scmp.eq.s32.totalorder %s11, 0
    %p123 = por %p121, %p122
    %p124 = scmp.ne.s32.totalorder %s113, %s116
    %p125 = scmp.eq.s32.totalorder %s16, 3
    %p126 = por %p124, %p125
    %p127 = scmp.ne.s32.totalorder %s116, %s117
    %p128 = scmp.eq.s32.totalorder %s16, 0
    %p129 = por %p127, %p128
    %p130 = scmp.ne.s32.totalorder %s116, %s117
    %p131 = scmp.eq.s32.totalorder %s17, 3
    %p132 = por %p130, %p131
    %p134 = scmp.ne.s32.totalorder %s117, %s133
    %p135 = scmp.eq.s32.totalorder %s17, 0
    %p136 = por %p134, %p135
    %s137 = ssub.s32 %s18, %s30
    %p138 = scmp.eq.s32.totalorder %s137, 0
    %s140 = sadd.s32 %s139, 1
    %s141 = scalar_select %p138, %s139, %s140
    %p144 = pneg %p138
    %p145 = scmp.eq.s32.totalorder %s11, 3
    %p146 = por %p144, %p145
    %p147 = scmp.ne.s32.totalorder %s139, %s142
    %p148 = scmp.eq.s32.totalorder %s11, 0
    %p149 = por %p147, %p148
    %p150 = scmp.ne.s32.totalorder %s139, %s142
    %p151 = scmp.eq.s32.totalorder %s16, 3
    %p152 = por %p150, %p151
    %p153 = scmp.ne.s32.totalorder %s142, %s143
    %p154 = scmp.eq.s32.totalorder %s16, 0
    %p155 = por %p153, %p154
    %p156 = scmp.ne.s32.totalorder %s142, %s143
    %p157 = scmp.eq.s32.totalorder %s17, 3
    %p158 = por %p156, %p157
    %p160 = scmp.ne.s32.totalorder %s143, %s159
    %p161 = scmp.eq.s32.totalorder %s17, 0
    %p162 = por %p160, %p161
    %s163 = ssub.s32 %s18, %s30
    %p164 = scmp.eq.s32.totalorder %s163, 0
    %s166 = sadd.s32 %s165, 1
    %s167 = scalar_select %p164, %s165, %s166
    %p170 = pneg %p164
    %p171 = scmp.eq.s32.totalorder %s11, 3
    %p172 = por %p170, %p171
    %p173 = scmp.ne.s32.totalorder %s165, %s168
    %p174 = scmp.eq.s32.totalorder %s11, 0
    %p175 = por %p173, %p174
    %p176 = scmp.ne.s32.totalorder %s165, %s168
    %p177 = scmp.eq.s32.totalorder %s16, 3
    %p178 = por %p176, %p177
    %p179 = scmp.ne.s32.totalorder %s168, %s169
    %p180 = scmp.eq.s32.totalorder %s16, 0
    %p181 = por %p179, %p180
    %p182 = scmp.ne.s32.totalorder %s168, %s169
    %p183 = scmp.eq.s32.totalorder %s17, 3
    %p184 = por %p182, %p183
    %p186 = scmp.ne.s32.totalorder %s169, %s185
    %p187 = scmp.eq.s32.totalorder %s17, 0
    %p188 = por %p186, %p187
    %p189 = scmp.le.s32.totalorder 1, %s11
    %p190 = scmp.lt.s32.totalorder %s11, 5
    %p191 = pnand %p189, %p190
    %p192 = pneg %p191
    // Predicated region
    $region9: #{simple1dcnn_forward.3} parent=5 // pred_check
      _
    $region10: #{simple1dcnn_forward.3} parent=5 // pred_check_branch
      %194 = sbr.rel (%p191) target = $region12
    $region11: #{simple1dcnn_forward.3} parent=5 // pred_region
      %s195 = ssub.s32 %s11, 1
      // Predicated region
      $region13: #{simple1dcnn_forward.3} parent=11 // pred_check
        %p196 = pneg %p103
      $region14: #{simple1dcnn_forward.3} parent=11 // pred_check_branch
        %198 = sbr.rel (%p196) target = $region16
      $region15: #{simple1dcnn_forward.3} parent=11 // pred_region
        %p199 = scmp.lt.s32.totalorder %s20, 0
        %s200 = scalar_select %p199, %s20, 0
        %s201 = scalar_lea.vmem %s2, %s200
      $region16: #{simple1dcnn_forward.3} parent=11 // pred_fallthru
        _
      // Predicated region
      $region17: #{simple1dcnn_forward.3} parent=11 // pred_check
        %p202 = pneg %p129
      $region18: #{simple1dcnn_forward.3} parent=11 // pred_check_branch
        %204 = sbr.rel (%p202) target = $region20
      $region19: #{simple1dcnn_forward.3} parent=11 // pred_region
        %p205 = scmp.lt.s32.totalorder %s20, 0
        %s206 = scalar_select %p205, %s20, 0
        %s207 = scalar_lea.vmem %s3, %s206
      $region20: #{simple1dcnn_forward.3} parent=11 // pred_fallthru
        _
      // Predicated region
      $region21: #{simple1dcnn_forward.3} parent=11 // pred_check
        %p208 = pneg %p155
      $region22: #{simple1dcnn_forward.3} parent=11 // pred_check_branch
        %210 = sbr.rel (%p208) target = $region24
      $region23: #{simple1dcnn_forward.3} parent=11 // pred_region
        %p211 = scmp.lt.s32.totalorder %s20, 0
        %s212 = scalar_select %p211, %s20, 0
        %s213 = smul.addr %s212, 16
        %s214 = smul.addr %s213, 8
        %s215 = scalar_lea.vmem %s4, %s214
      $region24: #{simple1dcnn_forward.3} parent=11 // pred_fallthru
        _
    $region12: #{simple1dcnn_forward.3} parent=5 // pred_fallthru
      _
    %p216 = scmp.lt.s32.totalorder %s11, 4
    // Predicated region
    $region25: #{simple1dcnn_forward.3} parent=5 // pred_check
      %p217 = pneg %p216
    $region26: #{simple1dcnn_forward.3} parent=5 // pred_check_branch
      %219 = sbr.rel (%p217) target = $region28
    $region27: #{simple1dcnn_forward.3} parent=5 // pred_region
      // Predicated region
      $region29: #{simple1dcnn_forward.3} parent=27 // pred_check
        %p220 = pneg %p43
      $region30: #{simple1dcnn_forward.3} parent=27 // pred_check_branch
        %222 = sbr.rel (%p220) target = $region32
      $region31: #{simple1dcnn_forward.3} parent=27 // pred_region
        %s223 = smul.u32 78, %s19
        %p224 = scmp.lt.s32.totalorder %s223, 311
        %s225 = scalar_select %p224, %s223, 311
        %s226 = scalar_lea.vmem %s0, %s225
        %s227 = smul.u32 78, %s19
      $region32: #{simple1dcnn_forward.3} parent=27 // pred_fallthru
        _
      // Predicated region
      $region33: #{simple1dcnn_forward.3} parent=27 // pred_check
        %p228 = pneg %p71
      $region34: #{simple1dcnn_forward.3} parent=27 // pred_check_branch
        %230 = sbr.rel (%p228) target = $region36
      $region35: #{simple1dcnn_forward.3} parent=27 // pred_region
        %s231 = smul.u32 312, %s19
        %p232 = scmp.lt.s32.totalorder %s18, 0
        %s233 = scalar_select %p232, %s18, 0
        %p234 = scmp.lt.s32.totalorder %s231, 1247
        %s235 = scalar_select %p234, %s231, 1247
        %s236 = smul.addr %s233, 1248
        %s237 = sadd.s32 %s235, %s236
        %s238 = smul.addr %s237, 8
        %s239 = scalar_lea.vmem %s1, %s238
        %s240 = smul.u32 312, %s19
      $region36: #{simple1dcnn_forward.3} parent=27 // pred_fallthru
        _
    $region28: #{simple1dcnn_forward.3} parent=5 // pred_fallthru
      _
    %p241 = scmp.le.s32.totalorder 1, %s11
    %p242 = scmp.lt.s32.totalorder %s11, 5
    %p243 = pnand %p241, %p242
    %p244 = pneg %p243
    // Predicated region
    $region37: #{simple1dcnn_forward.3} parent=5 // pred_check
      _
    $region38: #{simple1dcnn_forward.3} parent=5 // pred_check_branch
      %246 = sbr.rel (%p243) target = $region40
    $region39: #{simple1dcnn_forward.3} parent=5 // pred_region
      %s247 = ssub.s32 %s11, 1
      %s248 = smul.u32 78, %s21
      %p249 = scmp.lt.s32.totalorder %s248, 311
      %s250 = scalar_select %p249, %s248, 311
      %s251 = scalar_lea.vmem %s0, %s250
      %p252 = pneg %p49
      %p253 = pneg %p46
      %s254 = smul.u32 312, %s21
      %p255 = scmp.lt.s32.totalorder %s20, 0
      %s256 = scalar_select %p255, %s20, 0
      %p257 = scmp.lt.s32.totalorder %s254, 1247
      %s258 = scalar_select %p257, %s254, 1247
      %s259 = smul.addr %s256, 1248
      %s260 = sadd.s32 %s258, %s259
      %s261 = smul.addr %s260, 8
      %s262 = scalar_lea.vmem %s1, %s261
      %p263 = pneg %p77
      %p264 = pneg %p74
      %p265 = scmp.lt.s32.totalorder %s20, 0
      %s266 = scalar_select %p265, %s20, 0
      %s267 = scalar_lea.vmem %s2, %s266
      %p268 = pneg %p103
      %p269 = pneg %p100
      %p270 = scmp.lt.s32.totalorder %s20, 0
      %s271 = scalar_select %p270, %s20, 0
      %s272 = scalar_lea.vmem %s3, %s271
      %p273 = pneg %p129
      %p274 = pneg %p126
      %p275 = scmp.lt.s32.totalorder %s20, 0
      %s276 = scalar_select %p275, %s20, 0
      %s277 = smul.addr %s276, 16
      %s278 = smul.addr %s277, 8
      %s279 = scalar_lea.vmem %s4, %s278
      %p280 = pneg %p155
      %p281 = pneg %p152
      %p282 = pneg %p181
      %p283 = pneg %p178
      %p284 = scmp.lt.s32.totalorder %s20, 0
      %s285 = scalar_select %p284, %s20, 0
      %s286 = smul.addr %s285, 2
      %s287 = scalar_lea.vmem %s5, %s286
      %s288 = smul.u32 78, %s21
      %p289 = scmp.lt.s32.totalorder %s288, 311
      %s290 = scalar_select %p289, %s288, 311
      %s291 = scalar_lea.vmem %s0, %s290
      %s292 = smul.u32 78, %s21
      %s293 = smul.u32 312, %s21
      %p294 = scmp.lt.s32.totalorder %s20, 0
      %s295 = scalar_select %p294, %s20, 0
      %p296 = scmp.lt.s32.totalorder %s293, 1247
      %s297 = scalar_select %p296, %s293, 1247
      %s298 = smul.addr %s295, 1248
      %s299 = sadd.s32 %s297, %s298
      %s300 = smul.addr %s299, 8
      %s301 = scalar_lea.vmem %s1, %s300
      %s302 = smul.u32 312, %s21
      %p303 = scmp.lt.s32.totalorder %s20, 0
      %s304 = scalar_select %p303, %s20, 0
      %s305 = scalar_lea.vmem %s2, %s304
      %p306 = scmp.lt.s32.totalorder %s20, 0
      %s307 = scalar_select %p306, %s20, 0
      %s308 = scalar_lea.vmem %s3, %s307
      %p309 = scmp.lt.s32.totalorder %s20, 0
      %s310 = scalar_select %p309, %s20, 0
      %s311 = smul.addr %s310, 16
      %s312 = smul.addr %s311, 8
      %s313 = scalar_lea.vmem %s4, %s312
      %p314 = scmp.lt.s32.totalorder %s20, 0
      %s315 = scalar_select %p314, %s20, 0
      %s316 = smul.addr %s315, 2
      %s317 = scalar_lea.vmem %s5, %s316
      %p318 = scmp.eq.s32.totalorder %s21, 0
      // Predicated region
      $region41: #{simple1dcnn_forward.3} parent=39 // pred_check
        %p319 = pneg %p318
      $region42: #{simple1dcnn_forward.3} parent=39 // pred_check_branch
        %321 = sbr.rel (%p319) target = $region44
      $region43: #{simple1dcnn_forward.3} parent=39 // pred_region
        %322 = vst [vmem:[#allocation2] sm:$0x3] 0.0
      $region44: #{simple1dcnn_forward.3} parent=39 // pred_fallthru
        _
      %v323 = vld [vmem:[%s301] sm:$0xff]
      %v324 = vld [vmem:[%s301 + $0x8] sm:$0xff]
      %v325 = vld [vmem:[%s301 + $0x10] sm:$0xff]
      %v326 = vld [vmem:[%s301 + $0x18] sm:$0xff]
      %v327 = vld [vmem:[%s301 + $0x20] sm:$0xff]
      %v328 = vld [vmem:[%s301 + $0x28] sm:$0xff]
      %v329 = vld [vmem:[%s301 + $0x30] sm:$0xff]
      %v330 = vld [vmem:[%s301 + $0x38] sm:$0xff]
      %v331 = vld [vmem:[%s301 + $0x40] sm:$0xff]
      %v332 = vld [vmem:[%s301 + $0x48] sm:$0xff]
      %v333 = vld [vmem:[%s301 + $0x50] sm:$0xff]
      %v334 = vld [vmem:[%s301 + $0x58] sm:$0xff]
      %v335 = vld [vmem:[%s301 + $0x60] sm:$0xff]
      %v336 = vld [vmem:[%s301 + $0x68] sm:$0xff]
      %v337 = vld [vmem:[%s301 + $0x70] sm:$0xff]
      %v338 = vld [vmem:[%s301 + $0x78] sm:$0xff]
      %v339 = vld [vmem:[%s301 + $0x80] sm:$0xff]
      %v340 = vld [vmem:[%s301 + $0x88] sm:$0xff]
      %v341 = vld [vmem:[%s301 + $0x90] sm:$0xff]
      %v342 = vld [vmem:[%s301 + $0x98] sm:$0xff]
      %v343 = vld [vmem:[%s301 + $0xa0] sm:$0xff]
      %v344 = vld [vmem:[%s301 + $0xa8] sm:$0xff]
      %v345 = vld [vmem:[%s301 + $0xb0] sm:$0xff]
      %v346 = vld [vmem:[%s301 + $0xb8] sm:$0xff]
      %v347 = vld [vmem:[%s301 + $0xc0] sm:$0xff]
      %v348 = vld [vmem:[%s301 + $0xc8] sm:$0xff]
      %v349 = vld [vmem:[%s301 + $0xd0] sm:$0xff]
      %v350 = vld [vmem:[%s301 + $0xd8] sm:$0xff]
      %v351 = vld [vmem:[%s301 + $0xe0] sm:$0xff]
      %v352 = vld [vmem:[%s301 + $0xe8] sm:$0xff]
      %v353 = vld [vmem:[%s301 + $0xf0] sm:$0xff]
      %v354 = vld [vmem:[%s301 + $0xf8] sm:$0xff]
      %v355 = vld [vmem:[%s301 + $0x100] sm:$0xff]
      %v356 = vld [vmem:[%s301 + $0x108] sm:$0xff]
      %v357 = vld [vmem:[%s301 + $0x110] sm:$0xff]
      %v358 = vld [vmem:[%s301 + $0x118] sm:$0xff]
      %v359 = vld [vmem:[%s301 + $0x120] sm:$0xff]
      %v360 = vld [vmem:[%s301 + $0x128] sm:$0xff]
      %v361 = vld [vmem:[%s301 + $0x130] sm:$0xff]
      %v362 = vld [vmem:[%s301 + $0x138] sm:$0xff]
      %v363 = vld [vmem:[%s301 + $0x140] sm:$0xff]
      %v364 = vld [vmem:[%s301 + $0x148] sm:$0xff]
      %v365 = vld [vmem:[%s301 + $0x150] sm:$0xff]
      %v366 = vld [vmem:[%s301 + $0x158] sm:$0xff]
      %v367 = vld [vmem:[%s301 + $0x160] sm:$0xff]
      %v368 = vld [vmem:[%s301 + $0x168] sm:$0xff]
      %v369 = vld [vmem:[%s301 + $0x170] sm:$0xff]
      %v370 = vld [vmem:[%s301 + $0x178] sm:$0xff]
      %v371 = vld [vmem:[%s301 + $0x180] sm:$0xff]
      %v372 = vld [vmem:[%s301 + $0x188] sm:$0xff]
      %v373 = vld [vmem:[%s301 + $0x190] sm:$0xff]
      %v374 = vld [vmem:[%s301 + $0x198] sm:$0xff]
      %v375 = vld [vmem:[%s301 + $0x1a0] sm:$0xff]
      %v376 = vld [vmem:[%s301 + $0x1a8] sm:$0xff]
      %v377 = vld [vmem:[%s301 + $0x1b0] sm:$0xff]
      %v378 = vld [vmem:[%s301 + $0x1b8] sm:$0xff]
      %v379 = vld [vmem:[%s301 + $0x1c0] sm:$0xff]
      %v380 = vld [vmem:[%s301 + $0x1c8] sm:$0xff]
      %v381 = vld [vmem:[%s301 + $0x1d0] sm:$0xff]
      %v382 = vld [vmem:[%s301 + $0x1d8] sm:$0xff]
      %v383 = vld [vmem:[%s301 + $0x1e0] sm:$0xff]
      %v384 = vld [vmem:[%s301 + $0x1e8] sm:$0xff]
      %v385 = vld [vmem:[%s301 + $0x1f0] sm:$0xff]
      %v386 = vld [vmem:[%s301 + $0x1f8] sm:$0xff]
      %v387 = vld [vmem:[%s301 + $0x200] sm:$0xff]
      %v388 = vld [vmem:[%s301 + $0x208] sm:$0xff]
      %v389 = vld [vmem:[%s301 + $0x210] sm:$0xff]
      %v390 = vld [vmem:[%s301 + $0x218] sm:$0xff]
      %v391 = vld [vmem:[%s301 + $0x220] sm:$0xff]
      %v392 = vld [vmem:[%s301 + $0x228] sm:$0xff]
      %v393 = vld [vmem:[%s301 + $0x230] sm:$0xff]
      %v394 = vld [vmem:[%s301 + $0x238] sm:$0xff]
      %v395 = vld [vmem:[%s301 + $0x240] sm:$0xff]
      %v396 = vld [vmem:[%s301 + $0x248] sm:$0xff]
      %v397 = vld [vmem:[%s301 + $0x250] sm:$0xff]
      %v398 = vld [vmem:[%s301 + $0x258] sm:$0xff]
      %v399 = vld [vmem:[%s301 + $0x260] sm:$0xff]
      %v400 = vld [vmem:[%s301 + $0x268] sm:$0xff]
      %v401 = vld [vmem:[%s301 + $0x270] sm:$0xff]
      %v402 = vld [vmem:[%s301 + $0x278] sm:$0xff]
      %v403 = vld [vmem:[%s301 + $0x280] sm:$0xff]
      %v404 = vld [vmem:[%s301 + $0x288] sm:$0xff]
      %v405 = vld [vmem:[%s301 + $0x290] sm:$0xff]
      %v406 = vld [vmem:[%s301 + $0x298] sm:$0xff]
      %v407 = vld [vmem:[%s301 + $0x2a0] sm:$0xff]
      %v408 = vld [vmem:[%s301 + $0x2a8] sm:$0xff]
      %v409 = vld [vmem:[%s301 + $0x2b0] sm:$0xff]
      %v410 = vld [vmem:[%s301 + $0x2b8] sm:$0xff]
      %v411 = vld [vmem:[%s301 + $0x2c0] sm:$0xff]
      %v412 = vld [vmem:[%s301 + $0x2c8] sm:$0xff]
      %v413 = vld [vmem:[%s301 + $0x2d0] sm:$0xff]
      %v414 = vld [vmem:[%s301 + $0x2d8] sm:$0xff]
      %v415 = vld [vmem:[%s301 + $0x2e0] sm:$0xff]
      %v416 = vld [vmem:[%s301 + $0x2e8] sm:$0xff]
      %v417 = vld [vmem:[%s301 + $0x2f0] sm:$0xff]
      %v418 = vld [vmem:[%s301 + $0x2f8] sm:$0xff]
      %v419 = vld [vmem:[%s301 + $0x300] sm:$0xff]
      %v420 = vld [vmem:[%s301 + $0x308] sm:$0xff]
      %v421 = vld [vmem:[%s301 + $0x310] sm:$0xff]
      %v422 = vld [vmem:[%s301 + $0x318] sm:$0xff]
      %v423 = vld [vmem:[%s301 + $0x320] sm:$0xff]
      %v424 = vld [vmem:[%s301 + $0x328] sm:$0xff]
      %v425 = vld [vmem:[%s301 + $0x330] sm:$0xff]
      %v426 = vld [vmem:[%s301 + $0x338] sm:$0xff]
      %v427 = vld [vmem:[%s301 + $0x340] sm:$0xff]
      %v428 = vld [vmem:[%s301 + $0x348] sm:$0xff]
      %v429 = vld [vmem:[%s301 + $0x350] sm:$0xff]
      %v430 = vld [vmem:[%s301 + $0x358] sm:$0xff]
      %v431 = vld [vmem:[%s301 + $0x360] sm:$0xff]
      %v432 = vld [vmem:[%s301 + $0x368] sm:$0xff]
      %v433 = vld [vmem:[%s301 + $0x370] sm:$0xff]
      %v434 = vld [vmem:[%s301 + $0x378] sm:$0xff]
      %v435 = vld [vmem:[%s301 + $0x380] sm:$0xff]
      %v436 = vld [vmem:[%s301 + $0x388] sm:$0xff]
      %v437 = vld [vmem:[%s301 + $0x390] sm:$0xff]
      %v438 = vld [vmem:[%s301 + $0x398] sm:$0xff]
      %v439 = vld [vmem:[%s301 + $0x3a0] sm:$0xff]
      %v440 = vld [vmem:[%s301 + $0x3a8] sm:$0xff]
      %v441 = vld [vmem:[%s301 + $0x3b0] sm:$0xff]
      %v442 = vld [vmem:[%s301 + $0x3b8] sm:$0xff]
      %v443 = vld [vmem:[%s301 + $0x3c0] sm:$0xff]
      %v444 = vld [vmem:[%s301 + $0x3c8] sm:$0xff]
      %v445 = vld [vmem:[%s301 + $0x3d0] sm:$0xff]
      %v446 = vld [vmem:[%s301 + $0x3d8] sm:$0xff]
      %v447 = vld [vmem:[%s301 + $0x3e0] sm:$0xff]
      %v448 = vld [vmem:[%s301 + $0x3e8] sm:$0xff]
      %v449 = vld [vmem:[%s301 + $0x3f0] sm:$0xff]
      %v450 = vld [vmem:[%s301 + $0x3f8] sm:$0xff]
      %v451 = vld [vmem:[%s301 + $0x400] sm:$0xff]
      %v452 = vld [vmem:[%s301 + $0x408] sm:$0xff]
      %v453 = vld [vmem:[%s301 + $0x410] sm:$0xff]
      %v454 = vld [vmem:[%s301 + $0x418] sm:$0xff]
      %v455 = vld [vmem:[%s301 + $0x420] sm:$0xff]
      %v456 = vld [vmem:[%s301 + $0x428] sm:$0xff]
      %v457 = vld [vmem:[%s301 + $0x430] sm:$0xff]
      %v458 = vld [vmem:[%s301 + $0x438] sm:$0xff]
      %v459 = vld [vmem:[%s301 + $0x440] sm:$0xff]
      %v460 = vld [vmem:[%s301 + $0x448] sm:$0xff]
      %v461 = vld [vmem:[%s301 + $0x450] sm:$0xff]
      %v462 = vld [vmem:[%s301 + $0x458] sm:$0xff]
      %v463 = vld [vmem:[%s301 + $0x460] sm:$0xff]
      %v464 = vld [vmem:[%s301 + $0x468] sm:$0xff]
      %v465 = vld [vmem:[%s301 + $0x470] sm:$0xff]
      %v466 = vld [vmem:[%s301 + $0x478] sm:$0xff]
      %v467 = vld [vmem:[%s301 + $0x480] sm:$0xff]
      %v468 = vld [vmem:[%s301 + $0x488] sm:$0xff]
      %v469 = vld [vmem:[%s301 + $0x490] sm:$0xff]
      %v470 = vld [vmem:[%s301 + $0x498] sm:$0xff]
      %v471 = vld [vmem:[%s301 + $0x4a0] sm:$0xff]
      %v472 = vld [vmem:[%s301 + $0x4a8] sm:$0xff]
      %v473 = vld [vmem:[%s301 + $0x4b0] sm:$0xff]
      %v474 = vld [vmem:[%s301 + $0x4b8] sm:$0xff]
      %v475 = vld [vmem:[%s301 + $0x4c0] sm:$0xff]
      %v476 = vld [vmem:[%s301 + $0x4c8] sm:$0xff]
      %v477 = vld [vmem:[%s301 + $0x4d0] sm:$0xff]
      %v478 = vld [vmem:[%s301 + $0x4d8] sm:$0xff]
      %v479 = vld [vmem:[%s301 + $0x4e0] sm:$0xff]
      %v480 = vld [vmem:[%s301 + $0x4e8] sm:$0xff]
      %v481 = vld [vmem:[%s301 + $0x4f0] sm:$0xff]
      %v482 = vld [vmem:[%s301 + $0x4f8] sm:$0xff]
      %v483 = vld [vmem:[%s301 + $0x500] sm:$0xff]
      %v484 = vld [vmem:[%s301 + $0x508] sm:$0xff]
      %v485 = vld [vmem:[%s301 + $0x510] sm:$0xff]
      %v486 = vld [vmem:[%s301 + $0x518] sm:$0xff]
      %v487 = vld [vmem:[%s301 + $0x520] sm:$0xff]
      %v488 = vld [vmem:[%s301 + $0x528] sm:$0xff]
      %v489 = vld [vmem:[%s301 + $0x530] sm:$0xff]
      %v490 = vld [vmem:[%s301 + $0x538] sm:$0xff]
      %v491 = vld [vmem:[%s301 + $0x540] sm:$0xff]
      %v492 = vld [vmem:[%s301 + $0x548] sm:$0xff]
      %v493 = vld [vmem:[%s301 + $0x550] sm:$0xff]
      %v494 = vld [vmem:[%s301 + $0x558] sm:$0xff]
      %v495 = vld [vmem:[%s301 + $0x560] sm:$0xff]
      %v496 = vld [vmem:[%s301 + $0x568] sm:$0xff]
      %v497 = vld [vmem:[%s301 + $0x570] sm:$0xff]
      %v498 = vld [vmem:[%s301 + $0x578] sm:$0xff]
      %v499 = vld [vmem:[%s301 + $0x580] sm:$0xff]
      %v500 = vld [vmem:[%s301 + $0x588] sm:$0xff]
      %v501 = vld [vmem:[%s301 + $0x590] sm:$0xff]
      %v502 = vld [vmem:[%s301 + $0x598] sm:$0xff]
      %v503 = vld [vmem:[%s301 + $0x5a0] sm:$0xff]
      %v504 = vld [vmem:[%s301 + $0x5a8] sm:$0xff]
      %v505 = vld [vmem:[%s301 + $0x5b0] sm:$0xff]
      %v506 = vld [vmem:[%s301 + $0x5b8] sm:$0xff]
      %v507 = vld [vmem:[%s301 + $0x5c0] sm:$0xff]
      %v508 = vld [vmem:[%s301 + $0x5c8] sm:$0xff]
      %v509 = vld [vmem:[%s301 + $0x5d0] sm:$0xff]
      %v510 = vld [vmem:[%s301 + $0x5d8] sm:$0xff]
      %v511 = vld [vmem:[%s301 + $0x5e0] sm:$0xff]
      %v512 = vld [vmem:[%s301 + $0x5e8] sm:$0xff]
      %v513 = vld [vmem:[%s301 + $0x5f0] sm:$0xff]
      %v514 = vld [vmem:[%s301 + $0x5f8] sm:$0xff]
      %v515 = vld [vmem:[%s301 + $0x600] sm:$0xff]
      %v516 = vld [vmem:[%s301 + $0x608] sm:$0xff]
      %v517 = vld [vmem:[%s301 + $0x610] sm:$0xff]
      %v518 = vld [vmem:[%s301 + $0x618] sm:$0xff]
      %v519 = vld [vmem:[%s301 + $0x620] sm:$0xff]
      %v520 = vld [vmem:[%s301 + $0x628] sm:$0xff]
      %v521 = vld [vmem:[%s301 + $0x630] sm:$0xff]
      %v522 = vld [vmem:[%s301 + $0x638] sm:$0xff]
      %v523 = vld [vmem:[%s301 + $0x640] sm:$0xff]
      %v524 = vld [vmem:[%s301 + $0x648] sm:$0xff]
      %v525 = vld [vmem:[%s301 + $0x650] sm:$0xff]
      %v526 = vld [vmem:[%s301 + $0x658] sm:$0xff]
      %v527 = vld [vmem:[%s301 + $0x660] sm:$0xff]
      %v528 = vld [vmem:[%s301 + $0x668] sm:$0xff]
      %v529 = vld [vmem:[%s301 + $0x670] sm:$0xff]
      %v530 = vld [vmem:[%s301 + $0x678] sm:$0xff]
      %v531 = vld [vmem:[%s301 + $0x680] sm:$0xff]
      %v532 = vld [vmem:[%s301 + $0x688] sm:$0xff]
      %v533 = vld [vmem:[%s301 + $0x690] sm:$0xff]
      %v534 = vld [vmem:[%s301 + $0x698] sm:$0xff]
      %v535 = vld [vmem:[%s301 + $0x6a0] sm:$0xff]
      %v536 = vld [vmem:[%s301 + $0x6a8] sm:$0xff]
      %v537 = vld [vmem:[%s301 + $0x6b0] sm:$0xff]
      %v538 = vld [vmem:[%s301 + $0x6b8] sm:$0xff]
      %v539 = vld [vmem:[%s301 + $0x6c0] sm:$0xff]
      %v540 = vld [vmem:[%s301 + $0x6c8] sm:$0xff]
      %v541 = vld [vmem:[%s301 + $0x6d0] sm:$0xff]
      %v542 = vld [vmem:[%s301 + $0x6d8] sm:$0xff]
      %v543 = vld [vmem:[%s301 + $0x6e0] sm:$0xff]
      %v544 = vld [vmem:[%s301 + $0x6e8] sm:$0xff]
      %v545 = vld [vmem:[%s301 + $0x6f0] sm:$0xff]
      %v546 = vld [vmem:[%s301 + $0x6f8] sm:$0xff]
      %v547 = vld [vmem:[%s301 + $0x700] sm:$0xff]
      %v548 = vld [vmem:[%s301 + $0x708] sm:$0xff]
      %v549 = vld [vmem:[%s301 + $0x710] sm:$0xff]
      %v550 = vld [vmem:[%s301 + $0x718] sm:$0xff]
      %v551 = vld [vmem:[%s301 + $0x720] sm:$0xff]
      %v552 = vld [vmem:[%s301 + $0x728] sm:$0xff]
      %v553 = vld [vmem:[%s301 + $0x730] sm:$0xff]
      %v554 = vld [vmem:[%s301 + $0x738] sm:$0xff]
      %v555 = vld [vmem:[%s301 + $0x740] sm:$0xff]
      %v556 = vld [vmem:[%s301 + $0x748] sm:$0xff]
      %v557 = vld [vmem:[%s301 + $0x750] sm:$0xff]
      %v558 = vld [vmem:[%s301 + $0x758] sm:$0xff]
      %v559 = vld [vmem:[%s301 + $0x760] sm:$0xff]
      %v560 = vld [vmem:[%s301 + $0x768] sm:$0xff]
      %v561 = vld [vmem:[%s301 + $0x770] sm:$0xff]
      %v562 = vld [vmem:[%s301 + $0x778] sm:$0xff]
      %v563 = vld [vmem:[%s301 + $0x780] sm:$0xff]
      %v564 = vld [vmem:[%s301 + $0x788] sm:$0xff]
      %v565 = vld [vmem:[%s301 + $0x790] sm:$0xff]
      %v566 = vld [vmem:[%s301 + $0x798] sm:$0xff]
      %v567 = vld [vmem:[%s301 + $0x7a0] sm:$0xff]
      %v568 = vld [vmem:[%s301 + $0x7a8] sm:$0xff]
      %v569 = vld [vmem:[%s301 + $0x7b0] sm:$0xff]
      %v570 = vld [vmem:[%s301 + $0x7b8] sm:$0xff]
      %v571 = vld [vmem:[%s301 + $0x7c0] sm:$0xff]
      %v572 = vld [vmem:[%s301 + $0x7c8] sm:$0xff]
      %v573 = vld [vmem:[%s301 + $0x7d0] sm:$0xff]
      %v574 = vld [vmem:[%s301 + $0x7d8] sm:$0xff]
      %v575 = vld [vmem:[%s301 + $0x7e0] sm:$0xff]
      %v576 = vld [vmem:[%s301 + $0x7e8] sm:$0xff]
      %v577 = vld [vmem:[%s301 + $0x7f0] sm:$0xff]
      %v578 = vld [vmem:[%s301 + $0x7f8] sm:$0xff]
      %v579 = vld [vmem:[%s301 + $0x800] sm:$0xff]
      %v580 = vld [vmem:[%s301 + $0x808] sm:$0xff]
      %v581 = vld [vmem:[%s301 + $0x810] sm:$0xff]
      %v582 = vld [vmem:[%s301 + $0x818] sm:$0xff]
      %v583 = vld [vmem:[%s301 + $0x820] sm:$0xff]
      %v584 = vld [vmem:[%s301 + $0x828] sm:$0xff]
      %v585 = vld [vmem:[%s301 + $0x830] sm:$0xff]
      %v586 = vld [vmem:[%s301 + $0x838] sm:$0xff]
      %v587 = vld [vmem:[%s301 + $0x840] sm:$0xff]
      %v588 = vld [vmem:[%s301 + $0x848] sm:$0xff]
      %v589 = vld [vmem:[%s301 + $0x850] sm:$0xff]
      %v590 = vld [vmem:[%s301 + $0x858] sm:$0xff]
      %v591 = vld [vmem:[%s301 + $0x860] sm:$0xff]
      %v592 = vld [vmem:[%s301 + $0x868] sm:$0xff]
      %v593 = vld [vmem:[%s301 + $0x870] sm:$0xff]
      %v594 = vld [vmem:[%s301 + $0x878] sm:$0xff]
      %v595 = vld [vmem:[%s301 + $0x880] sm:$0xff]
      %v596 = vld [vmem:[%s301 + $0x888] sm:$0xff]
      %v597 = vld [vmem:[%s301 + $0x890] sm:$0xff]
      %v598 = vld [vmem:[%s301 + $0x898] sm:$0xff]
      %v599 = vld [vmem:[%s301 + $0x8a0] sm:$0xff]
      %v600 = vld [vmem:[%s301 + $0x8a8] sm:$0xff]
      %v601 = vld [vmem:[%s301 + $0x8b0] sm:$0xff]
      %v602 = vld [vmem:[%s301 + $0x8b8] sm:$0xff]
      %v603 = vld [vmem:[%s301 + $0x8c0] sm:$0xff]
      %v604 = vld [vmem:[%s301 + $0x8c8] sm:$0xff]
      %v605 = vld [vmem:[%s301 + $0x8d0] sm:$0xff]
      %v606 = vld [vmem:[%s301 + $0x8d8] sm:$0xff]
      %v607 = vld [vmem:[%s301 + $0x8e0] sm:$0xff]
      %v608 = vld [vmem:[%s301 + $0x8e8] sm:$0xff]
      %v609 = vld [vmem:[%s301 + $0x8f0] sm:$0xff]
      %v610 = vld [vmem:[%s301 + $0x8f8] sm:$0xff]
      %v611 = vld [vmem:[%s301 + $0x900] sm:$0xff]
      %v612 = vld [vmem:[%s301 + $0x908] sm:$0xff]
      %v613 = vld [vmem:[%s301 + $0x910] sm:$0xff]
      %v614 = vld [vmem:[%s301 + $0x918] sm:$0xff]
      %v615 = vld [vmem:[%s301 + $0x920] sm:$0xff]
      %v616 = vld [vmem:[%s301 + $0x928] sm:$0xff]
      %v617 = vld [vmem:[%s301 + $0x930] sm:$0xff]
      %v618 = vld [vmem:[%s301 + $0x938] sm:$0xff]
      %v619 = vld [vmem:[%s301 + $0x940] sm:$0xff]
      %v620 = vld [vmem:[%s301 + $0x948] sm:$0xff]
      %v621 = vld [vmem:[%s301 + $0x950] sm:$0xff]
      %v622 = vld [vmem:[%s301 + $0x958] sm:$0xff]
      %v623 = vld [vmem:[%s301 + $0x960] sm:$0xff]
      %v624 = vld [vmem:[%s301 + $0x968] sm:$0xff]
      %v625 = vld [vmem:[%s301 + $0x970] sm:$0xff]
      %v626 = vld [vmem:[%s301 + $0x978] sm:$0xff]
      %v627 = vld [vmem:[%s301 + $0x980] sm:$0xff]
      %v628 = vld [vmem:[%s301 + $0x988] sm:$0xff]
      %v629 = vld [vmem:[%s301 + $0x990] sm:$0xff]
      %v630 = vld [vmem:[%s301 + $0x998] sm:$0xff]
      %v631 = vld [vmem:[%s301 + $0x9a0] sm:$0xff]
      %v632 = vld [vmem:[%s301 + $0x9a8] sm:$0xff]
      %v633 = vld [vmem:[%s301 + $0x9b0] sm:$0xff]
      %v634 = vld [vmem:[%s301 + $0x9b8] sm:$0xff]
      %v635 = vunpack.c.0.s8 %v323
      %v636 = vunpack.c.1.s8 %v323
      %v637 = vunpack.c.2.s8 %v323
      %v638 = vunpack.c.3.s8 %v323
      %v639 = vunpack.c.0.s8 %v324
      %v640 = vunpack.c.1.s8 %v324
      %v641 = vunpack.c.2.s8 %v324
      %v642 = vunpack.c.3.s8 %v324
      %v643 = vunpack.c.0.s8 %v325
      %v644 = vunpack.c.1.s8 %v325
      %v645 = vunpack.c.2.s8 %v325
      %v646 = vunpack.c.3.s8 %v325
      %v647 = vunpack.c.0.s8 %v326
      %v648 = vunpack.c.1.s8 %v326
      %v649 = vunpack.c.2.s8 %v326
      %v650 = vunpack.c.3.s8 %v326
      %v651 = vunpack.c.0.s8 %v327
      %v652 = vunpack.c.1.s8 %v327
      %v653 = vunpack.c.2.s8 %v327
      %v654 = vunpack.c.3.s8 %v327
      %v655 = vunpack.c.0.s8 %v328
      %v656 = vunpack.c.1.s8 %v328
      %v657 = vunpack.c.2.s8 %v328
      %v658 = vunpack.c.3.s8 %v328
      %v659 = vunpack.c.0.s8 %v329
      %v660 = vunpack.c.1.s8 %v329
      %v661 = vunpack.c.2.s8 %v329
      %v662 = vunpack.c.3.s8 %v329
      %v663 = vunpack.c.0.s8 %v330
      %v664 = vunpack.c.1.s8 %v330
      %v665 = vunpack.c.2.s8 %v330
      %v666 = vunpack.c.3.s8 %v330
      %v667 = vunpack.c.0.s8 %v331
      %v668 = vunpack.c.1.s8 %v331
      %v669 = vunpack.c.2.s8 %v331
      %v670 = vunpack.c.3.s8 %v331
      %v671 = vunpack.c.0.s8 %v332
      %v672 = vunpack.c.1.s8 %v332
      %v673 = vunpack.c.2.s8 %v332
      %v674 = vunpack.c.3.s8 %v332
      %v675 = vunpack.c.0.s8 %v333
      %v676 = vunpack.c.1.s8 %v333
      %v677 = vunpack.c.2.s8 %v333
      %v678 = vunpack.c.3.s8 %v333
      %v679 = vunpack.c.0.s8 %v334
      %v680 = vunpack.c.1.s8 %v334
      %v681 = vunpack.c.2.s8 %v334
      %v682 = vunpack.c.3.s8 %v334
      %v683 = vunpack.c.0.s8 %v335
      %v684 = vunpack.c.1.s8 %v335
      %v685 = vunpack.c.2.s8 %v335
      %v686 = vunpack.c.3.s8 %v335
      %v687 = vunpack.c.0.s8 %v336
      %v688 = vunpack.c.1.s8 %v336
      %v689 = vunpack.c.2.s8 %v336
      %v690 = vunpack.c.3.s8 %v336
      %v691 = vunpack.c.0.s8 %v337
      %v692 = vunpack.c.1.s8 %v337
      %v693 = vunpack.c.2.s8 %v337
      %v694 = vunpack.c.3.s8 %v337
      %v695 = vunpack.c.0.s8 %v338
      %v696 = vunpack.c.1.s8 %v338
      %v697 = vunpack.c.2.s8 %v338
      %v698 = vunpack.c.3.s8 %v338
      %v699 = vunpack.c.0.s8 %v339
      %v700 = vunpack.c.1.s8 %v339
      %v701 = vunpack.c.2.s8 %v339
      %v702 = vunpack.c.3.s8 %v339
      %v703 = vunpack.c.0.s8 %v340
      %v704 = vunpack.c.1.s8 %v340
      %v705 = vunpack.c.2.s8 %v340
      %v706 = vunpack.c.3.s8 %v340
      %v707 = vunpack.c.0.s8 %v341
      %v708 = vunpack.c.1.s8 %v341
      %v709 = vunpack.c.2.s8 %v341
      %v710 = vunpack.c.3.s8 %v341
      %v711 = vunpack.c.0.s8 %v342
      %v712 = vunpack.c.1.s8 %v342
      %v713 = vunpack.c.2.s8 %v342
      %v714 = vunpack.c.3.s8 %v342
      %v715 = vunpack.c.0.s8 %v343
      %v716 = vunpack.c.1.s8 %v343
      %v717 = vunpack.c.2.s8 %v343
      %v718 = vunpack.c.3.s8 %v343
      %v719 = vunpack.c.0.s8 %v344
      %v720 = vunpack.c.1.s8 %v344
      %v721 = vunpack.c.2.s8 %v344
      %v722 = vunpack.c.3.s8 %v344
      %v723 = vunpack.c.0.s8 %v345
      %v724 = vunpack.c.1.s8 %v345
      %v725 = vunpack.c.2.s8 %v345
      %v726 = vunpack.c.3.s8 %v345
      %v727 = vunpack.c.0.s8 %v346
      %v728 = vunpack.c.1.s8 %v346
      %v729 = vunpack.c.2.s8 %v346
      %v730 = vunpack.c.3.s8 %v346
      %v731 = vunpack.c.0.s8 %v347
      %v732 = vunpack.c.1.s8 %v347
      %v733 = vunpack.c.2.s8 %v347
      %v734 = vunpack.c.3.s8 %v347
      %v735 = vunpack.c.0.s8 %v348
      %v736 = vunpack.c.1.s8 %v348
      %v737 = vunpack.c.2.s8 %v348
      %v738 = vunpack.c.3.s8 %v348
      %v739 = vunpack.c.0.s8 %v349
      %v740 = vunpack.c.1.s8 %v349
      %v741 = vunpack.c.2.s8 %v349
      %v742 = vunpack.c.3.s8 %v349
      %v743 = vunpack.c.0.s8 %v350
      %v744 = vunpack.c.1.s8 %v350
      %v745 = vunpack.c.2.s8 %v350
      %v746 = vunpack.c.3.s8 %v350
      %v747 = vunpack.c.0.s8 %v351
      %v748 = vunpack.c.1.s8 %v351
      %v749 = vunpack.c.2.s8 %v351
      %v750 = vunpack.c.3.s8 %v351
      %v751 = vunpack.c.0.s8 %v352
      %v752 = vunpack.c.1.s8 %v352
      %v753 = vunpack.c.2.s8 %v352
      %v754 = vunpack.c.3.s8 %v352
      %v755 = vunpack.c.0.s8 %v353
      %v756 = vunpack.c.1.s8 %v353
      %v757 = vunpack.c.2.s8 %v353
      %v758 = vunpack.c.3.s8 %v353
      %v759 = vunpack.c.0.s8 %v354
      %v760 = vunpack.c.1.s8 %v354
      %v761 = vunpack.c.2.s8 %v354
      %v762 = vunpack.c.3.s8 %v354
      %v763 = vunpack.c.0.s8 %v355
      %v764 = vunpack.c.1.s8 %v355
      %v765 = vunpack.c.2.s8 %v355
      %v766 = vunpack.c.3.s8 %v355
      %v767 = vunpack.c.0.s8 %v356
      %v768 = vunpack.c.1.s8 %v356
      %v769 = vunpack.c.2.s8 %v356
      %v770 = vunpack.c.3.s8 %v356
      %v771 = vunpack.c.0.s8 %v357
      %v772 = vunpack.c.1.s8 %v357
      %v773 = vunpack.c.2.s8 %v357
      %v774 = vunpack.c.3.s8 %v357
      %v775 = vunpack.c.0.s8 %v358
      %v776 = vunpack.c.1.s8 %v358
      %v777 = vunpack.c.2.s8 %v358
      %v778 = vunpack.c.3.s8 %v358
      %v779 = vunpack.c.0.s8 %v359
      %v780 = vunpack.c.1.s8 %v359
      %v781 = vunpack.c.2.s8 %v359
      %v782 = vunpack.c.3.s8 %v359
      %v783 = vunpack.c.0.s8 %v360
      %v784 = vunpack.c.1.s8 %v360
      %v785 = vunpack.c.2.s8 %v360
      %v786 = vunpack.c.3.s8 %v360
      %v787 = vunpack.c.0.s8 %v361
      %v788 = vunpack.c.1.s8 %v361
      %v789 = vunpack.c.2.s8 %v361
      %v790 = vunpack.c.3.s8 %v361
      %v791 = vunpack.c.0.s8 %v362
      %v792 = vunpack.c.1.s8 %v362
      %v793 = vunpack.c.2.s8 %v362
      %v794 = vunpack.c.3.s8 %v362
      %v795 = vunpack.c.0.s8 %v363
      %v796 = vunpack.c.1.s8 %v363
      %v797 = vunpack.c.2.s8 %v363
      %v798 = vunpack.c.3.s8 %v363
      %v799 = vunpack.c.0.s8 %v364
      %v800 = vunpack.c.1.s8 %v364
      %v801 = vunpack.c.2.s8 %v364
      %v802 = vunpack.c.3.s8 %v364
      %v803 = vunpack.c.0.s8 %v365
      %v804 = vunpack.c.1.s8 %v365
      %v805 = vunpack.c.2.s8 %v365
      %v806 = vunpack.c.3.s8 %v365
      %v807 = vunpack.c.0.s8 %v366
      %v808 = vunpack.c.1.s8 %v366
      %v809 = vunpack.c.2.s8 %v366
      %v810 = vunpack.c.3.s8 %v366
      %v811 = vunpack.c.0.s8 %v367
      %v812 = vunpack.c.1.s8 %v367
      %v813 = vunpack.c.2.s8 %v367
      %v814 = vunpack.c.3.s8 %v367
      %v815 = vunpack.c.0.s8 %v368
      %v816 = vunpack.c.1.s8 %v368
      %v817 = vunpack.c.2.s8 %v368
      %v818 = vunpack.c.3.s8 %v368
      %v819 = vunpack.c.0.s8 %v369
      %v820 = vunpack.c.1.s8 %v369
      %v821 = vunpack.c.2.s8 %v369
      %v822 = vunpack.c.3.s8 %v369
      %v823 = vunpack.c.0.s8 %v370
      %v824 = vunpack.c.1.s8 %v370
      %v825 = vunpack.c.2.s8 %v370
      %v826 = vunpack.c.3.s8 %v370
      %v827 = vunpack.c.0.s8 %v371
      %v828 = vunpack.c.1.s8 %v371
      %v829 = vunpack.c.2.s8 %v371
      %v830 = vunpack.c.3.s8 %v371
      %v831 = vunpack.c.0.s8 %v372
      %v832 = vunpack.c.1.s8 %v372
      %v833 = vunpack.c.2.s8 %v372
      %v834 = vunpack.c.3.s8 %v372
      %v835 = vunpack.c.0.s8 %v373
      %v836 = vunpack.c.1.s8 %v373
      %v837 = vunpack.c.2.s8 %v373
      %v838 = vunpack.c.3.s8 %v373
      %v839 = vunpack.c.0.s8 %v374
      %v840 = vunpack.c.1.s8 %v374
      %v841 = vunpack.c.2.s8 %v374
      %v842 = vunpack.c.3.s8 %v374
      %v843 = vunpack.c.0.s8 %v375
      %v844 = vunpack.c.1.s8 %v375
      %v845 = vunpack.c.2.s8 %v375
      %v846 = vunpack.c.3.s8 %v375
      %v847 = vunpack.c.0.s8 %v376
      %v848 = vunpack.c.1.s8 %v376
      %v849 = vunpack.c.2.s8 %v376
      %v850 = vunpack.c.3.s8 %v376
      %v851 = vunpack.c.0.s8 %v377
      %v852 = vunpack.c.1.s8 %v377
      %v853 = vunpack.c.2.s8 %v377
      %v854 = vunpack.c.3.s8 %v377
      %v855 = vunpack.c.0.s8 %v378
      %v856 = vunpack.c.1.s8 %v378
      %v857 = vunpack.c.2.s8 %v378
      %v858 = vunpack.c.3.s8 %v378
      %v859 = vunpack.c.0.s8 %v379
      %v860 = vunpack.c.1.s8 %v379
      %v861 = vunpack.c.2.s8 %v379
      %v862 = vunpack.c.3.s8 %v379
      %v863 = vunpack.c.0.s8 %v380
      %v864 = vunpack.c.1.s8 %v380
      %v865 = vunpack.c.2.s8 %v380
      %v866 = vunpack.c.3.s8 %v380
      %v867 = vunpack.c.0.s8 %v381
      %v868 = vunpack.c.1.s8 %v381
      %v869 = vunpack.c.2.s8 %v381
      %v870 = vunpack.c.3.s8 %v381
      %v871 = vunpack.c.0.s8 %v382
      %v872 = vunpack.c.1.s8 %v382
      %v873 = vunpack.c.2.s8 %v382
      %v874 = vunpack.c.3.s8 %v382
      %v875 = vunpack.c.0.s8 %v383
      %v876 = vunpack.c.1.s8 %v383
      %v877 = vunpack.c.2.s8 %v383
      %v878 = vunpack.c.3.s8 %v383
      %v879 = vunpack.c.0.s8 %v384
      %v880 = vunpack.c.1.s8 %v384
      %v881 = vunpack.c.2.s8 %v384
      %v882 = vunpack.c.3.s8 %v384
      %v883 = vunpack.c.0.s8 %v385
      %v884 = vunpack.c.1.s8 %v385
      %v885 = vunpack.c.2.s8 %v385
      %v886 = vunpack.c.3.s8 %v385
      %v887 = vunpack.c.0.s8 %v386
      %v888 = vunpack.c.1.s8 %v386
      %v889 = vunpack.c.2.s8 %v386
      %v890 = vunpack.c.3.s8 %v386
      %v891 = vunpack.c.0.s8 %v387
      %v892 = vunpack.c.1.s8 %v387
      %v893 = vunpack.c.2.s8 %v387
      %v894 = vunpack.c.3.s8 %v387
      %v895 = vunpack.c.0.s8 %v388
      %v896 = vunpack.c.1.s8 %v388
      %v897 = vunpack.c.2.s8 %v388
      %v898 = vunpack.c.3.s8 %v388
      %v899 = vunpack.c.0.s8 %v389
      %v900 = vunpack.c.1.s8 %v389
      %v901 = vunpack.c.2.s8 %v389
      %v902 = vunpack.c.3.s8 %v389
      %v903 = vunpack.c.0.s8 %v390
      %v904 = vunpack.c.1.s8 %v390
      %v905 = vunpack.c.2.s8 %v390
      %v906 = vunpack.c.3.s8 %v390
      %v907 = vunpack.c.0.s8 %v391
      %v908 = vunpack.c.1.s8 %v391
      %v909 = vunpack.c.2.s8 %v391
      %v910 = vunpack.c.3.s8 %v391
      %v911 = vunpack.c.0.s8 %v392
      %v912 = vunpack.c.1.s8 %v392
      %v913 = vunpack.c.2.s8 %v392
      %v914 = vunpack.c.3.s8 %v392
      %v915 = vunpack.c.0.s8 %v393
      %v916 = vunpack.c.1.s8 %v393
      %v917 = vunpack.c.2.s8 %v393
      %v918 = vunpack.c.3.s8 %v393
      %v919 = vunpack.c.0.s8 %v394
      %v920 = vunpack.c.1.s8 %v394
      %v921 = vunpack.c.2.s8 %v394
      %v922 = vunpack.c.3.s8 %v394
      %v923 = vunpack.c.0.s8 %v395
      %v924 = vunpack.c.1.s8 %v395
      %v925 = vunpack.c.2.s8 %v395
      %v926 = vunpack.c.3.s8 %v395
      %v927 = vunpack.c.0.s8 %v396
      %v928 = vunpack.c.1.s8 %v396
      %v929 = vunpack.c.2.s8 %v396
      %v930 = vunpack.c.3.s8 %v396
      %v931 = vunpack.c.0.s8 %v397
      %v932 = vunpack.c.1.s8 %v397
      %v933 = vunpack.c.2.s8 %v397
      %v934 = vunpack.c.3.s8 %v397
      %v935 = vunpack.c.0.s8 %v398
      %v936 = vunpack.c.1.s8 %v398
      %v937 = vunpack.c.2.s8 %v398
      %v938 = vunpack.c.3.s8 %v398
      %v939 = vunpack.c.0.s8 %v399
      %v940 = vunpack.c.1.s8 %v399
      %v941 = vunpack.c.2.s8 %v399
      %v942 = vunpack.c.3.s8 %v399
      %v943 = vunpack.c.0.s8 %v400
      %v944 = vunpack.c.1.s8 %v400
      %v945 = vunpack.c.2.s8 %v400
      %v946 = vunpack.c.3.s8 %v400
      %v947 = vunpack.c.0.s8 %v401
      %v948 = vunpack.c.1.s8 %v401
      %v949 = vunpack.c.2.s8 %v401
      %v950 = vunpack.c.3.s8 %v401
      %v951 = vunpack.c.0.s8 %v402
      %v952 = vunpack.c.1.s8 %v402
      %v953 = vunpack.c.2.s8 %v402
      %v954 = vunpack.c.3.s8 %v402
      %v955 = vunpack.c.0.s8 %v403
      %v956 = vunpack.c.1.s8 %v403
      %v957 = vunpack.c.2.s8 %v403
      %v958 = vunpack.c.3.s8 %v403
      %v959 = vunpack.c.0.s8 %v404
      %v960 = vunpack.c.1.s8 %v404
      %v961 = vunpack.c.2.s8 %v404
      %v962 = vunpack.c.3.s8 %v404
      %v963 = vunpack.c.0.s8 %v405
      %v964 = vunpack.c.1.s8 %v405
      %v965 = vunpack.c.2.s8 %v405
      %v966 = vunpack.c.3.s8 %v405
      %v967 = vunpack.c.0.s8 %v406
      %v968 = vunpack.c.1.s8 %v406
      %v969 = vunpack.c.2.s8 %v406
      %v970 = vunpack.c.3.s8 %v406
      %v971 = vunpack.c.0.s8 %v407
      %v972 = vunpack.c.1.s8 %v407
      %v973 = vunpack.c.2.s8 %v407
      %v974 = vunpack.c.3.s8 %v407
      %v975 = vunpack.c.0.s8 %v408
      %v976 = vunpack.c.1.s8 %v408
      %v977 = vunpack.c.2.s8 %v408
      %v978 = vunpack.c.3.s8 %v408
      %v979 = vunpack.c.0.s8 %v409
      %v980 = vunpack.c.1.s8 %v409
      %v981 = vunpack.c.2.s8 %v409
      %v982 = vunpack.c.3.s8 %v409
      %v983 = vunpack.c.0.s8 %v410
      %v984 = vunpack.c.1.s8 %v410
      %v985 = vunpack.c.2.s8 %v410
      %v986 = vunpack.c.3.s8 %v410
      %v987 = vunpack.c.0.s8 %v411
      %v988 = vunpack.c.1.s8 %v411
      %v989 = vunpack.c.2.s8 %v411
      %v990 = vunpack.c.3.s8 %v411
      %v991 = vunpack.c.0.s8 %v412
      %v992 = vunpack.c.1.s8 %v412
      %v993 = vunpack.c.2.s8 %v412
      %v994 = vunpack.c.3.s8 %v412
      %v995 = vunpack.c.0.s8 %v413
      %v996 = vunpack.c.1.s8 %v413
      %v997 = vunpack.c.2.s8 %v413
      %v998 = vunpack.c.3.s8 %v413
      %v999 = vunpack.c.0.s8 %v414
      %v1000 = vunpack.c.1.s8 %v414
      %v1001 = vunpack.c.2.s8 %v414
      %v1002 = vunpack.c.3.s8 %v414
      %v1003 = vunpack.c.0.s8 %v415
      %v1004 = vunpack.c.1.s8 %v415
      %v1005 = vunpack.c.2.s8 %v415
      %v1006 = vunpack.c.3.s8 %v415
      %v1007 = vunpack.c.0.s8 %v416
      %v1008 = vunpack.c.1.s8 %v416
      %v1009 = vunpack.c.2.s8 %v416
      %v1010 = vunpack.c.3.s8 %v416
      %v1011 = vunpack.c.0.s8 %v417
      %v1012 = vunpack.c.1.s8 %v417
      %v1013 = vunpack.c.2.s8 %v417
      %v1014 = vunpack.c.3.s8 %v417
      %v1015 = vunpack.c.0.s8 %v418
      %v1016 = vunpack.c.1.s8 %v418
      %v1017 = vunpack.c.2.s8 %v418
      %v1018 = vunpack.c.3.s8 %v418
      %v1019 = vunpack.c.0.s8 %v419
      %v1020 = vunpack.c.1.s8 %v419
      %v1021 = vunpack.c.2.s8 %v419
      %v1022 = vunpack.c.3.s8 %v419
      %v1023 = vunpack.c.0.s8 %v420
      %v1024 = vunpack.c.1.s8 %v420
      %v1025 = vunpack.c.2.s8 %v420
      %v1026 = vunpack.c.3.s8 %v420
      %v1027 = vunpack.c.0.s8 %v421
      %v1028 = vunpack.c.1.s8 %v421
      %v1029 = vunpack.c.2.s8 %v421
      %v1030 = vunpack.c.3.s8 %v421
      %v1031 = vunpack.c.0.s8 %v422
      %v1032 = vunpack.c.1.s8 %v422
      %v1033 = vunpack.c.2.s8 %v422
      %v1034 = vunpack.c.3.s8 %v422
      %v1035 = vunpack.c.0.s8 %v423
      %v1036 = vunpack.c.1.s8 %v423
      %v1037 = vunpack.c.2.s8 %v423
      %v1038 = vunpack.c.3.s8 %v423
      %v1039 = vunpack.c.0.s8 %v424
      %v1040 = vunpack.c.1.s8 %v424
      %v1041 = vunpack.c.2.s8 %v424
      %v1042 = vunpack.c.3.s8 %v424
      %v1043 = vunpack.c.0.s8 %v425
      %v1044 = vunpack.c.1.s8 %v425
      %v1045 = vunpack.c.2.s8 %v425
      %v1046 = vunpack.c.3.s8 %v425
      %v1047 = vunpack.c.0.s8 %v426
      %v1048 = vunpack.c.1.s8 %v426
      %v1049 = vunpack.c.2.s8 %v426
      %v1050 = vunpack.c.3.s8 %v426
      %v1051 = vunpack.c.0.s8 %v427
      %v1052 = vunpack.c.1.s8 %v427
      %v1053 = vunpack.c.2.s8 %v427
      %v1054 = vunpack.c.3.s8 %v427
      %v1055 = vunpack.c.0.s8 %v428
      %v1056 = vunpack.c.1.s8 %v428
      %v1057 = vunpack.c.2.s8 %v428
      %v1058 = vunpack.c.3.s8 %v428
      %v1059 = vunpack.c.0.s8 %v429
      %v1060 = vunpack.c.1.s8 %v429
      %v1061 = vunpack.c.2.s8 %v429
      %v1062 = vunpack.c.3.s8 %v429
      %v1063 = vunpack.c.0.s8 %v430
      %v1064 = vunpack.c.1.s8 %v430
      %v1065 = vunpack.c.2.s8 %v430
      %v1066 = vunpack.c.3.s8 %v430
      %v1067 = vunpack.c.0.s8 %v431
      %v1068 = vunpack.c.1.s8 %v431
      %v1069 = vunpack.c.2.s8 %v431
      %v1070 = vunpack.c.3.s8 %v431
      %v1071 = vunpack.c.0.s8 %v432
      %v1072 = vunpack.c.1.s8 %v432
      %v1073 = vunpack.c.2.s8 %v432
      %v1074 = vunpack.c.3.s8 %v432
      %v1075 = vunpack.c.0.s8 %v433
      %v1076 = vunpack.c.1.s8 %v433
      %v1077 = vunpack.c.2.s8 %v433
      %v1078 = vunpack.c.3.s8 %v433
      %v1079 = vunpack.c.0.s8 %v434
      %v1080 = vunpack.c.1.s8 %v434
      %v1081 = vunpack.c.2.s8 %v434
      %v1082 = vunpack.c.3.s8 %v434
      %v1083 = vunpack.c.0.s8 %v435
      %v1084 = vunpack.c.1.s8 %v435
      %v1085 = vunpack.c.2.s8 %v435
      %v1086 = vunpack.c.3.s8 %v435
      %v1087 = vunpack.c.0.s8 %v436
      %v1088 = vunpack.c.1.s8 %v436
      %v1089 = vunpack.c.2.s8 %v436
      %v1090 = vunpack.c.3.s8 %v436
      %v1091 = vunpack.c.0.s8 %v437
      %v1092 = vunpack.c.1.s8 %v437
      %v1093 = vunpack.c.2.s8 %v437
      %v1094 = vunpack.c.3.s8 %v437
      %v1095 = vunpack.c.0.s8 %v438
      %v1096 = vunpack.c.1.s8 %v438
      %v1097 = vunpack.c.2.s8 %v438
      %v1098 = vunpack.c.3.s8 %v438
      %v1099 = vunpack.c.0.s8 %v439
      %v1100 = vunpack.c.1.s8 %v439
      %v1101 = vunpack.c.2.s8 %v439
      %v1102 = vunpack.c.3.s8 %v439
      %v1103 = vunpack.c.0.s8 %v440
      %v1104 = vunpack.c.1.s8 %v440
      %v1105 = vunpack.c.2.s8 %v440
      %v1106 = vunpack.c.3.s8 %v440
      %v1107 = vunpack.c.0.s8 %v441
      %v1108 = vunpack.c.1.s8 %v441
      %v1109 = vunpack.c.2.s8 %v441
      %v1110 = vunpack.c.3.s8 %v441
      %v1111 = vunpack.c.0.s8 %v442
      %v1112 = vunpack.c.1.s8 %v442
      %v1113 = vunpack.c.2.s8 %v442
      %v1114 = vunpack.c.3.s8 %v442
      %v1115 = vunpack.c.0.s8 %v443
      %v1116 = vunpack.c.1.s8 %v443
      %v1117 = vunpack.c.2.s8 %v443
      %v1118 = vunpack.c.3.s8 %v443
      %v1119 = vunpack.c.0.s8 %v444
      %v1120 = vunpack.c.1.s8 %v444
      %v1121 = vunpack.c.2.s8 %v444
      %v1122 = vunpack.c.3.s8 %v444
      %v1123 = vunpack.c.0.s8 %v445
      %v1124 = vunpack.c.1.s8 %v445
      %v1125 = vunpack.c.2.s8 %v445
      %v1126 = vunpack.c.3.s8 %v445
      %v1127 = vunpack.c.0.s8 %v446
      %v1128 = vunpack.c.1.s8 %v446
      %v1129 = vunpack.c.2.s8 %v446
      %v1130 = vunpack.c.3.s8 %v446
      %v1131 = vunpack.c.0.s8 %v447
      %v1132 = vunpack.c.1.s8 %v447
      %v1133 = vunpack.c.2.s8 %v447
      %v1134 = vunpack.c.3.s8 %v447
      %v1135 = vunpack.c.0.s8 %v448
      %v1136 = vunpack.c.1.s8 %v448
      %v1137 = vunpack.c.2.s8 %v448
      %v1138 = vunpack.c.3.s8 %v448
      %v1139 = vunpack.c.0.s8 %v449
      %v1140 = vunpack.c.1.s8 %v449
      %v1141 = vunpack.c.2.s8 %v449
      %v1142 = vunpack.c.3.s8 %v449
      %v1143 = vunpack.c.0.s8 %v450
      %v1144 = vunpack.c.1.s8 %v450
      %v1145 = vunpack.c.2.s8 %v450
      %v1146 = vunpack.c.3.s8 %v450
      %v1147 = vunpack.c.0.s8 %v451
      %v1148 = vunpack.c.1.s8 %v451
      %v1149 = vunpack.c.2.s8 %v451
      %v1150 = vunpack.c.3.s8 %v451
      %v1151 = vunpack.c.0.s8 %v452
      %v1152 = vunpack.c.1.s8 %v452
      %v1153 = vunpack.c.2.s8 %v452
      %v1154 = vunpack.c.3.s8 %v452
      %v1155 = vunpack.c.0.s8 %v453
      %v1156 = vunpack.c.1.s8 %v453
      %v1157 = vunpack.c.2.s8 %v453
      %v1158 = vunpack.c.3.s8 %v453
      %v1159 = vunpack.c.0.s8 %v454
      %v1160 = vunpack.c.1.s8 %v454
      %v1161 = vunpack.c.2.s8 %v454
      %v1162 = vunpack.c.3.s8 %v454
      %v1163 = vunpack.c.0.s8 %v455
      %v1164 = vunpack.c.1.s8 %v455
      %v1165 = vunpack.c.2.s8 %v455
      %v1166 = vunpack.c.3.s8 %v455
      %v1167 = vunpack.c.0.s8 %v456
      %v1168 = vunpack.c.1.s8 %v456
      %v1169 = vunpack.c.2.s8 %v456
      %v1170 = vunpack.c.3.s8 %v456
      %v1171 = vunpack.c.0.s8 %v457
      %v1172 = vunpack.c.1.s8 %v457
      %v1173 = vunpack.c.2.s8 %v457
      %v1174 = vunpack.c.3.s8 %v457
      %v1175 = vunpack.c.0.s8 %v458
      %v1176 = vunpack.c.1.s8 %v458
      %v1177 = vunpack.c.2.s8 %v458
      %v1178 = vunpack.c.3.s8 %v458
      %v1179 = vunpack.c.0.s8 %v459
      %v1180 = vunpack.c.1.s8 %v459
      %v1181 = vunpack.c.2.s8 %v459
      %v1182 = vunpack.c.3.s8 %v459
      %v1183 = vunpack.c.0.s8 %v460
      %v1184 = vunpack.c.1.s8 %v460
      %v1185 = vunpack.c.2.s8 %v460
      %v1186 = vunpack.c.3.s8 %v460
      %v1187 = vunpack.c.0.s8 %v461
      %v1188 = vunpack.c.1.s8 %v461
      %v1189 = vunpack.c.2.s8 %v461
      %v1190 = vunpack.c.3.s8 %v461
      %v1191 = vunpack.c.0.s8 %v462
      %v1192 = vunpack.c.1.s8 %v462
      %v1193 = vunpack.c.2.s8 %v462
      %v1194 = vunpack.c.3.s8 %v462
      %v1195 = vunpack.c.0.s8 %v463
      %v1196 = vunpack.c.1.s8 %v463
      %v1197 = vunpack.c.2.s8 %v463
      %v1198 = vunpack.c.3.s8 %v463
      %v1199 = vunpack.c.0.s8 %v464
      %v1200 = vunpack.c.1.s8 %v464
      %v1201 = vunpack.c.2.s8 %v464
      %v1202 = vunpack.c.3.s8 %v464
      %v1203 = vunpack.c.0.s8 %v465
      %v1204 = vunpack.c.1.s8 %v465
      %v1205 = vunpack.c.2.s8 %v465
      %v1206 = vunpack.c.3.s8 %v465
      %v1207 = vunpack.c.0.s8 %v466
      %v1208 = vunpack.c.1.s8 %v466
      %v1209 = vunpack.c.2.s8 %v466
      %v1210 = vunpack.c.3.s8 %v466
      %v1211 = vunpack.c.0.s8 %v467
      %v1212 = vunpack.c.1.s8 %v467
      %v1213 = vunpack.c.2.s8 %v467
      %v1214 = vunpack.c.3.s8 %v467
      %v1215 = vunpack.c.0.s8 %v468
      %v1216 = vunpack.c.1.s8 %v468
      %v1217 = vunpack.c.2.s8 %v468
      %v1218 = vunpack.c.3.s8 %v468
      %v1219 = vunpack.c.0.s8 %v469
      %v1220 = vunpack.c.1.s8 %v469
      %v1221 = vunpack.c.2.s8 %v469
      %v1222 = vunpack.c.3.s8 %v469
      %v1223 = vunpack.c.0.s8 %v470
      %v1224 = vunpack.c.1.s8 %v470
      %v1225 = vunpack.c.2.s8 %v470
      %v1226 = vunpack.c.3.s8 %v470
      %v1227 = vunpack.c.0.s8 %v471
      %v1228 = vunpack.c.1.s8 %v471
      %v1229 = vunpack.c.2.s8 %v471
      %v1230 = vunpack.c.3.s8 %v471
      %v1231 = vunpack.c.0.s8 %v472
      %v1232 = vunpack.c.1.s8 %v472
      %v1233 = vunpack.c.2.s8 %v472
      %v1234 = vunpack.c.3.s8 %v472
      %v1235 = vunpack.c.0.s8 %v473
      %v1236 = vunpack.c.1.s8 %v473
      %v1237 = vunpack.c.2.s8 %v473
      %v1238 = vunpack.c.3.s8 %v473
      %v1239 = vunpack.c.0.s8 %v474
      %v1240 = vunpack.c.1.s8 %v474
      %v1241 = vunpack.c.2.s8 %v474
      %v1242 = vunpack.c.3.s8 %v474
      %v1243 = vunpack.c.0.s8 %v475
      %v1244 = vunpack.c.1.s8 %v475
      %v1245 = vunpack.c.2.s8 %v475
      %v1246 = vunpack.c.3.s8 %v475
      %v1247 = vunpack.c.0.s8 %v476
      %v1248 = vunpack.c.1.s8 %v476
      %v1249 = vunpack.c.2.s8 %v476
      %v1250 = vunpack.c.3.s8 %v476
      %v1251 = vunpack.c.0.s8 %v477
      %v1252 = vunpack.c.1.s8 %v477
      %v1253 = vunpack.c.2.s8 %v477
      %v1254 = vunpack.c.3.s8 %v477
      %v1255 = vunpack.c.0.s8 %v478
      %v1256 = vunpack.c.1.s8 %v478
      %v1257 = vunpack.c.2.s8 %v478
      %v1258 = vunpack.c.3.s8 %v478
      %v1259 = vunpack.c.0.s8 %v479
      %v1260 = vunpack.c.1.s8 %v479
      %v1261 = vunpack.c.2.s8 %v479
      %v1262 = vunpack.c.3.s8 %v479
      %v1263 = vunpack.c.0.s8 %v480
      %v1264 = vunpack.c.1.s8 %v480
      %v1265 = vunpack.c.2.s8 %v480
      %v1266 = vunpack.c.3.s8 %v480
      %v1267 = vunpack.c.0.s8 %v481
      %v1268 = vunpack.c.1.s8 %v481
      %v1269 = vunpack.c.2.s8 %v481
      %v1270 = vunpack.c.3.s8 %v481
      %v1271 = vunpack.c.0.s8 %v482
      %v1272 = vunpack.c.1.s8 %v482
      %v1273 = vunpack.c.2.s8 %v482
      %v1274 = vunpack.c.3.s8 %v482
      %v1275 = vunpack.c.0.s8 %v483
      %v1276 = vunpack.c.1.s8 %v483
      %v1277 = vunpack.c.2.s8 %v483
      %v1278 = vunpack.c.3.s8 %v483
      %v1279 = vunpack.c.0.s8 %v484
      %v1280 = vunpack.c.1.s8 %v484
      %v1281 = vunpack.c.2.s8 %v484
      %v1282 = vunpack.c.3.s8 %v484
      %v1283 = vunpack.c.0.s8 %v485
      %v1284 = vunpack.c.1.s8 %v485
      %v1285 = vunpack.c.2.s8 %v485
      %v1286 = vunpack.c.3.s8 %v485
      %v1287 = vunpack.c.0.s8 %v486
      %v1288 = vunpack.c.1.s8 %v486
      %v1289 = vunpack.c.2.s8 %v486
      %v1290 = vunpack.c.3.s8 %v486
      %v1291 = vunpack.c.0.s8 %v487
      %v1292 = vunpack.c.1.s8 %v487
      %v1293 = vunpack.c.2.s8 %v487
      %v1294 = vunpack.c.3.s8 %v487
      %v1295 = vunpack.c.0.s8 %v488
      %v1296 = vunpack.c.1.s8 %v488
      %v1297 = vunpack.c.2.s8 %v488
      %v1298 = vunpack.c.3.s8 %v488
      %v1299 = vunpack.c.0.s8 %v489
      %v1300 = vunpack.c.1.s8 %v489
      %v1301 = vunpack.c.2.s8 %v489
      %v1302 = vunpack.c.3.s8 %v489
      %v1303 = vunpack.c.0.s8 %v490
      %v1304 = vunpack.c.1.s8 %v490
      %v1305 = vunpack.c.2.s8 %v490
      %v1306 = vunpack.c.3.s8 %v490
      %v1307 = vunpack.c.0.s8 %v491
      %v1308 = vunpack.c.1.s8 %v491
      %v1309 = vunpack.c.2.s8 %v491
      %v1310 = vunpack.c.3.s8 %v491
      %v1311 = vunpack.c.0.s8 %v492
      %v1312 = vunpack.c.1.s8 %v492
      %v1313 = vunpack.c.2.s8 %v492
      %v1314 = vunpack.c.3.s8 %v492
      %v1315 = vunpack.c.0.s8 %v493
      %v1316 = vunpack.c.1.s8 %v493
      %v1317 = vunpack.c.2.s8 %v493
      %v1318 = vunpack.c.3.s8 %v493
      %v1319 = vunpack.c.0.s8 %v494
      %v1320 = vunpack.c.1.s8 %v494
      %v1321 = vunpack.c.2.s8 %v494
      %v1322 = vunpack.c.3.s8 %v494
      %v1323 = vunpack.c.0.s8 %v495
      %v1324 = vunpack.c.1.s8 %v495
      %v1325 = vunpack.c.2.s8 %v495
      %v1326 = vunpack.c.3.s8 %v495
      %v1327 = vunpack.c.0.s8 %v496
      %v1328 = vunpack.c.1.s8 %v496
      %v1329 = vunpack.c.2.s8 %v496
      %v1330 = vunpack.c.3.s8 %v496
      %v1331 = vunpack.c.0.s8 %v497
      %v1332 = vunpack.c.1.s8 %v497
      %v1333 = vunpack.c.2.s8 %v497
      %v1334 = vunpack.c.3.s8 %v497
      %v1335 = vunpack.c.0.s8 %v498
      %v1336 = vunpack.c.1.s8 %v498
      %v1337 = vunpack.c.2.s8 %v498
      %v1338 = vunpack.c.3.s8 %v498
      %v1339 = vunpack.c.0.s8 %v499
      %v1340 = vunpack.c.1.s8 %v499
      %v1341 = vunpack.c.2.s8 %v499
      %v1342 = vunpack.c.3.s8 %v499
      %v1343 = vunpack.c.0.s8 %v500
      %v1344 = vunpack.c.1.s8 %v500
      %v1345 = vunpack.c.2.s8 %v500
      %v1346 = vunpack.c.3.s8 %v500
      %v1347 = vunpack.c.0.s8 %v501
      %v1348 = vunpack.c.1.s8 %v501
      %v1349 = vunpack.c.2.s8 %v501
      %v1350 = vunpack.c.3.s8 %v501
      %v1351 = vunpack.c.0.s8 %v502
      %v1352 = vunpack.c.1.s8 %v502
      %v1353 = vunpack.c.2.s8 %v502
      %v1354 = vunpack.c.3.s8 %v502
      %v1355 = vunpack.c.0.s8 %v503
      %v1356 = vunpack.c.1.s8 %v503
      %v1357 = vunpack.c.2.s8 %v503
      %v1358 = vunpack.c.3.s8 %v503
      %v1359 = vunpack.c.0.s8 %v504
      %v1360 = vunpack.c.1.s8 %v504
      %v1361 = vunpack.c.2.s8 %v504
      %v1362 = vunpack.c.3.s8 %v504
      %v1363 = vunpack.c.0.s8 %v505
      %v1364 = vunpack.c.1.s8 %v505
      %v1365 = vunpack.c.2.s8 %v505
      %v1366 = vunpack.c.3.s8 %v505
      %v1367 = vunpack.c.0.s8 %v506
      %v1368 = vunpack.c.1.s8 %v506
      %v1369 = vunpack.c.2.s8 %v506
      %v1370 = vunpack.c.3.s8 %v506
      %v1371 = vunpack.c.0.s8 %v507
      %v1372 = vunpack.c.1.s8 %v507
      %v1373 = vunpack.c.2.s8 %v507
      %v1374 = vunpack.c.3.s8 %v507
      %v1375 = vunpack.c.0.s8 %v508
      %v1376 = vunpack.c.1.s8 %v508
      %v1377 = vunpack.c.2.s8 %v508
      %v1378 = vunpack.c.3.s8 %v508
      %v1379 = vunpack.c.0.s8 %v509
      %v1380 = vunpack.c.1.s8 %v509
      %v1381 = vunpack.c.2.s8 %v509
      %v1382 = vunpack.c.3.s8 %v509
      %v1383 = vunpack.c.0.s8 %v510
      %v1384 = vunpack.c.1.s8 %v510
      %v1385 = vunpack.c.2.s8 %v510
      %v1386 = vunpack.c.3.s8 %v510
      %v1387 = vunpack.c.0.s8 %v511
      %v1388 = vunpack.c.1.s8 %v511
      %v1389 = vunpack.c.2.s8 %v511
      %v1390 = vunpack.c.3.s8 %v511
      %v1391 = vunpack.c.0.s8 %v512
      %v1392 = vunpack.c.1.s8 %v512
      %v1393 = vunpack.c.2.s8 %v512
      %v1394 = vunpack.c.3.s8 %v512
      %v1395 = vunpack.c.0.s8 %v513
      %v1396 = vunpack.c.1.s8 %v513
      %v1397 = vunpack.c.2.s8 %v513
      %v1398 = vunpack.c.3.s8 %v513
      %v1399 = vunpack.c.0.s8 %v514
      %v1400 = vunpack.c.1.s8 %v514
      %v1401 = vunpack.c.2.s8 %v514
      %v1402 = vunpack.c.3.s8 %v514
      %v1403 = vunpack.c.0.s8 %v515
      %v1404 = vunpack.c.1.s8 %v515
      %v1405 = vunpack.c.2.s8 %v515
      %v1406 = vunpack.c.3.s8 %v515
      %v1407 = vunpack.c.0.s8 %v516
      %v1408 = vunpack.c.1.s8 %v516
      %v1409 = vunpack.c.2.s8 %v516
      %v1410 = vunpack.c.3.s8 %v516
      %v1411 = vunpack.c.0.s8 %v517
      %v1412 = vunpack.c.1.s8 %v517
      %v1413 = vunpack.c.2.s8 %v517
      %v1414 = vunpack.c.3.s8 %v517
      %v1415 = vunpack.c.0.s8 %v518
      %v1416 = vunpack.c.1.s8 %v518
      %v1417 = vunpack.c.2.s8 %v518
      %v1418 = vunpack.c.3.s8 %v518
      %v1419 = vunpack.c.0.s8 %v519
      %v1420 = vunpack.c.1.s8 %v519
      %v1421 = vunpack.c.2.s8 %v519
      %v1422 = vunpack.c.3.s8 %v519
      %v1423 = vunpack.c.0.s8 %v520
      %v1424 = vunpack.c.1.s8 %v520
      %v1425 = vunpack.c.2.s8 %v520
      %v1426 = vunpack.c.3.s8 %v520
      %v1427 = vunpack.c.0.s8 %v521
      %v1428 = vunpack.c.1.s8 %v521
      %v1429 = vunpack.c.2.s8 %v521
      %v1430 = vunpack.c.3.s8 %v521
      %v1431 = vunpack.c.0.s8 %v522
      %v1432 = vunpack.c.1.s8 %v522
      %v1433 = vunpack.c.2.s8 %v522
      %v1434 = vunpack.c.3.s8 %v522
      %v1435 = vunpack.c.0.s8 %v523
      %v1436 = vunpack.c.1.s8 %v523
      %v1437 = vunpack.c.2.s8 %v523
      %v1438 = vunpack.c.3.s8 %v523
      %v1439 = vunpack.c.0.s8 %v524
      %v1440 = vunpack.c.1.s8 %v524
      %v1441 = vunpack.c.2.s8 %v524
      %v1442 = vunpack.c.3.s8 %v524
      %v1443 = vunpack.c.0.s8 %v525
      %v1444 = vunpack.c.1.s8 %v525
      %v1445 = vunpack.c.2.s8 %v525
      %v1446 = vunpack.c.3.s8 %v525
      %v1447 = vunpack.c.0.s8 %v526
      %v1448 = vunpack.c.1.s8 %v526
      %v1449 = vunpack.c.2.s8 %v526
      %v1450 = vunpack.c.3.s8 %v526
      %v1451 = vunpack.c.0.s8 %v527
      %v1452 = vunpack.c.1.s8 %v527
      %v1453 = vunpack.c.2.s8 %v527
      %v1454 = vunpack.c.3.s8 %v527
      %v1455 = vunpack.c.0.s8 %v528
      %v1456 = vunpack.c.1.s8 %v528
      %v1457 = vunpack.c.2.s8 %v528
      %v1458 = vunpack.c.3.s8 %v528
      %v1459 = vunpack.c.0.s8 %v529
      %v1460 = vunpack.c.1.s8 %v529
      %v1461 = vunpack.c.2.s8 %v529
      %v1462 = vunpack.c.3.s8 %v529
      %v1463 = vunpack.c.0.s8 %v530
      %v1464 = vunpack.c.1.s8 %v530
      %v1465 = vunpack.c.2.s8 %v530
      %v1466 = vunpack.c.3.s8 %v530
      %v1467 = vunpack.c.0.s8 %v531
      %v1468 = vunpack.c.1.s8 %v531
      %v1469 = vunpack.c.2.s8 %v531
      %v1470 = vunpack.c.3.s8 %v531
      %v1471 = vunpack.c.0.s8 %v532
      %v1472 = vunpack.c.1.s8 %v532
      %v1473 = vunpack.c.2.s8 %v532
      %v1474 = vunpack.c.3.s8 %v532
      %v1475 = vunpack.c.0.s8 %v533
      %v1476 = vunpack.c.1.s8 %v533
      %v1477 = vunpack.c.2.s8 %v533
      %v1478 = vunpack.c.3.s8 %v533
      %v1479 = vunpack.c.0.s8 %v534
      %v1480 = vunpack.c.1.s8 %v534
      %v1481 = vunpack.c.2.s8 %v534
      %v1482 = vunpack.c.3.s8 %v534
      %v1483 = vunpack.c.0.s8 %v535
      %v1484 = vunpack.c.1.s8 %v535
      %v1485 = vunpack.c.2.s8 %v535
      %v1486 = vunpack.c.3.s8 %v535
      %v1487 = vunpack.c.0.s8 %v536
      %v1488 = vunpack.c.1.s8 %v536
      %v1489 = vunpack.c.2.s8 %v536
      %v1490 = vunpack.c.3.s8 %v536
      %v1491 = vunpack.c.0.s8 %v537
      %v1492 = vunpack.c.1.s8 %v537
      %v1493 = vunpack.c.2.s8 %v537
      %v1494 = vunpack.c.3.s8 %v537
      %v1495 = vunpack.c.0.s8 %v538
      %v1496 = vunpack.c.1.s8 %v538
      %v1497 = vunpack.c.2.s8 %v538
      %v1498 = vunpack.c.3.s8 %v538
      %v1499 = vunpack.c.0.s8 %v539
      %v1500 = vunpack.c.1.s8 %v539
      %v1501 = vunpack.c.2.s8 %v539
      %v1502 = vunpack.c.3.s8 %v539
      %v1503 = vunpack.c.0.s8 %v540
      %v1504 = vunpack.c.1.s8 %v540
      %v1505 = vunpack.c.2.s8 %v540
      %v1506 = vunpack.c.3.s8 %v540
      %v1507 = vunpack.c.0.s8 %v541
      %v1508 = vunpack.c.1.s8 %v541
      %v1509 = vunpack.c.2.s8 %v541
      %v1510 = vunpack.c.3.s8 %v541
      %v1511 = vunpack.c.0.s8 %v542
      %v1512 = vunpack.c.1.s8 %v542
      %v1513 = vunpack.c.2.s8 %v542
      %v1514 = vunpack.c.3.s8 %v542
      %v1515 = vunpack.c.0.s8 %v543
      %v1516 = vunpack.c.1.s8 %v543
      %v1517 = vunpack.c.2.s8 %v543
      %v1518 = vunpack.c.3.s8 %v543
      %v1519 = vunpack.c.0.s8 %v544
      %v1520 = vunpack.c.1.s8 %v544
      %v1521 = vunpack.c.2.s8 %v544
      %v1522 = vunpack.c.3.s8 %v544
      %v1523 = vunpack.c.0.s8 %v545
      %v1524 = vunpack.c.1.s8 %v545
      %v1525 = vunpack.c.2.s8 %v545
      %v1526 = vunpack.c.3.s8 %v545
      %v1527 = vunpack.c.0.s8 %v546
      %v1528 = vunpack.c.1.s8 %v546
      %v1529 = vunpack.c.2.s8 %v546
      %v1530 = vunpack.c.3.s8 %v546
      %v1531 = vunpack.c.0.s8 %v547
      %v1532 = vunpack.c.1.s8 %v547
      %v1533 = vunpack.c.2.s8 %v547
      %v1534 = vunpack.c.3.s8 %v547
      %v1535 = vunpack.c.0.s8 %v548
      %v1536 = vunpack.c.1.s8 %v548
      %v1537 = vunpack.c.2.s8 %v548
      %v1538 = vunpack.c.3.s8 %v548
      %v1539 = vunpack.c.0.s8 %v549
      %v1540 = vunpack.c.1.s8 %v549
      %v1541 = vunpack.c.2.s8 %v549
      %v1542 = vunpack.c.3.s8 %v549
      %v1543 = vunpack.c.0.s8 %v550
      %v1544 = vunpack.c.1.s8 %v550
      %v1545 = vunpack.c.2.s8 %v550
      %v1546 = vunpack.c.3.s8 %v550
      %v1547 = vunpack.c.0.s8 %v551
      %v1548 = vunpack.c.1.s8 %v551
      %v1549 = vunpack.c.2.s8 %v551
      %v1550 = vunpack.c.3.s8 %v551
      %v1551 = vunpack.c.0.s8 %v552
      %v1552 = vunpack.c.1.s8 %v552
      %v1553 = vunpack.c.2.s8 %v552
      %v1554 = vunpack.c.3.s8 %v552
      %v1555 = vunpack.c.0.s8 %v553
      %v1556 = vunpack.c.1.s8 %v553
      %v1557 = vunpack.c.2.s8 %v553
      %v1558 = vunpack.c.3.s8 %v553
      %v1559 = vunpack.c.0.s8 %v554
      %v1560 = vunpack.c.1.s8 %v554
      %v1561 = vunpack.c.2.s8 %v554
      %v1562 = vunpack.c.3.s8 %v554
      %v1563 = vunpack.c.0.s8 %v555
      %v1564 = vunpack.c.1.s8 %v555
      %v1565 = vunpack.c.2.s8 %v555
      %v1566 = vunpack.c.3.s8 %v555
      %v1567 = vunpack.c.0.s8 %v556
      %v1568 = vunpack.c.1.s8 %v556
      %v1569 = vunpack.c.2.s8 %v556
      %v1570 = vunpack.c.3.s8 %v556
      %v1571 = vunpack.c.0.s8 %v557
      %v1572 = vunpack.c.1.s8 %v557
      %v1573 = vunpack.c.2.s8 %v557
      %v1574 = vunpack.c.3.s8 %v557
      %v1575 = vunpack.c.0.s8 %v558
      %v1576 = vunpack.c.1.s8 %v558
      %v1577 = vunpack.c.2.s8 %v558
      %v1578 = vunpack.c.3.s8 %v558
      %v1579 = vunpack.c.0.s8 %v559
      %v1580 = vunpack.c.1.s8 %v559
      %v1581 = vunpack.c.2.s8 %v559
      %v1582 = vunpack.c.3.s8 %v559
      %v1583 = vunpack.c.0.s8 %v560
      %v1584 = vunpack.c.1.s8 %v560
      %v1585 = vunpack.c.2.s8 %v560
      %v1586 = vunpack.c.3.s8 %v560
      %v1587 = vunpack.c.0.s8 %v561
      %v1588 = vunpack.c.1.s8 %v561
      %v1589 = vunpack.c.2.s8 %v561
      %v1590 = vunpack.c.3.s8 %v561
      %v1591 = vunpack.c.0.s8 %v562
      %v1592 = vunpack.c.1.s8 %v562
      %v1593 = vunpack.c.2.s8 %v562
      %v1594 = vunpack.c.3.s8 %v562
      %v1595 = vunpack.c.0.s8 %v563
      %v1596 = vunpack.c.1.s8 %v563
      %v1597 = vunpack.c.2.s8 %v563
      %v1598 = vunpack.c.3.s8 %v563
      %v1599 = vunpack.c.0.s8 %v564
      %v1600 = vunpack.c.1.s8 %v564
      %v1601 = vunpack.c.2.s8 %v564
      %v1602 = vunpack.c.3.s8 %v564
      %v1603 = vunpack.c.0.s8 %v565
      %v1604 = vunpack.c.1.s8 %v565
      %v1605 = vunpack.c.2.s8 %v565
      %v1606 = vunpack.c.3.s8 %v565
      %v1607 = vunpack.c.0.s8 %v566
      %v1608 = vunpack.c.1.s8 %v566
      %v1609 = vunpack.c.2.s8 %v566
      %v1610 = vunpack.c.3.s8 %v566
      %v1611 = vunpack.c.0.s8 %v567
      %v1612 = vunpack.c.1.s8 %v567
      %v1613 = vunpack.c.2.s8 %v567
      %v1614 = vunpack.c.3.s8 %v567
      %v1615 = vunpack.c.0.s8 %v568
      %v1616 = vunpack.c.1.s8 %v568
      %v1617 = vunpack.c.2.s8 %v568
      %v1618 = vunpack.c.3.s8 %v568
      %v1619 = vunpack.c.0.s8 %v569
      %v1620 = vunpack.c.1.s8 %v569
      %v1621 = vunpack.c.2.s8 %v569
      %v1622 = vunpack.c.3.s8 %v569
      %v1623 = vunpack.c.0.s8 %v570
      %v1624 = vunpack.c.1.s8 %v570
      %v1625 = vunpack.c.2.s8 %v570
      %v1626 = vunpack.c.3.s8 %v570
      %v1627 = vunpack.c.0.s8 %v571
      %v1628 = vunpack.c.1.s8 %v571
      %v1629 = vunpack.c.2.s8 %v571
      %v1630 = vunpack.c.3.s8 %v571
      %v1631 = vunpack.c.0.s8 %v572
      %v1632 = vunpack.c.1.s8 %v572
      %v1633 = vunpack.c.2.s8 %v572
      %v1634 = vunpack.c.3.s8 %v572
      %v1635 = vunpack.c.0.s8 %v573
      %v1636 = vunpack.c.1.s8 %v573
      %v1637 = vunpack.c.2.s8 %v573
      %v1638 = vunpack.c.3.s8 %v573
      %v1639 = vunpack.c.0.s8 %v574
      %v1640 = vunpack.c.1.s8 %v574
      %v1641 = vunpack.c.2.s8 %v574
      %v1642 = vunpack.c.3.s8 %v574
      %v1643 = vunpack.c.0.s8 %v575
      %v1644 = vunpack.c.1.s8 %v575
      %v1645 = vunpack.c.2.s8 %v575
      %v1646 = vunpack.c.3.s8 %v575
      %v1647 = vunpack.c.0.s8 %v576
      %v1648 = vunpack.c.1.s8 %v576
      %v1649 = vunpack.c.2.s8 %v576
      %v1650 = vunpack.c.3.s8 %v576
      %v1651 = vunpack.c.0.s8 %v577
      %v1652 = vunpack.c.1.s8 %v577
      %v1653 = vunpack.c.2.s8 %v577
      %v1654 = vunpack.c.3.s8 %v577
      %v1655 = vunpack.c.0.s8 %v578
      %v1656 = vunpack.c.1.s8 %v578
      %v1657 = vunpack.c.2.s8 %v578
      %v1658 = vunpack.c.3.s8 %v578
      %v1659 = vunpack.c.0.s8 %v579
      %v1660 = vunpack.c.1.s8 %v579
      %v1661 = vunpack.c.2.s8 %v579
      %v1662 = vunpack.c.3.s8 %v579
      %v1663 = vunpack.c.0.s8 %v580
      %v1664 = vunpack.c.1.s8 %v580
      %v1665 = vunpack.c.2.s8 %v580
      %v1666 = vunpack.c.3.s8 %v580
      %v1667 = vunpack.c.0.s8 %v581
      %v1668 = vunpack.c.1.s8 %v581
      %v1669 = vunpack.c.2.s8 %v581
      %v1670 = vunpack.c.3.s8 %v581
      %v1671 = vunpack.c.0.s8 %v582
      %v1672 = vunpack.c.1.s8 %v582
      %v1673 = vunpack.c.2.s8 %v582
      %v1674 = vunpack.c.3.s8 %v582
      %v1675 = vunpack.c.0.s8 %v583
      %v1676 = vunpack.c.1.s8 %v583
      %v1677 = vunpack.c.2.s8 %v583
      %v1678 = vunpack.c.3.s8 %v583
      %v1679 = vunpack.c.0.s8 %v584
      %v1680 = vunpack.c.1.s8 %v584
      %v1681 = vunpack.c.2.s8 %v584
      %v1682 = vunpack.c.3.s8 %v584
      %v1683 = vunpack.c.0.s8 %v585
      %v1684 = vunpack.c.1.s8 %v585
      %v1685 = vunpack.c.2.s8 %v585
      %v1686 = vunpack.c.3.s8 %v585
      %v1687 = vunpack.c.0.s8 %v586
      %v1688 = vunpack.c.1.s8 %v586
      %v1689 = vunpack.c.2.s8 %v586
      %v1690 = vunpack.c.3.s8 %v586
      %v1691 = vunpack.c.0.s8 %v587
      %v1692 = vunpack.c.1.s8 %v587
      %v1693 = vunpack.c.2.s8 %v587
      %v1694 = vunpack.c.3.s8 %v587
      %v1695 = vunpack.c.0.s8 %v588
      %v1696 = vunpack.c.1.s8 %v588
      %v1697 = vunpack.c.2.s8 %v588
      %v1698 = vunpack.c.3.s8 %v588
      %v1699 = vunpack.c.0.s8 %v589
      %v1700 = vunpack.c.1.s8 %v589
      %v1701 = vunpack.c.2.s8 %v589
      %v1702 = vunpack.c.3.s8 %v589
      %v1703 = vunpack.c.0.s8 %v590
      %v1704 = vunpack.c.1.s8 %v590
      %v1705 = vunpack.c.2.s8 %v590
      %v1706 = vunpack.c.3.s8 %v590
      %v1707 = vunpack.c.0.s8 %v591
      %v1708 = vunpack.c.1.s8 %v591
      %v1709 = vunpack.c.2.s8 %v591
      %v1710 = vunpack.c.3.s8 %v591
      %v1711 = vunpack.c.0.s8 %v592
      %v1712 = vunpack.c.1.s8 %v592
      %v1713 = vunpack.c.2.s8 %v592
      %v1714 = vunpack.c.3.s8 %v592
      %v1715 = vunpack.c.0.s8 %v593
      %v1716 = vunpack.c.1.s8 %v593
      %v1717 = vunpack.c.2.s8 %v593
      %v1718 = vunpack.c.3.s8 %v593
      %v1719 = vunpack.c.0.s8 %v594
      %v1720 = vunpack.c.1.s8 %v594
      %v1721 = vunpack.c.2.s8 %v594
      %v1722 = vunpack.c.3.s8 %v594
      %v1723 = vunpack.c.0.s8 %v595
      %v1724 = vunpack.c.1.s8 %v595
      %v1725 = vunpack.c.2.s8 %v595
      %v1726 = vunpack.c.3.s8 %v595
      %v1727 = vunpack.c.0.s8 %v596
      %v1728 = vunpack.c.1.s8 %v596
      %v1729 = vunpack.c.2.s8 %v596
      %v1730 = vunpack.c.3.s8 %v596
      %v1731 = vunpack.c.0.s8 %v597
      %v1732 = vunpack.c.1.s8 %v597
      %v1733 = vunpack.c.2.s8 %v597
      %v1734 = vunpack.c.3.s8 %v597
      %v1735 = vunpack.c.0.s8 %v598
      %v1736 = vunpack.c.1.s8 %v598
      %v1737 = vunpack.c.2.s8 %v598
      %v1738 = vunpack.c.3.s8 %v598
      %v1739 = vunpack.c.0.s8 %v599
      %v1740 = vunpack.c.1.s8 %v599
      %v1741 = vunpack.c.2.s8 %v599
      %v1742 = vunpack.c.3.s8 %v599
      %v1743 = vunpack.c.0.s8 %v600
      %v1744 = vunpack.c.1.s8 %v600
      %v1745 = vunpack.c.2.s8 %v600
      %v1746 = vunpack.c.3.s8 %v600
      %v1747 = vunpack.c.0.s8 %v601
      %v1748 = vunpack.c.1.s8 %v601
      %v1749 = vunpack.c.2.s8 %v601
      %v1750 = vunpack.c.3.s8 %v601
      %v1751 = vunpack.c.0.s8 %v602
      %v1752 = vunpack.c.1.s8 %v602
      %v1753 = vunpack.c.2.s8 %v602
      %v1754 = vunpack.c.3.s8 %v602
      %v1755 = vunpack.c.0.s8 %v603
      %v1756 = vunpack.c.1.s8 %v603
      %v1757 = vunpack.c.2.s8 %v603
      %v1758 = vunpack.c.3.s8 %v603
      %v1759 = vunpack.c.0.s8 %v604
      %v1760 = vunpack.c.1.s8 %v604
      %v1761 = vunpack.c.2.s8 %v604
      %v1762 = vunpack.c.3.s8 %v604
      %v1763 = vunpack.c.0.s8 %v605
      %v1764 = vunpack.c.1.s8 %v605
      %v1765 = vunpack.c.2.s8 %v605
      %v1766 = vunpack.c.3.s8 %v605
      %v1767 = vunpack.c.0.s8 %v606
      %v1768 = vunpack.c.1.s8 %v606
      %v1769 = vunpack.c.2.s8 %v606
      %v1770 = vunpack.c.3.s8 %v606
      %v1771 = vunpack.c.0.s8 %v607
      %v1772 = vunpack.c.1.s8 %v607
      %v1773 = vunpack.c.2.s8 %v607
      %v1774 = vunpack.c.3.s8 %v607
      %v1775 = vunpack.c.0.s8 %v608
      %v1776 = vunpack.c.1.s8 %v608
      %v1777 = vunpack.c.2.s8 %v608
      %v1778 = vunpack.c.3.s8 %v608
      %v1779 = vunpack.c.0.s8 %v609
      %v1780 = vunpack.c.1.s8 %v609
      %v1781 = vunpack.c.2.s8 %v609
      %v1782 = vunpack.c.3.s8 %v609
      %v1783 = vunpack.c.0.s8 %v610
      %v1784 = vunpack.c.1.s8 %v610
      %v1785 = vunpack.c.2.s8 %v610
      %v1786 = vunpack.c.3.s8 %v610
      %v1787 = vunpack.c.0.s8 %v611
      %v1788 = vunpack.c.1.s8 %v611
      %v1789 = vunpack.c.2.s8 %v611
      %v1790 = vunpack.c.3.s8 %v611
      %v1791 = vunpack.c.0.s8 %v612
      %v1792 = vunpack.c.1.s8 %v612
      %v1793 = vunpack.c.2.s8 %v612
      %v1794 = vunpack.c.3.s8 %v612
      %v1795 = vunpack.c.0.s8 %v613
      %v1796 = vunpack.c.1.s8 %v613
      %v1797 = vunpack.c.2.s8 %v613
      %v1798 = vunpack.c.3.s8 %v613
      %v1799 = vunpack.c.0.s8 %v614
      %v1800 = vunpack.c.1.s8 %v614
      %v1801 = vunpack.c.2.s8 %v614
      %v1802 = vunpack.c.3.s8 %v614
      %v1803 = vunpack.c.0.s8 %v615
      %v1804 = vunpack.c.1.s8 %v615
      %v1805 = vunpack.c.2.s8 %v615
      %v1806 = vunpack.c.3.s8 %v615
      %v1807 = vunpack.c.0.s8 %v616
      %v1808 = vunpack.c.1.s8 %v616
      %v1809 = vunpack.c.2.s8 %v616
      %v1810 = vunpack.c.3.s8 %v616
      %v1811 = vunpack.c.0.s8 %v617
      %v1812 = vunpack.c.1.s8 %v617
      %v1813 = vunpack.c.2.s8 %v617
      %v1814 = vunpack.c.3.s8 %v617
      %v1815 = vunpack.c.0.s8 %v618
      %v1816 = vunpack.c.1.s8 %v618
      %v1817 = vunpack.c.2.s8 %v618
      %v1818 = vunpack.c.3.s8 %v618
      %v1819 = vunpack.c.0.s8 %v619
      %v1820 = vunpack.c.1.s8 %v619
      %v1821 = vunpack.c.2.s8 %v619
      %v1822 = vunpack.c.3.s8 %v619
      %v1823 = vunpack.c.0.s8 %v620
      %v1824 = vunpack.c.1.s8 %v620
      %v1825 = vunpack.c.2.s8 %v620
      %v1826 = vunpack.c.3.s8 %v620
      %v1827 = vunpack.c.0.s8 %v621
      %v1828 = vunpack.c.1.s8 %v621
      %v1829 = vunpack.c.2.s8 %v621
      %v1830 = vunpack.c.3.s8 %v621
      %v1831 = vunpack.c.0.s8 %v622
      %v1832 = vunpack.c.1.s8 %v622
      %v1833 = vunpack.c.2.s8 %v622
      %v1834 = vunpack.c.3.s8 %v622
      %v1835 = vunpack.c.0.s8 %v623
      %v1836 = vunpack.c.1.s8 %v623
      %v1837 = vunpack.c.2.s8 %v623
      %v1838 = vunpack.c.3.s8 %v623
      %v1839 = vunpack.c.0.s8 %v624
      %v1840 = vunpack.c.1.s8 %v624
      %v1841 = vunpack.c.2.s8 %v624
      %v1842 = vunpack.c.3.s8 %v624
      %v1843 = vunpack.c.0.s8 %v625
      %v1844 = vunpack.c.1.s8 %v625
      %v1845 = vunpack.c.2.s8 %v625
      %v1846 = vunpack.c.3.s8 %v625
      %v1847 = vunpack.c.0.s8 %v626
      %v1848 = vunpack.c.1.s8 %v626
      %v1849 = vunpack.c.2.s8 %v626
      %v1850 = vunpack.c.3.s8 %v626
      %v1851 = vunpack.c.0.s8 %v627
      %v1852 = vunpack.c.1.s8 %v627
      %v1853 = vunpack.c.2.s8 %v627
      %v1854 = vunpack.c.3.s8 %v627
      %v1855 = vunpack.c.0.s8 %v628
      %v1856 = vunpack.c.1.s8 %v628
      %v1857 = vunpack.c.2.s8 %v628
      %v1858 = vunpack.c.3.s8 %v628
      %v1859 = vunpack.c.0.s8 %v629
      %v1860 = vunpack.c.1.s8 %v629
      %v1861 = vunpack.c.2.s8 %v629
      %v1862 = vunpack.c.3.s8 %v629
      %v1863 = vunpack.c.0.s8 %v630
      %v1864 = vunpack.c.1.s8 %v630
      %v1865 = vunpack.c.2.s8 %v630
      %v1866 = vunpack.c.3.s8 %v630
      %v1867 = vunpack.c.0.s8 %v631
      %v1868 = vunpack.c.1.s8 %v631
      %v1869 = vunpack.c.2.s8 %v631
      %v1870 = vunpack.c.3.s8 %v631
      %v1871 = vunpack.c.0.s8 %v632
      %v1872 = vunpack.c.1.s8 %v632
      %v1873 = vunpack.c.2.s8 %v632
      %v1874 = vunpack.c.3.s8 %v632
      %v1875 = vunpack.c.0.s8 %v633
      %v1876 = vunpack.c.1.s8 %v633
      %v1877 = vunpack.c.2.s8 %v633
      %v1878 = vunpack.c.3.s8 %v633
      %v1879 = vunpack.c.0.s8 %v634
      %v1880 = vunpack.c.1.s8 %v634
      %v1881 = vunpack.c.2.s8 %v634
      %v1882 = vunpack.c.3.s8 %v634
      %v1883 = vcvt.s32.f32 %v635
      %v1884 = vcvt.s32.f32 %v636
      %v1885 = vcvt.s32.f32 %v637
      %v1886 = vcvt.s32.f32 %v638
      %v1887 = vcvt.s32.f32 %v639
      %v1888 = vcvt.s32.f32 %v640
      %v1889 = vcvt.s32.f32 %v641
      %v1890 = vcvt.s32.f32 %v642
      %v1891 = vcvt.s32.f32 %v643
      %v1892 = vcvt.s32.f32 %v644
      %v1893 = vcvt.s32.f32 %v645
      %v1894 = vcvt.s32.f32 %v646
      %v1895 = vcvt.s32.f32 %v647
      %v1896 = vcvt.s32.f32 %v648
      %v1897 = vcvt.s32.f32 %v649
      %v1898 = vcvt.s32.f32 %v650
      %v1899 = vcvt.s32.f32 %v651
      %v1900 = vcvt.s32.f32 %v652
      %v1901 = vcvt.s32.f32 %v653
      %v1902 = vcvt.s32.f32 %v654
      %v1903 = vcvt.s32.f32 %v655
      %v1904 = vcvt.s32.f32 %v656
      %v1905 = vcvt.s32.f32 %v657
      %v1906 = vcvt.s32.f32 %v658
      %v1907 = vcvt.s32.f32 %v659
      %v1908 = vcvt.s32.f32 %v660
      %v1909 = vcvt.s32.f32 %v661
      %v1910 = vcvt.s32.f32 %v662
      %v1911 = vcvt.s32.f32 %v663
      %v1912 = vcvt.s32.f32 %v664
      %v1913 = vcvt.s32.f32 %v665
      %v1914 = vcvt.s32.f32 %v666
      %v1915 = vcvt.s32.f32 %v667
      %v1916 = vcvt.s32.f32 %v668
      %v1917 = vcvt.s32.f32 %v669
      %v1918 = vcvt.s32.f32 %v670
      %v1919 = vcvt.s32.f32 %v671
      %v1920 = vcvt.s32.f32 %v672
      %v1921 = vcvt.s32.f32 %v673
      %v1922 = vcvt.s32.f32 %v674
      %v1923 = vcvt.s32.f32 %v675
      %v1924 = vcvt.s32.f32 %v676
      %v1925 = vcvt.s32.f32 %v677
      %v1926 = vcvt.s32.f32 %v678
      %v1927 = vcvt.s32.f32 %v679
      %v1928 = vcvt.s32.f32 %v680
      %v1929 = vcvt.s32.f32 %v681
      %v1930 = vcvt.s32.f32 %v682
      %v1931 = vcvt.s32.f32 %v683
      %v1932 = vcvt.s32.f32 %v684
      %v1933 = vcvt.s32.f32 %v685
      %v1934 = vcvt.s32.f32 %v686
      %v1935 = vcvt.s32.f32 %v687
      %v1936 = vcvt.s32.f32 %v688
      %v1937 = vcvt.s32.f32 %v689
      %v1938 = vcvt.s32.f32 %v690
      %v1939 = vcvt.s32.f32 %v691
      %v1940 = vcvt.s32.f32 %v692
      %v1941 = vcvt.s32.f32 %v693
      %v1942 = vcvt.s32.f32 %v694
      %v1943 = vcvt.s32.f32 %v695
      %v1944 = vcvt.s32.f32 %v696
      %v1945 = vcvt.s32.f32 %v697
      %v1946 = vcvt.s32.f32 %v698
      %v1947 = vcvt.s32.f32 %v699
      %v1948 = vcvt.s32.f32 %v700
      %v1949 = vcvt.s32.f32 %v701
      %v1950 = vcvt.s32.f32 %v702
      %v1951 = vcvt.s32.f32 %v703
      %v1952 = vcvt.s32.f32 %v704
      %v1953 = vcvt.s32.f32 %v705
      %v1954 = vcvt.s32.f32 %v706
      %v1955 = vcvt.s32.f32 %v707
      %v1956 = vcvt.s32.f32 %v708
      %v1957 = vcvt.s32.f32 %v709
      %v1958 = vcvt.s32.f32 %v710
      %v1959 = vcvt.s32.f32 %v711
      %v1960 = vcvt.s32.f32 %v712
      %v1961 = vcvt.s32.f32 %v713
      %v1962 = vcvt.s32.f32 %v714
      %v1963 = vcvt.s32.f32 %v715
      %v1964 = vcvt.s32.f32 %v716
      %v1965 = vcvt.s32.f32 %v717
      %v1966 = vcvt.s32.f32 %v718
      %v1967 = vcvt.s32.f32 %v719
      %v1968 = vcvt.s32.f32 %v720
      %v1969 = vcvt.s32.f32 %v721
      %v1970 = vcvt.s32.f32 %v722
      %v1971 = vcvt.s32.f32 %v723
      %v1972 = vcvt.s32.f32 %v724
      %v1973 = vcvt.s32.f32 %v725
      %v1974 = vcvt.s32.f32 %v726
      %v1975 = vcvt.s32.f32 %v727
      %v1976 = vcvt.s32.f32 %v728
      %v1977 = vcvt.s32.f32 %v729
      %v1978 = vcvt.s32.f32 %v730
      %v1979 = vcvt.s32.f32 %v731
      %v1980 = vcvt.s32.f32 %v732
      %v1981 = vcvt.s32.f32 %v733
      %v1982 = vcvt.s32.f32 %v734
      %v1983 = vcvt.s32.f32 %v735
      %v1984 = vcvt.s32.f32 %v736
      %v1985 = vcvt.s32.f32 %v737
      %v1986 = vcvt.s32.f32 %v738
      %v1987 = vcvt.s32.f32 %v739
      %v1988 = vcvt.s32.f32 %v740
      %v1989 = vcvt.s32.f32 %v741
      %v1990 = vcvt.s32.f32 %v742
      %v1991 = vcvt.s32.f32 %v743
      %v1992 = vcvt.s32.f32 %v744
      %v1993 = vcvt.s32.f32 %v745
      %v1994 = vcvt.s32.f32 %v746
      %v1995 = vcvt.s32.f32 %v747
      %v1996 = vcvt.s32.f32 %v748
      %v1997 = vcvt.s32.f32 %v749
      %v1998 = vcvt.s32.f32 %v750
      %v1999 = vcvt.s32.f32 %v751
      %v2000 = vcvt.s32.f32 %v752
      %v2001 = vcvt.s32.f32 %v753
      %v2002 = vcvt.s32.f32 %v754
      %v2003 = vcvt.s32.f32 %v755
      %v2004 = vcvt.s32.f32 %v756
      %v2005 = vcvt.s32.f32 %v757
      %v2006 = vcvt.s32.f32 %v758
      %v2007 = vcvt.s32.f32 %v759
      %v2008 = vcvt.s32.f32 %v760
      %v2009 = vcvt.s32.f32 %v761
      %v2010 = vcvt.s32.f32 %v762
      %v2011 = vcvt.s32.f32 %v763
      %v2012 = vcvt.s32.f32 %v764
      %v2013 = vcvt.s32.f32 %v765
      %v2014 = vcvt.s32.f32 %v766
      %v2015 = vcvt.s32.f32 %v767
      %v2016 = vcvt.s32.f32 %v768
      %v2017 = vcvt.s32.f32 %v769
      %v2018 = vcvt.s32.f32 %v770
      %v2019 = vcvt.s32.f32 %v771
      %v2020 = vcvt.s32.f32 %v772
      %v2021 = vcvt.s32.f32 %v773
      %v2022 = vcvt.s32.f32 %v774
      %v2023 = vcvt.s32.f32 %v775
      %v2024 = vcvt.s32.f32 %v776
      %v2025 = vcvt.s32.f32 %v777
      %v2026 = vcvt.s32.f32 %v778
      %v2027 = vcvt.s32.f32 %v779
      %v2028 = vcvt.s32.f32 %v780
      %v2029 = vcvt.s32.f32 %v781
      %v2030 = vcvt.s32.f32 %v782
      %v2031 = vcvt.s32.f32 %v783
      %v2032 = vcvt.s32.f32 %v784
      %v2033 = vcvt.s32.f32 %v785
      %v2034 = vcvt.s32.f32 %v786
      %v2035 = vcvt.s32.f32 %v787
      %v2036 = vcvt.s32.f32 %v788
      %v2037 = vcvt.s32.f32 %v789
      %v2038 = vcvt.s32.f32 %v790
      %v2039 = vcvt.s32.f32 %v791
      %v2040 = vcvt.s32.f32 %v792
      %v2041 = vcvt.s32.f32 %v793
      %v2042 = vcvt.s32.f32 %v794
      %v2043 = vcvt.s32.f32 %v795
      %v2044 = vcvt.s32.f32 %v796
      %v2045 = vcvt.s32.f32 %v797
      %v2046 = vcvt.s32.f32 %v798
      %v2047 = vcvt.s32.f32 %v799
      %v2048 = vcvt.s32.f32 %v800
      %v2049 = vcvt.s32.f32 %v801
      %v2050 = vcvt.s32.f32 %v802
      %v2051 = vcvt.s32.f32 %v803
      %v2052 = vcvt.s32.f32 %v804
      %v2053 = vcvt.s32.f32 %v805
      %v2054 = vcvt.s32.f32 %v806
      %v2055 = vcvt.s32.f32 %v807
      %v2056 = vcvt.s32.f32 %v808
      %v2057 = vcvt.s32.f32 %v809
      %v2058 = vcvt.s32.f32 %v810
      %v2059 = vcvt.s32.f32 %v811
      %v2060 = vcvt.s32.f32 %v812
      %v2061 = vcvt.s32.f32 %v813
      %v2062 = vcvt.s32.f32 %v814
      %v2063 = vcvt.s32.f32 %v815
      %v2064 = vcvt.s32.f32 %v816
      %v2065 = vcvt.s32.f32 %v817
      %v2066 = vcvt.s32.f32 %v818
      %v2067 = vcvt.s32.f32 %v819
      %v2068 = vcvt.s32.f32 %v820
      %v2069 = vcvt.s32.f32 %v821
      %v2070 = vcvt.s32.f32 %v822
      %v2071 = vcvt.s32.f32 %v823
      %v2072 = vcvt.s32.f32 %v824
      %v2073 = vcvt.s32.f32 %v825
      %v2074 = vcvt.s32.f32 %v826
      %v2075 = vcvt.s32.f32 %v827
      %v2076 = vcvt.s32.f32 %v828
      %v2077 = vcvt.s32.f32 %v829
      %v2078 = vcvt.s32.f32 %v830
      %v2079 = vcvt.s32.f32 %v831
      %v2080 = vcvt.s32.f32 %v832
      %v2081 = vcvt.s32.f32 %v833
      %v2082 = vcvt.s32.f32 %v834
      %v2083 = vcvt.s32.f32 %v835
      %v2084 = vcvt.s32.f32 %v836
      %v2085 = vcvt.s32.f32 %v837
      %v2086 = vcvt.s32.f32 %v838
      %v2087 = vcvt.s32.f32 %v839
      %v2088 = vcvt.s32.f32 %v840
      %v2089 = vcvt.s32.f32 %v841
      %v2090 = vcvt.s32.f32 %v842
      %v2091 = vcvt.s32.f32 %v843
      %v2092 = vcvt.s32.f32 %v844
      %v2093 = vcvt.s32.f32 %v845
      %v2094 = vcvt.s32.f32 %v846
      %v2095 = vcvt.s32.f32 %v847
      %v2096 = vcvt.s32.f32 %v848
      %v2097 = vcvt.s32.f32 %v849
      %v2098 = vcvt.s32.f32 %v850
      %v2099 = vcvt.s32.f32 %v851
      %v2100 = vcvt.s32.f32 %v852
      %v2101 = vcvt.s32.f32 %v853
      %v2102 = vcvt.s32.f32 %v854
      %v2103 = vcvt.s32.f32 %v855
      %v2104 = vcvt.s32.f32 %v856
      %v2105 = vcvt.s32.f32 %v857
      %v2106 = vcvt.s32.f32 %v858
      %v2107 = vcvt.s32.f32 %v859
      %v2108 = vcvt.s32.f32 %v860
      %v2109 = vcvt.s32.f32 %v861
      %v2110 = vcvt.s32.f32 %v862
      %v2111 = vcvt.s32.f32 %v863
      %v2112 = vcvt.s32.f32 %v864
      %v2113 = vcvt.s32.f32 %v865
      %v2114 = vcvt.s32.f32 %v866
      %v2115 = vcvt.s32.f32 %v867
      %v2116 = vcvt.s32.f32 %v868
      %v2117 = vcvt.s32.f32 %v869
      %v2118 = vcvt.s32.f32 %v870
      %v2119 = vcvt.s32.f32 %v871
      %v2120 = vcvt.s32.f32 %v872
      %v2121 = vcvt.s32.f32 %v873
      %v2122 = vcvt.s32.f32 %v874
      %v2123 = vcvt.s32.f32 %v875
      %v2124 = vcvt.s32.f32 %v876
      %v2125 = vcvt.s32.f32 %v877
      %v2126 = vcvt.s32.f32 %v878
      %v2127 = vcvt.s32.f32 %v879
      %v2128 = vcvt.s32.f32 %v880
      %v2129 = vcvt.s32.f32 %v881
      %v2130 = vcvt.s32.f32 %v882
      %v2131 = vcvt.s32.f32 %v883
      %v2132 = vcvt.s32.f32 %v884
      %v2133 = vcvt.s32.f32 %v885
      %v2134 = vcvt.s32.f32 %v886
      %v2135 = vcvt.s32.f32 %v887
      %v2136 = vcvt.s32.f32 %v888
      %v2137 = vcvt.s32.f32 %v889
      %v2138 = vcvt.s32.f32 %v890
      %v2139 = vcvt.s32.f32 %v891
      %v2140 = vcvt.s32.f32 %v892
      %v2141 = vcvt.s32.f32 %v893
      %v2142 = vcvt.s32.f32 %v894
      %v2143 = vcvt.s32.f32 %v895
      %v2144 = vcvt.s32.f32 %v896
      %v2145 = vcvt.s32.f32 %v897
      %v2146 = vcvt.s32.f32 %v898
      %v2147 = vcvt.s32.f32 %v899
      %v2148 = vcvt.s32.f32 %v900
      %v2149 = vcvt.s32.f32 %v901
      %v2150 = vcvt.s32.f32 %v902
      %v2151 = vcvt.s32.f32 %v903
      %v2152 = vcvt.s32.f32 %v904
      %v2153 = vcvt.s32.f32 %v905
      %v2154 = vcvt.s32.f32 %v906
      %v2155 = vcvt.s32.f32 %v907
      %v2156 = vcvt.s32.f32 %v908
      %v2157 = vcvt.s32.f32 %v909
      %v2158 = vcvt.s32.f32 %v910
      %v2159 = vcvt.s32.f32 %v911
      %v2160 = vcvt.s32.f32 %v912
      %v2161 = vcvt.s32.f32 %v913
      %v2162 = vcvt.s32.f32 %v914
      %v2163 = vcvt.s32.f32 %v915
      %v2164 = vcvt.s32.f32 %v916
      %v2165 = vcvt.s32.f32 %v917
      %v2166 = vcvt.s32.f32 %v918
      %v2167 = vcvt.s32.f32 %v919
      %v2168 = vcvt.s32.f32 %v920
      %v2169 = vcvt.s32.f32 %v921
      %v2170 = vcvt.s32.f32 %v922
      %v2171 = vcvt.s32.f32 %v923
      %v2172 = vcvt.s32.f32 %v924
      %v2173 = vcvt.s32.f32 %v925
      %v2174 = vcvt.s32.f32 %v926
      %v2175 = vcvt.s32.f32 %v927
      %v2176 = vcvt.s32.f32 %v928
      %v2177 = vcvt.s32.f32 %v929
      %v2178 = vcvt.s32.f32 %v930
      %v2179 = vcvt.s32.f32 %v931
      %v2180 = vcvt.s32.f32 %v932
      %v2181 = vcvt.s32.f32 %v933
      %v2182 = vcvt.s32.f32 %v934
      %v2183 = vcvt.s32.f32 %v935
      %v2184 = vcvt.s32.f32 %v936
      %v2185 = vcvt.s32.f32 %v937
      %v2186 = vcvt.s32.f32 %v938
      %v2187 = vcvt.s32.f32 %v939
      %v2188 = vcvt.s32.f32 %v940
      %v2189 = vcvt.s32.f32 %v941
      %v2190 = vcvt.s32.f32 %v942
      %v2191 = vcvt.s32.f32 %v943
      %v2192 = vcvt.s32.f32 %v944
      %v2193 = vcvt.s32.f32 %v945
      %v2194 = vcvt.s32.f32 %v946
      %v2195 = vcvt.s32.f32 %v947
      %v2196 = vcvt.s32.f32 %v948
      %v2197 = vcvt.s32.f32 %v949
      %v2198 = vcvt.s32.f32 %v950
      %v2199 = vcvt.s32.f32 %v951
      %v2200 = vcvt.s32.f32 %v952
      %v2201 = vcvt.s32.f32 %v953
      %v2202 = vcvt.s32.f32 %v954
      %v2203 = vcvt.s32.f32 %v955
      %v2204 = vcvt.s32.f32 %v956
      %v2205 = vcvt.s32.f32 %v957
      %v2206 = vcvt.s32.f32 %v958
      %v2207 = vcvt.s32.f32 %v959
      %v2208 = vcvt.s32.f32 %v960
      %v2209 = vcvt.s32.f32 %v961
      %v2210 = vcvt.s32.f32 %v962
      %v2211 = vcvt.s32.f32 %v963
      %v2212 = vcvt.s32.f32 %v964
      %v2213 = vcvt.s32.f32 %v965
      %v2214 = vcvt.s32.f32 %v966
      %v2215 = vcvt.s32.f32 %v967
      %v2216 = vcvt.s32.f32 %v968
      %v2217 = vcvt.s32.f32 %v969
      %v2218 = vcvt.s32.f32 %v970
      %v2219 = vcvt.s32.f32 %v971
      %v2220 = vcvt.s32.f32 %v972
      %v2221 = vcvt.s32.f32 %v973
      %v2222 = vcvt.s32.f32 %v974
      %v2223 = vcvt.s32.f32 %v975
      %v2224 = vcvt.s32.f32 %v976
      %v2225 = vcvt.s32.f32 %v977
      %v2226 = vcvt.s32.f32 %v978
      %v2227 = vcvt.s32.f32 %v979
      %v2228 = vcvt.s32.f32 %v980
      %v2229 = vcvt.s32.f32 %v981
      %v2230 = vcvt.s32.f32 %v982
      %v2231 = vcvt.s32.f32 %v983
      %v2232 = vcvt.s32.f32 %v984
      %v2233 = vcvt.s32.f32 %v985
      %v2234 = vcvt.s32.f32 %v986
      %v2235 = vcvt.s32.f32 %v987
      %v2236 = vcvt.s32.f32 %v988
      %v2237 = vcvt.s32.f32 %v989
      %v2238 = vcvt.s32.f32 %v990
      %v2239 = vcvt.s32.f32 %v991
      %v2240 = vcvt.s32.f32 %v992
      %v2241 = vcvt.s32.f32 %v993
      %v2242 = vcvt.s32.f32 %v994
      %v2243 = vcvt.s32.f32 %v995
      %v2244 = vcvt.s32.f32 %v996
      %v2245 = vcvt.s32.f32 %v997
      %v2246 = vcvt.s32.f32 %v998
      %v2247 = vcvt.s32.f32 %v999
      %v2248 = vcvt.s32.f32 %v1000
      %v2249 = vcvt.s32.f32 %v1001
      %v2250 = vcvt.s32.f32 %v1002
      %v2251 = vcvt.s32.f32 %v1003
      %v2252 = vcvt.s32.f32 %v1004
      %v2253 = vcvt.s32.f32 %v1005
      %v2254 = vcvt.s32.f32 %v1006
      %v2255 = vcvt.s32.f32 %v1007
      %v2256 = vcvt.s32.f32 %v1008
      %v2257 = vcvt.s32.f32 %v1009
      %v2258 = vcvt.s32.f32 %v1010
      %v2259 = vcvt.s32.f32 %v1011
      %v2260 = vcvt.s32.f32 %v1012
      %v2261 = vcvt.s32.f32 %v1013
      %v2262 = vcvt.s32.f32 %v1014
      %v2263 = vcvt.s32.f32 %v1015
      %v2264 = vcvt.s32.f32 %v1016
      %v2265 = vcvt.s32.f32 %v1017
      %v2266 = vcvt.s32.f32 %v1018
      %v2267 = vcvt.s32.f32 %v1019
      %v2268 = vcvt.s32.f32 %v1020
      %v2269 = vcvt.s32.f32 %v1021
      %v2270 = vcvt.s32.f32 %v1022
      %v2271 = vcvt.s32.f32 %v1023
      %v2272 = vcvt.s32.f32 %v1024
      %v2273 = vcvt.s32.f32 %v1025
      %v2274 = vcvt.s32.f32 %v1026
      %v2275 = vcvt.s32.f32 %v1027
      %v2276 = vcvt.s32.f32 %v1028
      %v2277 = vcvt.s32.f32 %v1029
      %v2278 = vcvt.s32.f32 %v1030
      %v2279 = vcvt.s32.f32 %v1031
      %v2280 = vcvt.s32.f32 %v1032
      %v2281 = vcvt.s32.f32 %v1033
      %v2282 = vcvt.s32.f32 %v1034
      %v2283 = vcvt.s32.f32 %v1035
      %v2284 = vcvt.s32.f32 %v1036
      %v2285 = vcvt.s32.f32 %v1037
      %v2286 = vcvt.s32.f32 %v1038
      %v2287 = vcvt.s32.f32 %v1039
      %v2288 = vcvt.s32.f32 %v1040
      %v2289 = vcvt.s32.f32 %v1041
      %v2290 = vcvt.s32.f32 %v1042
      %v2291 = vcvt.s32.f32 %v1043
      %v2292 = vcvt.s32.f32 %v1044
      %v2293 = vcvt.s32.f32 %v1045
      %v2294 = vcvt.s32.f32 %v1046
      %v2295 = vcvt.s32.f32 %v1047
      %v2296 = vcvt.s32.f32 %v1048
      %v2297 = vcvt.s32.f32 %v1049
      %v2298 = vcvt.s32.f32 %v1050
      %v2299 = vcvt.s32.f32 %v1051
      %v2300 = vcvt.s32.f32 %v1052
      %v2301 = vcvt.s32.f32 %v1053
      %v2302 = vcvt.s32.f32 %v1054
      %v2303 = vcvt.s32.f32 %v1055
      %v2304 = vcvt.s32.f32 %v1056
      %v2305 = vcvt.s32.f32 %v1057
      %v2306 = vcvt.s32.f32 %v1058
      %v2307 = vcvt.s32.f32 %v1059
      %v2308 = vcvt.s32.f32 %v1060
      %v2309 = vcvt.s32.f32 %v1061
      %v2310 = vcvt.s32.f32 %v1062
      %v2311 = vcvt.s32.f32 %v1063
      %v2312 = vcvt.s32.f32 %v1064
      %v2313 = vcvt.s32.f32 %v1065
      %v2314 = vcvt.s32.f32 %v1066
      %v2315 = vcvt.s32.f32 %v1067
      %v2316 = vcvt.s32.f32 %v1068
      %v2317 = vcvt.s32.f32 %v1069
      %v2318 = vcvt.s32.f32 %v1070
      %v2319 = vcvt.s32.f32 %v1071
      %v2320 = vcvt.s32.f32 %v1072
      %v2321 = vcvt.s32.f32 %v1073
      %v2322 = vcvt.s32.f32 %v1074
      %v2323 = vcvt.s32.f32 %v1075
      %v2324 = vcvt.s32.f32 %v1076
      %v2325 = vcvt.s32.f32 %v1077
      %v2326 = vcvt.s32.f32 %v1078
      %v2327 = vcvt.s32.f32 %v1079
      %v2328 = vcvt.s32.f32 %v1080
      %v2329 = vcvt.s32.f32 %v1081
      %v2330 = vcvt.s32.f32 %v1082
      %v2331 = vcvt.s32.f32 %v1083
      %v2332 = vcvt.s32.f32 %v1084
      %v2333 = vcvt.s32.f32 %v1085
      %v2334 = vcvt.s32.f32 %v1086
      %v2335 = vcvt.s32.f32 %v1087
      %v2336 = vcvt.s32.f32 %v1088
      %v2337 = vcvt.s32.f32 %v1089
      %v2338 = vcvt.s32.f32 %v1090
      %v2339 = vcvt.s32.f32 %v1091
      %v2340 = vcvt.s32.f32 %v1092
      %v2341 = vcvt.s32.f32 %v1093
      %v2342 = vcvt.s32.f32 %v1094
      %v2343 = vcvt.s32.f32 %v1095
      %v2344 = vcvt.s32.f32 %v1096
      %v2345 = vcvt.s32.f32 %v1097
      %v2346 = vcvt.s32.f32 %v1098
      %v2347 = vcvt.s32.f32 %v1099
      %v2348 = vcvt.s32.f32 %v1100
      %v2349 = vcvt.s32.f32 %v1101
      %v2350 = vcvt.s32.f32 %v1102
      %v2351 = vcvt.s32.f32 %v1103
      %v2352 = vcvt.s32.f32 %v1104
      %v2353 = vcvt.s32.f32 %v1105
      %v2354 = vcvt.s32.f32 %v1106
      %v2355 = vcvt.s32.f32 %v1107
      %v2356 = vcvt.s32.f32 %v1108
      %v2357 = vcvt.s32.f32 %v1109
      %v2358 = vcvt.s32.f32 %v1110
      %v2359 = vcvt.s32.f32 %v1111
      %v2360 = vcvt.s32.f32 %v1112
      %v2361 = vcvt.s32.f32 %v1113
      %v2362 = vcvt.s32.f32 %v1114
      %v2363 = vcvt.s32.f32 %v1115
      %v2364 = vcvt.s32.f32 %v1116
      %v2365 = vcvt.s32.f32 %v1117
      %v2366 = vcvt.s32.f32 %v1118
      %v2367 = vcvt.s32.f32 %v1119
      %v2368 = vcvt.s32.f32 %v1120
      %v2369 = vcvt.s32.f32 %v1121
      %v2370 = vcvt.s32.f32 %v1122
      %v2371 = vcvt.s32.f32 %v1123
      %v2372 = vcvt.s32.f32 %v1124
      %v2373 = vcvt.s32.f32 %v1125
      %v2374 = vcvt.s32.f32 %v1126
      %v2375 = vcvt.s32.f32 %v1127
      %v2376 = vcvt.s32.f32 %v1128
      %v2377 = vcvt.s32.f32 %v1129
      %v2378 = vcvt.s32.f32 %v1130
      %v2379 = vcvt.s32.f32 %v1131
      %v2380 = vcvt.s32.f32 %v1132
      %v2381 = vcvt.s32.f32 %v1133
      %v2382 = vcvt.s32.f32 %v1134
      %v2383 = vcvt.s32.f32 %v1135
      %v2384 = vcvt.s32.f32 %v1136
      %v2385 = vcvt.s32.f32 %v1137
      %v2386 = vcvt.s32.f32 %v1138
      %v2387 = vcvt.s32.f32 %v1139
      %v2388 = vcvt.s32.f32 %v1140
      %v2389 = vcvt.s32.f32 %v1141
      %v2390 = vcvt.s32.f32 %v1142
      %v2391 = vcvt.s32.f32 %v1143
      %v2392 = vcvt.s32.f32 %v1144
      %v2393 = vcvt.s32.f32 %v1145
      %v2394 = vcvt.s32.f32 %v1146
      %v2395 = vcvt.s32.f32 %v1147
      %v2396 = vcvt.s32.f32 %v1148
      %v2397 = vcvt.s32.f32 %v1149
      %v2398 = vcvt.s32.f32 %v1150
      %v2399 = vcvt.s32.f32 %v1151
      %v2400 = vcvt.s32.f32 %v1152
      %v2401 = vcvt.s32.f32 %v1153
      %v2402 = vcvt.s32.f32 %v1154
      %v2403 = vcvt.s32.f32 %v1155
      %v2404 = vcvt.s32.f32 %v1156
      %v2405 = vcvt.s32.f32 %v1157
      %v2406 = vcvt.s32.f32 %v1158
      %v2407 = vcvt.s32.f32 %v1159
      %v2408 = vcvt.s32.f32 %v1160
      %v2409 = vcvt.s32.f32 %v1161
      %v2410 = vcvt.s32.f32 %v1162
      %v2411 = vcvt.s32.f32 %v1163
      %v2412 = vcvt.s32.f32 %v1164
      %v2413 = vcvt.s32.f32 %v1165
      %v2414 = vcvt.s32.f32 %v1166
      %v2415 = vcvt.s32.f32 %v1167
      %v2416 = vcvt.s32.f32 %v1168
      %v2417 = vcvt.s32.f32 %v1169
      %v2418 = vcvt.s32.f32 %v1170
      %v2419 = vcvt.s32.f32 %v1171
      %v2420 = vcvt.s32.f32 %v1172
      %v2421 = vcvt.s32.f32 %v1173
      %v2422 = vcvt.s32.f32 %v1174
      %v2423 = vcvt.s32.f32 %v1175
      %v2424 = vcvt.s32.f32 %v1176
      %v2425 = vcvt.s32.f32 %v1177
      %v2426 = vcvt.s32.f32 %v1178
      %v2427 = vcvt.s32.f32 %v1179
      %v2428 = vcvt.s32.f32 %v1180
      %v2429 = vcvt.s32.f32 %v1181
      %v2430 = vcvt.s32.f32 %v1182
      %v2431 = vcvt.s32.f32 %v1183
      %v2432 = vcvt.s32.f32 %v1184
      %v2433 = vcvt.s32.f32 %v1185
      %v2434 = vcvt.s32.f32 %v1186
      %v2435 = vcvt.s32.f32 %v1187
      %v2436 = vcvt.s32.f32 %v1188
      %v2437 = vcvt.s32.f32 %v1189
      %v2438 = vcvt.s32.f32 %v1190
      %v2439 = vcvt.s32.f32 %v1191
      %v2440 = vcvt.s32.f32 %v1192
      %v2441 = vcvt.s32.f32 %v1193
      %v2442 = vcvt.s32.f32 %v1194
      %v2443 = vcvt.s32.f32 %v1195
      %v2444 = vcvt.s32.f32 %v1196
      %v2445 = vcvt.s32.f32 %v1197
      %v2446 = vcvt.s32.f32 %v1198
      %v2447 = vcvt.s32.f32 %v1199
      %v2448 = vcvt.s32.f32 %v1200
      %v2449 = vcvt.s32.f32 %v1201
      %v2450 = vcvt.s32.f32 %v1202
      %v2451 = vcvt.s32.f32 %v1203
      %v2452 = vcvt.s32.f32 %v1204
      %v2453 = vcvt.s32.f32 %v1205
      %v2454 = vcvt.s32.f32 %v1206
      %v2455 = vcvt.s32.f32 %v1207
      %v2456 = vcvt.s32.f32 %v1208
      %v2457 = vcvt.s32.f32 %v1209
      %v2458 = vcvt.s32.f32 %v1210
      %v2459 = vcvt.s32.f32 %v1211
      %v2460 = vcvt.s32.f32 %v1212
      %v2461 = vcvt.s32.f32 %v1213
      %v2462 = vcvt.s32.f32 %v1214
      %v2463 = vcvt.s32.f32 %v1215
      %v2464 = vcvt.s32.f32 %v1216
      %v2465 = vcvt.s32.f32 %v1217
      %v2466 = vcvt.s32.f32 %v1218
      %v2467 = vcvt.s32.f32 %v1219
      %v2468 = vcvt.s32.f32 %v1220
      %v2469 = vcvt.s32.f32 %v1221
      %v2470 = vcvt.s32.f32 %v1222
      %v2471 = vcvt.s32.f32 %v1223
      %v2472 = vcvt.s32.f32 %v1224
      %v2473 = vcvt.s32.f32 %v1225
      %v2474 = vcvt.s32.f32 %v1226
      %v2475 = vcvt.s32.f32 %v1227
      %v2476 = vcvt.s32.f32 %v1228
      %v2477 = vcvt.s32.f32 %v1229
      %v2478 = vcvt.s32.f32 %v1230
      %v2479 = vcvt.s32.f32 %v1231
      %v2480 = vcvt.s32.f32 %v1232
      %v2481 = vcvt.s32.f32 %v1233
      %v2482 = vcvt.s32.f32 %v1234
      %v2483 = vcvt.s32.f32 %v1235
      %v2484 = vcvt.s32.f32 %v1236
      %v2485 = vcvt.s32.f32 %v1237
      %v2486 = vcvt.s32.f32 %v1238
      %v2487 = vcvt.s32.f32 %v1239
      %v2488 = vcvt.s32.f32 %v1240
      %v2489 = vcvt.s32.f32 %v1241
      %v2490 = vcvt.s32.f32 %v1242
      %v2491 = vcvt.s32.f32 %v1243
      %v2492 = vcvt.s32.f32 %v1244
      %v2493 = vcvt.s32.f32 %v1245
      %v2494 = vcvt.s32.f32 %v1246
      %v2495 = vcvt.s32.f32 %v1247
      %v2496 = vcvt.s32.f32 %v1248
      %v2497 = vcvt.s32.f32 %v1249
      %v2498 = vcvt.s32.f32 %v1250
      %v2499 = vcvt.s32.f32 %v1251
      %v2500 = vcvt.s32.f32 %v1252
      %v2501 = vcvt.s32.f32 %v1253
      %v2502 = vcvt.s32.f32 %v1254
      %v2503 = vcvt.s32.f32 %v1255
      %v2504 = vcvt.s32.f32 %v1256
      %v2505 = vcvt.s32.f32 %v1257
      %v2506 = vcvt.s32.f32 %v1258
      %v2507 = vcvt.s32.f32 %v1259
      %v2508 = vcvt.s32.f32 %v1260
      %v2509 = vcvt.s32.f32 %v1261
      %v2510 = vcvt.s32.f32 %v1262
      %v2511 = vcvt.s32.f32 %v1263
      %v2512 = vcvt.s32.f32 %v1264
      %v2513 = vcvt.s32.f32 %v1265
      %v2514 = vcvt.s32.f32 %v1266
      %v2515 = vcvt.s32.f32 %v1267
      %v2516 = vcvt.s32.f32 %v1268
      %v2517 = vcvt.s32.f32 %v1269
      %v2518 = vcvt.s32.f32 %v1270
      %v2519 = vcvt.s32.f32 %v1271
      %v2520 = vcvt.s32.f32 %v1272
      %v2521 = vcvt.s32.f32 %v1273
      %v2522 = vcvt.s32.f32 %v1274
      %v2523 = vcvt.s32.f32 %v1275
      %v2524 = vcvt.s32.f32 %v1276
      %v2525 = vcvt.s32.f32 %v1277
      %v2526 = vcvt.s32.f32 %v1278
      %v2527 = vcvt.s32.f32 %v1279
      %v2528 = vcvt.s32.f32 %v1280
      %v2529 = vcvt.s32.f32 %v1281
      %v2530 = vcvt.s32.f32 %v1282
      %v2531 = vcvt.s32.f32 %v1283
      %v2532 = vcvt.s32.f32 %v1284
      %v2533 = vcvt.s32.f32 %v1285
      %v2534 = vcvt.s32.f32 %v1286
      %v2535 = vcvt.s32.f32 %v1287
      %v2536 = vcvt.s32.f32 %v1288
      %v2537 = vcvt.s32.f32 %v1289
      %v2538 = vcvt.s32.f32 %v1290
      %v2539 = vcvt.s32.f32 %v1291
      %v2540 = vcvt.s32.f32 %v1292
      %v2541 = vcvt.s32.f32 %v1293
      %v2542 = vcvt.s32.f32 %v1294
      %v2543 = vcvt.s32.f32 %v1295
      %v2544 = vcvt.s32.f32 %v1296
      %v2545 = vcvt.s32.f32 %v1297
      %v2546 = vcvt.s32.f32 %v1298
      %v2547 = vcvt.s32.f32 %v1299
      %v2548 = vcvt.s32.f32 %v1300
      %v2549 = vcvt.s32.f32 %v1301
      %v2550 = vcvt.s32.f32 %v1302
      %v2551 = vcvt.s32.f32 %v1303
      %v2552 = vcvt.s32.f32 %v1304
      %v2553 = vcvt.s32.f32 %v1305
      %v2554 = vcvt.s32.f32 %v1306
      %v2555 = vcvt.s32.f32 %v1307
      %v2556 = vcvt.s32.f32 %v1308
      %v2557 = vcvt.s32.f32 %v1309
      %v2558 = vcvt.s32.f32 %v1310
      %v2559 = vcvt.s32.f32 %v1311
      %v2560 = vcvt.s32.f32 %v1312
      %v2561 = vcvt.s32.f32 %v1313
      %v2562 = vcvt.s32.f32 %v1314
      %v2563 = vcvt.s32.f32 %v1315
      %v2564 = vcvt.s32.f32 %v1316
      %v2565 = vcvt.s32.f32 %v1317
      %v2566 = vcvt.s32.f32 %v1318
      %v2567 = vcvt.s32.f32 %v1319
      %v2568 = vcvt.s32.f32 %v1320
      %v2569 = vcvt.s32.f32 %v1321
      %v2570 = vcvt.s32.f32 %v1322
      %v2571 = vcvt.s32.f32 %v1323
      %v2572 = vcvt.s32.f32 %v1324
      %v2573 = vcvt.s32.f32 %v1325
      %v2574 = vcvt.s32.f32 %v1326
      %v2575 = vcvt.s32.f32 %v1327
      %v2576 = vcvt.s32.f32 %v1328
      %v2577 = vcvt.s32.f32 %v1329
      %v2578 = vcvt.s32.f32 %v1330
      %v2579 = vcvt.s32.f32 %v1331
      %v2580 = vcvt.s32.f32 %v1332
      %v2581 = vcvt.s32.f32 %v1333
      %v2582 = vcvt.s32.f32 %v1334
      %v2583 = vcvt.s32.f32 %v1335
      %v2584 = vcvt.s32.f32 %v1336
      %v2585 = vcvt.s32.f32 %v1337
      %v2586 = vcvt.s32.f32 %v1338
      %v2587 = vcvt.s32.f32 %v1339
      %v2588 = vcvt.s32.f32 %v1340
      %v2589 = vcvt.s32.f32 %v1341
      %v2590 = vcvt.s32.f32 %v1342
      %v2591 = vcvt.s32.f32 %v1343
      %v2592 = vcvt.s32.f32 %v1344
      %v2593 = vcvt.s32.f32 %v1345
      %v2594 = vcvt.s32.f32 %v1346
      %v2595 = vcvt.s32.f32 %v1347
      %v2596 = vcvt.s32.f32 %v1348
      %v2597 = vcvt.s32.f32 %v1349
      %v2598 = vcvt.s32.f32 %v1350
      %v2599 = vcvt.s32.f32 %v1351
      %v2600 = vcvt.s32.f32 %v1352
      %v2601 = vcvt.s32.f32 %v1353
      %v2602 = vcvt.s32.f32 %v1354
      %v2603 = vcvt.s32.f32 %v1355
      %v2604 = vcvt.s32.f32 %v1356
      %v2605 = vcvt.s32.f32 %v1357
      %v2606 = vcvt.s32.f32 %v1358
      %v2607 = vcvt.s32.f32 %v1359
      %v2608 = vcvt.s32.f32 %v1360
      %v2609 = vcvt.s32.f32 %v1361
      %v2610 = vcvt.s32.f32 %v1362
      %v2611 = vcvt.s32.f32 %v1363
      %v2612 = vcvt.s32.f32 %v1364
      %v2613 = vcvt.s32.f32 %v1365
      %v2614 = vcvt.s32.f32 %v1366
      %v2615 = vcvt.s32.f32 %v1367
      %v2616 = vcvt.s32.f32 %v1368
      %v2617 = vcvt.s32.f32 %v1369
      %v2618 = vcvt.s32.f32 %v1370
      %v2619 = vcvt.s32.f32 %v1371
      %v2620 = vcvt.s32.f32 %v1372
      %v2621 = vcvt.s32.f32 %v1373
      %v2622 = vcvt.s32.f32 %v1374
      %v2623 = vcvt.s32.f32 %v1375
      %v2624 = vcvt.s32.f32 %v1376
      %v2625 = vcvt.s32.f32 %v1377
      %v2626 = vcvt.s32.f32 %v1378
      %v2627 = vcvt.s32.f32 %v1379
      %v2628 = vcvt.s32.f32 %v1380
      %v2629 = vcvt.s32.f32 %v1381
      %v2630 = vcvt.s32.f32 %v1382
      %v2631 = vcvt.s32.f32 %v1383
      %v2632 = vcvt.s32.f32 %v1384
      %v2633 = vcvt.s32.f32 %v1385
      %v2634 = vcvt.s32.f32 %v1386
      %v2635 = vcvt.s32.f32 %v1387
      %v2636 = vcvt.s32.f32 %v1388
      %v2637 = vcvt.s32.f32 %v1389
      %v2638 = vcvt.s32.f32 %v1390
      %v2639 = vcvt.s32.f32 %v1391
      %v2640 = vcvt.s32.f32 %v1392
      %v2641 = vcvt.s32.f32 %v1393
      %v2642 = vcvt.s32.f32 %v1394
      %v2643 = vcvt.s32.f32 %v1395
      %v2644 = vcvt.s32.f32 %v1396
      %v2645 = vcvt.s32.f32 %v1397
      %v2646 = vcvt.s32.f32 %v1398
      %v2647 = vcvt.s32.f32 %v1399
      %v2648 = vcvt.s32.f32 %v1400
      %v2649 = vcvt.s32.f32 %v1401
      %v2650 = vcvt.s32.f32 %v1402
      %v2651 = vcvt.s32.f32 %v1403
      %v2652 = vcvt.s32.f32 %v1404
      %v2653 = vcvt.s32.f32 %v1405
      %v2654 = vcvt.s32.f32 %v1406
      %v2655 = vcvt.s32.f32 %v1407
      %v2656 = vcvt.s32.f32 %v1408
      %v2657 = vcvt.s32.f32 %v1409
      %v2658 = vcvt.s32.f32 %v1410
      %v2659 = vcvt.s32.f32 %v1411
      %v2660 = vcvt.s32.f32 %v1412
      %v2661 = vcvt.s32.f32 %v1413
      %v2662 = vcvt.s32.f32 %v1414
      %v2663 = vcvt.s32.f32 %v1415
      %v2664 = vcvt.s32.f32 %v1416
      %v2665 = vcvt.s32.f32 %v1417
      %v2666 = vcvt.s32.f32 %v1418
      %v2667 = vcvt.s32.f32 %v1419
      %v2668 = vcvt.s32.f32 %v1420
      %v2669 = vcvt.s32.f32 %v1421
      %v2670 = vcvt.s32.f32 %v1422
      %v2671 = vcvt.s32.f32 %v1423
      %v2672 = vcvt.s32.f32 %v1424
      %v2673 = vcvt.s32.f32 %v1425
      %v2674 = vcvt.s32.f32 %v1426
      %v2675 = vcvt.s32.f32 %v1427
      %v2676 = vcvt.s32.f32 %v1428
      %v2677 = vcvt.s32.f32 %v1429
      %v2678 = vcvt.s32.f32 %v1430
      %v2679 = vcvt.s32.f32 %v1431
      %v2680 = vcvt.s32.f32 %v1432
      %v2681 = vcvt.s32.f32 %v1433
      %v2682 = vcvt.s32.f32 %v1434
      %v2683 = vcvt.s32.f32 %v1435
      %v2684 = vcvt.s32.f32 %v1436
      %v2685 = vcvt.s32.f32 %v1437
      %v2686 = vcvt.s32.f32 %v1438
      %v2687 = vcvt.s32.f32 %v1439
      %v2688 = vcvt.s32.f32 %v1440
      %v2689 = vcvt.s32.f32 %v1441
      %v2690 = vcvt.s32.f32 %v1442
      %v2691 = vcvt.s32.f32 %v1443
      %v2692 = vcvt.s32.f32 %v1444
      %v2693 = vcvt.s32.f32 %v1445
      %v2694 = vcvt.s32.f32 %v1446
      %v2695 = vcvt.s32.f32 %v1447
      %v2696 = vcvt.s32.f32 %v1448
      %v2697 = vcvt.s32.f32 %v1449
      %v2698 = vcvt.s32.f32 %v1450
      %v2699 = vcvt.s32.f32 %v1451
      %v2700 = vcvt.s32.f32 %v1452
      %v2701 = vcvt.s32.f32 %v1453
      %v2702 = vcvt.s32.f32 %v1454
      %v2703 = vcvt.s32.f32 %v1455
      %v2704 = vcvt.s32.f32 %v1456
      %v2705 = vcvt.s32.f32 %v1457
      %v2706 = vcvt.s32.f32 %v1458
      %v2707 = vcvt.s32.f32 %v1459
      %v2708 = vcvt.s32.f32 %v1460
      %v2709 = vcvt.s32.f32 %v1461
      %v2710 = vcvt.s32.f32 %v1462
      %v2711 = vcvt.s32.f32 %v1463
      %v2712 = vcvt.s32.f32 %v1464
      %v2713 = vcvt.s32.f32 %v1465
      %v2714 = vcvt.s32.f32 %v1466
      %v2715 = vcvt.s32.f32 %v1467
      %v2716 = vcvt.s32.f32 %v1468
      %v2717 = vcvt.s32.f32 %v1469
      %v2718 = vcvt.s32.f32 %v1470
      %v2719 = vcvt.s32.f32 %v1471
      %v2720 = vcvt.s32.f32 %v1472
      %v2721 = vcvt.s32.f32 %v1473
      %v2722 = vcvt.s32.f32 %v1474
      %v2723 = vcvt.s32.f32 %v1475
      %v2724 = vcvt.s32.f32 %v1476
      %v2725 = vcvt.s32.f32 %v1477
      %v2726 = vcvt.s32.f32 %v1478
      %v2727 = vcvt.s32.f32 %v1479
      %v2728 = vcvt.s32.f32 %v1480
      %v2729 = vcvt.s32.f32 %v1481
      %v2730 = vcvt.s32.f32 %v1482
      %v2731 = vcvt.s32.f32 %v1483
      %v2732 = vcvt.s32.f32 %v1484
      %v2733 = vcvt.s32.f32 %v1485
      %v2734 = vcvt.s32.f32 %v1486
      %v2735 = vcvt.s32.f32 %v1487
      %v2736 = vcvt.s32.f32 %v1488
      %v2737 = vcvt.s32.f32 %v1489
      %v2738 = vcvt.s32.f32 %v1490
      %v2739 = vcvt.s32.f32 %v1491
      %v2740 = vcvt.s32.f32 %v1492
      %v2741 = vcvt.s32.f32 %v1493
      %v2742 = vcvt.s32.f32 %v1494
      %v2743 = vcvt.s32.f32 %v1495
      %v2744 = vcvt.s32.f32 %v1496
      %v2745 = vcvt.s32.f32 %v1497
      %v2746 = vcvt.s32.f32 %v1498
      %v2747 = vcvt.s32.f32 %v1499
      %v2748 = vcvt.s32.f32 %v1500
      %v2749 = vcvt.s32.f32 %v1501
      %v2750 = vcvt.s32.f32 %v1502
      %v2751 = vcvt.s32.f32 %v1503
      %v2752 = vcvt.s32.f32 %v1504
      %v2753 = vcvt.s32.f32 %v1505
      %v2754 = vcvt.s32.f32 %v1506
      %v2755 = vcvt.s32.f32 %v1507
      %v2756 = vcvt.s32.f32 %v1508
      %v2757 = vcvt.s32.f32 %v1509
      %v2758 = vcvt.s32.f32 %v1510
      %v2759 = vcvt.s32.f32 %v1511
      %v2760 = vcvt.s32.f32 %v1512
      %v2761 = vcvt.s32.f32 %v1513
      %v2762 = vcvt.s32.f32 %v1514
      %v2763 = vcvt.s32.f32 %v1515
      %v2764 = vcvt.s32.f32 %v1516
      %v2765 = vcvt.s32.f32 %v1517
      %v2766 = vcvt.s32.f32 %v1518
      %v2767 = vcvt.s32.f32 %v1519
      %v2768 = vcvt.s32.f32 %v1520
      %v2769 = vcvt.s32.f32 %v1521
      %v2770 = vcvt.s32.f32 %v1522
      %v2771 = vcvt.s32.f32 %v1523
      %v2772 = vcvt.s32.f32 %v1524
      %v2773 = vcvt.s32.f32 %v1525
      %v2774 = vcvt.s32.f32 %v1526
      %v2775 = vcvt.s32.f32 %v1527
      %v2776 = vcvt.s32.f32 %v1528
      %v2777 = vcvt.s32.f32 %v1529
      %v2778 = vcvt.s32.f32 %v1530
      %v2779 = vcvt.s32.f32 %v1531
      %v2780 = vcvt.s32.f32 %v1532
      %v2781 = vcvt.s32.f32 %v1533
      %v2782 = vcvt.s32.f32 %v1534
      %v2783 = vcvt.s32.f32 %v1535
      %v2784 = vcvt.s32.f32 %v1536
      %v2785 = vcvt.s32.f32 %v1537
      %v2786 = vcvt.s32.f32 %v1538
      %v2787 = vcvt.s32.f32 %v1539
      %v2788 = vcvt.s32.f32 %v1540
      %v2789 = vcvt.s32.f32 %v1541
      %v2790 = vcvt.s32.f32 %v1542
      %v2791 = vcvt.s32.f32 %v1543
      %v2792 = vcvt.s32.f32 %v1544
      %v2793 = vcvt.s32.f32 %v1545
      %v2794 = vcvt.s32.f32 %v1546
      %v2795 = vcvt.s32.f32 %v1547
      %v2796 = vcvt.s32.f32 %v1548
      %v2797 = vcvt.s32.f32 %v1549
      %v2798 = vcvt.s32.f32 %v1550
      %v2799 = vcvt.s32.f32 %v1551
      %v2800 = vcvt.s32.f32 %v1552
      %v2801 = vcvt.s32.f32 %v1553
      %v2802 = vcvt.s32.f32 %v1554
      %v2803 = vcvt.s32.f32 %v1555
      %v2804 = vcvt.s32.f32 %v1556
      %v2805 = vcvt.s32.f32 %v1557
      %v2806 = vcvt.s32.f32 %v1558
      %v2807 = vcvt.s32.f32 %v1559
      %v2808 = vcvt.s32.f32 %v1560
      %v2809 = vcvt.s32.f32 %v1561
      %v2810 = vcvt.s32.f32 %v1562
      %v2811 = vcvt.s32.f32 %v1563
      %v2812 = vcvt.s32.f32 %v1564
      %v2813 = vcvt.s32.f32 %v1565
      %v2814 = vcvt.s32.f32 %v1566
      %v2815 = vcvt.s32.f32 %v1567
      %v2816 = vcvt.s32.f32 %v1568
      %v2817 = vcvt.s32.f32 %v1569
      %v2818 = vcvt.s32.f32 %v1570
      %v2819 = vcvt.s32.f32 %v1571
      %v2820 = vcvt.s32.f32 %v1572
      %v2821 = vcvt.s32.f32 %v1573
      %v2822 = vcvt.s32.f32 %v1574
      %v2823 = vcvt.s32.f32 %v1575
      %v2824 = vcvt.s32.f32 %v1576
      %v2825 = vcvt.s32.f32 %v1577
      %v2826 = vcvt.s32.f32 %v1578
      %v2827 = vcvt.s32.f32 %v1579
      %v2828 = vcvt.s32.f32 %v1580
      %v2829 = vcvt.s32.f32 %v1581
      %v2830 = vcvt.s32.f32 %v1582
      %v2831 = vcvt.s32.f32 %v1583
      %v2832 = vcvt.s32.f32 %v1584
      %v2833 = vcvt.s32.f32 %v1585
      %v2834 = vcvt.s32.f32 %v1586
      %v2835 = vcvt.s32.f32 %v1587
      %v2836 = vcvt.s32.f32 %v1588
      %v2837 = vcvt.s32.f32 %v1589
      %v2838 = vcvt.s32.f32 %v1590
      %v2839 = vcvt.s32.f32 %v1591
      %v2840 = vcvt.s32.f32 %v1592
      %v2841 = vcvt.s32.f32 %v1593
      %v2842 = vcvt.s32.f32 %v1594
      %v2843 = vcvt.s32.f32 %v1595
      %v2844 = vcvt.s32.f32 %v1596
      %v2845 = vcvt.s32.f32 %v1597
      %v2846 = vcvt.s32.f32 %v1598
      %v2847 = vcvt.s32.f32 %v1599
      %v2848 = vcvt.s32.f32 %v1600
      %v2849 = vcvt.s32.f32 %v1601
      %v2850 = vcvt.s32.f32 %v1602
      %v2851 = vcvt.s32.f32 %v1603
      %v2852 = vcvt.s32.f32 %v1604
      %v2853 = vcvt.s32.f32 %v1605
      %v2854 = vcvt.s32.f32 %v1606
      %v2855 = vcvt.s32.f32 %v1607
      %v2856 = vcvt.s32.f32 %v1608
      %v2857 = vcvt.s32.f32 %v1609
      %v2858 = vcvt.s32.f32 %v1610
      %v2859 = vcvt.s32.f32 %v1611
      %v2860 = vcvt.s32.f32 %v1612
      %v2861 = vcvt.s32.f32 %v1613
      %v2862 = vcvt.s32.f32 %v1614
      %v2863 = vcvt.s32.f32 %v1615
      %v2864 = vcvt.s32.f32 %v1616
      %v2865 = vcvt.s32.f32 %v1617
      %v2866 = vcvt.s32.f32 %v1618
      %v2867 = vcvt.s32.f32 %v1619
      %v2868 = vcvt.s32.f32 %v1620
      %v2869 = vcvt.s32.f32 %v1621
      %v2870 = vcvt.s32.f32 %v1622
      %v2871 = vcvt.s32.f32 %v1623
      %v2872 = vcvt.s32.f32 %v1624
      %v2873 = vcvt.s32.f32 %v1625
      %v2874 = vcvt.s32.f32 %v1626
      %v2875 = vcvt.s32.f32 %v1627
      %v2876 = vcvt.s32.f32 %v1628
      %v2877 = vcvt.s32.f32 %v1629
      %v2878 = vcvt.s32.f32 %v1630
      %v2879 = vcvt.s32.f32 %v1631
      %v2880 = vcvt.s32.f32 %v1632
      %v2881 = vcvt.s32.f32 %v1633
      %v2882 = vcvt.s32.f32 %v1634
      %v2883 = vcvt.s32.f32 %v1635
      %v2884 = vcvt.s32.f32 %v1636
      %v2885 = vcvt.s32.f32 %v1637
      %v2886 = vcvt.s32.f32 %v1638
      %v2887 = vcvt.s32.f32 %v1639
      %v2888 = vcvt.s32.f32 %v1640
      %v2889 = vcvt.s32.f32 %v1641
      %v2890 = vcvt.s32.f32 %v1642
      %v2891 = vcvt.s32.f32 %v1643
      %v2892 = vcvt.s32.f32 %v1644
      %v2893 = vcvt.s32.f32 %v1645
      %v2894 = vcvt.s32.f32 %v1646
      %v2895 = vcvt.s32.f32 %v1647
      %v2896 = vcvt.s32.f32 %v1648
      %v2897 = vcvt.s32.f32 %v1649
      %v2898 = vcvt.s32.f32 %v1650
      %v2899 = vcvt.s32.f32 %v1651
      %v2900 = vcvt.s32.f32 %v1652
      %v2901 = vcvt.s32.f32 %v1653
      %v2902 = vcvt.s32.f32 %v1654
      %v2903 = vcvt.s32.f32 %v1655
      %v2904 = vcvt.s32.f32 %v1656
      %v2905 = vcvt.s32.f32 %v1657
      %v2906 = vcvt.s32.f32 %v1658
      %v2907 = vcvt.s32.f32 %v1659
      %v2908 = vcvt.s32.f32 %v1660
      %v2909 = vcvt.s32.f32 %v1661
      %v2910 = vcvt.s32.f32 %v1662
      %v2911 = vcvt.s32.f32 %v1663
      %v2912 = vcvt.s32.f32 %v1664
      %v2913 = vcvt.s32.f32 %v1665
      %v2914 = vcvt.s32.f32 %v1666
      %v2915 = vcvt.s32.f32 %v1667
      %v2916 = vcvt.s32.f32 %v1668
      %v2917 = vcvt.s32.f32 %v1669
      %v2918 = vcvt.s32.f32 %v1670
      %v2919 = vcvt.s32.f32 %v1671
      %v2920 = vcvt.s32.f32 %v1672
      %v2921 = vcvt.s32.f32 %v1673
      %v2922 = vcvt.s32.f32 %v1674
      %v2923 = vcvt.s32.f32 %v1675
      %v2924 = vcvt.s32.f32 %v1676
      %v2925 = vcvt.s32.f32 %v1677
      %v2926 = vcvt.s32.f32 %v1678
      %v2927 = vcvt.s32.f32 %v1679
      %v2928 = vcvt.s32.f32 %v1680
      %v2929 = vcvt.s32.f32 %v1681
      %v2930 = vcvt.s32.f32 %v1682
      %v2931 = vcvt.s32.f32 %v1683
      %v2932 = vcvt.s32.f32 %v1684
      %v2933 = vcvt.s32.f32 %v1685
      %v2934 = vcvt.s32.f32 %v1686
      %v2935 = vcvt.s32.f32 %v1687
      %v2936 = vcvt.s32.f32 %v1688
      %v2937 = vcvt.s32.f32 %v1689
      %v2938 = vcvt.s32.f32 %v1690
      %v2939 = vcvt.s32.f32 %v1691
      %v2940 = vcvt.s32.f32 %v1692
      %v2941 = vcvt.s32.f32 %v1693
      %v2942 = vcvt.s32.f32 %v1694
      %v2943 = vcvt.s32.f32 %v1695
      %v2944 = vcvt.s32.f32 %v1696
      %v2945 = vcvt.s32.f32 %v1697
      %v2946 = vcvt.s32.f32 %v1698
      %v2947 = vcvt.s32.f32 %v1699
      %v2948 = vcvt.s32.f32 %v1700
      %v2949 = vcvt.s32.f32 %v1701
      %v2950 = vcvt.s32.f32 %v1702
      %v2951 = vcvt.s32.f32 %v1703
      %v2952 = vcvt.s32.f32 %v1704
      %v2953 = vcvt.s32.f32 %v1705
      %v2954 = vcvt.s32.f32 %v1706
      %v2955 = vcvt.s32.f32 %v1707
      %v2956 = vcvt.s32.f32 %v1708
      %v2957 = vcvt.s32.f32 %v1709
      %v2958 = vcvt.s32.f32 %v1710
      %v2959 = vcvt.s32.f32 %v1711
      %v2960 = vcvt.s32.f32 %v1712
      %v2961 = vcvt.s32.f32 %v1713
      %v2962 = vcvt.s32.f32 %v1714
      %v2963 = vcvt.s32.f32 %v1715
      %v2964 = vcvt.s32.f32 %v1716
      %v2965 = vcvt.s32.f32 %v1717
      %v2966 = vcvt.s32.f32 %v1718
      %v2967 = vcvt.s32.f32 %v1719
      %v2968 = vcvt.s32.f32 %v1720
      %v2969 = vcvt.s32.f32 %v1721
      %v2970 = vcvt.s32.f32 %v1722
      %v2971 = vcvt.s32.f32 %v1723
      %v2972 = vcvt.s32.f32 %v1724
      %v2973 = vcvt.s32.f32 %v1725
      %v2974 = vcvt.s32.f32 %v1726
      %v2975 = vcvt.s32.f32 %v1727
      %v2976 = vcvt.s32.f32 %v1728
      %v2977 = vcvt.s32.f32 %v1729
      %v2978 = vcvt.s32.f32 %v1730
      %v2979 = vcvt.s32.f32 %v1731
      %v2980 = vcvt.s32.f32 %v1732
      %v2981 = vcvt.s32.f32 %v1733
      %v2982 = vcvt.s32.f32 %v1734
      %v2983 = vcvt.s32.f32 %v1735
      %v2984 = vcvt.s32.f32 %v1736
      %v2985 = vcvt.s32.f32 %v1737
      %v2986 = vcvt.s32.f32 %v1738
      %v2987 = vcvt.s32.f32 %v1739
      %v2988 = vcvt.s32.f32 %v1740
      %v2989 = vcvt.s32.f32 %v1741
      %v2990 = vcvt.s32.f32 %v1742
      %v2991 = vcvt.s32.f32 %v1743
      %v2992 = vcvt.s32.f32 %v1744
      %v2993 = vcvt.s32.f32 %v1745
      %v2994 = vcvt.s32.f32 %v1746
      %v2995 = vcvt.s32.f32 %v1747
      %v2996 = vcvt.s32.f32 %v1748
      %v2997 = vcvt.s32.f32 %v1749
      %v2998 = vcvt.s32.f32 %v1750
      %v2999 = vcvt.s32.f32 %v1751
      %v3000 = vcvt.s32.f32 %v1752
      %v3001 = vcvt.s32.f32 %v1753
      %v3002 = vcvt.s32.f32 %v1754
      %v3003 = vcvt.s32.f32 %v1755
      %v3004 = vcvt.s32.f32 %v1756
      %v3005 = vcvt.s32.f32 %v1757
      %v3006 = vcvt.s32.f32 %v1758
      %v3007 = vcvt.s32.f32 %v1759
      %v3008 = vcvt.s32.f32 %v1760
      %v3009 = vcvt.s32.f32 %v1761
      %v3010 = vcvt.s32.f32 %v1762
      %v3011 = vcvt.s32.f32 %v1763
      %v3012 = vcvt.s32.f32 %v1764
      %v3013 = vcvt.s32.f32 %v1765
      %v3014 = vcvt.s32.f32 %v1766
      %v3015 = vcvt.s32.f32 %v1767
      %v3016 = vcvt.s32.f32 %v1768
      %v3017 = vcvt.s32.f32 %v1769
      %v3018 = vcvt.s32.f32 %v1770
      %v3019 = vcvt.s32.f32 %v1771
      %v3020 = vcvt.s32.f32 %v1772
      %v3021 = vcvt.s32.f32 %v1773
      %v3022 = vcvt.s32.f32 %v1774
      %v3023 = vcvt.s32.f32 %v1775
      %v3024 = vcvt.s32.f32 %v1776
      %v3025 = vcvt.s32.f32 %v1777
      %v3026 = vcvt.s32.f32 %v1778
      %v3027 = vcvt.s32.f32 %v1779
      %v3028 = vcvt.s32.f32 %v1780
      %v3029 = vcvt.s32.f32 %v1781
      %v3030 = vcvt.s32.f32 %v1782
      %v3031 = vcvt.s32.f32 %v1783
      %v3032 = vcvt.s32.f32 %v1784
      %v3033 = vcvt.s32.f32 %v1785
      %v3034 = vcvt.s32.f32 %v1786
      %v3035 = vcvt.s32.f32 %v1787
      %v3036 = vcvt.s32.f32 %v1788
      %v3037 = vcvt.s32.f32 %v1789
      %v3038 = vcvt.s32.f32 %v1790
      %v3039 = vcvt.s32.f32 %v1791
      %v3040 = vcvt.s32.f32 %v1792
      %v3041 = vcvt.s32.f32 %v1793
      %v3042 = vcvt.s32.f32 %v1794
      %v3043 = vcvt.s32.f32 %v1795
      %v3044 = vcvt.s32.f32 %v1796
      %v3045 = vcvt.s32.f32 %v1797
      %v3046 = vcvt.s32.f32 %v1798
      %v3047 = vcvt.s32.f32 %v1799
      %v3048 = vcvt.s32.f32 %v1800
      %v3049 = vcvt.s32.f32 %v1801
      %v3050 = vcvt.s32.f32 %v1802
      %v3051 = vcvt.s32.f32 %v1803
      %v3052 = vcvt.s32.f32 %v1804
      %v3053 = vcvt.s32.f32 %v1805
      %v3054 = vcvt.s32.f32 %v1806
      %v3055 = vcvt.s32.f32 %v1807
      %v3056 = vcvt.s32.f32 %v1808
      %v3057 = vcvt.s32.f32 %v1809
      %v3058 = vcvt.s32.f32 %v1810
      %v3059 = vcvt.s32.f32 %v1811
      %v3060 = vcvt.s32.f32 %v1812
      %v3061 = vcvt.s32.f32 %v1813
      %v3062 = vcvt.s32.f32 %v1814
      %v3063 = vcvt.s32.f32 %v1815
      %v3064 = vcvt.s32.f32 %v1816
      %v3065 = vcvt.s32.f32 %v1817
      %v3066 = vcvt.s32.f32 %v1818
      %v3067 = vcvt.s32.f32 %v1819
      %v3068 = vcvt.s32.f32 %v1820
      %v3069 = vcvt.s32.f32 %v1821
      %v3070 = vcvt.s32.f32 %v1822
      %v3071 = vcvt.s32.f32 %v1823
      %v3072 = vcvt.s32.f32 %v1824
      %v3073 = vcvt.s32.f32 %v1825
      %v3074 = vcvt.s32.f32 %v1826
      %v3075 = vcvt.s32.f32 %v1827
      %v3076 = vcvt.s32.f32 %v1828
      %v3077 = vcvt.s32.f32 %v1829
      %v3078 = vcvt.s32.f32 %v1830
      %v3079 = vcvt.s32.f32 %v1831
      %v3080 = vcvt.s32.f32 %v1832
      %v3081 = vcvt.s32.f32 %v1833
      %v3082 = vcvt.s32.f32 %v1834
      %v3083 = vcvt.s32.f32 %v1835
      %v3084 = vcvt.s32.f32 %v1836
      %v3085 = vcvt.s32.f32 %v1837
      %v3086 = vcvt.s32.f32 %v1838
      %v3087 = vcvt.s32.f32 %v1839
      %v3088 = vcvt.s32.f32 %v1840
      %v3089 = vcvt.s32.f32 %v1841
      %v3090 = vcvt.s32.f32 %v1842
      %v3091 = vcvt.s32.f32 %v1843
      %v3092 = vcvt.s32.f32 %v1844
      %v3093 = vcvt.s32.f32 %v1845
      %v3094 = vcvt.s32.f32 %v1846
      %v3095 = vcvt.s32.f32 %v1847
      %v3096 = vcvt.s32.f32 %v1848
      %v3097 = vcvt.s32.f32 %v1849
      %v3098 = vcvt.s32.f32 %v1850
      %v3099 = vcvt.s32.f32 %v1851
      %v3100 = vcvt.s32.f32 %v1852
      %v3101 = vcvt.s32.f32 %v1853
      %v3102 = vcvt.s32.f32 %v1854
      %v3103 = vcvt.s32.f32 %v1855
      %v3104 = vcvt.s32.f32 %v1856
      %v3105 = vcvt.s32.f32 %v1857
      %v3106 = vcvt.s32.f32 %v1858
      %v3107 = vcvt.s32.f32 %v1859
      %v3108 = vcvt.s32.f32 %v1860
      %v3109 = vcvt.s32.f32 %v1861
      %v3110 = vcvt.s32.f32 %v1862
      %v3111 = vcvt.s32.f32 %v1863
      %v3112 = vcvt.s32.f32 %v1864
      %v3113 = vcvt.s32.f32 %v1865
      %v3114 = vcvt.s32.f32 %v1866
      %v3115 = vcvt.s32.f32 %v1867
      %v3116 = vcvt.s32.f32 %v1868
      %v3117 = vcvt.s32.f32 %v1869
      %v3118 = vcvt.s32.f32 %v1870
      %v3119 = vcvt.s32.f32 %v1871
      %v3120 = vcvt.s32.f32 %v1872
      %v3121 = vcvt.s32.f32 %v1873
      %v3122 = vcvt.s32.f32 %v1874
      %v3123 = vcvt.s32.f32 %v1875
      %v3124 = vcvt.s32.f32 %v1876
      %v3125 = vcvt.s32.f32 %v1877
      %v3126 = vcvt.s32.f32 %v1878
      %v3127 = vcvt.s32.f32 %v1879
      %v3128 = vcvt.s32.f32 %v1880
      %v3129 = vcvt.s32.f32 %v1881
      %v3130 = vcvt.s32.f32 %v1882
      %v3131 = vpack.c.bf16 %v1884, %v1883
      %v3132 = vpack.c.bf16 %v1886, %v1885
      %v3133 = vpack.c.bf16 %v1888, %v1887
      %v3134 = vpack.c.bf16 %v1890, %v1889
      %v3135 = vpack.c.bf16 %v1892, %v1891
      %v3136 = vpack.c.bf16 %v1894, %v1893
      %v3137 = vpack.c.bf16 %v1896, %v1895
      %v3138 = vpack.c.bf16 %v1898, %v1897
      %v3139 = vpack.c.bf16 %v1900, %v1899
      %v3140 = vpack.c.bf16 %v1902, %v1901
      %v3141 = vpack.c.bf16 %v1904, %v1903
      %v3142 = vpack.c.bf16 %v1906, %v1905
      %v3143 = vpack.c.bf16 %v1908, %v1907
      %v3144 = vpack.c.bf16 %v1910, %v1909
      %v3145 = vpack.c.bf16 %v1912, %v1911
      %v3146 = vpack.c.bf16 %v1914, %v1913
      %v3147 = vpack.c.bf16 %v1916, %v1915
      %v3148 = vpack.c.bf16 %v1918, %v1917
      %v3149 = vpack.c.bf16 %v1920, %v1919
      %v3150 = vpack.c.bf16 %v1922, %v1921
      %v3151 = vpack.c.bf16 %v1924, %v1923
      %v3152 = vpack.c.bf16 %v1926, %v1925
      %v3153 = vpack.c.bf16 %v1928, %v1927
      %v3154 = vpack.c.bf16 %v1930, %v1929
      %v3155 = vpack.c.bf16 %v1932, %v1931
      %v3156 = vpack.c.bf16 %v1934, %v1933
      %v3157 = vpack.c.bf16 %v1936, %v1935
      %v3158 = vpack.c.bf16 %v1938, %v1937
      %v3159 = vpack.c.bf16 %v1940, %v1939
      %v3160 = vpack.c.bf16 %v1942, %v1941
      %v3161 = vpack.c.bf16 %v1944, %v1943
      %v3162 = vpack.c.bf16 %v1946, %v1945
      %v3163 = vpack.c.bf16 %v1948, %v1947
      %v3164 = vpack.c.bf16 %v1950, %v1949
      %v3165 = vpack.c.bf16 %v1952, %v1951
      %v3166 = vpack.c.bf16 %v1954, %v1953
      %v3167 = vpack.c.bf16 %v1956, %v1955
      %v3168 = vpack.c.bf16 %v1958, %v1957
      %v3169 = vpack.c.bf16 %v1960, %v1959
      %v3170 = vpack.c.bf16 %v1962, %v1961
      %v3171 = vpack.c.bf16 %v1964, %v1963
      %v3172 = vpack.c.bf16 %v1966, %v1965
      %v3173 = vpack.c.bf16 %v1968, %v1967
      %v3174 = vpack.c.bf16 %v1970, %v1969
      %v3175 = vpack.c.bf16 %v1972, %v1971
      %v3176 = vpack.c.bf16 %v1974, %v1973
      %v3177 = vpack.c.bf16 %v1976, %v1975
      %v3178 = vpack.c.bf16 %v1978, %v1977
      %v3179 = vpack.c.bf16 %v1980, %v1979
      %v3180 = vpack.c.bf16 %v1982, %v1981
      %v3181 = vpack.c.bf16 %v1984, %v1983
      %v3182 = vpack.c.bf16 %v1986, %v1985
      %v3183 = vpack.c.bf16 %v1988, %v1987
      %v3184 = vpack.c.bf16 %v1990, %v1989
      %v3185 = vpack.c.bf16 %v1992, %v1991
      %v3186 = vpack.c.bf16 %v1994, %v1993
      %v3187 = vpack.c.bf16 %v1996, %v1995
      %v3188 = vpack.c.bf16 %v1998, %v1997
      %v3189 = vpack.c.bf16 %v2000, %v1999
      %v3190 = vpack.c.bf16 %v2002, %v2001
      %v3191 = vpack.c.bf16 %v2004, %v2003
      %v3192 = vpack.c.bf16 %v2006, %v2005
      %v3193 = vpack.c.bf16 %v2008, %v2007
      %v3194 = vpack.c.bf16 %v2010, %v2009
      %v3195 = vpack.c.bf16 %v2012, %v2011
      %v3196 = vpack.c.bf16 %v2014, %v2013
      %v3197 = vpack.c.bf16 %v2016, %v2015
      %v3198 = vpack.c.bf16 %v2018, %v2017
      %v3199 = vpack.c.bf16 %v2020, %v2019
      %v3200 = vpack.c.bf16 %v2022, %v2021
      %v3201 = vpack.c.bf16 %v2024, %v2023
      %v3202 = vpack.c.bf16 %v2026, %v2025
      %v3203 = vpack.c.bf16 %v2028, %v2027
      %v3204 = vpack.c.bf16 %v2030, %v2029
      %v3205 = vpack.c.bf16 %v2032, %v2031
      %v3206 = vpack.c.bf16 %v2034, %v2033
      %v3207 = vpack.c.bf16 %v2036, %v2035
      %v3208 = vpack.c.bf16 %v2038, %v2037
      %v3209 = vpack.c.bf16 %v2040, %v2039
      %v3210 = vpack.c.bf16 %v2042, %v2041
      %v3211 = vpack.c.bf16 %v2044, %v2043
      %v3212 = vpack.c.bf16 %v2046, %v2045
      %v3213 = vpack.c.bf16 %v2048, %v2047
      %v3214 = vpack.c.bf16 %v2050, %v2049
      %v3215 = vpack.c.bf16 %v2052, %v2051
      %v3216 = vpack.c.bf16 %v2054, %v2053
      %v3217 = vpack.c.bf16 %v2056, %v2055
      %v3218 = vpack.c.bf16 %v2058, %v2057
      %v3219 = vpack.c.bf16 %v2060, %v2059
      %v3220 = vpack.c.bf16 %v2062, %v2061
      %v3221 = vpack.c.bf16 %v2064, %v2063
      %v3222 = vpack.c.bf16 %v2066, %v2065
      %v3223 = vpack.c.bf16 %v2068, %v2067
      %v3224 = vpack.c.bf16 %v2070, %v2069
      %v3225 = vpack.c.bf16 %v2072, %v2071
      %v3226 = vpack.c.bf16 %v2074, %v2073
      %v3227 = vpack.c.bf16 %v2076, %v2075
      %v3228 = vpack.c.bf16 %v2078, %v2077
      %v3229 = vpack.c.bf16 %v2080, %v2079
      %v3230 = vpack.c.bf16 %v2082, %v2081
      %v3231 = vpack.c.bf16 %v2084, %v2083
      %v3232 = vpack.c.bf16 %v2086, %v2085
      %v3233 = vpack.c.bf16 %v2088, %v2087
      %v3234 = vpack.c.bf16 %v2090, %v2089
      %v3235 = vpack.c.bf16 %v2092, %v2091
      %v3236 = vpack.c.bf16 %v2094, %v2093
      %v3237 = vpack.c.bf16 %v2096, %v2095
      %v3238 = vpack.c.bf16 %v2098, %v2097
      %v3239 = vpack.c.bf16 %v2100, %v2099
      %v3240 = vpack.c.bf16 %v2102, %v2101
      %v3241 = vpack.c.bf16 %v2104, %v2103
      %v3242 = vpack.c.bf16 %v2106, %v2105
      %v3243 = vpack.c.bf16 %v2108, %v2107
      %v3244 = vpack.c.bf16 %v2110, %v2109
      %v3245 = vpack.c.bf16 %v2112, %v2111
      %v3246 = vpack.c.bf16 %v2114, %v2113
      %v3247 = vpack.c.bf16 %v2116, %v2115
      %v3248 = vpack.c.bf16 %v2118, %v2117
      %v3249 = vpack.c.bf16 %v2120, %v2119
      %v3250 = vpack.c.bf16 %v2122, %v2121
      %v3251 = vpack.c.bf16 %v2124, %v2123
      %v3252 = vpack.c.bf16 %v2126, %v2125
      %v3253 = vpack.c.bf16 %v2128, %v2127
      %v3254 = vpack.c.bf16 %v2130, %v2129
      %v3255 = vpack.c.bf16 %v2132, %v2131
      %v3256 = vpack.c.bf16 %v2134, %v2133
      %v3257 = vpack.c.bf16 %v2136, %v2135
      %v3258 = vpack.c.bf16 %v2138, %v2137
      %v3259 = vpack.c.bf16 %v2140, %v2139
      %v3260 = vpack.c.bf16 %v2142, %v2141
      %v3261 = vpack.c.bf16 %v2144, %v2143
      %v3262 = vpack.c.bf16 %v2146, %v2145
      %v3263 = vpack.c.bf16 %v2148, %v2147
      %v3264 = vpack.c.bf16 %v2150, %v2149
      %v3265 = vpack.c.bf16 %v2152, %v2151
      %v3266 = vpack.c.bf16 %v2154, %v2153
      %v3267 = vpack.c.bf16 %v2156, %v2155
      %v3268 = vpack.c.bf16 %v2158, %v2157
      %v3269 = vpack.c.bf16 %v2160, %v2159
      %v3270 = vpack.c.bf16 %v2162, %v2161
      %v3271 = vpack.c.bf16 %v2164, %v2163
      %v3272 = vpack.c.bf16 %v2166, %v2165
      %v3273 = vpack.c.bf16 %v2168, %v2167
      %v3274 = vpack.c.bf16 %v2170, %v2169
      %v3275 = vpack.c.bf16 %v2172, %v2171
      %v3276 = vpack.c.bf16 %v2174, %v2173
      %v3277 = vpack.c.bf16 %v2176, %v2175
      %v3278 = vpack.c.bf16 %v2178, %v2177
      %v3279 = vpack.c.bf16 %v2180, %v2179
      %v3280 = vpack.c.bf16 %v2182, %v2181
      %v3281 = vpack.c.bf16 %v2184, %v2183
      %v3282 = vpack.c.bf16 %v2186, %v2185
      %v3283 = vpack.c.bf16 %v2188, %v2187
      %v3284 = vpack.c.bf16 %v2190, %v2189
      %v3285 = vpack.c.bf16 %v2192, %v2191
      %v3286 = vpack.c.bf16 %v2194, %v2193
      %v3287 = vpack.c.bf16 %v2196, %v2195
      %v3288 = vpack.c.bf16 %v2198, %v2197
      %v3289 = vpack.c.bf16 %v2200, %v2199
      %v3290 = vpack.c.bf16 %v2202, %v2201
      %v3291 = vpack.c.bf16 %v2204, %v2203
      %v3292 = vpack.c.bf16 %v2206, %v2205
      %v3293 = vpack.c.bf16 %v2208, %v2207
      %v3294 = vpack.c.bf16 %v2210, %v2209
      %v3295 = vpack.c.bf16 %v2212, %v2211
      %v3296 = vpack.c.bf16 %v2214, %v2213
      %v3297 = vpack.c.bf16 %v2216, %v2215
      %v3298 = vpack.c.bf16 %v2218, %v2217
      %v3299 = vpack.c.bf16 %v2220, %v2219
      %v3300 = vpack.c.bf16 %v2222, %v2221
      %v3301 = vpack.c.bf16 %v2224, %v2223
      %v3302 = vpack.c.bf16 %v2226, %v2225
      %v3303 = vpack.c.bf16 %v2228, %v2227
      %v3304 = vpack.c.bf16 %v2230, %v2229
      %v3305 = vpack.c.bf16 %v2232, %v2231
      %v3306 = vpack.c.bf16 %v2234, %v2233
      %v3307 = vpack.c.bf16 %v2236, %v2235
      %v3308 = vpack.c.bf16 %v2238, %v2237
      %v3309 = vpack.c.bf16 %v2240, %v2239
      %v3310 = vpack.c.bf16 %v2242, %v2241
      %v3311 = vpack.c.bf16 %v2244, %v2243
      %v3312 = vpack.c.bf16 %v2246, %v2245
      %v3313 = vpack.c.bf16 %v2248, %v2247
      %v3314 = vpack.c.bf16 %v2250, %v2249
      %v3315 = vpack.c.bf16 %v2252, %v2251
      %v3316 = vpack.c.bf16 %v2254, %v2253
      %v3317 = vpack.c.bf16 %v2256, %v2255
      %v3318 = vpack.c.bf16 %v2258, %v2257
      %v3319 = vpack.c.bf16 %v2260, %v2259
      %v3320 = vpack.c.bf16 %v2262, %v2261
      %v3321 = vpack.c.bf16 %v2264, %v2263
      %v3322 = vpack.c.bf16 %v2266, %v2265
      %v3323 = vpack.c.bf16 %v2268, %v2267
      %v3324 = vpack.c.bf16 %v2270, %v2269
      %v3325 = vpack.c.bf16 %v2272, %v2271
      %v3326 = vpack.c.bf16 %v2274, %v2273
      %v3327 = vpack.c.bf16 %v2276, %v2275
      %v3328 = vpack.c.bf16 %v2278, %v2277
      %v3329 = vpack.c.bf16 %v2280, %v2279
      %v3330 = vpack.c.bf16 %v2282, %v2281
      %v3331 = vpack.c.bf16 %v2284, %v2283
      %v3332 = vpack.c.bf16 %v2286, %v2285
      %v3333 = vpack.c.bf16 %v2288, %v2287
      %v3334 = vpack.c.bf16 %v2290, %v2289
      %v3335 = vpack.c.bf16 %v2292, %v2291
      %v3336 = vpack.c.bf16 %v2294, %v2293
      %v3337 = vpack.c.bf16 %v2296, %v2295
      %v3338 = vpack.c.bf16 %v2298, %v2297
      %v3339 = vpack.c.bf16 %v2300, %v2299
      %v3340 = vpack.c.bf16 %v2302, %v2301
      %v3341 = vpack.c.bf16 %v2304, %v2303
      %v3342 = vpack.c.bf16 %v2306, %v2305
      %v3343 = vpack.c.bf16 %v2308, %v2307
      %v3344 = vpack.c.bf16 %v2310, %v2309
      %v3345 = vpack.c.bf16 %v2312, %v2311
      %v3346 = vpack.c.bf16 %v2314, %v2313
      %v3347 = vpack.c.bf16 %v2316, %v2315
      %v3348 = vpack.c.bf16 %v2318, %v2317
      %v3349 = vpack.c.bf16 %v2320, %v2319
      %v3350 = vpack.c.bf16 %v2322, %v2321
      %v3351 = vpack.c.bf16 %v2324, %v2323
      %v3352 = vpack.c.bf16 %v2326, %v2325
      %v3353 = vpack.c.bf16 %v2328, %v2327
      %v3354 = vpack.c.bf16 %v2330, %v2329
      %v3355 = vpack.c.bf16 %v2332, %v2331
      %v3356 = vpack.c.bf16 %v2334, %v2333
      %v3357 = vpack.c.bf16 %v2336, %v2335
      %v3358 = vpack.c.bf16 %v2338, %v2337
      %v3359 = vpack.c.bf16 %v2340, %v2339
      %v3360 = vpack.c.bf16 %v2342, %v2341
      %v3361 = vpack.c.bf16 %v2344, %v2343
      %v3362 = vpack.c.bf16 %v2346, %v2345
      %v3363 = vpack.c.bf16 %v2348, %v2347
      %v3364 = vpack.c.bf16 %v2350, %v2349
      %v3365 = vpack.c.bf16 %v2352, %v2351
      %v3366 = vpack.c.bf16 %v2354, %v2353
      %v3367 = vpack.c.bf16 %v2356, %v2355
      %v3368 = vpack.c.bf16 %v2358, %v2357
      %v3369 = vpack.c.bf16 %v2360, %v2359
      %v3370 = vpack.c.bf16 %v2362, %v2361
      %v3371 = vpack.c.bf16 %v2364, %v2363
      %v3372 = vpack.c.bf16 %v2366, %v2365
      %v3373 = vpack.c.bf16 %v2368, %v2367
      %v3374 = vpack.c.bf16 %v2370, %v2369
      %v3375 = vpack.c.bf16 %v2372, %v2371
      %v3376 = vpack.c.bf16 %v2374, %v2373
      %v3377 = vpack.c.bf16 %v2376, %v2375
      %v3378 = vpack.c.bf16 %v2378, %v2377
      %v3379 = vpack.c.bf16 %v2380, %v2379
      %v3380 = vpack.c.bf16 %v2382, %v2381
      %v3381 = vpack.c.bf16 %v2384, %v2383
      %v3382 = vpack.c.bf16 %v2386, %v2385
      %v3383 = vpack.c.bf16 %v2388, %v2387
      %v3384 = vpack.c.bf16 %v2390, %v2389
      %v3385 = vpack.c.bf16 %v2392, %v2391
      %v3386 = vpack.c.bf16 %v2394, %v2393
      %v3387 = vpack.c.bf16 %v2396, %v2395
      %v3388 = vpack.c.bf16 %v2398, %v2397
      %v3389 = vpack.c.bf16 %v2400, %v2399
      %v3390 = vpack.c.bf16 %v2402, %v2401
      %v3391 = vpack.c.bf16 %v2404, %v2403
      %v3392 = vpack.c.bf16 %v2406, %v2405
      %v3393 = vpack.c.bf16 %v2408, %v2407
      %v3394 = vpack.c.bf16 %v2410, %v2409
      %v3395 = vpack.c.bf16 %v2412, %v2411
      %v3396 = vpack.c.bf16 %v2414, %v2413
      %v3397 = vpack.c.bf16 %v2416, %v2415
      %v3398 = vpack.c.bf16 %v2418, %v2417
      %v3399 = vpack.c.bf16 %v2420, %v2419
      %v3400 = vpack.c.bf16 %v2422, %v2421
      %v3401 = vpack.c.bf16 %v2424, %v2423
      %v3402 = vpack.c.bf16 %v2426, %v2425
      %v3403 = vpack.c.bf16 %v2428, %v2427
      %v3404 = vpack.c.bf16 %v2430, %v2429
      %v3405 = vpack.c.bf16 %v2432, %v2431
      %v3406 = vpack.c.bf16 %v2434, %v2433
      %v3407 = vpack.c.bf16 %v2436, %v2435
      %v3408 = vpack.c.bf16 %v2438, %v2437
      %v3409 = vpack.c.bf16 %v2440, %v2439
      %v3410 = vpack.c.bf16 %v2442, %v2441
      %v3411 = vpack.c.bf16 %v2444, %v2443
      %v3412 = vpack.c.bf16 %v2446, %v2445
      %v3413 = vpack.c.bf16 %v2448, %v2447
      %v3414 = vpack.c.bf16 %v2450, %v2449
      %v3415 = vpack.c.bf16 %v2452, %v2451
      %v3416 = vpack.c.bf16 %v2454, %v2453
      %v3417 = vpack.c.bf16 %v2456, %v2455
      %v3418 = vpack.c.bf16 %v2458, %v2457
      %v3419 = vpack.c.bf16 %v2460, %v2459
      %v3420 = vpack.c.bf16 %v2462, %v2461
      %v3421 = vpack.c.bf16 %v2464, %v2463
      %v3422 = vpack.c.bf16 %v2466, %v2465
      %v3423 = vpack.c.bf16 %v2468, %v2467
      %v3424 = vpack.c.bf16 %v2470, %v2469
      %v3425 = vpack.c.bf16 %v2472, %v2471
      %v3426 = vpack.c.bf16 %v2474, %v2473
      %v3427 = vpack.c.bf16 %v2476, %v2475
      %v3428 = vpack.c.bf16 %v2478, %v2477
      %v3429 = vpack.c.bf16 %v2480, %v2479
      %v3430 = vpack.c.bf16 %v2482, %v2481
      %v3431 = vpack.c.bf16 %v2484, %v2483
      %v3432 = vpack.c.bf16 %v2486, %v2485
      %v3433 = vpack.c.bf16 %v2488, %v2487
      %v3434 = vpack.c.bf16 %v2490, %v2489
      %v3435 = vpack.c.bf16 %v2492, %v2491
      %v3436 = vpack.c.bf16 %v2494, %v2493
      %v3437 = vpack.c.bf16 %v2496, %v2495
      %v3438 = vpack.c.bf16 %v2498, %v2497
      %v3439 = vpack.c.bf16 %v2500, %v2499
      %v3440 = vpack.c.bf16 %v2502, %v2501
      %v3441 = vpack.c.bf16 %v2504, %v2503
      %v3442 = vpack.c.bf16 %v2506, %v2505
      %v3443 = vpack.c.bf16 %v2508, %v2507
      %v3444 = vpack.c.bf16 %v2510, %v2509
      %v3445 = vpack.c.bf16 %v2512, %v2511
      %v3446 = vpack.c.bf16 %v2514, %v2513
      %v3447 = vpack.c.bf16 %v2516, %v2515
      %v3448 = vpack.c.bf16 %v2518, %v2517
      %v3449 = vpack.c.bf16 %v2520, %v2519
      %v3450 = vpack.c.bf16 %v2522, %v2521
      %v3451 = vpack.c.bf16 %v2524, %v2523
      %v3452 = vpack.c.bf16 %v2526, %v2525
      %v3453 = vpack.c.bf16 %v2528, %v2527
      %v3454 = vpack.c.bf16 %v2530, %v2529
      %v3455 = vpack.c.bf16 %v2532, %v2531
      %v3456 = vpack.c.bf16 %v2534, %v2533
      %v3457 = vpack.c.bf16 %v2536, %v2535
      %v3458 = vpack.c.bf16 %v2538, %v2537
      %v3459 = vpack.c.bf16 %v2540, %v2539
      %v3460 = vpack.c.bf16 %v2542, %v2541
      %v3461 = vpack.c.bf16 %v2544, %v2543
      %v3462 = vpack.c.bf16 %v2546, %v2545
      %v3463 = vpack.c.bf16 %v2548, %v2547
      %v3464 = vpack.c.bf16 %v2550, %v2549
      %v3465 = vpack.c.bf16 %v2552, %v2551
      %v3466 = vpack.c.bf16 %v2554, %v2553
      %v3467 = vpack.c.bf16 %v2556, %v2555
      %v3468 = vpack.c.bf16 %v2558, %v2557
      %v3469 = vpack.c.bf16 %v2560, %v2559
      %v3470 = vpack.c.bf16 %v2562, %v2561
      %v3471 = vpack.c.bf16 %v2564, %v2563
      %v3472 = vpack.c.bf16 %v2566, %v2565
      %v3473 = vpack.c.bf16 %v2568, %v2567
      %v3474 = vpack.c.bf16 %v2570, %v2569
      %v3475 = vpack.c.bf16 %v2572, %v2571
      %v3476 = vpack.c.bf16 %v2574, %v2573
      %v3477 = vpack.c.bf16 %v2576, %v2575
      %v3478 = vpack.c.bf16 %v2578, %v2577
      %v3479 = vpack.c.bf16 %v2580, %v2579
      %v3480 = vpack.c.bf16 %v2582, %v2581
      %v3481 = vpack.c.bf16 %v2584, %v2583
      %v3482 = vpack.c.bf16 %v2586, %v2585
      %v3483 = vpack.c.bf16 %v2588, %v2587
      %v3484 = vpack.c.bf16 %v2590, %v2589
      %v3485 = vpack.c.bf16 %v2592, %v2591
      %v3486 = vpack.c.bf16 %v2594, %v2593
      %v3487 = vpack.c.bf16 %v2596, %v2595
      %v3488 = vpack.c.bf16 %v2598, %v2597
      %v3489 = vpack.c.bf16 %v2600, %v2599
      %v3490 = vpack.c.bf16 %v2602, %v2601
      %v3491 = vpack.c.bf16 %v2604, %v2603
      %v3492 = vpack.c.bf16 %v2606, %v2605
      %v3493 = vpack.c.bf16 %v2608, %v2607
      %v3494 = vpack.c.bf16 %v2610, %v2609
      %v3495 = vpack.c.bf16 %v2612, %v2611
      %v3496 = vpack.c.bf16 %v2614, %v2613
      %v3497 = vpack.c.bf16 %v2616, %v2615
      %v3498 = vpack.c.bf16 %v2618, %v2617
      %v3499 = vpack.c.bf16 %v2620, %v2619
      %v3500 = vpack.c.bf16 %v2622, %v2621
      %v3501 = vpack.c.bf16 %v2624, %v2623
      %v3502 = vpack.c.bf16 %v2626, %v2625
      %v3503 = vpack.c.bf16 %v2628, %v2627
      %v3504 = vpack.c.bf16 %v2630, %v2629
      %v3505 = vpack.c.bf16 %v2632, %v2631
      %v3506 = vpack.c.bf16 %v2634, %v2633
      %v3507 = vpack.c.bf16 %v2636, %v2635
      %v3508 = vpack.c.bf16 %v2638, %v2637
      %v3509 = vpack.c.bf16 %v2640, %v2639
      %v3510 = vpack.c.bf16 %v2642, %v2641
      %v3511 = vpack.c.bf16 %v2644, %v2643
      %v3512 = vpack.c.bf16 %v2646, %v2645
      %v3513 = vpack.c.bf16 %v2648, %v2647
      %v3514 = vpack.c.bf16 %v2650, %v2649
      %v3515 = vpack.c.bf16 %v2652, %v2651
      %v3516 = vpack.c.bf16 %v2654, %v2653
      %v3517 = vpack.c.bf16 %v2656, %v2655
      %v3518 = vpack.c.bf16 %v2658, %v2657
      %v3519 = vpack.c.bf16 %v2660, %v2659
      %v3520 = vpack.c.bf16 %v2662, %v2661
      %v3521 = vpack.c.bf16 %v2664, %v2663
      %v3522 = vpack.c.bf16 %v2666, %v2665
      %v3523 = vpack.c.bf16 %v2668, %v2667
      %v3524 = vpack.c.bf16 %v2670, %v2669
      %v3525 = vpack.c.bf16 %v2672, %v2671
      %v3526 = vpack.c.bf16 %v2674, %v2673
      %v3527 = vpack.c.bf16 %v2676, %v2675
      %v3528 = vpack.c.bf16 %v2678, %v2677
      %v3529 = vpack.c.bf16 %v2680, %v2679
      %v3530 = vpack.c.bf16 %v2682, %v2681
      %v3531 = vpack.c.bf16 %v2684, %v2683
      %v3532 = vpack.c.bf16 %v2686, %v2685
      %v3533 = vpack.c.bf16 %v2688, %v2687
      %v3534 = vpack.c.bf16 %v2690, %v2689
      %v3535 = vpack.c.bf16 %v2692, %v2691
      %v3536 = vpack.c.bf16 %v2694, %v2693
      %v3537 = vpack.c.bf16 %v2696, %v2695
      %v3538 = vpack.c.bf16 %v2698, %v2697
      %v3539 = vpack.c.bf16 %v2700, %v2699
      %v3540 = vpack.c.bf16 %v2702, %v2701
      %v3541 = vpack.c.bf16 %v2704, %v2703
      %v3542 = vpack.c.bf16 %v2706, %v2705
      %v3543 = vpack.c.bf16 %v2708, %v2707
      %v3544 = vpack.c.bf16 %v2710, %v2709
      %v3545 = vpack.c.bf16 %v2712, %v2711
      %v3546 = vpack.c.bf16 %v2714, %v2713
      %v3547 = vpack.c.bf16 %v2716, %v2715
      %v3548 = vpack.c.bf16 %v2718, %v2717
      %v3549 = vpack.c.bf16 %v2720, %v2719
      %v3550 = vpack.c.bf16 %v2722, %v2721
      %v3551 = vpack.c.bf16 %v2724, %v2723
      %v3552 = vpack.c.bf16 %v2726, %v2725
      %v3553 = vpack.c.bf16 %v2728, %v2727
      %v3554 = vpack.c.bf16 %v2730, %v2729
      %v3555 = vpack.c.bf16 %v2732, %v2731
      %v3556 = vpack.c.bf16 %v2734, %v2733
      %v3557 = vpack.c.bf16 %v2736, %v2735
      %v3558 = vpack.c.bf16 %v2738, %v2737
      %v3559 = vpack.c.bf16 %v2740, %v2739
      %v3560 = vpack.c.bf16 %v2742, %v2741
      %v3561 = vpack.c.bf16 %v2744, %v2743
      %v3562 = vpack.c.bf16 %v2746, %v2745
      %v3563 = vpack.c.bf16 %v2748, %v2747
      %v3564 = vpack.c.bf16 %v2750, %v2749
      %v3565 = vpack.c.bf16 %v2752, %v2751
      %v3566 = vpack.c.bf16 %v2754, %v2753
      %v3567 = vpack.c.bf16 %v2756, %v2755
      %v3568 = vpack.c.bf16 %v2758, %v2757
      %v3569 = vpack.c.bf16 %v2760, %v2759
      %v3570 = vpack.c.bf16 %v2762, %v2761
      %v3571 = vpack.c.bf16 %v2764, %v2763
      %v3572 = vpack.c.bf16 %v2766, %v2765
      %v3573 = vpack.c.bf16 %v2768, %v2767
      %v3574 = vpack.c.bf16 %v2770, %v2769
      %v3575 = vpack.c.bf16 %v2772, %v2771
      %v3576 = vpack.c.bf16 %v2774, %v2773
      %v3577 = vpack.c.bf16 %v2776, %v2775
      %v3578 = vpack.c.bf16 %v2778, %v2777
      %v3579 = vpack.c.bf16 %v2780, %v2779
      %v3580 = vpack.c.bf16 %v2782, %v2781
      %v3581 = vpack.c.bf16 %v2784, %v2783
      %v3582 = vpack.c.bf16 %v2786, %v2785
      %v3583 = vpack.c.bf16 %v2788, %v2787
      %v3584 = vpack.c.bf16 %v2790, %v2789
      %v3585 = vpack.c.bf16 %v2792, %v2791
      %v3586 = vpack.c.bf16 %v2794, %v2793
      %v3587 = vpack.c.bf16 %v2796, %v2795
      %v3588 = vpack.c.bf16 %v2798, %v2797
      %v3589 = vpack.c.bf16 %v2800, %v2799
      %v3590 = vpack.c.bf16 %v2802, %v2801
      %v3591 = vpack.c.bf16 %v2804, %v2803
      %v3592 = vpack.c.bf16 %v2806, %v2805
      %v3593 = vpack.c.bf16 %v2808, %v2807
      %v3594 = vpack.c.bf16 %v2810, %v2809
      %v3595 = vpack.c.bf16 %v2812, %v2811
      %v3596 = vpack.c.bf16 %v2814, %v2813
      %v3597 = vpack.c.bf16 %v2816, %v2815
      %v3598 = vpack.c.bf16 %v2818, %v2817
      %v3599 = vpack.c.bf16 %v2820, %v2819
      %v3600 = vpack.c.bf16 %v2822, %v2821
      %v3601 = vpack.c.bf16 %v2824, %v2823
      %v3602 = vpack.c.bf16 %v2826, %v2825
      %v3603 = vpack.c.bf16 %v2828, %v2827
      %v3604 = vpack.c.bf16 %v2830, %v2829
      %v3605 = vpack.c.bf16 %v2832, %v2831
      %v3606 = vpack.c.bf16 %v2834, %v2833
      %v3607 = vpack.c.bf16 %v2836, %v2835
      %v3608 = vpack.c.bf16 %v2838, %v2837
      %v3609 = vpack.c.bf16 %v2840, %v2839
      %v3610 = vpack.c.bf16 %v2842, %v2841
      %v3611 = vpack.c.bf16 %v2844, %v2843
      %v3612 = vpack.c.bf16 %v2846, %v2845
      %v3613 = vpack.c.bf16 %v2848, %v2847
      %v3614 = vpack.c.bf16 %v2850, %v2849
      %v3615 = vpack.c.bf16 %v2852, %v2851
      %v3616 = vpack.c.bf16 %v2854, %v2853
      %v3617 = vpack.c.bf16 %v2856, %v2855
      %v3618 = vpack.c.bf16 %v2858, %v2857
      %v3619 = vpack.c.bf16 %v2860, %v2859
      %v3620 = vpack.c.bf16 %v2862, %v2861
      %v3621 = vpack.c.bf16 %v2864, %v2863
      %v3622 = vpack.c.bf16 %v2866, %v2865
      %v3623 = vpack.c.bf16 %v2868, %v2867
      %v3624 = vpack.c.bf16 %v2870, %v2869
      %v3625 = vpack.c.bf16 %v2872, %v2871
      %v3626 = vpack.c.bf16 %v2874, %v2873
      %v3627 = vpack.c.bf16 %v2876, %v2875
      %v3628 = vpack.c.bf16 %v2878, %v2877
      %v3629 = vpack.c.bf16 %v2880, %v2879
      %v3630 = vpack.c.bf16 %v2882, %v2881
      %v3631 = vpack.c.bf16 %v2884, %v2883
      %v3632 = vpack.c.bf16 %v2886, %v2885
      %v3633 = vpack.c.bf16 %v2888, %v2887
      %v3634 = vpack.c.bf16 %v2890, %v2889
      %v3635 = vpack.c.bf16 %v2892, %v2891
      %v3636 = vpack.c.bf16 %v2894, %v2893
      %v3637 = vpack.c.bf16 %v2896, %v2895
      %v3638 = vpack.c.bf16 %v2898, %v2897
      %v3639 = vpack.c.bf16 %v2900, %v2899
      %v3640 = vpack.c.bf16 %v2902, %v2901
      %v3641 = vpack.c.bf16 %v2904, %v2903
      %v3642 = vpack.c.bf16 %v2906, %v2905
      %v3643 = vpack.c.bf16 %v2908, %v2907
      %v3644 = vpack.c.bf16 %v2910, %v2909
      %v3645 = vpack.c.bf16 %v2912, %v2911
      %v3646 = vpack.c.bf16 %v2914, %v2913
      %v3647 = vpack.c.bf16 %v2916, %v2915
      %v3648 = vpack.c.bf16 %v2918, %v2917
      %v3649 = vpack.c.bf16 %v2920, %v2919
      %v3650 = vpack.c.bf16 %v2922, %v2921
      %v3651 = vpack.c.bf16 %v2924, %v2923
      %v3652 = vpack.c.bf16 %v2926, %v2925
      %v3653 = vpack.c.bf16 %v2928, %v2927
      %v3654 = vpack.c.bf16 %v2930, %v2929
      %v3655 = vpack.c.bf16 %v2932, %v2931
      %v3656 = vpack.c.bf16 %v2934, %v2933
      %v3657 = vpack.c.bf16 %v2936, %v2935
      %v3658 = vpack.c.bf16 %v2938, %v2937
      %v3659 = vpack.c.bf16 %v2940, %v2939
      %v3660 = vpack.c.bf16 %v2942, %v2941
      %v3661 = vpack.c.bf16 %v2944, %v2943
      %v3662 = vpack.c.bf16 %v2946, %v2945
      %v3663 = vpack.c.bf16 %v2948, %v2947
      %v3664 = vpack.c.bf16 %v2950, %v2949
      %v3665 = vpack.c.bf16 %v2952, %v2951
      %v3666 = vpack.c.bf16 %v2954, %v2953
      %v3667 = vpack.c.bf16 %v2956, %v2955
      %v3668 = vpack.c.bf16 %v2958, %v2957
      %v3669 = vpack.c.bf16 %v2960, %v2959
      %v3670 = vpack.c.bf16 %v2962, %v2961
      %v3671 = vpack.c.bf16 %v2964, %v2963
      %v3672 = vpack.c.bf16 %v2966, %v2965
      %v3673 = vpack.c.bf16 %v2968, %v2967
      %v3674 = vpack.c.bf16 %v2970, %v2969
      %v3675 = vpack.c.bf16 %v2972, %v2971
      %v3676 = vpack.c.bf16 %v2974, %v2973
      %v3677 = vpack.c.bf16 %v2976, %v2975
      %v3678 = vpack.c.bf16 %v2978, %v2977
      %v3679 = vpack.c.bf16 %v2980, %v2979
      %v3680 = vpack.c.bf16 %v2982, %v2981
      %v3681 = vpack.c.bf16 %v2984, %v2983
      %v3682 = vpack.c.bf16 %v2986, %v2985
      %v3683 = vpack.c.bf16 %v2988, %v2987
      %v3684 = vpack.c.bf16 %v2990, %v2989
      %v3685 = vpack.c.bf16 %v2992, %v2991
      %v3686 = vpack.c.bf16 %v2994, %v2993
      %v3687 = vpack.c.bf16 %v2996, %v2995
      %v3688 = vpack.c.bf16 %v2998, %v2997
      %v3689 = vpack.c.bf16 %v3000, %v2999
      %v3690 = vpack.c.bf16 %v3002, %v3001
      %v3691 = vpack.c.bf16 %v3004, %v3003
      %v3692 = vpack.c.bf16 %v3006, %v3005
      %v3693 = vpack.c.bf16 %v3008, %v3007
      %v3694 = vpack.c.bf16 %v3010, %v3009
      %v3695 = vpack.c.bf16 %v3012, %v3011
      %v3696 = vpack.c.bf16 %v3014, %v3013
      %v3697 = vpack.c.bf16 %v3016, %v3015
      %v3698 = vpack.c.bf16 %v3018, %v3017
      %v3699 = vpack.c.bf16 %v3020, %v3019
      %v3700 = vpack.c.bf16 %v3022, %v3021
      %v3701 = vpack.c.bf16 %v3024, %v3023
      %v3702 = vpack.c.bf16 %v3026, %v3025
      %v3703 = vpack.c.bf16 %v3028, %v3027
      %v3704 = vpack.c.bf16 %v3030, %v3029
      %v3705 = vpack.c.bf16 %v3032, %v3031
      %v3706 = vpack.c.bf16 %v3034, %v3033
      %v3707 = vpack.c.bf16 %v3036, %v3035
      %v3708 = vpack.c.bf16 %v3038, %v3037
      %v3709 = vpack.c.bf16 %v3040, %v3039
      %v3710 = vpack.c.bf16 %v3042, %v3041
      %v3711 = vpack.c.bf16 %v3044, %v3043
      %v3712 = vpack.c.bf16 %v3046, %v3045
      %v3713 = vpack.c.bf16 %v3048, %v3047
      %v3714 = vpack.c.bf16 %v3050, %v3049
      %v3715 = vpack.c.bf16 %v3052, %v3051
      %v3716 = vpack.c.bf16 %v3054, %v3053
      %v3717 = vpack.c.bf16 %v3056, %v3055
      %v3718 = vpack.c.bf16 %v3058, %v3057
      %v3719 = vpack.c.bf16 %v3060, %v3059
      %v3720 = vpack.c.bf16 %v3062, %v3061
      %v3721 = vpack.c.bf16 %v3064, %v3063
      %v3722 = vpack.c.bf16 %v3066, %v3065
      %v3723 = vpack.c.bf16 %v3068, %v3067
      %v3724 = vpack.c.bf16 %v3070, %v3069
      %v3725 = vpack.c.bf16 %v3072, %v3071
      %v3726 = vpack.c.bf16 %v3074, %v3073
      %v3727 = vpack.c.bf16 %v3076, %v3075
      %v3728 = vpack.c.bf16 %v3078, %v3077
      %v3729 = vpack.c.bf16 %v3080, %v3079
      %v3730 = vpack.c.bf16 %v3082, %v3081
      %v3731 = vpack.c.bf16 %v3084, %v3083
      %v3732 = vpack.c.bf16 %v3086, %v3085
      %v3733 = vpack.c.bf16 %v3088, %v3087
      %v3734 = vpack.c.bf16 %v3090, %v3089
      %v3735 = vpack.c.bf16 %v3092, %v3091
      %v3736 = vpack.c.bf16 %v3094, %v3093
      %v3737 = vpack.c.bf16 %v3096, %v3095
      %v3738 = vpack.c.bf16 %v3098, %v3097
      %v3739 = vpack.c.bf16 %v3100, %v3099
      %v3740 = vpack.c.bf16 %v3102, %v3101
      %v3741 = vpack.c.bf16 %v3104, %v3103
      %v3742 = vpack.c.bf16 %v3106, %v3105
      %v3743 = vpack.c.bf16 %v3108, %v3107
      %v3744 = vpack.c.bf16 %v3110, %v3109
      %v3745 = vpack.c.bf16 %v3112, %v3111
      %v3746 = vpack.c.bf16 %v3114, %v3113
      %v3747 = vpack.c.bf16 %v3116, %v3115
      %v3748 = vpack.c.bf16 %v3118, %v3117
      %v3749 = vpack.c.bf16 %v3120, %v3119
      %v3750 = vpack.c.bf16 %v3122, %v3121
      %v3751 = vpack.c.bf16 %v3124, %v3123
      %v3752 = vpack.c.bf16 %v3126, %v3125
      %v3753 = vpack.c.bf16 %v3128, %v3127
      %v3754 = vpack.c.bf16 %v3130, %v3129
      %v3755 = vld [vmem:[#allocation2] sm:$0x3]
      %v3756 = vld [vmem:[%s291] sm:$0xff]
      %v3757 = vld [vmem:[%s291 + $0x8] sm:$0xff]
      %v3758 = vld [vmem:[%s291 + $0x10] sm:$0xff]
      %v3759 = vld [vmem:[%s291 + $0x18] sm:$0xff]
      %v3760 = vld [vmem:[%s291 + $0x20] sm:$0xff]
      %v3761 = vld [vmem:[%s291 + $0x28] sm:$0xff]
      %v3762 = vld [vmem:[%s291 + $0x30] sm:$0xff]
      %v3763 = vld [vmem:[%s291 + $0x38] sm:$0xff]
      %v3764 = vld [vmem:[%s291 + $0x40] sm:$0xff]
      %v3765 = vld [vmem:[%s291 + $0x48] sm:$0x3f]
      %3767 = vst [vmem:[#allocation1] ss:$9 sm:$0xff] %v3756
      %v3768 = vld [vmem:[#allocation1] sm:$0xff]
      %v3769 = vld [vmem:[#allocation1 + $0x9] sm:$0xff]
      %v3770 = vld [vmem:[#allocation1 + $0x12] sm:$0xff]
      %v3771 = vld [vmem:[#allocation1 + $0x1b] sm:$0xff]
      %v3772 = vld [vmem:[#allocation1 + $0x24] sm:$0xff]
      %v3773 = vld [vmem:[#allocation1 + $0x2d] sm:$0xff]
      %v3774 = vld [vmem:[#allocation1 + $0x36] sm:$0xff]
      %v3775 = vld [vmem:[#allocation1 + $0x3f] sm:$0xff]
      %3777 = vst [vmem:[#allocation1] ss:$9 sm:$0xff] %v3757
      %v3778 = vld [vmem:[#allocation1] sm:$0xff]
      %v3779 = vld [vmem:[#allocation1 + $0x9] sm:$0xff]
      %v3780 = vld [vmem:[#allocation1 + $0x12] sm:$0xff]
      %v3781 = vld [vmem:[#allocation1 + $0x1b] sm:$0xff]
      %v3782 = vld [vmem:[#allocation1 + $0x24] sm:$0xff]
      %v3783 = vld [vmem:[#allocation1 + $0x2d] sm:$0xff]
      %v3784 = vld [vmem:[#allocation1 + $0x36] sm:$0xff]
      %v3785 = vld [vmem:[#allocation1 + $0x3f] sm:$0xff]
      %3787 = vst [vmem:[#allocation1] ss:$9 sm:$0xff] %v3758
      %v3788 = vld [vmem:[#allocation1] sm:$0xff]
      %v3789 = vld [vmem:[#allocation1 + $0x9] sm:$0xff]
      %v3790 = vld [vmem:[#allocation1 + $0x12] sm:$0xff]
      %v3791 = vld [vmem:[#allocation1 + $0x1b] sm:$0xff]
      %v3792 = vld [vmem:[#allocation1 + $0x24] sm:$0xff]
      %v3793 = vld [vmem:[#allocation1 + $0x2d] sm:$0xff]
      %v3794 = vld [vmem:[#allocation1 + $0x36] sm:$0xff]
      %v3795 = vld [vmem:[#allocation1 + $0x3f] sm:$0xff]
      %3797 = vst [vmem:[#allocation1] ss:$9 sm:$0xff] %v3759
      %v3798 = vld [vmem:[#allocation1] sm:$0xff]
      %v3799 = vld [vmem:[#allocation1 + $0x9] sm:$0xff]
      %v3800 = vld [vmem:[#allocation1 + $0x12] sm:$0xff]
      %v3801 = vld [vmem:[#allocation1 + $0x1b] sm:$0xff]
      %v3802 = vld [vmem:[#allocation1 + $0x24] sm:$0xff]
      %v3803 = vld [vmem:[#allocation1 + $0x2d] sm:$0xff]
      %v3804 = vld [vmem:[#allocation1 + $0x36] sm:$0xff]
      %v3805 = vld [vmem:[#allocation1 + $0x3f] sm:$0xff]
      %3807 = vst [vmem:[#allocation1] ss:$9 sm:$0xff] %v3760
      %v3808 = vld [vmem:[#allocation1] sm:$0xff]
      %v3809 = vld [vmem:[#allocation1 + $0x9] sm:$0xff]
      %v3810 = vld [vmem:[#allocation1 + $0x12] sm:$0xff]
      %v3811 = vld [vmem:[#allocation1 + $0x1b] sm:$0xff]
      %v3812 = vld [vmem:[#allocation1 + $0x24] sm:$0xff]
      %v3813 = vld [vmem:[#allocation1 + $0x2d] sm:$0xff]
      %v3814 = vld [vmem:[#allocation1 + $0x36] sm:$0xff]
      %v3815 = vld [vmem:[#allocation1 + $0x3f] sm:$0xff]
      %3817 = vst [vmem:[#allocation1] ss:$9 sm:$0xff] %v3761
      %v3818 = vld [vmem:[#allocation1] sm:$0xff]
      %v3819 = vld [vmem:[#allocation1 + $0x9] sm:$0xff]
      %v3820 = vld [vmem:[#allocation1 + $0x12] sm:$0xff]
      %v3821 = vld [vmem:[#allocation1 + $0x1b] sm:$0xff]
      %v3822 = vld [vmem:[#allocation1 + $0x24] sm:$0xff]
      %v3823 = vld [vmem:[#allocation1 + $0x2d] sm:$0xff]
      %v3824 = vld [vmem:[#allocation1 + $0x36] sm:$0xff]
      %v3825 = vld [vmem:[#allocation1 + $0x3f] sm:$0xff]
      %3827 = vst [vmem:[#allocation1] ss:$9 sm:$0xff] %v3762
      %v3828 = vld [vmem:[#allocation1] sm:$0xff]
      %v3829 = vld [vmem:[#allocation1 + $0x9] sm:$0xff]
      %v3830 = vld [vmem:[#allocation1 + $0x12] sm:$0xff]
      %v3831 = vld [vmem:[#allocation1 + $0x1b] sm:$0xff]
      %v3832 = vld [vmem:[#allocation1 + $0x24] sm:$0xff]
      %v3833 = vld [vmem:[#allocation1 + $0x2d] sm:$0xff]
      %v3834 = vld [vmem:[#allocation1 + $0x36] sm:$0xff]
      %v3835 = vld [vmem:[#allocation1 + $0x3f] sm:$0xff]
      %3837 = vst [vmem:[#allocation1] ss:$9 sm:$0xff] %v3763
      %v3838 = vld [vmem:[#allocation1] sm:$0xff]
      %v3839 = vld [vmem:[#allocation1 + $0x9] sm:$0xff]
      %v3840 = vld [vmem:[#allocation1 + $0x12] sm:$0xff]
      %v3841 = vld [vmem:[#allocation1 + $0x1b] sm:$0xff]
      %v3842 = vld [vmem:[#allocation1 + $0x24] sm:$0xff]
      %v3843 = vld [vmem:[#allocation1 + $0x2d] sm:$0xff]
      %v3844 = vld [vmem:[#allocation1 + $0x36] sm:$0xff]
      %v3845 = vld [vmem:[#allocation1 + $0x3f] sm:$0xff]
      %3847 = vst [vmem:[#allocation1] ss:$9 sm:$0xff] %v3764
      %v3848 = vld [vmem:[#allocation1] sm:$0xff]
      %v3849 = vld [vmem:[#allocation1 + $0x9] sm:$0xff]
      %v3850 = vld [vmem:[#allocation1 + $0x12] sm:$0xff]
      %v3851 = vld [vmem:[#allocation1 + $0x1b] sm:$0xff]
      %v3852 = vld [vmem:[#allocation1 + $0x24] sm:$0xff]
      %v3853 = vld [vmem:[#allocation1 + $0x2d] sm:$0xff]
      %v3854 = vld [vmem:[#allocation1 + $0x36] sm:$0xff]
      %v3855 = vld [vmem:[#allocation1 + $0x3f] sm:$0xff]
      %3857 = vst [vmem:[#allocation1] ss:$9 sm:$0xff] %v3765
      %v3858 = vld [vmem:[#allocation1] sm:$0xff]
      %v3859 = vld [vmem:[#allocation1 + $0x9] sm:$0xff]
      %v3860 = vld [vmem:[#allocation1 + $0x12] sm:$0xff]
      %v3861 = vld [vmem:[#allocation1 + $0x1b] sm:$0xff]
      %v3862 = vld [vmem:[#allocation1 + $0x24] sm:$0xff]
      %v3863 = vld [vmem:[#allocation1 + $0x2d] sm:$0xff]
      %3942 = vmatpush.bf16.msra.mxu0 %v3138
      %3943 = vmatpush.bf16.msra.mxu0 %v3137
      %3944 = vmatpush.bf16.msra.mxu0 %v3136
      %3945 = vmatpush.bf16.msra.mxu0 %v3135
      %3946 = vmatpush.bf16.msra.mxu0 %v3134
      %3947 = vmatpush.bf16.msra.mxu0 %v3133
      %3948 = vmatpush.bf16.msra.mxu0 %v3132
      %3949 = vmatpush.bf16.msra.mxu0 %v3131
      %3950 = vmatmul.bf16.gmra.mxu0 %v3768
      %v3951 = vpop.f32.mrf.mxu0
      %v3952 = vadd.f32 0.0, %v3951
      %v3953 = vpop.f32.mrf.mxu0
      %3954 = vdwg.mxu0
      %3955 = vmatpush.bf16.msra.mxu0 %v3146
      %3956 = vmatpush.bf16.msra.mxu0 %v3145
      %3957 = vmatpush.bf16.msra.mxu0 %v3144
      %3958 = vmatpush.bf16.msra.mxu0 %v3143
      %3959 = vmatpush.bf16.msra.mxu0 %v3142
      %3960 = vmatpush.bf16.msra.mxu0 %v3141
      %3961 = vmatpush.bf16.msra.mxu0 %v3140
      %3962 = vmatpush.bf16.msra.mxu0 %v3139
      %3963 = vmatmul.bf16.gmra.mxu0 %v3769
      %v3964 = vpop.f32.mrf.mxu0
      %v3965 = vadd.f32 %v3952, %v3964
      %v3966 = vpop.f32.mrf.mxu0
      %3967 = vdwg.mxu0
      %3968 = vmatpush.bf16.msra.mxu0 %v3154
      %3969 = vmatpush.bf16.msra.mxu0 %v3153
      %3970 = vmatpush.bf16.msra.mxu0 %v3152
      %3971 = vmatpush.bf16.msra.mxu0 %v3151
      %3972 = vmatpush.bf16.msra.mxu0 %v3150
      %3973 = vmatpush.bf16.msra.mxu0 %v3149
      %3974 = vmatpush.bf16.msra.mxu0 %v3148
      %3975 = vmatpush.bf16.msra.mxu0 %v3147
      %3976 = vmatmul.bf16.gmra.mxu0 %v3770
      %v3977 = vpop.f32.mrf.mxu0
      %v3978 = vadd.f32 %v3965, %v3977
      %v3979 = vpop.f32.mrf.mxu0
      %3980 = vdwg.mxu0
      %3981 = vmatpush.bf16.msra.mxu0 %v3162
      %3982 = vmatpush.bf16.msra.mxu0 %v3161
      %3983 = vmatpush.bf16.msra.mxu0 %v3160
      %3984 = vmatpush.bf16.msra.mxu0 %v3159
      %3985 = vmatpush.bf16.msra.mxu0 %v3158
      %3986 = vmatpush.bf16.msra.mxu0 %v3157
      %3987 = vmatpush.bf16.msra.mxu0 %v3156
      %3988 = vmatpush.bf16.msra.mxu0 %v3155
      %3989 = vmatmul.bf16.gmra.mxu0 %v3771
      %v3990 = vpop.f32.mrf.mxu0
      %v3991 = vadd.f32 %v3978, %v3990
      %v3992 = vpop.f32.mrf.mxu0
      %3993 = vdwg.mxu0
      %3994 = vmatpush.bf16.msra.mxu0 %v3170
      %3995 = vmatpush.bf16.msra.mxu0 %v3169
      %3996 = vmatpush.bf16.msra.mxu0 %v3168
      %3997 = vmatpush.bf16.msra.mxu0 %v3167
      %3998 = vmatpush.bf16.msra.mxu0 %v3166
      %3999 = vmatpush.bf16.msra.mxu0 %v3165
      %4000 = vmatpush.bf16.msra.mxu0 %v3164
      %4001 = vmatpush.bf16.msra.mxu0 %v3163
      %4002 = vmatmul.bf16.gmra.mxu0 %v3772
      %v4003 = vpop.f32.mrf.mxu0
      %v4004 = vadd.f32 %v3991, %v4003
      %v4005 = vpop.f32.mrf.mxu0
      %4006 = vdwg.mxu0
      %4007 = vmatpush.bf16.msra.mxu0 %v3178
      %4008 = vmatpush.bf16.msra.mxu0 %v3177
      %4009 = vmatpush.bf16.msra.mxu0 %v3176
      %4010 = vmatpush.bf16.msra.mxu0 %v3175
      %4011 = vmatpush.bf16.msra.mxu0 %v3174
      %4012 = vmatpush.bf16.msra.mxu0 %v3173
      %4013 = vmatpush.bf16.msra.mxu0 %v3172
      %4014 = vmatpush.bf16.msra.mxu0 %v3171
      %4015 = vmatmul.bf16.gmra.mxu0 %v3773
      %v4016 = vpop.f32.mrf.mxu0
      %v4017 = vadd.f32 %v4004, %v4016
      %v4018 = vpop.f32.mrf.mxu0
      %4019 = vdwg.mxu0
      %4020 = vmatpush.bf16.msra.mxu0 %v3186
      %4021 = vmatpush.bf16.msra.mxu0 %v3185
      %4022 = vmatpush.bf16.msra.mxu0 %v3184
      %4023 = vmatpush.bf16.msra.mxu0 %v3183
      %4024 = vmatpush.bf16.msra.mxu0 %v3182
      %4025 = vmatpush.bf16.msra.mxu0 %v3181
      %4026 = vmatpush.bf16.msra.mxu0 %v3180
      %4027 = vmatpush.bf16.msra.mxu0 %v3179
      %4028 = vmatmul.bf16.gmra.mxu0 %v3774
      %v4029 = vpop.f32.mrf.mxu0
      %v4030 = vadd.f32 %v4017, %v4029
      %v4031 = vpop.f32.mrf.mxu0
      %4032 = vdwg.mxu0
      %4033 = vmatpush.bf16.msra.mxu0 %v3194
      %4034 = vmatpush.bf16.msra.mxu0 %v3193
      %4035 = vmatpush.bf16.msra.mxu0 %v3192
      %4036 = vmatpush.bf16.msra.mxu0 %v3191
      %4037 = vmatpush.bf16.msra.mxu0 %v3190
      %4038 = vmatpush.bf16.msra.mxu0 %v3189
      %4039 = vmatpush.bf16.msra.mxu0 %v3188
      %4040 = vmatpush.bf16.msra.mxu0 %v3187
      %4041 = vmatmul.bf16.gmra.mxu0 %v3775
      %v4042 = vpop.f32.mrf.mxu0
      %v4043 = vadd.f32 %v4030, %v4042
      %v4044 = vpop.f32.mrf.mxu0
      %4045 = vdwg.mxu0
      %4046 = vmatpush.bf16.msra.mxu0 %v3202
      %4047 = vmatpush.bf16.msra.mxu0 %v3201
      %4048 = vmatpush.bf16.msra.mxu0 %v3200
      %4049 = vmatpush.bf16.msra.mxu0 %v3199
      %4050 = vmatpush.bf16.msra.mxu0 %v3198
      %4051 = vmatpush.bf16.msra.mxu0 %v3197
      %4052 = vmatpush.bf16.msra.mxu0 %v3196
      %4053 = vmatpush.bf16.msra.mxu0 %v3195
      %4054 = vmatmul.bf16.gmra.mxu0 %v3778
      %v4055 = vpop.f32.mrf.mxu0
      %v4056 = vadd.f32 %v4043, %v4055
      %v4057 = vpop.f32.mrf.mxu0
      %4058 = vdwg.mxu0
      %4059 = vmatpush.bf16.msra.mxu0 %v3210
      %4060 = vmatpush.bf16.msra.mxu0 %v3209
      %4061 = vmatpush.bf16.msra.mxu0 %v3208
      %4062 = vmatpush.bf16.msra.mxu0 %v3207
      %4063 = vmatpush.bf16.msra.mxu0 %v3206
      %4064 = vmatpush.bf16.msra.mxu0 %v3205
      %4065 = vmatpush.bf16.msra.mxu0 %v3204
      %4066 = vmatpush.bf16.msra.mxu0 %v3203
      %4067 = vmatmul.bf16.gmra.mxu0 %v3779
      %v4068 = vpop.f32.mrf.mxu0
      %v4069 = vadd.f32 %v4056, %v4068
      %v4070 = vpop.f32.mrf.mxu0
      %4071 = vdwg.mxu0
      %4072 = vmatpush.bf16.msra.mxu0 %v3218
      %4073 = vmatpush.bf16.msra.mxu0 %v3217
      %4074 = vmatpush.bf16.msra.mxu0 %v3216
      %4075 = vmatpush.bf16.msra.mxu0 %v3215
      %4076 = vmatpush.bf16.msra.mxu0 %v3214
      %4077 = vmatpush.bf16.msra.mxu0 %v3213
      %4078 = vmatpush.bf16.msra.mxu0 %v3212
      %4079 = vmatpush.bf16.msra.mxu0 %v3211
      %4080 = vmatmul.bf16.gmra.mxu0 %v3780
      %v4081 = vpop.f32.mrf.mxu0
      %v4082 = vadd.f32 %v4069, %v4081
      %v4083 = vpop.f32.mrf.mxu0
      %4084 = vdwg.mxu0
      %4085 = vmatpush.bf16.msra.mxu0 %v3226
      %4086 = vmatpush.bf16.msra.mxu0 %v3225
      %4087 = vmatpush.bf16.msra.mxu0 %v3224
      %4088 = vmatpush.bf16.msra.mxu0 %v3223
      %4089 = vmatpush.bf16.msra.mxu0 %v3222
      %4090 = vmatpush.bf16.msra.mxu0 %v3221
      %4091 = vmatpush.bf16.msra.mxu0 %v3220
      %4092 = vmatpush.bf16.msra.mxu0 %v3219
      %4093 = vmatmul.bf16.gmra.mxu0 %v3781
      %v4094 = vpop.f32.mrf.mxu0
      %v4095 = vadd.f32 %v4082, %v4094
      %v4096 = vpop.f32.mrf.mxu0
      %4097 = vdwg.mxu0
      %4098 = vmatpush.bf16.msra.mxu0 %v3234
      %4099 = vmatpush.bf16.msra.mxu0 %v3233
      %4100 = vmatpush.bf16.msra.mxu0 %v3232
      %4101 = vmatpush.bf16.msra.mxu0 %v3231
      %4102 = vmatpush.bf16.msra.mxu0 %v3230
      %4103 = vmatpush.bf16.msra.mxu0 %v3229
      %4104 = vmatpush.bf16.msra.mxu0 %v3228
      %4105 = vmatpush.bf16.msra.mxu0 %v3227
      %4106 = vmatmul.bf16.gmra.mxu0 %v3782
      %v4107 = vpop.f32.mrf.mxu0
      %v4108 = vadd.f32 %v4095, %v4107
      %v4109 = vpop.f32.mrf.mxu0
      %4110 = vdwg.mxu0
      %4111 = vmatpush.bf16.msra.mxu0 %v3242
      %4112 = vmatpush.bf16.msra.mxu0 %v3241
      %4113 = vmatpush.bf16.msra.mxu0 %v3240
      %4114 = vmatpush.bf16.msra.mxu0 %v3239
      %4115 = vmatpush.bf16.msra.mxu0 %v3238
      %4116 = vmatpush.bf16.msra.mxu0 %v3237
      %4117 = vmatpush.bf16.msra.mxu0 %v3236
      %4118 = vmatpush.bf16.msra.mxu0 %v3235
      %4119 = vmatmul.bf16.gmra.mxu0 %v3783
      %v4120 = vpop.f32.mrf.mxu0
      %v4121 = vadd.f32 %v4108, %v4120
      %v4122 = vpop.f32.mrf.mxu0
      %4123 = vdwg.mxu0
      %4124 = vmatpush.bf16.msra.mxu0 %v3250
      %4125 = vmatpush.bf16.msra.mxu0 %v3249
      %4126 = vmatpush.bf16.msra.mxu0 %v3248
      %4127 = vmatpush.bf16.msra.mxu0 %v3247
      %4128 = vmatpush.bf16.msra.mxu0 %v3246
      %4129 = vmatpush.bf16.msra.mxu0 %v3245
      %4130 = vmatpush.bf16.msra.mxu0 %v3244
      %4131 = vmatpush.bf16.msra.mxu0 %v3243
      %4132 = vmatmul.bf16.gmra.mxu0 %v3784
      %v4133 = vpop.f32.mrf.mxu0
      %v4134 = vadd.f32 %v4121, %v4133
      %v4135 = vpop.f32.mrf.mxu0
      %4136 = vdwg.mxu0
      %4137 = vmatpush.bf16.msra.mxu0 %v3258
      %4138 = vmatpush.bf16.msra.mxu0 %v3257
      %4139 = vmatpush.bf16.msra.mxu0 %v3256
      %4140 = vmatpush.bf16.msra.mxu0 %v3255
      %4141 = vmatpush.bf16.msra.mxu0 %v3254
      %4142 = vmatpush.bf16.msra.mxu0 %v3253
      %4143 = vmatpush.bf16.msra.mxu0 %v3252
      %4144 = vmatpush.bf16.msra.mxu0 %v3251
      %4145 = vmatmul.bf16.gmra.mxu0 %v3785
      %v4146 = vpop.f32.mrf.mxu0
      %v4147 = vadd.f32 %v4134, %v4146
      %v4148 = vpop.f32.mrf.mxu0
      %4149 = vdwg.mxu0
      %4150 = vmatpush.bf16.msra.mxu0 %v3266
      %4151 = vmatpush.bf16.msra.mxu0 %v3265
      %4152 = vmatpush.bf16.msra.mxu0 %v3264
      %4153 = vmatpush.bf16.msra.mxu0 %v3263
      %4154 = vmatpush.bf16.msra.mxu0 %v3262
      %4155 = vmatpush.bf16.msra.mxu0 %v3261
      %4156 = vmatpush.bf16.msra.mxu0 %v3260
      %4157 = vmatpush.bf16.msra.mxu0 %v3259
      %4158 = vmatmul.bf16.gmra.mxu0 %v3788
      %v4159 = vpop.f32.mrf.mxu0
      %v4160 = vadd.f32 %v4147, %v4159
      %v4161 = vpop.f32.mrf.mxu0
      %4162 = vdwg.mxu0
      %4163 = vmatpush.bf16.msra.mxu0 %v3274
      %4164 = vmatpush.bf16.msra.mxu0 %v3273
      %4165 = vmatpush.bf16.msra.mxu0 %v3272
      %4166 = vmatpush.bf16.msra.mxu0 %v3271
      %4167 = vmatpush.bf16.msra.mxu0 %v3270
      %4168 = vmatpush.bf16.msra.mxu0 %v3269
      %4169 = vmatpush.bf16.msra.mxu0 %v3268
      %4170 = vmatpush.bf16.msra.mxu0 %v3267
      %4171 = vmatmul.bf16.gmra.mxu0 %v3789
      %v4172 = vpop.f32.mrf.mxu0
      %v4173 = vadd.f32 %v4160, %v4172
      %v4174 = vpop.f32.mrf.mxu0
      %4175 = vdwg.mxu0
      %4176 = vmatpush.bf16.msra.mxu0 %v3282
      %4177 = vmatpush.bf16.msra.mxu0 %v3281
      %4178 = vmatpush.bf16.msra.mxu0 %v3280
      %4179 = vmatpush.bf16.msra.mxu0 %v3279
      %4180 = vmatpush.bf16.msra.mxu0 %v3278
      %4181 = vmatpush.bf16.msra.mxu0 %v3277
      %4182 = vmatpush.bf16.msra.mxu0 %v3276
      %4183 = vmatpush.bf16.msra.mxu0 %v3275
      %4184 = vmatmul.bf16.gmra.mxu0 %v3790
      %v4185 = vpop.f32.mrf.mxu0
      %v4186 = vadd.f32 %v4173, %v4185
      %v4187 = vpop.f32.mrf.mxu0
      %4188 = vdwg.mxu0
      %4189 = vmatpush.bf16.msra.mxu0 %v3290
      %4190 = vmatpush.bf16.msra.mxu0 %v3289
      %4191 = vmatpush.bf16.msra.mxu0 %v3288
      %4192 = vmatpush.bf16.msra.mxu0 %v3287
      %4193 = vmatpush.bf16.msra.mxu0 %v3286
      %4194 = vmatpush.bf16.msra.mxu0 %v3285
      %4195 = vmatpush.bf16.msra.mxu0 %v3284
      %4196 = vmatpush.bf16.msra.mxu0 %v3283
      %4197 = vmatmul.bf16.gmra.mxu0 %v3791
      %v4198 = vpop.f32.mrf.mxu0
      %v4199 = vadd.f32 %v4186, %v4198
      %v4200 = vpop.f32.mrf.mxu0
      %4201 = vdwg.mxu0
      %4202 = vmatpush.bf16.msra.mxu0 %v3298
      %4203 = vmatpush.bf16.msra.mxu0 %v3297
      %4204 = vmatpush.bf16.msra.mxu0 %v3296
      %4205 = vmatpush.bf16.msra.mxu0 %v3295
      %4206 = vmatpush.bf16.msra.mxu0 %v3294
      %4207 = vmatpush.bf16.msra.mxu0 %v3293
      %4208 = vmatpush.bf16.msra.mxu0 %v3292
      %4209 = vmatpush.bf16.msra.mxu0 %v3291
      %4210 = vmatmul.bf16.gmra.mxu0 %v3792
      %v4211 = vpop.f32.mrf.mxu0
      %v4212 = vadd.f32 %v4199, %v4211
      %v4213 = vpop.f32.mrf.mxu0
      %4214 = vdwg.mxu0
      %4215 = vmatpush.bf16.msra.mxu0 %v3306
      %4216 = vmatpush.bf16.msra.mxu0 %v3305
      %4217 = vmatpush.bf16.msra.mxu0 %v3304
      %4218 = vmatpush.bf16.msra.mxu0 %v3303
      %4219 = vmatpush.bf16.msra.mxu0 %v3302
      %4220 = vmatpush.bf16.msra.mxu0 %v3301
      %4221 = vmatpush.bf16.msra.mxu0 %v3300
      %4222 = vmatpush.bf16.msra.mxu0 %v3299
      %4223 = vmatmul.bf16.gmra.mxu0 %v3793
      %v4224 = vpop.f32.mrf.mxu0
      %v4225 = vadd.f32 %v4212, %v4224
      %v4226 = vpop.f32.mrf.mxu0
      %4227 = vdwg.mxu0
      %4228 = vmatpush.bf16.msra.mxu0 %v3314
      %4229 = vmatpush.bf16.msra.mxu0 %v3313
      %4230 = vmatpush.bf16.msra.mxu0 %v3312
      %4231 = vmatpush.bf16.msra.mxu0 %v3311
      %4232 = vmatpush.bf16.msra.mxu0 %v3310
      %4233 = vmatpush.bf16.msra.mxu0 %v3309
      %4234 = vmatpush.bf16.msra.mxu0 %v3308
      %4235 = vmatpush.bf16.msra.mxu0 %v3307
      %4236 = vmatmul.bf16.gmra.mxu0 %v3794
      %v4237 = vpop.f32.mrf.mxu0
      %v4238 = vadd.f32 %v4225, %v4237
      %v4239 = vpop.f32.mrf.mxu0
      %4240 = vdwg.mxu0
      %4241 = vmatpush.bf16.msra.mxu0 %v3322
      %4242 = vmatpush.bf16.msra.mxu0 %v3321
      %4243 = vmatpush.bf16.msra.mxu0 %v3320
      %4244 = vmatpush.bf16.msra.mxu0 %v3319
      %4245 = vmatpush.bf16.msra.mxu0 %v3318
      %4246 = vmatpush.bf16.msra.mxu0 %v3317
      %4247 = vmatpush.bf16.msra.mxu0 %v3316
      %4248 = vmatpush.bf16.msra.mxu0 %v3315
      %4249 = vmatmul.bf16.gmra.mxu0 %v3795
      %v4250 = vpop.f32.mrf.mxu0
      %v4251 = vadd.f32 %v4238, %v4250
      %v4252 = vpop.f32.mrf.mxu0
      %4253 = vdwg.mxu0
      %4254 = vmatpush.bf16.msra.mxu0 %v3330
      %4255 = vmatpush.bf16.msra.mxu0 %v3329
      %4256 = vmatpush.bf16.msra.mxu0 %v3328
      %4257 = vmatpush.bf16.msra.mxu0 %v3327
      %4258 = vmatpush.bf16.msra.mxu0 %v3326
      %4259 = vmatpush.bf16.msra.mxu0 %v3325
      %4260 = vmatpush.bf16.msra.mxu0 %v3324
      %4261 = vmatpush.bf16.msra.mxu0 %v3323
      %4262 = vmatmul.bf16.gmra.mxu0 %v3798
      %v4263 = vpop.f32.mrf.mxu0
      %v4264 = vadd.f32 %v4251, %v4263
      %v4265 = vpop.f32.mrf.mxu0
      %4266 = vdwg.mxu0
      %4267 = vmatpush.bf16.msra.mxu0 %v3338
      %4268 = vmatpush.bf16.msra.mxu0 %v3337
      %4269 = vmatpush.bf16.msra.mxu0 %v3336
      %4270 = vmatpush.bf16.msra.mxu0 %v3335
      %4271 = vmatpush.bf16.msra.mxu0 %v3334
      %4272 = vmatpush.bf16.msra.mxu0 %v3333
      %4273 = vmatpush.bf16.msra.mxu0 %v3332
      %4274 = vmatpush.bf16.msra.mxu0 %v3331
      %4275 = vmatmul.bf16.gmra.mxu0 %v3799
      %v4276 = vpop.f32.mrf.mxu0
      %v4277 = vadd.f32 %v4264, %v4276
      %v4278 = vpop.f32.mrf.mxu0
      %4279 = vdwg.mxu0
      %4280 = vmatpush.bf16.msra.mxu0 %v3346
      %4281 = vmatpush.bf16.msra.mxu0 %v3345
      %4282 = vmatpush.bf16.msra.mxu0 %v3344
      %4283 = vmatpush.bf16.msra.mxu0 %v3343
      %4284 = vmatpush.bf16.msra.mxu0 %v3342
      %4285 = vmatpush.bf16.msra.mxu0 %v3341
      %4286 = vmatpush.bf16.msra.mxu0 %v3340
      %4287 = vmatpush.bf16.msra.mxu0 %v3339
      %4288 = vmatmul.bf16.gmra.mxu0 %v3800
      %v4289 = vpop.f32.mrf.mxu0
      %v4290 = vadd.f32 %v4277, %v4289
      %v4291 = vpop.f32.mrf.mxu0
      %4292 = vdwg.mxu0
      %4293 = vmatpush.bf16.msra.mxu0 %v3354
      %4294 = vmatpush.bf16.msra.mxu0 %v3353
      %4295 = vmatpush.bf16.msra.mxu0 %v3352
      %4296 = vmatpush.bf16.msra.mxu0 %v3351
      %4297 = vmatpush.bf16.msra.mxu0 %v3350
      %4298 = vmatpush.bf16.msra.mxu0 %v3349
      %4299 = vmatpush.bf16.msra.mxu0 %v3348
      %4300 = vmatpush.bf16.msra.mxu0 %v3347
      %4301 = vmatmul.bf16.gmra.mxu0 %v3801
      %v4302 = vpop.f32.mrf.mxu0
      %v4303 = vadd.f32 %v4290, %v4302
      %v4304 = vpop.f32.mrf.mxu0
      %4305 = vdwg.mxu0
      %4306 = vmatpush.bf16.msra.mxu0 %v3362
      %4307 = vmatpush.bf16.msra.mxu0 %v3361
      %4308 = vmatpush.bf16.msra.mxu0 %v3360
      %4309 = vmatpush.bf16.msra.mxu0 %v3359
      %4310 = vmatpush.bf16.msra.mxu0 %v3358
      %4311 = vmatpush.bf16.msra.mxu0 %v3357
      %4312 = vmatpush.bf16.msra.mxu0 %v3356
      %4313 = vmatpush.bf16.msra.mxu0 %v3355
      %4314 = vmatmul.bf16.gmra.mxu0 %v3802
      %v4315 = vpop.f32.mrf.mxu0
      %v4316 = vadd.f32 %v4303, %v4315
      %v4317 = vpop.f32.mrf.mxu0
      %4318 = vdwg.mxu0
      %4319 = vmatpush.bf16.msra.mxu0 %v3370
      %4320 = vmatpush.bf16.msra.mxu0 %v3369
      %4321 = vmatpush.bf16.msra.mxu0 %v3368
      %4322 = vmatpush.bf16.msra.mxu0 %v3367
      %4323 = vmatpush.bf16.msra.mxu0 %v3366
      %4324 = vmatpush.bf16.msra.mxu0 %v3365
      %4325 = vmatpush.bf16.msra.mxu0 %v3364
      %4326 = vmatpush.bf16.msra.mxu0 %v3363
      %4327 = vmatmul.bf16.gmra.mxu0 %v3803
      %v4328 = vpop.f32.mrf.mxu0
      %v4329 = vadd.f32 %v4316, %v4328
      %v4330 = vpop.f32.mrf.mxu0
      %4331 = vdwg.mxu0
      %4332 = vmatpush.bf16.msra.mxu0 %v3378
      %4333 = vmatpush.bf16.msra.mxu0 %v3377
      %4334 = vmatpush.bf16.msra.mxu0 %v3376
      %4335 = vmatpush.bf16.msra.mxu0 %v3375
      %4336 = vmatpush.bf16.msra.mxu0 %v3374
      %4337 = vmatpush.bf16.msra.mxu0 %v3373
      %4338 = vmatpush.bf16.msra.mxu0 %v3372
      %4339 = vmatpush.bf16.msra.mxu0 %v3371
      %4340 = vmatmul.bf16.gmra.mxu0 %v3804
      %v4341 = vpop.f32.mrf.mxu0
      %v4342 = vadd.f32 %v4329, %v4341
      %v4343 = vpop.f32.mrf.mxu0
      %4344 = vdwg.mxu0
      %4345 = vmatpush.bf16.msra.mxu0 %v3386
      %4346 = vmatpush.bf16.msra.mxu0 %v3385
      %4347 = vmatpush.bf16.msra.mxu0 %v3384
      %4348 = vmatpush.bf16.msra.mxu0 %v3383
      %4349 = vmatpush.bf16.msra.mxu0 %v3382
      %4350 = vmatpush.bf16.msra.mxu0 %v3381
      %4351 = vmatpush.bf16.msra.mxu0 %v3380
      %4352 = vmatpush.bf16.msra.mxu0 %v3379
      %4353 = vmatmul.bf16.gmra.mxu0 %v3805
      %v4354 = vpop.f32.mrf.mxu0
      %v4355 = vadd.f32 %v4342, %v4354
      %v4356 = vpop.f32.mrf.mxu0
      %4357 = vdwg.mxu0
      %4358 = vmatpush.bf16.msra.mxu0 %v3394
      %4359 = vmatpush.bf16.msra.mxu0 %v3393
      %4360 = vmatpush.bf16.msra.mxu0 %v3392
      %4361 = vmatpush.bf16.msra.mxu0 %v3391
      %4362 = vmatpush.bf16.msra.mxu0 %v3390
      %4363 = vmatpush.bf16.msra.mxu0 %v3389
      %4364 = vmatpush.bf16.msra.mxu0 %v3388
      %4365 = vmatpush.bf16.msra.mxu0 %v3387
      %4366 = vmatmul.bf16.gmra.mxu0 %v3808
      %v4367 = vpop.f32.mrf.mxu0
      %v4368 = vadd.f32 %v4355, %v4367
      %v4369 = vpop.f32.mrf.mxu0
      %4370 = vdwg.mxu0
      %4371 = vmatpush.bf16.msra.mxu0 %v3402
      %4372 = vmatpush.bf16.msra.mxu0 %v3401
      %4373 = vmatpush.bf16.msra.mxu0 %v3400
      %4374 = vmatpush.bf16.msra.mxu0 %v3399
      %4375 = vmatpush.bf16.msra.mxu0 %v3398
      %4376 = vmatpush.bf16.msra.mxu0 %v3397
      %4377 = vmatpush.bf16.msra.mxu0 %v3396
      %4378 = vmatpush.bf16.msra.mxu0 %v3395
      %4379 = vmatmul.bf16.gmra.mxu0 %v3809
      %v4380 = vpop.f32.mrf.mxu0
      %v4381 = vadd.f32 %v4368, %v4380
      %v4382 = vpop.f32.mrf.mxu0
      %4383 = vdwg.mxu0
      %4384 = vmatpush.bf16.msra.mxu0 %v3410
      %4385 = vmatpush.bf16.msra.mxu0 %v3409
      %4386 = vmatpush.bf16.msra.mxu0 %v3408
      %4387 = vmatpush.bf16.msra.mxu0 %v3407
      %4388 = vmatpush.bf16.msra.mxu0 %v3406
      %4389 = vmatpush.bf16.msra.mxu0 %v3405
      %4390 = vmatpush.bf16.msra.mxu0 %v3404
      %4391 = vmatpush.bf16.msra.mxu0 %v3403
      %4392 = vmatmul.bf16.gmra.mxu0 %v3810
      %v4393 = vpop.f32.mrf.mxu0
      %v4394 = vadd.f32 %v4381, %v4393
      %v4395 = vpop.f32.mrf.mxu0
      %4396 = vdwg.mxu0
      %4397 = vmatpush.bf16.msra.mxu0 %v3418
      %4398 = vmatpush.bf16.msra.mxu0 %v3417
      %4399 = vmatpush.bf16.msra.mxu0 %v3416
      %4400 = vmatpush.bf16.msra.mxu0 %v3415
      %4401 = vmatpush.bf16.msra.mxu0 %v3414
      %4402 = vmatpush.bf16.msra.mxu0 %v3413
      %4403 = vmatpush.bf16.msra.mxu0 %v3412
      %4404 = vmatpush.bf16.msra.mxu0 %v3411
      %4405 = vmatmul.bf16.gmra.mxu0 %v3811
      %v4406 = vpop.f32.mrf.mxu0
      %v4407 = vadd.f32 %v4394, %v4406
      %v4408 = vpop.f32.mrf.mxu0
      %4409 = vdwg.mxu0
      %4410 = vmatpush.bf16.msra.mxu0 %v3426
      %4411 = vmatpush.bf16.msra.mxu0 %v3425
      %4412 = vmatpush.bf16.msra.mxu0 %v3424
      %4413 = vmatpush.bf16.msra.mxu0 %v3423
      %4414 = vmatpush.bf16.msra.mxu0 %v3422
      %4415 = vmatpush.bf16.msra.mxu0 %v3421
      %4416 = vmatpush.bf16.msra.mxu0 %v3420
      %4417 = vmatpush.bf16.msra.mxu0 %v3419
      %4418 = vmatmul.bf16.gmra.mxu0 %v3812
      %v4419 = vpop.f32.mrf.mxu0
      %v4420 = vadd.f32 %v4407, %v4419
      %v4421 = vpop.f32.mrf.mxu0
      %4422 = vdwg.mxu0
      %4423 = vmatpush.bf16.msra.mxu0 %v3434
      %4424 = vmatpush.bf16.msra.mxu0 %v3433
      %4425 = vmatpush.bf16.msra.mxu0 %v3432
      %4426 = vmatpush.bf16.msra.mxu0 %v3431
      %4427 = vmatpush.bf16.msra.mxu0 %v3430
      %4428 = vmatpush.bf16.msra.mxu0 %v3429
      %4429 = vmatpush.bf16.msra.mxu0 %v3428
      %4430 = vmatpush.bf16.msra.mxu0 %v3427
      %4431 = vmatmul.bf16.gmra.mxu0 %v3813
      %v4432 = vpop.f32.mrf.mxu0
      %v4433 = vadd.f32 %v4420, %v4432
      %v4434 = vpop.f32.mrf.mxu0
      %4435 = vdwg.mxu0
      %4436 = vmatpush.bf16.msra.mxu0 %v3442
      %4437 = vmatpush.bf16.msra.mxu0 %v3441
      %4438 = vmatpush.bf16.msra.mxu0 %v3440
      %4439 = vmatpush.bf16.msra.mxu0 %v3439
      %4440 = vmatpush.bf16.msra.mxu0 %v3438
      %4441 = vmatpush.bf16.msra.mxu0 %v3437
      %4442 = vmatpush.bf16.msra.mxu0 %v3436
      %4443 = vmatpush.bf16.msra.mxu0 %v3435
      %4444 = vmatmul.bf16.gmra.mxu0 %v3814
      %v4445 = vpop.f32.mrf.mxu0
      %v4446 = vadd.f32 %v4433, %v4445
      %v4447 = vpop.f32.mrf.mxu0
      %4448 = vdwg.mxu0
      %4449 = vmatpush.bf16.msra.mxu0 %v3450
      %4450 = vmatpush.bf16.msra.mxu0 %v3449
      %4451 = vmatpush.bf16.msra.mxu0 %v3448
      %4452 = vmatpush.bf16.msra.mxu0 %v3447
      %4453 = vmatpush.bf16.msra.mxu0 %v3446
      %4454 = vmatpush.bf16.msra.mxu0 %v3445
      %4455 = vmatpush.bf16.msra.mxu0 %v3444
      %4456 = vmatpush.bf16.msra.mxu0 %v3443
      %4457 = vmatmul.bf16.gmra.mxu0 %v3815
      %v4458 = vpop.f32.mrf.mxu0
      %v4459 = vadd.f32 %v4446, %v4458
      %v4460 = vpop.f32.mrf.mxu0
      %4461 = vdwg.mxu0
      %4462 = vmatpush.bf16.msra.mxu0 %v3458
      %4463 = vmatpush.bf16.msra.mxu0 %v3457
      %4464 = vmatpush.bf16.msra.mxu0 %v3456
      %4465 = vmatpush.bf16.msra.mxu0 %v3455
      %4466 = vmatpush.bf16.msra.mxu0 %v3454
      %4467 = vmatpush.bf16.msra.mxu0 %v3453
      %4468 = vmatpush.bf16.msra.mxu0 %v3452
      %4469 = vmatpush.bf16.msra.mxu0 %v3451
      %4470 = vmatmul.bf16.gmra.mxu0 %v3818
      %v4471 = vpop.f32.mrf.mxu0
      %v4472 = vadd.f32 %v4459, %v4471
      %v4473 = vpop.f32.mrf.mxu0
      %4474 = vdwg.mxu0
      %4475 = vmatpush.bf16.msra.mxu0 %v3466
      %4476 = vmatpush.bf16.msra.mxu0 %v3465
      %4477 = vmatpush.bf16.msra.mxu0 %v3464
      %4478 = vmatpush.bf16.msra.mxu0 %v3463
      %4479 = vmatpush.bf16.msra.mxu0 %v3462
      %4480 = vmatpush.bf16.msra.mxu0 %v3461
      %4481 = vmatpush.bf16.msra.mxu0 %v3460
      %4482 = vmatpush.bf16.msra.mxu0 %v3459
      %4483 = vmatmul.bf16.gmra.mxu0 %v3819
      %v4484 = vpop.f32.mrf.mxu0
      %v4485 = vadd.f32 %v4472, %v4484
      %v4486 = vpop.f32.mrf.mxu0
      %4487 = vdwg.mxu0
      %4488 = vmatpush.bf16.msra.mxu0 %v3474
      %4489 = vmatpush.bf16.msra.mxu0 %v3473
      %4490 = vmatpush.bf16.msra.mxu0 %v3472
      %4491 = vmatpush.bf16.msra.mxu0 %v3471
      %4492 = vmatpush.bf16.msra.mxu0 %v3470
      %4493 = vmatpush.bf16.msra.mxu0 %v3469
      %4494 = vmatpush.bf16.msra.mxu0 %v3468
      %4495 = vmatpush.bf16.msra.mxu0 %v3467
      %4496 = vmatmul.bf16.gmra.mxu0 %v3820
      %v4497 = vpop.f32.mrf.mxu0
      %v4498 = vadd.f32 %v4485, %v4497
      %v4499 = vpop.f32.mrf.mxu0
      %4500 = vdwg.mxu0
      %4501 = vmatpush.bf16.msra.mxu0 %v3482
      %4502 = vmatpush.bf16.msra.mxu0 %v3481
      %4503 = vmatpush.bf16.msra.mxu0 %v3480
      %4504 = vmatpush.bf16.msra.mxu0 %v3479
      %4505 = vmatpush.bf16.msra.mxu0 %v3478
      %4506 = vmatpush.bf16.msra.mxu0 %v3477
      %4507 = vmatpush.bf16.msra.mxu0 %v3476
      %4508 = vmatpush.bf16.msra.mxu0 %v3475
      %4509 = vmatmul.bf16.gmra.mxu0 %v3821
      %v4510 = vpop.f32.mrf.mxu0
      %v4511 = vadd.f32 %v4498, %v4510
      %v4512 = vpop.f32.mrf.mxu0
      %4513 = vdwg.mxu0
      %4514 = vmatpush.bf16.msra.mxu0 %v3490
      %4515 = vmatpush.bf16.msra.mxu0 %v3489
      %4516 = vmatpush.bf16.msra.mxu0 %v3488
      %4517 = vmatpush.bf16.msra.mxu0 %v3487
      %4518 = vmatpush.bf16.msra.mxu0 %v3486
      %4519 = vmatpush.bf16.msra.mxu0 %v3485
      %4520 = vmatpush.bf16.msra.mxu0 %v3484
      %4521 = vmatpush.bf16.msra.mxu0 %v3483
      %4522 = vmatmul.bf16.gmra.mxu0 %v3822
      %v4523 = vpop.f32.mrf.mxu0
      %v4524 = vadd.f32 %v4511, %v4523
      %v4525 = vpop.f32.mrf.mxu0
      %4526 = vdwg.mxu0
      %4527 = vmatpush.bf16.msra.mxu0 %v3498
      %4528 = vmatpush.bf16.msra.mxu0 %v3497
      %4529 = vmatpush.bf16.msra.mxu0 %v3496
      %4530 = vmatpush.bf16.msra.mxu0 %v3495
      %4531 = vmatpush.bf16.msra.mxu0 %v3494
      %4532 = vmatpush.bf16.msra.mxu0 %v3493
      %4533 = vmatpush.bf16.msra.mxu0 %v3492
      %4534 = vmatpush.bf16.msra.mxu0 %v3491
      %4535 = vmatmul.bf16.gmra.mxu0 %v3823
      %v4536 = vpop.f32.mrf.mxu0
      %v4537 = vadd.f32 %v4524, %v4536
      %v4538 = vpop.f32.mrf.mxu0
      %4539 = vdwg.mxu0
      %4540 = vmatpush.bf16.msra.mxu0 %v3506
      %4541 = vmatpush.bf16.msra.mxu0 %v3505
      %4542 = vmatpush.bf16.msra.mxu0 %v3504
      %4543 = vmatpush.bf16.msra.mxu0 %v3503
      %4544 = vmatpush.bf16.msra.mxu0 %v3502
      %4545 = vmatpush.bf16.msra.mxu0 %v3501
      %4546 = vmatpush.bf16.msra.mxu0 %v3500
      %4547 = vmatpush.bf16.msra.mxu0 %v3499
      %4548 = vmatmul.bf16.gmra.mxu0 %v3824
      %v4549 = vpop.f32.mrf.mxu0
      %v4550 = vadd.f32 %v4537, %v4549
      %v4551 = vpop.f32.mrf.mxu0
      %4552 = vdwg.mxu0
      %4553 = vmatpush.bf16.msra.mxu0 %v3514
      %4554 = vmatpush.bf16.msra.mxu0 %v3513
      %4555 = vmatpush.bf16.msra.mxu0 %v3512
      %4556 = vmatpush.bf16.msra.mxu0 %v3511
      %4557 = vmatpush.bf16.msra.mxu0 %v3510
      %4558 = vmatpush.bf16.msra.mxu0 %v3509
      %4559 = vmatpush.bf16.msra.mxu0 %v3508
      %4560 = vmatpush.bf16.msra.mxu0 %v3507
      %4561 = vmatmul.bf16.gmra.mxu0 %v3825
      %v4562 = vpop.f32.mrf.mxu0
      %v4563 = vadd.f32 %v4550, %v4562
      %v4564 = vpop.f32.mrf.mxu0
      %4565 = vdwg.mxu0
      %4566 = vmatpush.bf16.msra.mxu0 %v3522
      %4567 = vmatpush.bf16.msra.mxu0 %v3521
      %4568 = vmatpush.bf16.msra.mxu0 %v3520
      %4569 = vmatpush.bf16.msra.mxu0 %v3519
      %4570 = vmatpush.bf16.msra.mxu0 %v3518
      %4571 = vmatpush.bf16.msra.mxu0 %v3517
      %4572 = vmatpush.bf16.msra.mxu0 %v3516
      %4573 = vmatpush.bf16.msra.mxu0 %v3515
      %4574 = vmatmul.bf16.gmra.mxu0 %v3828
      %v4575 = vpop.f32.mrf.mxu0
      %v4576 = vadd.f32 %v4563, %v4575
      %v4577 = vpop.f32.mrf.mxu0
      %4578 = vdwg.mxu0
      %4579 = vmatpush.bf16.msra.mxu0 %v3530
      %4580 = vmatpush.bf16.msra.mxu0 %v3529
      %4581 = vmatpush.bf16.msra.mxu0 %v3528
      %4582 = vmatpush.bf16.msra.mxu0 %v3527
      %4583 = vmatpush.bf16.msra.mxu0 %v3526
      %4584 = vmatpush.bf16.msra.mxu0 %v3525
      %4585 = vmatpush.bf16.msra.mxu0 %v3524
      %4586 = vmatpush.bf16.msra.mxu0 %v3523
      %4587 = vmatmul.bf16.gmra.mxu0 %v3829
      %v4588 = vpop.f32.mrf.mxu0
      %v4589 = vadd.f32 %v4576, %v4588
      %v4590 = vpop.f32.mrf.mxu0
      %4591 = vdwg.mxu0
      %4592 = vmatpush.bf16.msra.mxu0 %v3538
      %4593 = vmatpush.bf16.msra.mxu0 %v3537
      %4594 = vmatpush.bf16.msra.mxu0 %v3536
      %4595 = vmatpush.bf16.msra.mxu0 %v3535
      %4596 = vmatpush.bf16.msra.mxu0 %v3534
      %4597 = vmatpush.bf16.msra.mxu0 %v3533
      %4598 = vmatpush.bf16.msra.mxu0 %v3532
      %4599 = vmatpush.bf16.msra.mxu0 %v3531
      %4600 = vmatmul.bf16.gmra.mxu0 %v3830
      %v4601 = vpop.f32.mrf.mxu0
      %v4602 = vadd.f32 %v4589, %v4601
      %v4603 = vpop.f32.mrf.mxu0
      %4604 = vdwg.mxu0
      %4605 = vmatpush.bf16.msra.mxu0 %v3546
      %4606 = vmatpush.bf16.msra.mxu0 %v3545
      %4607 = vmatpush.bf16.msra.mxu0 %v3544
      %4608 = vmatpush.bf16.msra.mxu0 %v3543
      %4609 = vmatpush.bf16.msra.mxu0 %v3542
      %4610 = vmatpush.bf16.msra.mxu0 %v3541
      %4611 = vmatpush.bf16.msra.mxu0 %v3540
      %4612 = vmatpush.bf16.msra.mxu0 %v3539
      %4613 = vmatmul.bf16.gmra.mxu0 %v3831
      %v4614 = vpop.f32.mrf.mxu0
      %v4615 = vadd.f32 %v4602, %v4614
      %v4616 = vpop.f32.mrf.mxu0
      %4617 = vdwg.mxu0
      %4618 = vmatpush.bf16.msra.mxu0 %v3554
      %4619 = vmatpush.bf16.msra.mxu0 %v3553
      %4620 = vmatpush.bf16.msra.mxu0 %v3552
      %4621 = vmatpush.bf16.msra.mxu0 %v3551
      %4622 = vmatpush.bf16.msra.mxu0 %v3550
      %4623 = vmatpush.bf16.msra.mxu0 %v3549
      %4624 = vmatpush.bf16.msra.mxu0 %v3548
      %4625 = vmatpush.bf16.msra.mxu0 %v3547
      %4626 = vmatmul.bf16.gmra.mxu0 %v3832
      %v4627 = vpop.f32.mrf.mxu0
      %v4628 = vadd.f32 %v4615, %v4627
      %v4629 = vpop.f32.mrf.mxu0
      %4630 = vdwg.mxu0
      %4631 = vmatpush.bf16.msra.mxu0 %v3562
      %4632 = vmatpush.bf16.msra.mxu0 %v3561
      %4633 = vmatpush.bf16.msra.mxu0 %v3560
      %4634 = vmatpush.bf16.msra.mxu0 %v3559
      %4635 = vmatpush.bf16.msra.mxu0 %v3558
      %4636 = vmatpush.bf16.msra.mxu0 %v3557
      %4637 = vmatpush.bf16.msra.mxu0 %v3556
      %4638 = vmatpush.bf16.msra.mxu0 %v3555
      %4639 = vmatmul.bf16.gmra.mxu0 %v3833
      %v4640 = vpop.f32.mrf.mxu0
      %v4641 = vadd.f32 %v4628, %v4640
      %v4642 = vpop.f32.mrf.mxu0
      %4643 = vdwg.mxu0
      %4644 = vmatpush.bf16.msra.mxu0 %v3570
      %4645 = vmatpush.bf16.msra.mxu0 %v3569
      %4646 = vmatpush.bf16.msra.mxu0 %v3568
      %4647 = vmatpush.bf16.msra.mxu0 %v3567
      %4648 = vmatpush.bf16.msra.mxu0 %v3566
      %4649 = vmatpush.bf16.msra.mxu0 %v3565
      %4650 = vmatpush.bf16.msra.mxu0 %v3564
      %4651 = vmatpush.bf16.msra.mxu0 %v3563
      %4652 = vmatmul.bf16.gmra.mxu0 %v3834
      %v4653 = vpop.f32.mrf.mxu0
      %v4654 = vadd.f32 %v4641, %v4653
      %v4655 = vpop.f32.mrf.mxu0
      %4656 = vdwg.mxu0
      %4657 = vmatpush.bf16.msra.mxu0 %v3578
      %4658 = vmatpush.bf16.msra.mxu0 %v3577
      %4659 = vmatpush.bf16.msra.mxu0 %v3576
      %4660 = vmatpush.bf16.msra.mxu0 %v3575
      %4661 = vmatpush.bf16.msra.mxu0 %v3574
      %4662 = vmatpush.bf16.msra.mxu0 %v3573
      %4663 = vmatpush.bf16.msra.mxu0 %v3572
      %4664 = vmatpush.bf16.msra.mxu0 %v3571
      %4665 = vmatmul.bf16.gmra.mxu0 %v3835
      %v4666 = vpop.f32.mrf.mxu0
      %v4667 = vadd.f32 %v4654, %v4666
      %v4668 = vpop.f32.mrf.mxu0
      %4669 = vdwg.mxu0
      %4670 = vmatpush.bf16.msra.mxu0 %v3586
      %4671 = vmatpush.bf16.msra.mxu0 %v3585
      %4672 = vmatpush.bf16.msra.mxu0 %v3584
      %4673 = vmatpush.bf16.msra.mxu0 %v3583
      %4674 = vmatpush.bf16.msra.mxu0 %v3582
      %4675 = vmatpush.bf16.msra.mxu0 %v3581
      %4676 = vmatpush.bf16.msra.mxu0 %v3580
      %4677 = vmatpush.bf16.msra.mxu0 %v3579
      %4678 = vmatmul.bf16.gmra.mxu0 %v3838
      %v4679 = vpop.f32.mrf.mxu0
      %v4680 = vadd.f32 %v4667, %v4679
      %v4681 = vpop.f32.mrf.mxu0
      %4682 = vdwg.mxu0
      %4683 = vmatpush.bf16.msra.mxu0 %v3594
      %4684 = vmatpush.bf16.msra.mxu0 %v3593
      %4685 = vmatpush.bf16.msra.mxu0 %v3592
      %4686 = vmatpush.bf16.msra.mxu0 %v3591
      %4687 = vmatpush.bf16.msra.mxu0 %v3590
      %4688 = vmatpush.bf16.msra.mxu0 %v3589
      %4689 = vmatpush.bf16.msra.mxu0 %v3588
      %4690 = vmatpush.bf16.msra.mxu0 %v3587
      %4691 = vmatmul.bf16.gmra.mxu0 %v3839
      %v4692 = vpop.f32.mrf.mxu0
      %v4693 = vadd.f32 %v4680, %v4692
      %v4694 = vpop.f32.mrf.mxu0
      %4695 = vdwg.mxu0
      %4696 = vmatpush.bf16.msra.mxu0 %v3602
      %4697 = vmatpush.bf16.msra.mxu0 %v3601
      %4698 = vmatpush.bf16.msra.mxu0 %v3600
      %4699 = vmatpush.bf16.msra.mxu0 %v3599
      %4700 = vmatpush.bf16.msra.mxu0 %v3598
      %4701 = vmatpush.bf16.msra.mxu0 %v3597
      %4702 = vmatpush.bf16.msra.mxu0 %v3596
      %4703 = vmatpush.bf16.msra.mxu0 %v3595
      %4704 = vmatmul.bf16.gmra.mxu0 %v3840
      %v4705 = vpop.f32.mrf.mxu0
      %v4706 = vadd.f32 %v4693, %v4705
      %v4707 = vpop.f32.mrf.mxu0
      %4708 = vdwg.mxu0
      %4709 = vmatpush.bf16.msra.mxu0 %v3610
      %4710 = vmatpush.bf16.msra.mxu0 %v3609
      %4711 = vmatpush.bf16.msra.mxu0 %v3608
      %4712 = vmatpush.bf16.msra.mxu0 %v3607
      %4713 = vmatpush.bf16.msra.mxu0 %v3606
      %4714 = vmatpush.bf16.msra.mxu0 %v3605
      %4715 = vmatpush.bf16.msra.mxu0 %v3604
      %4716 = vmatpush.bf16.msra.mxu0 %v3603
      %4717 = vmatmul.bf16.gmra.mxu0 %v3841
      %v4718 = vpop.f32.mrf.mxu0
      %v4719 = vadd.f32 %v4706, %v4718
      %v4720 = vpop.f32.mrf.mxu0
      %4721 = vdwg.mxu0
      %4722 = vmatpush.bf16.msra.mxu0 %v3618
      %4723 = vmatpush.bf16.msra.mxu0 %v3617
      %4724 = vmatpush.bf16.msra.mxu0 %v3616
      %4725 = vmatpush.bf16.msra.mxu0 %v3615
      %4726 = vmatpush.bf16.msra.mxu0 %v3614
      %4727 = vmatpush.bf16.msra.mxu0 %v3613
      %4728 = vmatpush.bf16.msra.mxu0 %v3612
      %4729 = vmatpush.bf16.msra.mxu0 %v3611
      %4730 = vmatmul.bf16.gmra.mxu0 %v3842
      %v4731 = vpop.f32.mrf.mxu0
      %v4732 = vadd.f32 %v4719, %v4731
      %v4733 = vpop.f32.mrf.mxu0
      %4734 = vdwg.mxu0
      %4735 = vmatpush.bf16.msra.mxu0 %v3626
      %4736 = vmatpush.bf16.msra.mxu0 %v3625
      %4737 = vmatpush.bf16.msra.mxu0 %v3624
      %4738 = vmatpush.bf16.msra.mxu0 %v3623
      %4739 = vmatpush.bf16.msra.mxu0 %v3622
      %4740 = vmatpush.bf16.msra.mxu0 %v3621
      %4741 = vmatpush.bf16.msra.mxu0 %v3620
      %4742 = vmatpush.bf16.msra.mxu0 %v3619
      %4743 = vmatmul.bf16.gmra.mxu0 %v3843
      %v4744 = vpop.f32.mrf.mxu0
      %v4745 = vadd.f32 %v4732, %v4744
      %v4746 = vpop.f32.mrf.mxu0
      %4747 = vdwg.mxu0
      %4748 = vmatpush.bf16.msra.mxu0 %v3634
      %4749 = vmatpush.bf16.msra.mxu0 %v3633
      %4750 = vmatpush.bf16.msra.mxu0 %v3632
      %4751 = vmatpush.bf16.msra.mxu0 %v3631
      %4752 = vmatpush.bf16.msra.mxu0 %v3630
      %4753 = vmatpush.bf16.msra.mxu0 %v3629
      %4754 = vmatpush.bf16.msra.mxu0 %v3628
      %4755 = vmatpush.bf16.msra.mxu0 %v3627
      %4756 = vmatmul.bf16.gmra.mxu0 %v3844
      %v4757 = vpop.f32.mrf.mxu0
      %v4758 = vadd.f32 %v4745, %v4757
      %v4759 = vpop.f32.mrf.mxu0
      %4760 = vdwg.mxu0
      %4761 = vmatpush.bf16.msra.mxu0 %v3642
      %4762 = vmatpush.bf16.msra.mxu0 %v3641
      %4763 = vmatpush.bf16.msra.mxu0 %v3640
      %4764 = vmatpush.bf16.msra.mxu0 %v3639
      %4765 = vmatpush.bf16.msra.mxu0 %v3638
      %4766 = vmatpush.bf16.msra.mxu0 %v3637
      %4767 = vmatpush.bf16.msra.mxu0 %v3636
      %4768 = vmatpush.bf16.msra.mxu0 %v3635
      %4769 = vmatmul.bf16.gmra.mxu0 %v3845
      %v4770 = vpop.f32.mrf.mxu0
      %v4771 = vadd.f32 %v4758, %v4770
      %v4772 = vpop.f32.mrf.mxu0
      %4773 = vdwg.mxu0
      %4774 = vmatpush.bf16.msra.mxu0 %v3650
      %4775 = vmatpush.bf16.msra.mxu0 %v3649
      %4776 = vmatpush.bf16.msra.mxu0 %v3648
      %4777 = vmatpush.bf16.msra.mxu0 %v3647
      %4778 = vmatpush.bf16.msra.mxu0 %v3646
      %4779 = vmatpush.bf16.msra.mxu0 %v3645
      %4780 = vmatpush.bf16.msra.mxu0 %v3644
      %4781 = vmatpush.bf16.msra.mxu0 %v3643
      %4782 = vmatmul.bf16.gmra.mxu0 %v3848
      %v4783 = vpop.f32.mrf.mxu0
      %v4784 = vadd.f32 %v4771, %v4783
      %v4785 = vpop.f32.mrf.mxu0
      %4786 = vdwg.mxu0
      %4787 = vmatpush.bf16.msra.mxu0 %v3658
      %4788 = vmatpush.bf16.msra.mxu0 %v3657
      %4789 = vmatpush.bf16.msra.mxu0 %v3656
      %4790 = vmatpush.bf16.msra.mxu0 %v3655
      %4791 = vmatpush.bf16.msra.mxu0 %v3654
      %4792 = vmatpush.bf16.msra.mxu0 %v3653
      %4793 = vmatpush.bf16.msra.mxu0 %v3652
      %4794 = vmatpush.bf16.msra.mxu0 %v3651
      %4795 = vmatmul.bf16.gmra.mxu0 %v3849
      %v4796 = vpop.f32.mrf.mxu0
      %v4797 = vadd.f32 %v4784, %v4796
      %v4798 = vpop.f32.mrf.mxu0
      %4799 = vdwg.mxu0
      %4800 = vmatpush.bf16.msra.mxu0 %v3666
      %4801 = vmatpush.bf16.msra.mxu0 %v3665
      %4802 = vmatpush.bf16.msra.mxu0 %v3664
      %4803 = vmatpush.bf16.msra.mxu0 %v3663
      %4804 = vmatpush.bf16.msra.mxu0 %v3662
      %4805 = vmatpush.bf16.msra.mxu0 %v3661
      %4806 = vmatpush.bf16.msra.mxu0 %v3660
      %4807 = vmatpush.bf16.msra.mxu0 %v3659
      %4808 = vmatmul.bf16.gmra.mxu0 %v3850
      %v4809 = vpop.f32.mrf.mxu0
      %v4810 = vadd.f32 %v4797, %v4809
      %v4811 = vpop.f32.mrf.mxu0
      %4812 = vdwg.mxu0
      %4813 = vmatpush.bf16.msra.mxu0 %v3674
      %4814 = vmatpush.bf16.msra.mxu0 %v3673
      %4815 = vmatpush.bf16.msra.mxu0 %v3672
      %4816 = vmatpush.bf16.msra.mxu0 %v3671
      %4817 = vmatpush.bf16.msra.mxu0 %v3670
      %4818 = vmatpush.bf16.msra.mxu0 %v3669
      %4819 = vmatpush.bf16.msra.mxu0 %v3668
      %4820 = vmatpush.bf16.msra.mxu0 %v3667
      %4821 = vmatmul.bf16.gmra.mxu0 %v3851
      %v4822 = vpop.f32.mrf.mxu0
      %v4823 = vadd.f32 %v4810, %v4822
      %v4824 = vpop.f32.mrf.mxu0
      %4825 = vdwg.mxu0
      %4826 = vmatpush.bf16.msra.mxu0 %v3682
      %4827 = vmatpush.bf16.msra.mxu0 %v3681
      %4828 = vmatpush.bf16.msra.mxu0 %v3680
      %4829 = vmatpush.bf16.msra.mxu0 %v3679
      %4830 = vmatpush.bf16.msra.mxu0 %v3678
      %4831 = vmatpush.bf16.msra.mxu0 %v3677
      %4832 = vmatpush.bf16.msra.mxu0 %v3676
      %4833 = vmatpush.bf16.msra.mxu0 %v3675
      %4834 = vmatmul.bf16.gmra.mxu0 %v3852
      %v4835 = vpop.f32.mrf.mxu0
      %v4836 = vadd.f32 %v4823, %v4835
      %v4837 = vpop.f32.mrf.mxu0
      %4838 = vdwg.mxu0
      %4839 = vmatpush.bf16.msra.mxu0 %v3690
      %4840 = vmatpush.bf16.msra.mxu0 %v3689
      %4841 = vmatpush.bf16.msra.mxu0 %v3688
      %4842 = vmatpush.bf16.msra.mxu0 %v3687
      %4843 = vmatpush.bf16.msra.mxu0 %v3686
      %4844 = vmatpush.bf16.msra.mxu0 %v3685
      %4845 = vmatpush.bf16.msra.mxu0 %v3684
      %4846 = vmatpush.bf16.msra.mxu0 %v3683
      %4847 = vmatmul.bf16.gmra.mxu0 %v3853
      %v4848 = vpop.f32.mrf.mxu0
      %v4849 = vadd.f32 %v4836, %v4848
      %v4850 = vpop.f32.mrf.mxu0
      %4851 = vdwg.mxu0
      %4852 = vmatpush.bf16.msra.mxu0 %v3698
      %4853 = vmatpush.bf16.msra.mxu0 %v3697
      %4854 = vmatpush.bf16.msra.mxu0 %v3696
      %4855 = vmatpush.bf16.msra.mxu0 %v3695
      %4856 = vmatpush.bf16.msra.mxu0 %v3694
      %4857 = vmatpush.bf16.msra.mxu0 %v3693
      %4858 = vmatpush.bf16.msra.mxu0 %v3692
      %4859 = vmatpush.bf16.msra.mxu0 %v3691
      %4860 = vmatmul.bf16.gmra.mxu0 %v3854
      %v4861 = vpop.f32.mrf.mxu0
      %v4862 = vadd.f32 %v4849, %v4861
      %v4863 = vpop.f32.mrf.mxu0
      %4864 = vdwg.mxu0
      %4865 = vmatpush.bf16.msra.mxu0 %v3706
      %4866 = vmatpush.bf16.msra.mxu0 %v3705
      %4867 = vmatpush.bf16.msra.mxu0 %v3704
      %4868 = vmatpush.bf16.msra.mxu0 %v3703
      %4869 = vmatpush.bf16.msra.mxu0 %v3702
      %4870 = vmatpush.bf16.msra.mxu0 %v3701
      %4871 = vmatpush.bf16.msra.mxu0 %v3700
      %4872 = vmatpush.bf16.msra.mxu0 %v3699
      %4873 = vmatmul.bf16.gmra.mxu0 %v3855
      %v4874 = vpop.f32.mrf.mxu0
      %v4875 = vadd.f32 %v4862, %v4874
      %v4876 = vpop.f32.mrf.mxu0
      %4877 = vdwg.mxu0
      %4878 = vmatpush.bf16.msra.mxu0 %v3714
      %4879 = vmatpush.bf16.msra.mxu0 %v3713
      %4880 = vmatpush.bf16.msra.mxu0 %v3712
      %4881 = vmatpush.bf16.msra.mxu0 %v3711
      %4882 = vmatpush.bf16.msra.mxu0 %v3710
      %4883 = vmatpush.bf16.msra.mxu0 %v3709
      %4884 = vmatpush.bf16.msra.mxu0 %v3708
      %4885 = vmatpush.bf16.msra.mxu0 %v3707
      %4886 = vmatmul.bf16.gmra.mxu0 %v3858
      %v4887 = vpop.f32.mrf.mxu0
      %v4888 = vadd.f32 %v4875, %v4887
      %v4889 = vpop.f32.mrf.mxu0
      %4890 = vdwg.mxu0
      %4891 = vmatpush.bf16.msra.mxu0 %v3722
      %4892 = vmatpush.bf16.msra.mxu0 %v3721
      %4893 = vmatpush.bf16.msra.mxu0 %v3720
      %4894 = vmatpush.bf16.msra.mxu0 %v3719
      %4895 = vmatpush.bf16.msra.mxu0 %v3718
      %4896 = vmatpush.bf16.msra.mxu0 %v3717
      %4897 = vmatpush.bf16.msra.mxu0 %v3716
      %4898 = vmatpush.bf16.msra.mxu0 %v3715
      %4899 = vmatmul.bf16.gmra.mxu0 %v3859
      %v4900 = vpop.f32.mrf.mxu0
      %v4901 = vadd.f32 %v4888, %v4900
      %v4902 = vpop.f32.mrf.mxu0
      %4903 = vdwg.mxu0
      %4904 = vmatpush.bf16.msra.mxu0 %v3730
      %4905 = vmatpush.bf16.msra.mxu0 %v3729
      %4906 = vmatpush.bf16.msra.mxu0 %v3728
      %4907 = vmatpush.bf16.msra.mxu0 %v3727
      %4908 = vmatpush.bf16.msra.mxu0 %v3726
      %4909 = vmatpush.bf16.msra.mxu0 %v3725
      %4910 = vmatpush.bf16.msra.mxu0 %v3724
      %4911 = vmatpush.bf16.msra.mxu0 %v3723
      %4912 = vmatmul.bf16.gmra.mxu0 %v3860
      %v4913 = vpop.f32.mrf.mxu0
      %v4914 = vadd.f32 %v4901, %v4913
      %v4915 = vpop.f32.mrf.mxu0
      %4916 = vdwg.mxu0
      %4917 = vmatpush.bf16.msra.mxu0 %v3738
      %4918 = vmatpush.bf16.msra.mxu0 %v3737
      %4919 = vmatpush.bf16.msra.mxu0 %v3736
      %4920 = vmatpush.bf16.msra.mxu0 %v3735
      %4921 = vmatpush.bf16.msra.mxu0 %v3734
      %4922 = vmatpush.bf16.msra.mxu0 %v3733
      %4923 = vmatpush.bf16.msra.mxu0 %v3732
      %4924 = vmatpush.bf16.msra.mxu0 %v3731
      %4925 = vmatmul.bf16.gmra.mxu0 %v3861
      %v4926 = vpop.f32.mrf.mxu0
      %v4927 = vadd.f32 %v4914, %v4926
      %v4928 = vpop.f32.mrf.mxu0
      %4929 = vdwg.mxu0
      %4930 = vmatpush.bf16.msra.mxu0 %v3746
      %4931 = vmatpush.bf16.msra.mxu0 %v3745
      %4932 = vmatpush.bf16.msra.mxu0 %v3744
      %4933 = vmatpush.bf16.msra.mxu0 %v3743
      %4934 = vmatpush.bf16.msra.mxu0 %v3742
      %4935 = vmatpush.bf16.msra.mxu0 %v3741
      %4936 = vmatpush.bf16.msra.mxu0 %v3740
      %4937 = vmatpush.bf16.msra.mxu0 %v3739
      %4938 = vmatmul.bf16.gmra.mxu0 %v3862
      %v4939 = vpop.f32.mrf.mxu0
      %v4940 = vadd.f32 %v4927, %v4939
      %v4941 = vpop.f32.mrf.mxu0
      %4942 = vdwg.mxu0
      %4943 = vmatpush.bf16.msra.mxu0 %v3754
      %4944 = vmatpush.bf16.msra.mxu0 %v3753
      %4945 = vmatpush.bf16.msra.mxu0 %v3752
      %4946 = vmatpush.bf16.msra.mxu0 %v3751
      %4947 = vmatpush.bf16.msra.mxu0 %v3750
      %4948 = vmatpush.bf16.msra.mxu0 %v3749
      %4949 = vmatpush.bf16.msra.mxu0 %v3748
      %4950 = vmatpush.bf16.msra.mxu0 %v3747
      %4951 = vmatmul.bf16.gmra.mxu0 %v3863
      %v4952 = vpop.f32.mrf.mxu0
      %v4953 = vadd.f32 %v4940, %v4952
      %v4954 = vpop.f32.mrf.mxu0
      %4955 = vdwg.mxu0
      %v4956 = vadd.f32 %v3755, %v4953
      %4957 = vst [vmem:[#allocation2] sm:$0x3] %v4956
      %p4958 = scmp.eq.s32.totalorder %s21, 3
      // Predicated region
      $region45: #{simple1dcnn_forward.3} parent=39 // pred_check
        %p4959 = pneg %p4958
      $region46: #{simple1dcnn_forward.3} parent=39 // pred_check_branch
        %4961 = sbr.rel (%p4959) target = $region48
      $region47: #{simple1dcnn_forward.3} parent=39 // pred_region
        %v4962 = vld [vmem:[#allocation2] sm:$0x3]
        %v4963 = vld [vmem:[%s305] sm:$0x1]
        %v4965 = vperm.slane %v4963, 0
        %v4967 = vmul.f32 %v4962, %v4965
        %v4968 = vld [vmem:[%s308] sm:$0x1]
        %v4970 = vperm.slane %v4968, 0
        %v4972 = vadd.f32 %v4967, %v4970
        %v4973 = vmax.f32 %v4972, 0.0
        %v4974 = vld [vmem:[%s313] sm:$0xff]
        %v4975 = vld [vmem:[%s313 + $0x8] sm:$0xff]
        %v4976 = vld [vmem:[%s313 + $0x10] sm:$0xff]
        %v4977 = vld [vmem:[%s313 + $0x18] sm:$0xff]
        %v4978 = vld [vmem:[%s313 + $0x20] sm:$0xff]
        %v4979 = vld [vmem:[%s313 + $0x28] sm:$0xff]
        %v4980 = vld [vmem:[%s313 + $0x30] sm:$0xff]
        %v4981 = vld [vmem:[%s313 + $0x38] sm:$0xff]
        %v4982 = vld [vmem:[%s313 + $0x40] sm:$0xff]
        %v4983 = vld [vmem:[%s313 + $0x48] sm:$0xff]
        %v4984 = vld [vmem:[%s313 + $0x50] sm:$0xff]
        %v4985 = vld [vmem:[%s313 + $0x58] sm:$0xff]
        %v4986 = vld [vmem:[%s313 + $0x60] sm:$0xff]
        %v4987 = vld [vmem:[%s313 + $0x68] sm:$0xff]
        %v4988 = vld [vmem:[%s313 + $0x70] sm:$0xff]
        %v4989 = vld [vmem:[%s313 + $0x78] sm:$0xff]
        %4990 = vmatpush.msra.mxu0 %v4989
        %4991 = vmatpush.msra.mxu0 %v4988
        %4992 = vmatpush.msra.mxu0 %v4987
        %4993 = vmatpush.msra.mxu0 %v4986
        %4994 = vmatpush.msra.mxu0 %v4985
        %4995 = vmatpush.msra.mxu0 %v4984
        %4996 = vmatpush.msra.mxu0 %v4983
        %4997 = vmatpush.msra.mxu0 %v4982
        %4998 = vmatpush.msra.mxu0 %v4981
        %4999 = vmatpush.msra.mxu0 %v4980
        %5000 = vmatpush.msra.mxu0 %v4979
        %5001 = vmatpush.msra.mxu0 %v4978
        %5002 = vmatpush.msra.mxu0 %v4977
        %5003 = vmatpush.msra.mxu0 %v4976
        %5004 = vmatpush.msra.mxu0 %v4975
        %5005 = vmatpush.msra.mxu0 %v4974
        %5006 = vmatmul.f32.gmra.mxu0 %v4973
        %v5007 = vpop.f32.mrf.mxu0
        %v5008 = vadd.f32 0.0, %v5007
        %5009 = vdwg.mxu0
        %vm5010 = vcmask 74752
        %5011 = vst.msk [vmem:[%s317] sm:$0x3] %vm5010, %v5008
      $region48: #{simple1dcnn_forward.3} parent=39 // pred_fallthru
        _
      %p5012 = scmp.lt.s32.totalorder %s20, 0
      %s5013 = scalar_select %p5012, %s20, 0
      %s5014 = smul.addr %s5013, 2
      %s5015 = scalar_lea.vmem %s5, %s5014
      // Predicated region
      $region49: #{simple1dcnn_forward.3} parent=39 // pred_check
        %p5016 = pneg %p178
      $region50: #{simple1dcnn_forward.3} parent=39 // pred_check_branch
        %5018 = sbr.rel (%p5016) target = $region52
      $region51: #{simple1dcnn_forward.3} parent=39 // pred_region
        _
      $region52: #{simple1dcnn_forward.3} parent=39 // pred_fallthru
        _
      // Predicated region
      $region53: #{simple1dcnn_forward.3} parent=39 // pred_check
        %p5019 = pneg %p178
      $region54: #{simple1dcnn_forward.3} parent=39 // pred_check_branch
        %5021 = sbr.rel (%p5019) target = $region56
      $region55: #{simple1dcnn_forward.3} parent=39 // pred_region
        %p5022 = scmp.lt.s32.totalorder %s20, 0
        %s5023 = scalar_select %p5022, %s20, 0
        %s5024 = smul.addr %s5023, 2
        %s5025 = scalar_lea.vmem %s5, %s5024
      $region56: #{simple1dcnn_forward.3} parent=39 // pred_fallthru
        _
    $region40: #{simple1dcnn_forward.3} parent=5 // pred_fallthru
      _
    %p5026 = scmp.le.s32.totalorder 2, %s11
    // Predicated region
    $region57: #{simple1dcnn_forward.3} parent=5 // pred_check
      %p5027 = pneg %p5026
    $region58: #{simple1dcnn_forward.3} parent=5 // pred_check_branch
      %5029 = sbr.rel (%p5027) target = $region60
    $region59: #{simple1dcnn_forward.3} parent=5 // pred_region
      %s5030 = ssub.s32 %s11, 2
    $region60: #{simple1dcnn_forward.3} parent=5 // pred_fallthru
      _
  $region6: #{simple1dcnn_forward.3} parent=0 // loop_footer
    %s15 = sadd.s32 1, %s11
  $region7: #{simple1dcnn_forward.3} parent=0 // loop_footer_branch
    %10 = sbr.rel target = $region3
  $region8: #{simple1dcnn_forward.3} parent=0 // loop_exit
    _

</llo_original>
